<compile_context>
chip_gen: v7x
topology: tpu7x:2x2x1
jax: 0.10.0
libtpu: 0.0.40
codegen_flags: <defaults>
</compile_context>

<pallas_src>
import functools

import numpy as np
import jax
import jax.numpy as jnp
from jax import lax
from jax.experimental import pallas as pl
from jax.experimental.pallas import tpu as pltpu

BN_EPS = 1e-5
LEAKY_SLOPE = 0.01
LSTM_HIDDEN = 64
LSTM_INPUT = 192
Y_LEN = 3


# ----------------------------------------------------------------------------
# In-kernel helpers
# ----------------------------------------------------------------------------
def _leaky(y):
    return jnp.where(y >= 0.0, y, LEAKY_SLOPE * y)


def _act(y, kind):
    return _leaky(y) if kind == "leaky" else jnp.tanh(y)


def _shift_rows(v, delta, fill, n_valid):
    """s[t] = v[t + delta] if 0 <= t + delta < n_valid else fill."""
    n = v.shape[0]
    rolled = pltpu.roll(v, shift=(-delta) % n, axis=0) if delta else v
    idx = lax.broadcasted_iota(jnp.int32, v.shape, 0)
    ok = jnp.logical_and(idx + delta >= 0, idx + delta <= n_valid - 1)
    return jnp.where(ok, rolled, fill)


# ----------------------------------------------------------------------------
# The fused kernel: conv1 + conv2 + conv3 + inception + LSTM + FC
# ----------------------------------------------------------------------------
def _deeplob_fused_kernel(
        x_ref,
        w10_ref, w11_ref, w12_ref, va_ref,
        w20_ref, w21_ref, w22_ref, vb_ref,
        w30_ref, w31_ref, w32_ref, vc_ref,
        went_ref, v192_ref, wi11_ref, wi21_ref, v64_ref,
        wih_ref, blstm_ref, whh_ref, wfc_ref, bfc_ref,
        o_ref, *, t_len, bb):
    f32 = jnp.float32
    tl = t_len
    t3 = tl - 18                       # valid LSTM sequence length
    hdim = LSTM_HIDDEN

    # Load every (small) weight once; reused across examples and W-slabs.
    w10 = w10_ref[...]; w11 = w11_ref[...]; w12 = w12_ref[...]; va = va_ref[...]
    w20 = w20_ref[...]; w21 = w21_ref[...]; w22 = w22_ref[...]; vb = vb_ref[...]
    w30 = w30_ref[...]; w31 = w31_ref[...]; w32 = w32_ref[...]; vc = vc_ref[...]
    went = went_ref[...]; v192 = v192_ref[...]
    wi11 = wi11_ref[...]; wi21 = wi21_ref[...]; v64 = v64_ref[...]
    wih = wih_ref[...]; blstm = blstm_ref[...]
    whh = whh_ref[...]; wfc = wfc_ref[...]; bfc = bfc_ref[...]

    def mm(a, w):
        # bf16 MXU matmul with f32 accumulation.
        return jnp.dot(a.astype(w.dtype), w, preferred_element_type=f32)

    def cba(a, w, v3, act):
        # conv(-as-matmul) -> +bias -> activation -> folded BatchNorm.
        z = mm(a, w) + v3[0:1, :]
        return _act(z, act) * v3[1:2, :] + v3[2:3, :]

    def tap_cba(a, w, v3, act, kh=4):
        # kh x 1 conv along time: taps are distance-1 sublane rolls (XLU).
        n = a.shape[0]
        taps = [a] + [pltpu.roll(a, shift=n - d, axis=0) for d in range(1, kh)]
        return cba(jnp.concatenate(taps, axis=1), w, v3, act)

    xp_list = []
    for b in range(bb):
        # ---------------- conv1 + conv2 (per W-slab; compute on full T rows,
        # rows beyond the per-layer valid count carry harmless garbage) -------
        slabs = []
        for g in range(5):
            xg = x_ref[b, g]                       # (T, 8): input cols 8g..8g+7
            y = cba(xg, w10, va[0:3], "leaky")     # (T, 128): 4 w-pos x 32 ch
            y = tap_cba(y, w11, va[3:6], "leaky")
            y = tap_cba(y, w12, va[6:9], "leaky")
            u = cba(y, w20, vb[0:3], "tanh")       # (T, 64): 2 w-pos x 32 ch
            u = tap_cba(u, w21, vb[3:6], "tanh")
            u = tap_cba(u, w22, vb[6:9], "tanh")
            slabs.append(u)
        u2 = jnp.concatenate(slabs, axis=1)        # (T, 320), lanes = (w, ci)

        # ---------------- conv3 ----------------
        y = cba(u2, w30, vc[0:3], "leaky")         # 1x10 conv: W collapses to 1
        y = tap_cba(y, w31, vc[3:6], "leaky")
        x3 = tap_cba(y, w32, vc[6:9], "leaky")     # (T, 32), valid rows: t3

        # ---------------- inception head ----------------
        pooled = jnp.maximum(
            jnp.maximum(_shift_rows(x3, -1, -jnp.inf, t3), x3),
            _shift_rows(x3, 1, -jnp.inf, t3))      # MaxPool(3,1) 'same'
        ent_in = jnp.concatenate([x3, pooled], axis=1)          # (T, 64)
        y0 = cba(ent_in, went, v192, "leaky")                   # fused 1x1 x3
        b1, b2, b3 = y0[:, 0:64], y0[:, 64:128], y0[:, 128:192]

        p1 = jnp.concatenate(
            [_shift_rows(b1, d, 0.0, t3) for d in (-1, 0, 1)], axis=1)
        z1 = cba(p1, wi11, v64[0:3], "leaky")                   # 3x1 'same'
        p2 = jnp.concatenate(
            [_shift_rows(b2, d, 0.0, t3) for d in (-2, -1, 0, 1, 2)], axis=1)
        z2 = cba(p2, wi21, v64[3:6], "leaky")                   # 5x1 'same'
        z = jnp.concatenate([z1, z2, b3], axis=1)               # (T, 192)

        # Hoisted LSTM input projection -> lane-dense (T, 256) gates input.
        xp_list.append(mm(z, wih) + blstm)

    # ---------------- LSTM recurrence + FC (batched over the bb examples) ----
    h = jnp.zeros((bb, hdim), f32)
    c = jnp.zeros((bb, hdim), f32)
    lane = lax.broadcasted_iota(jnp.int32, (bb, 4 * hdim), 1)   # hoisted
    is_g = jnp.logical_and(lane >= 2 * hdim, lane < 3 * hdim)
    for t in range(t3):
        xt = jnp.concatenate([xp_list[i][t:t + 1, :] for i in range(bb)], axis=0)
        gates = xt + jnp.dot(h, whh, preferred_element_type=f32)
        a = jnp.where(is_g, jnp.tanh(gates), jax.nn.sigmoid(gates))
        i_g = a[:, 0 * hdim:1 * hdim]
        f_g = a[:, 1 * hdim:2 * hdim]
        g_g = a[:, 2 * hdim:3 * hdim]
        o_g = a[:, 3 * hdim:4 * hdim]
        c = f_g * c + i_g * g_g
        h = o_g * jnp.tanh(c)

    o_ref[0] = jnp.dot(h, wfc, preferred_element_type=f32) + bfc


# ----------------------------------------------------------------------------
# Weight / BN packing helpers (run once at trace time, outside the kernel)
# ----------------------------------------------------------------------------
def _fold_bn(pp):
    sc = pp["gamma"] / jnp.sqrt(pp["var"] + BN_EPS)
    sh = pp["beta"] - pp["mean"] * sc
    return sc, sh


def _vec_pack(layers, reps=1):
    rows = []
    for pp in layers:
        sc, sh = _fold_bn(pp)
        rows += [jnp.tile(pp["b"], reps), jnp.tile(sc, reps), jnp.tile(sh, reps)]
    return jnp.stack(rows, axis=0)


def _tap_weight(w):
    # (Cout, Cin, kh, 1) -> (kh*Cin, Cout), row = dh*Cin + ci
    co, ci, kh, _ = w.shape
    return jnp.transpose(w[:, :, :, 0], (2, 1, 0)).reshape(kh * ci, co)


def _wdim_weight(w):
    # (Cout, Cin, 1, kw) -> (kw*Cin, Cout), row = dw*Cin + ci
    co, ci, _, kw = w.shape
    return jnp.transpose(w[:, :, 0, :], (2, 1, 0)).reshape(kw * ci, co)


def _pack_tap_wide(w, nw):
    # kh x 1 conv weight shared over nw packed W positions -> block-diagonal
    # (kh*nw*Cin, nw*Cout): rows = (dh, ws, ci), cols = (ws, co).
    co, ci, kh, _ = w.shape
    wt = jnp.transpose(w[:, :, :, 0], (2, 1, 0))                 # (kh, ci, co)
    eye = jnp.eye(nw, dtype=w.dtype)
    big = wt[:, None, :, None, :] * eye[None, :, None, :, None]  # kh,nw,ci,nw,co
    return big.reshape(kh * nw * ci, nw * co)


def _pack_conv1_0(w):
    # Conv(1->32,(1,2),stride(1,2)) over a slab of 8 input cols -> (8, 128):
    # out lanes = (ws in 0..3, co); input lane 2*ws+k carries tap k.
    wv = w[:, 0, 0, :]                                           # (32, 2)
    out = jnp.zeros((8, 128), w.dtype)
    for ws in range(4):
        for k in range(2):
            out = out.at[2 * ws + k, ws * 32:(ws + 1) * 32].set(wv[:, k])
    return out


def _pack_conv2_0(w):
    # Conv(32->32,(1,2),stride(1,2)) over a slab of 4 W positions -> (128, 64):
    # in lanes = (ws in 0..3, ci), out lanes = (p in 0..1, co), ws = 2p + k.
    wk = jnp.transpose(w[:, :, 0, :], (2, 1, 0))                 # (2, ci, co)
    out = jnp.zeros((128, 64), w.dtype)
    for p_ in range(2):
        for k in range(2):
            ws = 2 * p_ + k
            out = out.at[ws * 32:(ws + 1) * 32, p_ * 32:(p_ + 1) * 32].set(wk[k])
    return out


def _pick_bb(batch):
    """Batch-fold while keeping >= 2 grid steps (v7x has 2 TensorCores)."""
    if batch == 1:
        return 1
    for bb in (8, 4, 2, 1):
        if batch % bb == 0 and batch // bb >= 2:
            return bb
    return 1


# ----------------------------------------------------------------------------
# Forward pass
# ----------------------------------------------------------------------------
def deeplob_forward_pallas(x, p, y_len):
    B, _, T, W0 = x.shape
    assert W0 == 40, "deeplob requires 40 LOB features"
    assert T >= 19, "need T - 18 >= 1 for the LSTM sequence"
    f32, bf16 = jnp.float32, jnp.bfloat16

    bb = _pick_bb(B)
    nblk = B // bb

    # Input: 5 slabs of 8 W columns -> (B, 5, T, 8); every width-direction conv
    # and stride-2 compaction stays inside a single slab.
    xs = jnp.transpose(x[:, 0].reshape(B, T, 5, 8), (0, 2, 1, 3))

    # conv1 block (4 W positions packed per lane group -> 128-lane tiles)
    w10 = _pack_conv1_0(p["c1_0"]["w"]).astype(bf16)             # (8, 128)
    w11 = _pack_tap_wide(p["c1_1"]["w"], 4).astype(bf16)         # (512, 128)
    w12 = _pack_tap_wide(p["c1_2"]["w"], 4).astype(bf16)
    va = _vec_pack([p["c1_0"], p["c1_1"], p["c1_2"]], reps=4)    # (9, 128)

    # conv2 block (2 W positions per lane group -> 64-lane tiles)
    w20 = _pack_conv2_0(p["c2_0"]["w"]).astype(bf16)             # (128, 64)
    w21 = _pack_tap_wide(p["c2_1"]["w"], 2).astype(bf16)         # (256, 64)
    w22 = _pack_tap_wide(p["c2_2"]["w"], 2).astype(bf16)
    vb = _vec_pack([p["c2_0"], p["c2_1"], p["c2_2"]], reps=2)    # (9, 64)

    # conv3 block
    w30 = _wdim_weight(p["c3_0"]["w"]).astype(bf16)              # (320, 32)
    w31 = _tap_weight(p["c3_1"]["w"]).astype(bf16)               # (128, 32)
    w32 = _tap_weight(p["c3_2"]["w"]).astype(bf16)
    vc = _vec_pack([p["c3_0"], p["c3_1"], p["c3_2"]])            # (9, 32)

    # inception: the three 1x1 entry convs fused into one K=64 / N=192 matmul
    wi10 = p["i1_0"]["w"][:, :, 0, 0].T
    wi20 = p["i2_0"]["w"][:, :, 0, 0].T
    wi30 = p["i3_0"]["w"][:, :, 0, 0].T
    went = jnp.zeros((64, 192), f32)
    went = went.at[0:32, 0:64].set(wi10)
    went = went.at[0:32, 64:128].set(wi20)
    went = went.at[32:64, 128:192].set(wi30)
    went = went.astype(bf16)
    sc1, sh1 = _fold_bn(p["i1_0"])
    sc2, sh2 = _fold_bn(p["i2_0"])
    sc3, sh3 = _fold_bn(p["i3_0"])
    v192 = jnp.stack([
        jnp.concatenate([p["i1_0"]["b"], p["i2_0"]["b"], p["i3_0"]["b"]]),
        jnp.concatenate([sc1, sc2, sc3]),
        jnp.concatenate([sh1, sh2, sh3]),
    ], axis=0)                                                   # (3, 192)
    wi11 = _tap_weight(p["i1_1"]["w"]).astype(bf16)              # (192, 64)
    wi21 = _tap_weight(p["i2_1"]["w"]).astype(bf16)              # (320, 64)
    v64 = _vec_pack([p["i1_1"], p["i2_1"]])                      # (6, 64)

    # LSTM + FC.  W_ih projection is bf16 (hoisted, off the serial path);
    # the recurrent matmul and FC stay f32 (tiny, latency bound).
    wih = p["lstm"]["wih"].astype(bf16)                          # (192, 256)
    blstm = p["lstm"]["b"].reshape(1, 4 * LSTM_HIDDEN)
    whh = p["lstm"]["whh"]
    wfc = p["fc"]["w"]
    bfc = p["fc"]["b"].reshape(1, y_len)

    weights = [w10, w11, w12, va, w20, w21, w22, vb,
               w30, w31, w32, vc, went, v192, wi11, wi21, v64,
               wih, blstm, whh, wfc, bfc]

    def full_spec(a):
        return pl.BlockSpec(a.shape, lambda i: (0,) * a.ndim)

    out = pl.pallas_call(
        functools.partial(_deeplob_fused_kernel, t_len=T, bb=bb),
        grid=(nblk,),
        in_specs=[pl.BlockSpec((bb, 5, T, 8), lambda i: (i, 0, 0, 0))]
                 + [full_spec(w) for w in weights],
        out_specs=pl.BlockSpec((1, bb, y_len), lambda i: (i, 0, 0)),
        out_shape=jax.ShapeDtypeStruct((nblk, bb, y_len), f32),
        compiler_params=pltpu.CompilerParams(
            dimension_semantics=("parallel",),
            vmem_limit_bytes=32 * 1024 * 1024),
    )(xs, *weights)
    return out.reshape(B, y_len)


# ----------------------------------------------------------------------------
# Pure-JAX reference (f32) for the correctness check of the Pallas path
# ----------------------------------------------------------------------------
def deeplob_forward_ref(x, p, y_len):
    def cba(x, pp, stride=(1, 1), padding="VALID", act="leaky"):
        y = lax.conv_general_dilated(
            x, pp["w"], window_strides=stride, padding=padding,
            dimension_numbers=("NCHW", "OIHW", "NCHW"))
        y = y + pp["b"][None, :, None, None]
        y = jnp.where(y >= 0.0, y, LEAKY_SLOPE * y) if act == "leaky" else jnp.tanh(y)
        sc = pp["gamma"] / jnp.sqrt(pp["var"] + BN_EPS)
        sh = pp["beta"] - pp["mean"] * sc
        return y * sc[None, :, None, None] + sh[None, :, None, None]

    x = cba(x, p["c1_0"], stride=(1, 2)); x = cba(x, p["c1_1"]); x = cba(x, p["c1_2"])
    x = cba(x, p["c2_0"], stride=(1, 2), act="tanh")
    x = cba(x, p["c2_1"], act="tanh"); x = cba(x, p["c2_2"], act="tanh")
    x = cba(x, p["c3_0"]); x = cba(x, p["c3_1"]); x = cba(x, p["c3_2"])
    a = cba(x, p["i1_0"]); a = cba(a, p["i1_1"], padding="SAME")
    b = cba(x, p["i2_0"]); b = cba(b, p["i2_1"], padding="SAME")
    c = lax.reduce_window(x, -jnp.inf, lax.max, (1, 1, 3, 1), (1, 1, 1, 1),
                          [(0, 0), (0, 0), (1, 1), (0, 0)])
    c = cba(c, p["i3_0"])
    z = jnp.concatenate([a, b, c], axis=1)
    seq = z[:, :, :, 0].transpose(0, 2, 1)          # (B, T3, 192)

    wih, whh, bb = p["lstm"]["wih"], p["lstm"]["whh"], p["lstm"]["b"]

    def step(carry, xt):
        h, cc = carry
        gates = xt @ wih + h @ whh + bb
        i_g, f_g, g_g, o_g = jnp.split(gates, 4, axis=-1)
        i_g = jax.nn.sigmoid(i_g); f_g = jax.nn.sigmoid(f_g)
        g_g = jnp.tanh(g_g); o_g = jax.nn.sigmoid(o_g)
        cc = f_g * cc + i_g * g_g
        h = o_g * jnp.tanh(cc)
        return (h, cc), None

    Bn = seq.shape[0]
    h0 = jnp.zeros((Bn, LSTM_HIDDEN), jnp.float32)
    c0 = jnp.zeros((Bn, LSTM_HIDDEN), jnp.float32)
    (h, _), _ = lax.scan(step, (h0, c0), seq.transpose(1, 0, 2))
    return h @ p["fc"]["w"] + p["fc"]["b"]


# ----------------------------------------------------------------------------
# Deterministic parameter init (shapes taken from the nn.Module.__init__)
# ----------------------------------------------------------------------------
def conv_params(key, cin, cout, kh, kw):
    k1, k2, k3, k4, k5, k6 = jax.random.split(key, 6)
    fan = cin * kh * kw
    return dict(
        w=jax.random.normal(k1, (cout, cin, kh, kw), jnp.float32) / np.sqrt(fan),
        b=0.1 * jax.random.normal(k2, (cout,), jnp.float32),
        gamma=1.0 + 0.1 * jax.random.normal(k3, (cout,), jnp.float32),
        beta=0.1 * jax.random.normal(k4, (cout,), jnp.float32),
        mean=0.1 * jax.random.normal(k5, (cout,), jnp.float32),
        var=jax.random.uniform(k6, (cout,), jnp.float32, 0.5, 1.5),
    )


def init_params(key, y_len):
    keys = iter(jax.random.split(key, 20))
    p = {}
    p["c1_0"] = conv_params(next(keys), 1, 32, 1, 2)
    p["c1_1"] = conv_params(next(keys), 32, 32, 4, 1)
    p["c1_2"] = conv_params(next(keys), 32, 32, 4, 1)
    p["c2_0"] = conv_params(next(keys), 32, 32, 1, 2)
    p["c2_1"] = conv_params(next(keys), 32, 32, 4, 1)
    p["c2_2"] = conv_params(next(keys), 32, 32, 4, 1)
    p["c3_0"] = conv_params(next(keys), 32, 32, 1, 10)
    p["c3_1"] = conv_params(next(keys), 32, 32, 4, 1)
    p["c3_2"] = conv_params(next(keys), 32, 32, 4, 1)
    p["i1_0"] = conv_params(next(keys), 32, 64, 1, 1)
    p["i1_1"] = conv_params(next(keys), 64, 64, 3, 1)
    p["i2_0"] = conv_params(next(keys), 32, 64, 1, 1)
    p["i2_1"] = conv_params(next(keys), 64, 64, 5, 1)
    p["i3_0"] = conv_params(next(keys), 32, 64, 1, 1)
    k1, k2, k3, k4, k5 = jax.random.split(next(keys), 5)
    D, Hh = LSTM_INPUT, LSTM_HIDDEN
    p["lstm"] = dict(  # gate order i,f,g,o (PyTorch); b = b_ih + b_hh combined
        wih=jax.random.normal(k1, (D, 4 * Hh), jnp.float32) / np.sqrt(D),
        whh=jax.random.normal(k2, (Hh, 4 * Hh), jnp.float32) / np.sqrt(Hh),
        b=0.1 * jax.random.normal(k3, (4 * Hh,), jnp.float32),
    )
    p["fc"] = dict(
        w=jax.random.normal(k4, (Hh, y_len), jnp.float32) / np.sqrt(Hh),
        b=0.1 * jax.random.normal(k5, (y_len,), jnp.float32),
    )
    return p


# ----------------------------------------------------------------------------
if __name__ == "__main__":
    key = jax.random.PRNGKey(0)
    kx, kp = jax.random.split(key)

    # W must be 40 (40 -> 20 -> 10 -> 1 through the width-reducing convs);
    # T=26 gives an LSTM sequence length of 26 - 18 = 8.
    B, T, W = 2, 26, 40
    x = jax.random.normal(kx, (B, 1, T, W), jnp.float32)
    params = init_params(kp, Y_LEN)

    fwd = jax.jit(functools.partial(deeplob_forward_pallas, y_len=Y_LEN))
    out = jax.block_until_ready(fwd(x, params))

    ref = jax.jit(functools.partial(deeplob_forward_ref, y_len=Y_LEN))(x, params)
    ref = jax.block_until_ready(ref)

    assert out.shape == (B, Y_LEN)
    err = float(np.max(np.abs(np.asarray(out) - np.asarray(ref))))
    # Tolerance accounts for the bf16 MXU operands in the conv/inception stack
    # (accumulation and the serial LSTM recurrence stay f32).
    assert np.allclose(np.asarray(out), np.asarray(ref), atol=4e-2, rtol=4e-2), (
        "mismatch: max abs diff %g" % err)

    print("KERNEL_OK")
</pallas_src>

<mosaic_0001>
module attributes {stable_mosaic.version = 11 : i64} {
  func.func @_deeplob_fused_kernel(%arg0: i32, %arg1: memref<1x5x26x8xf32, #tpu.memory_space<vmem>>, %arg2: memref<8x128xbf16, #tpu.memory_space<vmem>>, %arg3: memref<512x128xbf16, #tpu.memory_space<vmem>>, %arg4: memref<512x128xbf16, #tpu.memory_space<vmem>>, %arg5: memref<9x128xf32, #tpu.memory_space<vmem>>, %arg6: memref<128x64xbf16, #tpu.memory_space<vmem>>, %arg7: memref<256x64xbf16, #tpu.memory_space<vmem>>, %arg8: memref<256x64xbf16, #tpu.memory_space<vmem>>, %arg9: memref<9x64xf32, #tpu.memory_space<vmem>>, %arg10: memref<320x32xbf16, #tpu.memory_space<vmem>>, %arg11: memref<128x32xbf16, #tpu.memory_space<vmem>>, %arg12: memref<128x32xbf16, #tpu.memory_space<vmem>>, %arg13: memref<9x32xf32, #tpu.memory_space<vmem>>, %arg14: memref<64x192xbf16, #tpu.memory_space<vmem>>, %arg15: memref<3x192xf32, #tpu.memory_space<vmem>>, %arg16: memref<192x64xbf16, #tpu.memory_space<vmem>>, %arg17: memref<320x64xbf16, #tpu.memory_space<vmem>>, %arg18: memref<6x64xf32, #tpu.memory_space<vmem>>, %arg19: memref<192x256xbf16, #tpu.memory_space<vmem>>, %arg20: memref<1x256xf32, #tpu.memory_space<vmem>>, %arg21: memref<64x256xf32, #tpu.memory_space<vmem>>, %arg22: memref<64x3xf32, #tpu.memory_space<vmem>>, %arg23: memref<1x3xf32, #tpu.memory_space<vmem>>, %arg24: memref<1x1x3xf32, #tpu.memory_space<vmem>>) attributes {dimension_semantics = [#tpu.dimension_semantics<parallel>], iteration_bounds = array<i64: 2>, scalar_prefetch = 0 : i64, scratch_operands = 0 : i64, tpu.core_type = #tpu.core_type<tc>, window_params = [{transform_indices = @transform_0, window_bounds = array<i64: 1, 5, 26, 8>}, {pipeline_mode = #tpu.pipeline_mode<synchronous>, transform_indices = @transform_1, window_bounds = array<i64: 8, 128>}, {pipeline_mode = #tpu.pipeline_mode<synchronous>, transform_indices = @transform_2, window_bounds = array<i64: 512, 128>}, {pipeline_mode = #tpu.pipeline_mode<synchronous>, transform_indices = @transform_3, window_bounds = array<i64: 512, 128>}, {pipeline_mode = #tpu.pipeline_mode<synchronous>, transform_indices = @transform_4, window_bounds = array<i64: 9, 128>}, {pipeline_mode = #tpu.pipeline_mode<synchronous>, transform_indices = @transform_5, window_bounds = array<i64: 128, 64>}, {pipeline_mode = #tpu.pipeline_mode<synchronous>, transform_indices = @transform_6, window_bounds = array<i64: 256, 64>}, {pipeline_mode = #tpu.pipeline_mode<synchronous>, transform_indices = @transform_7, window_bounds = array<i64: 256, 64>}, {pipeline_mode = #tpu.pipeline_mode<synchronous>, transform_indices = @transform_8, window_bounds = array<i64: 9, 64>}, {pipeline_mode = #tpu.pipeline_mode<synchronous>, transform_indices = @transform_9, window_bounds = array<i64: 320, 32>}, {pipeline_mode = #tpu.pipeline_mode<synchronous>, transform_indices = @transform_10, window_bounds = array<i64: 128, 32>}, {pipeline_mode = #tpu.pipeline_mode<synchronous>, transform_indices = @transform_11, window_bounds = array<i64: 128, 32>}, {pipeline_mode = #tpu.pipeline_mode<synchronous>, transform_indices = @transform_12, window_bounds = array<i64: 9, 32>}, {pipeline_mode = #tpu.pipeline_mode<synchronous>, transform_indices = @transform_13, window_bounds = array<i64: 64, 192>}, {pipeline_mode = #tpu.pipeline_mode<synchronous>, transform_indices = @transform_14, window_bounds = array<i64: 3, 192>}, {pipeline_mode = #tpu.pipeline_mode<synchronous>, transform_indices = @transform_15, window_bounds = array<i64: 192, 64>}, {pipeline_mode = #tpu.pipeline_mode<synchronous>, transform_indices = @transform_16, window_bounds = array<i64: 320, 64>}, {pipeline_mode = #tpu.pipeline_mode<synchronous>, transform_indices = @transform_17, window_bounds = array<i64: 6, 64>}, {pipeline_mode = #tpu.pipeline_mode<synchronous>, transform_indices = @transform_18, window_bounds = array<i64: 192, 256>}, {pipeline_mode = #tpu.pipeline_mode<synchronous>, transform_indices = @transform_19, window_bounds = array<i64: 1, 256>}, {pipeline_mode = #tpu.pipeline_mode<synchronous>, transform_indices = @transform_20, window_bounds = array<i64: 64, 256>}, {pipeline_mode = #tpu.pipeline_mode<synchronous>, transform_indices = @transform_21, window_bounds = array<i64: 64, 3>}, {pipeline_mode = #tpu.pipeline_mode<synchronous>, transform_indices = @transform_22, window_bounds = array<i64: 1, 3>}, {transform_indices = @transform_23, window_bounds = array<i64: 1, 1, 3>}]} {
    %c0 = arith.constant 0 : index
    %c0_0 = arith.constant 0 : index
    %0 = vector.load %arg2[%c0, %c0_0] : memref<8x128xbf16, #tpu.memory_space<vmem>>, vector<8x128xbf16>
    %c0_1 = arith.constant 0 : index
    %c0_2 = arith.constant 0 : index
    %1 = vector.load %arg3[%c0_1, %c0_2] : memref<512x128xbf16, #tpu.memory_space<vmem>>, vector<512x128xbf16>
    %c0_3 = arith.constant 0 : index
    %c0_4 = arith.constant 0 : index
    %2 = vector.load %arg4[%c0_3, %c0_4] : memref<512x128xbf16, #tpu.memory_space<vmem>>, vector<512x128xbf16>
    %c0_5 = arith.constant 0 : index
    %c0_6 = arith.constant 0 : index
    %3 = vector.load %arg5[%c0_5, %c0_6] : memref<9x128xf32, #tpu.memory_space<vmem>>, vector<9x128xf32>
    %c0_7 = arith.constant 0 : index
    %c0_8 = arith.constant 0 : index
    %4 = vector.load %arg6[%c0_7, %c0_8] : memref<128x64xbf16, #tpu.memory_space<vmem>>, vector<128x64xbf16>
    %c0_9 = arith.constant 0 : index
    %c0_10 = arith.constant 0 : index
    %5 = vector.load %arg7[%c0_9, %c0_10] : memref<256x64xbf16, #tpu.memory_space<vmem>>, vector<256x64xbf16>
    %c0_11 = arith.constant 0 : index
    %c0_12 = arith.constant 0 : index
    %6 = vector.load %arg8[%c0_11, %c0_12] : memref<256x64xbf16, #tpu.memory_space<vmem>>, vector<256x64xbf16>
    %c0_13 = arith.constant 0 : index
    %c0_14 = arith.constant 0 : index
    %7 = vector.load %arg9[%c0_13, %c0_14] : memref<9x64xf32, #tpu.memory_space<vmem>>, vector<9x64xf32>
    %c0_15 = arith.constant 0 : index
    %c0_16 = arith.constant 0 : index
    %8 = vector.load %arg10[%c0_15, %c0_16] : memref<320x32xbf16, #tpu.memory_space<vmem>>, vector<320x32xbf16>
    %c0_17 = arith.constant 0 : index
    %c0_18 = arith.constant 0 : index
    %9 = vector.load %arg11[%c0_17, %c0_18] : memref<128x32xbf16, #tpu.memory_space<vmem>>, vector<128x32xbf16>
    %c0_19 = arith.constant 0 : index
    %c0_20 = arith.constant 0 : index
    %10 = vector.load %arg12[%c0_19, %c0_20] : memref<128x32xbf16, #tpu.memory_space<vmem>>, vector<128x32xbf16>
    %c0_21 = arith.constant 0 : index
    %c0_22 = arith.constant 0 : index
    %11 = vector.load %arg13[%c0_21, %c0_22] : memref<9x32xf32, #tpu.memory_space<vmem>>, vector<9x32xf32>
    %c0_23 = arith.constant 0 : index
    %c0_24 = arith.constant 0 : index
    %12 = vector.load %arg14[%c0_23, %c0_24] : memref<64x192xbf16, #tpu.memory_space<vmem>>, vector<64x192xbf16>
    %c0_25 = arith.constant 0 : index
    %c0_26 = arith.constant 0 : index
    %13 = vector.load %arg15[%c0_25, %c0_26] : memref<3x192xf32, #tpu.memory_space<vmem>>, vector<3x192xf32>
    %c0_27 = arith.constant 0 : index
    %c0_28 = arith.constant 0 : index
    %14 = vector.load %arg16[%c0_27, %c0_28] : memref<192x64xbf16, #tpu.memory_space<vmem>>, vector<192x64xbf16>
    %c0_29 = arith.constant 0 : index
    %c0_30 = arith.constant 0 : index
    %15 = vector.load %arg17[%c0_29, %c0_30] : memref<320x64xbf16, #tpu.memory_space<vmem>>, vector<320x64xbf16>
    %c0_31 = arith.constant 0 : index
    %c0_32 = arith.constant 0 : index
    %16 = vector.load %arg18[%c0_31, %c0_32] : memref<6x64xf32, #tpu.memory_space<vmem>>, vector<6x64xf32>
    %c0_33 = arith.constant 0 : index
    %c0_34 = arith.constant 0 : index
    %17 = vector.load %arg19[%c0_33, %c0_34] : memref<192x256xbf16, #tpu.memory_space<vmem>>, vector<192x256xbf16>
    %c0_35 = arith.constant 0 : index
    %c0_36 = arith.constant 0 : index
    %18 = vector.load %arg20[%c0_35, %c0_36] : memref<1x256xf32, #tpu.memory_space<vmem>>, vector<1x256xf32>
    %c0_37 = arith.constant 0 : index
    %c0_38 = arith.constant 0 : index
    %19 = vector.load %arg21[%c0_37, %c0_38] : memref<64x256xf32, #tpu.memory_space<vmem>>, vector<64x256xf32>
    %c0_39 = arith.constant 0 : index
    %c0_40 = arith.constant 0 : index
    %20 = vector.load %arg22[%c0_39, %c0_40] : memref<64x3xf32, #tpu.memory_space<vmem>>, vector<64x3xf32>
    %c0_41 = arith.constant 0 : index
    %c0_42 = arith.constant 0 : index
    %21 = vector.load %arg23[%c0_41, %c0_42] : memref<1x3xf32, #tpu.memory_space<vmem>>, vector<1x3xf32>
    %c0_43 = arith.constant 0 : index
    %c0_44 = arith.constant 0 : index
    %c0_45 = arith.constant 0 : index
    %c0_46 = arith.constant 0 : index
    %22 = vector.load %arg1[%c0_43, %c0_44, %c0_45, %c0_46] : memref<1x5x26x8xf32, #tpu.memory_space<vmem>>, vector<1x1x26x8xf32>
    %23 = vector.shape_cast %22 : vector<1x1x26x8xf32> to vector<26x8xf32>
    %24 = vector.extract_strided_slice %3 {offsets = [0, 0], sizes = [3, 128], strides = [1, 1]} : vector<9x128xf32> to vector<3x128xf32>
    %25 = arith.truncf %23 : vector<26x8xf32> to vector<26x8xbf16>
    %cst = arith.constant dense<0.000000e+00> : vector<26x128xf32>
    %26 = tpu.matmul %25, %0, %cst {dimension_numbers = #tpu.dot_dimension_numbers<[1], [0], [0], [1], [0, 0, 1, 1], [], []>} : vector<26x8xbf16>, vector<8x128xbf16>, vector<26x128xf32> -> vector<26x128xf32>
    %27 = vector.extract_strided_slice %24 {offsets = [0, 0], sizes = [1, 128], strides = [1, 1]} : vector<3x128xf32> to vector<1x128xf32>
    %28 = vector.broadcast %27 : vector<1x128xf32> to vector<26x128xf32>
    %29 = arith.addf %26, %28 : vector<26x128xf32>
    %cst_47 = arith.constant 0.000000e+00 : f32
    %30 = vector.broadcast %cst_47 : f32 to vector<26x128xf32>
    %31 = arith.cmpf oge, %29, %30 : vector<26x128xf32>
    %cst_48 = arith.constant 0.00999999977 : f32
    %32 = vector.broadcast %cst_48 : f32 to vector<26x128xf32>
    %33 = arith.mulf %32, %29 : vector<26x128xf32>
    %34 = arith.select %31, %29, %33 : vector<26x128xi1>, vector<26x128xf32>
    %35 = vector.extract_strided_slice %24 {offsets = [1, 0], sizes = [1, 128], strides = [1, 1]} : vector<3x128xf32> to vector<1x128xf32>
    %36 = vector.broadcast %35 : vector<1x128xf32> to vector<26x128xf32>
    %37 = arith.mulf %34, %36 : vector<26x128xf32>
    %38 = vector.extract_strided_slice %24 {offsets = [2, 0], sizes = [1, 128], strides = [1, 1]} : vector<3x128xf32> to vector<1x128xf32>
    %39 = vector.broadcast %38 : vector<1x128xf32> to vector<26x128xf32>
    %40 = arith.addf %37, %39 : vector<26x128xf32>
    %41 = vector.extract_strided_slice %3 {offsets = [3, 0], sizes = [3, 128], strides = [1, 1]} : vector<9x128xf32> to vector<3x128xf32>
    %c25_i32 = arith.constant 25 : i32
    %42 = tpu.dynamic_rotate %40 by %c25_i32 dim 0 : vector<26x128xf32>, i32 -> vector<26x128xf32>
    %c24_i32 = arith.constant 24 : i32
    %43 = tpu.dynamic_rotate %40 by %c24_i32 dim 0 : vector<26x128xf32>, i32 -> vector<26x128xf32>
    %c23_i32 = arith.constant 23 : i32
    %44 = tpu.dynamic_rotate %40 by %c23_i32 dim 0 : vector<26x128xf32>, i32 -> vector<26x128xf32>
    %45 = tpu.concatenate %40, %42, %43, %44 in 1 : vector<26x128xf32>, vector<26x128xf32>, vector<26x128xf32>, vector<26x128xf32> -> vector<26x512xf32>
    %46 = arith.truncf %45 : vector<26x512xf32> to vector<26x512xbf16>
    %cst_49 = arith.constant dense<0.000000e+00> : vector<26x128xf32>
    %47 = tpu.matmul %46, %1, %cst_49 {dimension_numbers = #tpu.dot_dimension_numbers<[1], [0], [0], [1], [0, 0, 1, 1], [], []>} : vector<26x512xbf16>, vector<512x128xbf16>, vector<26x128xf32> -> vector<26x128xf32>
    %48 = vector.extract_strided_slice %41 {offsets = [0, 0], sizes = [1, 128], strides = [1, 1]} : vector<3x128xf32> to vector<1x128xf32>
    %49 = vector.broadcast %48 : vector<1x128xf32> to vector<26x128xf32>
    %50 = arith.addf %47, %49 : vector<26x128xf32>
    %cst_50 = arith.constant 0.000000e+00 : f32
    %51 = vector.broadcast %cst_50 : f32 to vector<26x128xf32>
    %52 = arith.cmpf oge, %50, %51 : vector<26x128xf32>
    %cst_51 = arith.constant 0.00999999977 : f32
    %53 = vector.broadcast %cst_51 : f32 to vector<26x128xf32>
    %54 = arith.mulf %53, %50 : vector<26x128xf32>
    %55 = arith.select %52, %50, %54 : vector<26x128xi1>, vector<26x128xf32>
    %56 = vector.extract_strided_slice %41 {offsets = [1, 0], sizes = [1, 128], strides = [1, 1]} : vector<3x128xf32> to vector<1x128xf32>
    %57 = vector.broadcast %56 : vector<1x128xf32> to vector<26x128xf32>
    %58 = arith.mulf %55, %57 : vector<26x128xf32>
    %59 = vector.extract_strided_slice %41 {offsets = [2, 0], sizes = [1, 128], strides = [1, 1]} : vector<3x128xf32> to vector<1x128xf32>
    %60 = vector.broadcast %59 : vector<1x128xf32> to vector<26x128xf32>
    %61 = arith.addf %58, %60 : vector<26x128xf32>
    %62 = vector.extract_strided_slice %3 {offsets = [6, 0], sizes = [3, 128], strides = [1, 1]} : vector<9x128xf32> to vector<3x128xf32>
    %c25_i32_52 = arith.constant 25 : i32
    %63 = tpu.dynamic_rotate %61 by %c25_i32_52 dim 0 : vector<26x128xf32>, i32 -> vector<26x128xf32>
    %c24_i32_53 = arith.constant 24 : i32
    %64 = tpu.dynamic_rotate %61 by %c24_i32_53 dim 0 : vector<26x128xf32>, i32 -> vector<26x128xf32>
    %c23_i32_54 = arith.constant 23 : i32
    %65 = tpu.dynamic_rotate %61 by %c23_i32_54 dim 0 : vector<26x128xf32>, i32 -> vector<26x128xf32>
    %66 = tpu.concatenate %61, %63, %64, %65 in 1 : vector<26x128xf32>, vector<26x128xf32>, vector<26x128xf32>, vector<26x128xf32> -> vector<26x512xf32>
    %67 = arith.truncf %66 : vector<26x512xf32> to vector<26x512xbf16>
    %cst_55 = arith.constant dense<0.000000e+00> : vector<26x128xf32>
    %68 = tpu.matmul %67, %2, %cst_55 {dimension_numbers = #tpu.dot_dimension_numbers<[1], [0], [0], [1], [0, 0, 1, 1], [], []>} : vector<26x512xbf16>, vector<512x128xbf16>, vector<26x128xf32> -> vector<26x128xf32>
    %69 = vector.extract_strided_slice %62 {offsets = [0, 0], sizes = [1, 128], strides = [1, 1]} : vector<3x128xf32> to vector<1x128xf32>
    %70 = vector.broadcast %69 : vector<1x128xf32> to vector<26x128xf32>
    %71 = arith.addf %68, %70 : vector<26x128xf32>
    %cst_56 = arith.constant 0.000000e+00 : f32
    %72 = vector.broadcast %cst_56 : f32 to vector<26x128xf32>
    %73 = arith.cmpf oge, %71, %72 : vector<26x128xf32>
    %cst_57 = arith.constant 0.00999999977 : f32
    %74 = vector.broadcast %cst_57 : f32 to vector<26x128xf32>
    %75 = arith.mulf %74, %71 : vector<26x128xf32>
    %76 = arith.select %73, %71, %75 : vector<26x128xi1>, vector<26x128xf32>
    %77 = vector.extract_strided_slice %62 {offsets = [1, 0], sizes = [1, 128], strides = [1, 1]} : vector<3x128xf32> to vector<1x128xf32>
    %78 = vector.broadcast %77 : vector<1x128xf32> to vector<26x128xf32>
    %79 = arith.mulf %76, %78 : vector<26x128xf32>
    %80 = vector.extract_strided_slice %62 {offsets = [2, 0], sizes = [1, 128], strides = [1, 1]} : vector<3x128xf32> to vector<1x128xf32>
    %81 = vector.broadcast %80 : vector<1x128xf32> to vector<26x128xf32>
    %82 = arith.addf %79, %81 : vector<26x128xf32>
    %83 = vector.extract_strided_slice %7 {offsets = [0, 0], sizes = [3, 64], strides = [1, 1]} : vector<9x64xf32> to vector<3x64xf32>
    %84 = arith.truncf %82 : vector<26x128xf32> to vector<26x128xbf16>
    %cst_58 = arith.constant dense<0.000000e+00> : vector<26x64xf32>
    %85 = tpu.matmul %84, %4, %cst_58 {dimension_numbers = #tpu.dot_dimension_numbers<[1], [0], [0], [1], [0, 0, 1, 1], [], []>} : vector<26x128xbf16>, vector<128x64xbf16>, vector<26x64xf32> -> vector<26x64xf32>
    %86 = vector.extract_strided_slice %83 {offsets = [0, 0], sizes = [1, 64], strides = [1, 1]} : vector<3x64xf32> to vector<1x64xf32>
    %87 = vector.broadcast %86 : vector<1x64xf32> to vector<26x64xf32>
    %88 = arith.addf %85, %87 : vector<26x64xf32>
    %89 = math.tanh %88 : vector<26x64xf32>
    %90 = vector.extract_strided_slice %83 {offsets = [1, 0], sizes = [1, 64], strides = [1, 1]} : vector<3x64xf32> to vector<1x64xf32>
    %91 = vector.broadcast %90 : vector<1x64xf32> to vector<26x64xf32>
    %92 = arith.mulf %89, %91 : vector<26x64xf32>
    %93 = vector.extract_strided_slice %83 {offsets = [2, 0], sizes = [1, 64], strides = [1, 1]} : vector<3x64xf32> to vector<1x64xf32>
    %94 = vector.broadcast %93 : vector<1x64xf32> to vector<26x64xf32>
    %95 = arith.addf %92, %94 : vector<26x64xf32>
    %96 = vector.extract_strided_slice %7 {offsets = [3, 0], sizes = [3, 64], strides = [1, 1]} : vector<9x64xf32> to vector<3x64xf32>
    %c25_i32_59 = arith.constant 25 : i32
    %97 = tpu.dynamic_rotate %95 by %c25_i32_59 dim 0 : vector<26x64xf32>, i32 -> vector<26x64xf32>
    %c24_i32_60 = arith.constant 24 : i32
    %98 = tpu.dynamic_rotate %95 by %c24_i32_60 dim 0 : vector<26x64xf32>, i32 -> vector<26x64xf32>
    %c23_i32_61 = arith.constant 23 : i32
    %99 = tpu.dynamic_rotate %95 by %c23_i32_61 dim 0 : vector<26x64xf32>, i32 -> vector<26x64xf32>
    %100 = tpu.concatenate %95, %97, %98, %99 in 1 : vector<26x64xf32>, vector<26x64xf32>, vector<26x64xf32>, vector<26x64xf32> -> vector<26x256xf32>
    %101 = arith.truncf %100 : vector<26x256xf32> to vector<26x256xbf16>
    %cst_62 = arith.constant dense<0.000000e+00> : vector<26x64xf32>
    %102 = tpu.matmul %101, %5, %cst_62 {dimension_numbers = #tpu.dot_dimension_numbers<[1], [0], [0], [1], [0, 0, 1, 1], [], []>} : vector<26x256xbf16>, vector<256x64xbf16>, vector<26x64xf32> -> vector<26x64xf32>
    %103 = vector.extract_strided_slice %96 {offsets = [0, 0], sizes = [1, 64], strides = [1, 1]} : vector<3x64xf32> to vector<1x64xf32>
    %104 = vector.broadcast %103 : vector<1x64xf32> to vector<26x64xf32>
    %105 = arith.addf %102, %104 : vector<26x64xf32>
    %106 = math.tanh %105 : vector<26x64xf32>
    %107 = vector.extract_strided_slice %96 {offsets = [1, 0], sizes = [1, 64], strides = [1, 1]} : vector<3x64xf32> to vector<1x64xf32>
    %108 = vector.broadcast %107 : vector<1x64xf32> to vector<26x64xf32>
    %109 = arith.mulf %106, %108 : vector<26x64xf32>
    %110 = vector.extract_strided_slice %96 {offsets = [2, 0], sizes = [1, 64], strides = [1, 1]} : vector<3x64xf32> to vector<1x64xf32>
    %111 = vector.broadcast %110 : vector<1x64xf32> to vector<26x64xf32>
    %112 = arith.addf %109, %111 : vector<26x64xf32>
    %113 = vector.extract_strided_slice %7 {offsets = [6, 0], sizes = [3, 64], strides = [1, 1]} : vector<9x64xf32> to vector<3x64xf32>
    %c25_i32_63 = arith.constant 25 : i32
    %114 = tpu.dynamic_rotate %112 by %c25_i32_63 dim 0 : vector<26x64xf32>, i32 -> vector<26x64xf32>
    %c24_i32_64 = arith.constant 24 : i32
    %115 = tpu.dynamic_rotate %112 by %c24_i32_64 dim 0 : vector<26x64xf32>, i32 -> vector<26x64xf32>
    %c23_i32_65 = arith.constant 23 : i32
    %116 = tpu.dynamic_rotate %112 by %c23_i32_65 dim 0 : vector<26x64xf32>, i32 -> vector<26x64xf32>
    %117 = tpu.concatenate %112, %114, %115, %116 in 1 : vector<26x64xf32>, vector<26x64xf32>, vector<26x64xf32>, vector<26x64xf32> -> vector<26x256xf32>
    %118 = arith.truncf %117 : vector<26x256xf32> to vector<26x256xbf16>
    %cst_66 = arith.constant dense<0.000000e+00> : vector<26x64xf32>
    %119 = tpu.matmul %118, %6, %cst_66 {dimension_numbers = #tpu.dot_dimension_numbers<[1], [0], [0], [1], [0, 0, 1, 1], [], []>} : vector<26x256xbf16>, vector<256x64xbf16>, vector<26x64xf32> -> vector<26x64xf32>
    %120 = vector.extract_strided_slice %113 {offsets = [0, 0], sizes = [1, 64], strides = [1, 1]} : vector<3x64xf32> to vector<1x64xf32>
    %121 = vector.broadcast %120 : vector<1x64xf32> to vector<26x64xf32>
    %122 = arith.addf %119, %121 : vector<26x64xf32>
    %123 = math.tanh %122 : vector<26x64xf32>
    %124 = vector.extract_strided_slice %113 {offsets = [1, 0], sizes = [1, 64], strides = [1, 1]} : vector<3x64xf32> to vector<1x64xf32>
    %125 = vector.broadcast %124 : vector<1x64xf32> to vector<26x64xf32>
    %126 = arith.mulf %123, %125 : vector<26x64xf32>
    %127 = vector.extract_strided_slice %113 {offsets = [2, 0], sizes = [1, 64], strides = [1, 1]} : vector<3x64xf32> to vector<1x64xf32>
    %128 = vector.broadcast %127 : vector<1x64xf32> to vector<26x64xf32>
    %129 = arith.addf %126, %128 : vector<26x64xf32>
    %c0_67 = arith.constant 0 : index
    %c1 = arith.constant 1 : index
    %c0_68 = arith.constant 0 : index
    %c0_69 = arith.constant 0 : index
    %130 = vector.load %arg1[%c0_67, %c1, %c0_68, %c0_69] : memref<1x5x26x8xf32, #tpu.memory_space<vmem>>, vector<1x1x26x8xf32>
    %131 = vector.shape_cast %130 : vector<1x1x26x8xf32> to vector<26x8xf32>
    %132 = vector.extract_strided_slice %3 {offsets = [0, 0], sizes = [3, 128], strides = [1, 1]} : vector<9x128xf32> to vector<3x128xf32>
    %133 = arith.truncf %131 : vector<26x8xf32> to vector<26x8xbf16>
    %cst_70 = arith.constant dense<0.000000e+00> : vector<26x128xf32>
    %134 = tpu.matmul %133, %0, %cst_70 {dimension_numbers = #tpu.dot_dimension_numbers<[1], [0], [0], [1], [0, 0, 1, 1], [], []>} : vector<26x8xbf16>, vector<8x128xbf16>, vector<26x128xf32> -> vector<26x128xf32>
    %135 = vector.extract_strided_slice %132 {offsets = [0, 0], sizes = [1, 128], strides = [1, 1]} : vector<3x128xf32> to vector<1x128xf32>
    %136 = vector.broadcast %135 : vector<1x128xf32> to vector<26x128xf32>
    %137 = arith.addf %134, %136 : vector<26x128xf32>
    %cst_71 = arith.constant 0.000000e+00 : f32
    %138 = vector.broadcast %cst_71 : f32 to vector<26x128xf32>
    %139 = arith.cmpf oge, %137, %138 : vector<26x128xf32>
    %cst_72 = arith.constant 0.00999999977 : f32
    %140 = vector.broadcast %cst_72 : f32 to vector<26x128xf32>
    %141 = arith.mulf %140, %137 : vector<26x128xf32>
    %142 = arith.select %139, %137, %141 : vector<26x128xi1>, vector<26x128xf32>
    %143 = vector.extract_strided_slice %132 {offsets = [1, 0], sizes = [1, 128], strides = [1, 1]} : vector<3x128xf32> to vector<1x128xf32>
    %144 = vector.broadcast %143 : vector<1x128xf32> to vector<26x128xf32>
    %145 = arith.mulf %142, %144 : vector<26x128xf32>
    %146 = vector.extract_strided_slice %132 {offsets = [2, 0], sizes = [1, 128], strides = [1, 1]} : vector<3x128xf32> to vector<1x128xf32>
    %147 = vector.broadcast %146 : vector<1x128xf32> to vector<26x128xf32>
    %148 = arith.addf %145, %147 : vector<26x128xf32>
    %149 = vector.extract_strided_slice %3 {offsets = [3, 0], sizes = [3, 128], strides = [1, 1]} : vector<9x128xf32> to vector<3x128xf32>
    %c25_i32_73 = arith.constant 25 : i32
    %150 = tpu.dynamic_rotate %148 by %c25_i32_73 dim 0 : vector<26x128xf32>, i32 -> vector<26x128xf32>
    %c24_i32_74 = arith.constant 24 : i32
    %151 = tpu.dynamic_rotate %148 by %c24_i32_74 dim 0 : vector<26x128xf32>, i32 -> vector<26x128xf32>
    %c23_i32_75 = arith.constant 23 : i32
    %152 = tpu.dynamic_rotate %148 by %c23_i32_75 dim 0 : vector<26x128xf32>, i32 -> vector<26x128xf32>
    %153 = tpu.concatenate %148, %150, %151, %152 in 1 : vector<26x128xf32>, vector<26x128xf32>, vector<26x128xf32>, vector<26x128xf32> -> vector<26x512xf32>
    %154 = arith.truncf %153 : vector<26x512xf32> to vector<26x512xbf16>
    %cst_76 = arith.constant dense<0.000000e+00> : vector<26x128xf32>
    %155 = tpu.matmul %154, %1, %cst_76 {dimension_numbers = #tpu.dot_dimension_numbers<[1], [0], [0], [1], [0, 0, 1, 1], [], []>} : vector<26x512xbf16>, vector<512x128xbf16>, vector<26x128xf32> -> vector<26x128xf32>
    %156 = vector.extract_strided_slice %149 {offsets = [0, 0], sizes = [1, 128], strides = [1, 1]} : vector<3x128xf32> to vector<1x128xf32>
    %157 = vector.broadcast %156 : vector<1x128xf32> to vector<26x128xf32>
    %158 = arith.addf %155, %157 : vector<26x128xf32>
    %cst_77 = arith.constant 0.000000e+00 : f32
    %159 = vector.broadcast %cst_77 : f32 to vector<26x128xf32>
    %160 = arith.cmpf oge, %158, %159 : vector<26x128xf32>
    %cst_78 = arith.constant 0.00999999977 : f32
    %161 = vector.broadcast %cst_78 : f32 to vector<26x128xf32>
    %162 = arith.mulf %161, %158 : vector<26x128xf32>
    %163 = arith.select %160, %158, %162 : vector<26x128xi1>, vector<26x128xf32>
    %164 = vector.extract_strided_slice %149 {offsets = [1, 0], sizes = [1, 128], strides = [1, 1]} : vector<3x128xf32> to vector<1x128xf32>
    %165 = vector.broadcast %164 : vector<1x128xf32> to vector<26x128xf32>
    %166 = arith.mulf %163, %165 : vector<26x128xf32>
    %167 = vector.extract_strided_slice %149 {offsets = [2, 0], sizes = [1, 128], strides = [1, 1]} : vector<3x128xf32> to vector<1x128xf32>
    %168 = vector.broadcast %167 : vector<1x128xf32> to vector<26x128xf32>
    %169 = arith.addf %166, %168 : vector<26x128xf32>
    %170 = vector.extract_strided_slice %3 {offsets = [6, 0], sizes = [3, 128], strides = [1, 1]} : vector<9x128xf32> to vector<3x128xf32>
    %c25_i32_79 = arith.constant 25 : i32
    %171 = tpu.dynamic_rotate %169 by %c25_i32_79 dim 0 : vector<26x128xf32>, i32 -> vector<26x128xf32>
    %c24_i32_80 = arith.constant 24 : i32
    %172 = tpu.dynamic_rotate %169 by %c24_i32_80 dim 0 : vector<26x128xf32>, i32 -> vector<26x128xf32>
    %c23_i32_81 = arith.constant 23 : i32
    %173 = tpu.dynamic_rotate %169 by %c23_i32_81 dim 0 : vector<26x128xf32>, i32 -> vector<26x128xf32>
    %174 = tpu.concatenate %169, %171, %172, %173 in 1 : vector<26x128xf32>, vector<26x128xf32>, vector<26x128xf32>, vector<26x128xf32> -> vector<26x512xf32>
    %175 = arith.truncf %174 : vector<26x512xf32> to vector<26x512xbf16>
    %cst_82 = arith.constant dense<0.000000e+00> : vector<26x128xf32>
    %176 = tpu.matmul %175, %2, %cst_82 {dimension_numbers = #tpu.dot_dimension_numbers<[1], [0], [0], [1], [0, 0, 1, 1], [], []>} : vector<26x512xbf16>, vector<512x128xbf16>, vector<26x128xf32> -> vector<26x128xf32>
    %177 = vector.extract_strided_slice %170 {offsets = [0, 0], sizes = [1, 128], strides = [1, 1]} : vector<3x128xf32> to vector<1x128xf32>
    %178 = vector.broadcast %177 : vector<1x128xf32> to vector<26x128xf32>
    %179 = arith.addf %176, %178 : vector<26x128xf32>
    %cst_83 = arith.constant 0.000000e+00 : f32
    %180 = vector.broadcast %cst_83 : f32 to vector<26x128xf32>
    %181 = arith.cmpf oge, %179, %180 : vector<26x128xf32>
    %cst_84 = arith.constant 0.00999999977 : f32
    %182 = vector.broadcast %cst_84 : f32 to vector<26x128xf32>
    %183 = arith.mulf %182, %179 : vector<26x128xf32>
    %184 = arith.select %181, %179, %183 : vector<26x128xi1>, vector<26x128xf32>
    %185 = vector.extract_strided_slice %170 {offsets = [1, 0], sizes = [1, 128], strides = [1, 1]} : vector<3x128xf32> to vector<1x128xf32>
    %186 = vector.broadcast %185 : vector<1x128xf32> to vector<26x128xf32>
    %187 = arith.mulf %184, %186 : vector<26x128xf32>
    %188 = vector.extract_strided_slice %170 {offsets = [2, 0], sizes = [1, 128], strides = [1, 1]} : vector<3x128xf32> to vector<1x128xf32>
    %189 = vector.broadcast %188 : vector<1x128xf32> to vector<26x128xf32>
    %190 = arith.addf %187, %189 : vector<26x128xf32>
    %191 = vector.extract_strided_slice %7 {offsets = [0, 0], sizes = [3, 64], strides = [1, 1]} : vector<9x64xf32> to vector<3x64xf32>
    %192 = arith.truncf %190 : vector<26x128xf32> to vector<26x128xbf16>
    %cst_85 = arith.constant dense<0.000000e+00> : vector<26x64xf32>
    %193 = tpu.matmul %192, %4, %cst_85 {dimension_numbers = #tpu.dot_dimension_numbers<[1], [0], [0], [1], [0, 0, 1, 1], [], []>} : vector<26x128xbf16>, vector<128x64xbf16>, vector<26x64xf32> -> vector<26x64xf32>
    %194 = vector.extract_strided_slice %191 {offsets = [0, 0], sizes = [1, 64], strides = [1, 1]} : vector<3x64xf32> to vector<1x64xf32>
    %195 = vector.broadcast %194 : vector<1x64xf32> to vector<26x64xf32>
    %196 = arith.addf %193, %195 : vector<26x64xf32>
    %197 = math.tanh %196 : vector<26x64xf32>
    %198 = vector.extract_strided_slice %191 {offsets = [1, 0], sizes = [1, 64], strides = [1, 1]} : vector<3x64xf32> to vector<1x64xf32>
    %199 = vector.broadcast %198 : vector<1x64xf32> to vector<26x64xf32>
    %200 = arith.mulf %197, %199 : vector<26x64xf32>
    %201 = vector.extract_strided_slice %191 {offsets = [2, 0], sizes = [1, 64], strides = [1, 1]} : vector<3x64xf32> to vector<1x64xf32>
    %202 = vector.broadcast %201 : vector<1x64xf32> to vector<26x64xf32>
    %203 = arith.addf %200, %202 : vector<26x64xf32>
    %204 = vector.extract_strided_slice %7 {offsets = [3, 0], sizes = [3, 64], strides = [1, 1]} : vector<9x64xf32> to vector<3x64xf32>
    %c25_i32_86 = arith.constant 25 : i32
    %205 = tpu.dynamic_rotate %203 by %c25_i32_86 dim 0 : vector<26x64xf32>, i32 -> vector<26x64xf32>
    %c24_i32_87 = arith.constant 24 : i32
    %206 = tpu.dynamic_rotate %203 by %c24_i32_87 dim 0 : vector<26x64xf32>, i32 -> vector<26x64xf32>
    %c23_i32_88 = arith.constant 23 : i32
    %207 = tpu.dynamic_rotate %203 by %c23_i32_88 dim 0 : vector<26x64xf32>, i32 -> vector<26x64xf32>
    %208 = tpu.concatenate %203, %205, %206, %207 in 1 : vector<26x64xf32>, vector<26x64xf32>, vector<26x64xf32>, vector<26x64xf32> -> vector<26x256xf32>
    %209 = arith.truncf %208 : vector<26x256xf32> to vector<26x256xbf16>
    %cst_89 = arith.constant dense<0.000000e+00> : vector<26x64xf32>
    %210 = tpu.matmul %209, %5, %cst_89 {dimension_numbers = #tpu.dot_dimension_numbers<[1], [0], [0], [1], [0, 0, 1, 1], [], []>} : vector<26x256xbf16>, vector<256x64xbf16>, vector<26x64xf32> -> vector<26x64xf32>
    %211 = vector.extract_strided_slice %204 {offsets = [0, 0], sizes = [1, 64], strides = [1, 1]} : vector<3x64xf32> to vector<1x64xf32>
    %212 = vector.broadcast %211 : vector<1x64xf32> to vector<26x64xf32>
    %213 = arith.addf %210, %212 : vector<26x64xf32>
    %214 = math.tanh %213 : vector<26x64xf32>
    %215 = vector.extract_strided_slice %204 {offsets = [1, 0], sizes = [1, 64], strides = [1, 1]} : vector<3x64xf32> to vector<1x64xf32>
    %216 = vector.broadcast %215 : vector<1x64xf32> to vector<26x64xf32>
    %217 = arith.mulf %214, %216 : vector<26x64xf32>
    %218 = vector.extract_strided_slice %204 {offsets = [2, 0], sizes = [1, 64], strides = [1, 1]} : vector<3x64xf32> to vector<1x64xf32>
    %219 = vector.broadcast %218 : vector<1x64xf32> to vector<26x64xf32>
    %220 = arith.addf %217, %219 : vector<26x64xf32>
    %221 = vector.extract_strided_slice %7 {offsets = [6, 0], sizes = [3, 64], strides = [1, 1]} : vector<9x64xf32> to vector<3x64xf32>
    %c25_i32_90 = arith.constant 25 : i32
    %222 = tpu.dynamic_rotate %220 by %c25_i32_90 dim 0 : vector<26x64xf32>, i32 -> vector<26x64xf32>
    %c24_i32_91 = arith.constant 24 : i32
    %223 = tpu.dynamic_rotate %220 by %c24_i32_91 dim 0 : vector<26x64xf32>, i32 -> vector<26x64xf32>
    %c23_i32_92 = arith.constant 23 : i32
    %224 = tpu.dynamic_rotate %220 by %c23_i32_92 dim 0 : vector<26x64xf32>, i32 -> vector<26x64xf32>
    %225 = tpu.concatenate %220, %222, %223, %224 in 1 : vector<26x64xf32>, vector<26x64xf32>, vector<26x64xf32>, vector<26x64xf32> -> vector<26x256xf32>
    %226 = arith.truncf %225 : vector<26x256xf32> to vector<26x256xbf16>
    %cst_93 = arith.constant dense<0.000000e+00> : vector<26x64xf32>
    %227 = tpu.matmul %226, %6, %cst_93 {dimension_numbers = #tpu.dot_dimension_numbers<[1], [0], [0], [1], [0, 0, 1, 1], [], []>} : vector<26x256xbf16>, vector<256x64xbf16>, vector<26x64xf32> -> vector<26x64xf32>
    %228 = vector.extract_strided_slice %221 {offsets = [0, 0], sizes = [1, 64], strides = [1, 1]} : vector<3x64xf32> to vector<1x64xf32>
    %229 = vector.broadcast %228 : vector<1x64xf32> to vector<26x64xf32>
    %230 = arith.addf %227, %229 : vector<26x64xf32>
    %231 = math.tanh %230 : vector<26x64xf32>
    %232 = vector.extract_strided_slice %221 {offsets = [1, 0], sizes = [1, 64], strides = [1, 1]} : vector<3x64xf32> to vector<1x64xf32>
    %233 = vector.broadcast %232 : vector<1x64xf32> to vector<26x64xf32>
    %234 = arith.mulf %231, %233 : vector<26x64xf32>
    %235 = vector.extract_strided_slice %221 {offsets = [2, 0], sizes = [1, 64], strides = [1, 1]} : vector<3x64xf32> to vector<1x64xf32>
    %236 = vector.broadcast %235 : vector<1x64xf32> to vector<26x64xf32>
    %237 = arith.addf %234, %236 : vector<26x64xf32>
    %c0_94 = arith.constant 0 : index
    %c2 = arith.constant 2 : index
    %c0_95 = arith.constant 0 : index
    %c0_96 = arith.constant 0 : index
    %238 = vector.load %arg1[%c0_94, %c2, %c0_95, %c0_96] : memref<1x5x26x8xf32, #tpu.memory_space<vmem>>, vector<1x1x26x8xf32>
    %239 = vector.shape_cast %238 : vector<1x1x26x8xf32> to vector<26x8xf32>
    %240 = vector.extract_strided_slice %3 {offsets = [0, 0], sizes = [3, 128], strides = [1, 1]} : vector<9x128xf32> to vector<3x128xf32>
    %241 = arith.truncf %239 : vector<26x8xf32> to vector<26x8xbf16>
    %cst_97 = arith.constant dense<0.000000e+00> : vector<26x128xf32>
    %242 = tpu.matmul %241, %0, %cst_97 {dimension_numbers = #tpu.dot_dimension_numbers<[1], [0], [0], [1], [0, 0, 1, 1], [], []>} : vector<26x8xbf16>, vector<8x128xbf16>, vector<26x128xf32> -> vector<26x128xf32>
    %243 = vector.extract_strided_slice %240 {offsets = [0, 0], sizes = [1, 128], strides = [1, 1]} : vector<3x128xf32> to vector<1x128xf32>
    %244 = vector.broadcast %243 : vector<1x128xf32> to vector<26x128xf32>
    %245 = arith.addf %242, %244 : vector<26x128xf32>
    %cst_98 = arith.constant 0.000000e+00 : f32
    %246 = vector.broadcast %cst_98 : f32 to vector<26x128xf32>
    %247 = arith.cmpf oge, %245, %246 : vector<26x128xf32>
    %cst_99 = arith.constant 0.00999999977 : f32
    %248 = vector.broadcast %cst_99 : f32 to vector<26x128xf32>
    %249 = arith.mulf %248, %245 : vector<26x128xf32>
    %250 = arith.select %247, %245, %249 : vector<26x128xi1>, vector<26x128xf32>
    %251 = vector.extract_strided_slice %240 {offsets = [1, 0], sizes = [1, 128], strides = [1, 1]} : vector<3x128xf32> to vector<1x128xf32>
    %252 = vector.broadcast %251 : vector<1x128xf32> to vector<26x128xf32>
    %253 = arith.mulf %250, %252 : vector<26x128xf32>
    %254 = vector.extract_strided_slice %240 {offsets = [2, 0], sizes = [1, 128], strides = [1, 1]} : vector<3x128xf32> to vector<1x128xf32>
    %255 = vector.broadcast %254 : vector<1x128xf32> to vector<26x128xf32>
    %256 = arith.addf %253, %255 : vector<26x128xf32>
    %257 = vector.extract_strided_slice %3 {offsets = [3, 0], sizes = [3, 128], strides = [1, 1]} : vector<9x128xf32> to vector<3x128xf32>
    %c25_i32_100 = arith.constant 25 : i32
    %258 = tpu.dynamic_rotate %256 by %c25_i32_100 dim 0 : vector<26x128xf32>, i32 -> vector<26x128xf32>
    %c24_i32_101 = arith.constant 24 : i32
    %259 = tpu.dynamic_rotate %256 by %c24_i32_101 dim 0 : vector<26x128xf32>, i32 -> vector<26x128xf32>
    %c23_i32_102 = arith.constant 23 : i32
    %260 = tpu.dynamic_rotate %256 by %c23_i32_102 dim 0 : vector<26x128xf32>, i32 -> vector<26x128xf32>
    %261 = tpu.concatenate %256, %258, %259, %260 in 1 : vector<26x128xf32>, vector<26x128xf32>, vector<26x128xf32>, vector<26x128xf32> -> vector<26x512xf32>
    %262 = arith.truncf %261 : vector<26x512xf32> to vector<26x512xbf16>
    %cst_103 = arith.constant dense<0.000000e+00> : vector<26x128xf32>
    %263 = tpu.matmul %262, %1, %cst_103 {dimension_numbers = #tpu.dot_dimension_numbers<[1], [0], [0], [1], [0, 0, 1, 1], [], []>} : vector<26x512xbf16>, vector<512x128xbf16>, vector<26x128xf32> -> vector<26x128xf32>
    %264 = vector.extract_strided_slice %257 {offsets = [0, 0], sizes = [1, 128], strides = [1, 1]} : vector<3x128xf32> to vector<1x128xf32>
    %265 = vector.broadcast %264 : vector<1x128xf32> to vector<26x128xf32>
    %266 = arith.addf %263, %265 : vector<26x128xf32>
    %cst_104 = arith.constant 0.000000e+00 : f32
    %267 = vector.broadcast %cst_104 : f32 to vector<26x128xf32>
    %268 = arith.cmpf oge, %266, %267 : vector<26x128xf32>
    %cst_105 = arith.constant 0.00999999977 : f32
    %269 = vector.broadcast %cst_105 : f32 to vector<26x128xf32>
    %270 = arith.mulf %269, %266 : vector<26x128xf32>
    %271 = arith.select %268, %266, %270 : vector<26x128xi1>, vector<26x128xf32>
    %272 = vector.extract_strided_slice %257 {offsets = [1, 0], sizes = [1, 128], strides = [1, 1]} : vector<3x128xf32> to vector<1x128xf32>
    %273 = vector.broadcast %272 : vector<1x128xf32> to vector<26x128xf32>
    %274 = arith.mulf %271, %273 : vector<26x128xf32>
    %275 = vector.extract_strided_slice %257 {offsets = [2, 0], sizes = [1, 128], strides = [1, 1]} : vector<3x128xf32> to vector<1x128xf32>
    %276 = vector.broadcast %275 : vector<1x128xf32> to vector<26x128xf32>
    %277 = arith.addf %274, %276 : vector<26x128xf32>
    %278 = vector.extract_strided_slice %3 {offsets = [6, 0], sizes = [3, 128], strides = [1, 1]} : vector<9x128xf32> to vector<3x128xf32>
    %c25_i32_106 = arith.constant 25 : i32
    %279 = tpu.dynamic_rotate %277 by %c25_i32_106 dim 0 : vector<26x128xf32>, i32 -> vector<26x128xf32>
    %c24_i32_107 = arith.constant 24 : i32
    %280 = tpu.dynamic_rotate %277 by %c24_i32_107 dim 0 : vector<26x128xf32>, i32 -> vector<26x128xf32>
    %c23_i32_108 = arith.constant 23 : i32
    %281 = tpu.dynamic_rotate %277 by %c23_i32_108 dim 0 : vector<26x128xf32>, i32 -> vector<26x128xf32>
    %282 = tpu.concatenate %277, %279, %280, %281 in 1 : vector<26x128xf32>, vector<26x128xf32>, vector<26x128xf32>, vector<26x128xf32> -> vector<26x512xf32>
    %283 = arith.truncf %282 : vector<26x512xf32> to vector<26x512xbf16>
    %cst_109 = arith.constant dense<0.000000e+00> : vector<26x128xf32>
    %284 = tpu.matmul %283, %2, %cst_109 {dimension_numbers = #tpu.dot_dimension_numbers<[1], [0], [0], [1], [0, 0, 1, 1], [], []>} : vector<26x512xbf16>, vector<512x128xbf16>, vector<26x128xf32> -> vector<26x128xf32>
    %285 = vector.extract_strided_slice %278 {offsets = [0, 0], sizes = [1, 128], strides = [1, 1]} : vector<3x128xf32> to vector<1x128xf32>
    %286 = vector.broadcast %285 : vector<1x128xf32> to vector<26x128xf32>
    %287 = arith.addf %284, %286 : vector<26x128xf32>
    %cst_110 = arith.constant 0.000000e+00 : f32
    %288 = vector.broadcast %cst_110 : f32 to vector<26x128xf32>
    %289 = arith.cmpf oge, %287, %288 : vector<26x128xf32>
    %cst_111 = arith.constant 0.00999999977 : f32
    %290 = vector.broadcast %cst_111 : f32 to vector<26x128xf32>
    %291 = arith.mulf %290, %287 : vector<26x128xf32>
    %292 = arith.select %289, %287, %291 : vector<26x128xi1>, vector<26x128xf32>
    %293 = vector.extract_strided_slice %278 {offsets = [1, 0], sizes = [1, 128], strides = [1, 1]} : vector<3x128xf32> to vector<1x128xf32>
    %294 = vector.broadcast %293 : vector<1x128xf32> to vector<26x128xf32>
    %295 = arith.mulf %292, %294 : vector<26x128xf32>
    %296 = vector.extract_strided_slice %278 {offsets = [2, 0], sizes = [1, 128], strides = [1, 1]} : vector<3x128xf32> to vector<1x128xf32>
    %297 = vector.broadcast %296 : vector<1x128xf32> to vector<26x128xf32>
    %298 = arith.addf %295, %297 : vector<26x128xf32>
    %299 = vector.extract_strided_slice %7 {offsets = [0, 0], sizes = [3, 64], strides = [1, 1]} : vector<9x64xf32> to vector<3x64xf32>
    %300 = arith.truncf %298 : vector<26x128xf32> to vector<26x128xbf16>
    %cst_112 = arith.constant dense<0.000000e+00> : vector<26x64xf32>
    %301 = tpu.matmul %300, %4, %cst_112 {dimension_numbers = #tpu.dot_dimension_numbers<[1], [0], [0], [1], [0, 0, 1, 1], [], []>} : vector<26x128xbf16>, vector<128x64xbf16>, vector<26x64xf32> -> vector<26x64xf32>
    %302 = vector.extract_strided_slice %299 {offsets = [0, 0], sizes = [1, 64], strides = [1, 1]} : vector<3x64xf32> to vector<1x64xf32>
    %303 = vector.broadcast %302 : vector<1x64xf32> to vector<26x64xf32>
    %304 = arith.addf %301, %303 : vector<26x64xf32>
    %305 = math.tanh %304 : vector<26x64xf32>
    %306 = vector.extract_strided_slice %299 {offsets = [1, 0], sizes = [1, 64], strides = [1, 1]} : vector<3x64xf32> to vector<1x64xf32>
    %307 = vector.broadcast %306 : vector<1x64xf32> to vector<26x64xf32>
    %308 = arith.mulf %305, %307 : vector<26x64xf32>
    %309 = vector.extract_strided_slice %299 {offsets = [2, 0], sizes = [1, 64], strides = [1, 1]} : vector<3x64xf32> to vector<1x64xf32>
    %310 = vector.broadcast %309 : vector<1x64xf32> to vector<26x64xf32>
    %311 = arith.addf %308, %310 : vector<26x64xf32>
    %312 = vector.extract_strided_slice %7 {offsets = [3, 0], sizes = [3, 64], strides = [1, 1]} : vector<9x64xf32> to vector<3x64xf32>
    %c25_i32_113 = arith.constant 25 : i32
    %313 = tpu.dynamic_rotate %311 by %c25_i32_113 dim 0 : vector<26x64xf32>, i32 -> vector<26x64xf32>
    %c24_i32_114 = arith.constant 24 : i32
    %314 = tpu.dynamic_rotate %311 by %c24_i32_114 dim 0 : vector<26x64xf32>, i32 -> vector<26x64xf32>
    %c23_i32_115 = arith.constant 23 : i32
    %315 = tpu.dynamic_rotate %311 by %c23_i32_115 dim 0 : vector<26x64xf32>, i32 -> vector<26x64xf32>
    %316 = tpu.concatenate %311, %313, %314, %315 in 1 : vector<26x64xf32>, vector<26x64xf32>, vector<26x64xf32>, vector<26x64xf32> -> vector<26x256xf32>
    %317 = arith.truncf %316 : vector<26x256xf32> to vector<26x256xbf16>
    %cst_116 = arith.constant dense<0.000000e+00> : vector<26x64xf32>
    %318 = tpu.matmul %317, %5, %cst_116 {dimension_numbers = #tpu.dot_dimension_numbers<[1], [0], [0], [1], [0, 0, 1, 1], [], []>} : vector<26x256xbf16>, vector<256x64xbf16>, vector<26x64xf32> -> vector<26x64xf32>
    %319 = vector.extract_strided_slice %312 {offsets = [0, 0], sizes = [1, 64], strides = [1, 1]} : vector<3x64xf32> to vector<1x64xf32>
    %320 = vector.broadcast %319 : vector<1x64xf32> to vector<26x64xf32>
    %321 = arith.addf %318, %320 : vector<26x64xf32>
    %322 = math.tanh %321 : vector<26x64xf32>
    %323 = vector.extract_strided_slice %312 {offsets = [1, 0], sizes = [1, 64], strides = [1, 1]} : vector<3x64xf32> to vector<1x64xf32>
    %324 = vector.broadcast %323 : vector<1x64xf32> to vector<26x64xf32>
    %325 = arith.mulf %322, %324 : vector<26x64xf32>
    %326 = vector.extract_strided_slice %312 {offsets = [2, 0], sizes = [1, 64], strides = [1, 1]} : vector<3x64xf32> to vector<1x64xf32>
    %327 = vector.broadcast %326 : vector<1x64xf32> to vector<26x64xf32>
    %328 = arith.addf %325, %327 : vector<26x64xf32>
    %329 = vector.extract_strided_slice %7 {offsets = [6, 0], sizes = [3, 64], strides = [1, 1]} : vector<9x64xf32> to vector<3x64xf32>
    %c25_i32_117 = arith.constant 25 : i32
    %330 = tpu.dynamic_rotate %328 by %c25_i32_117 dim 0 : vector<26x64xf32>, i32 -> vector<26x64xf32>
    %c24_i32_118 = arith.constant 24 : i32
    %331 = tpu.dynamic_rotate %328 by %c24_i32_118 dim 0 : vector<26x64xf32>, i32 -> vector<26x64xf32>
    %c23_i32_119 = arith.constant 23 : i32
    %332 = tpu.dynamic_rotate %328 by %c23_i32_119 dim 0 : vector<26x64xf32>, i32 -> vector<26x64xf32>
    %333 = tpu.concatenate %328, %330, %331, %332 in 1 : vector<26x64xf32>, vector<26x64xf32>, vector<26x64xf32>, vector<26x64xf32> -> vector<26x256xf32>
    %334 = arith.truncf %333 : vector<26x256xf32> to vector<26x256xbf16>
    %cst_120 = arith.constant dense<0.000000e+00> : vector<26x64xf32>
    %335 = tpu.matmul %334, %6, %cst_120 {dimension_numbers = #tpu.dot_dimension_numbers<[1], [0], [0], [1], [0, 0, 1, 1], [], []>} : vector<26x256xbf16>, vector<256x64xbf16>, vector<26x64xf32> -> vector<26x64xf32>
    %336 = vector.extract_strided_slice %329 {offsets = [0, 0], sizes = [1, 64], strides = [1, 1]} : vector<3x64xf32> to vector<1x64xf32>
    %337 = vector.broadcast %336 : vector<1x64xf32> to vector<26x64xf32>
    %338 = arith.addf %335, %337 : vector<26x64xf32>
    %339 = math.tanh %338 : vector<26x64xf32>
    %340 = vector.extract_strided_slice %329 {offsets = [1, 0], sizes = [1, 64], strides = [1, 1]} : vector<3x64xf32> to vector<1x64xf32>
    %341 = vector.broadcast %340 : vector<1x64xf32> to vector<26x64xf32>
    %342 = arith.mulf %339, %341 : vector<26x64xf32>
    %343 = vector.extract_strided_slice %329 {offsets = [2, 0], sizes = [1, 64], strides = [1, 1]} : vector<3x64xf32> to vector<1x64xf32>
    %344 = vector.broadcast %343 : vector<1x64xf32> to vector<26x64xf32>
    %345 = arith.addf %342, %344 : vector<26x64xf32>
    %c0_121 = arith.constant 0 : index
    %c3 = arith.constant 3 : index
    %c0_122 = arith.constant 0 : index
    %c0_123 = arith.constant 0 : index
    %346 = vector.load %arg1[%c0_121, %c3, %c0_122, %c0_123] : memref<1x5x26x8xf32, #tpu.memory_space<vmem>>, vector<1x1x26x8xf32>
    %347 = vector.shape_cast %346 : vector<1x1x26x8xf32> to vector<26x8xf32>
    %348 = vector.extract_strided_slice %3 {offsets = [0, 0], sizes = [3, 128], strides = [1, 1]} : vector<9x128xf32> to vector<3x128xf32>
    %349 = arith.truncf %347 : vector<26x8xf32> to vector<26x8xbf16>
    %cst_124 = arith.constant dense<0.000000e+00> : vector<26x128xf32>
    %350 = tpu.matmul %349, %0, %cst_124 {dimension_numbers = #tpu.dot_dimension_numbers<[1], [0], [0], [1], [0, 0, 1, 1], [], []>} : vector<26x8xbf16>, vector<8x128xbf16>, vector<26x128xf32> -> vector<26x128xf32>
    %351 = vector.extract_strided_slice %348 {offsets = [0, 0], sizes = [1, 128], strides = [1, 1]} : vector<3x128xf32> to vector<1x128xf32>
    %352 = vector.broadcast %351 : vector<1x128xf32> to vector<26x128xf32>
    %353 = arith.addf %350, %352 : vector<26x128xf32>
    %cst_125 = arith.constant 0.000000e+00 : f32
    %354 = vector.broadcast %cst_125 : f32 to vector<26x128xf32>
    %355 = arith.cmpf oge, %353, %354 : vector<26x128xf32>
    %cst_126 = arith.constant 0.00999999977 : f32
    %356 = vector.broadcast %cst_126 : f32 to vector<26x128xf32>
    %357 = arith.mulf %356, %353 : vector<26x128xf32>
    %358 = arith.select %355, %353, %357 : vector<26x128xi1>, vector<26x128xf32>
    %359 = vector.extract_strided_slice %348 {offsets = [1, 0], sizes = [1, 128], strides = [1, 1]} : vector<3x128xf32> to vector<1x128xf32>
    %360 = vector.broadcast %359 : vector<1x128xf32> to vector<26x128xf32>
    %361 = arith.mulf %358, %360 : vector<26x128xf32>
    %362 = vector.extract_strided_slice %348 {offsets = [2, 0], sizes = [1, 128], strides = [1, 1]} : vector<3x128xf32> to vector<1x128xf32>
    %363 = vector.broadcast %362 : vector<1x128xf32> to vector<26x128xf32>
    %364 = arith.addf %361, %363 : vector<26x128xf32>
    %365 = vector.extract_strided_slice %3 {offsets = [3, 0], sizes = [3, 128], strides = [1, 1]} : vector<9x128xf32> to vector<3x128xf32>
    %c25_i32_127 = arith.constant 25 : i32
    %366 = tpu.dynamic_rotate %364 by %c25_i32_127 dim 0 : vector<26x128xf32>, i32 -> vector<26x128xf32>
    %c24_i32_128 = arith.constant 24 : i32
    %367 = tpu.dynamic_rotate %364 by %c24_i32_128 dim 0 : vector<26x128xf32>, i32 -> vector<26x128xf32>
    %c23_i32_129 = arith.constant 23 : i32
    %368 = tpu.dynamic_rotate %364 by %c23_i32_129 dim 0 : vector<26x128xf32>, i32 -> vector<26x128xf32>
    %369 = tpu.concatenate %364, %366, %367, %368 in 1 : vector<26x128xf32>, vector<26x128xf32>, vector<26x128xf32>, vector<26x128xf32> -> vector<26x512xf32>
    %370 = arith.truncf %369 : vector<26x512xf32> to vector<26x512xbf16>
    %cst_130 = arith.constant dense<0.000000e+00> : vector<26x128xf32>
    %371 = tpu.matmul %370, %1, %cst_130 {dimension_numbers = #tpu.dot_dimension_numbers<[1], [0], [0], [1], [0, 0, 1, 1], [], []>} : vector<26x512xbf16>, vector<512x128xbf16>, vector<26x128xf32> -> vector<26x128xf32>
    %372 = vector.extract_strided_slice %365 {offsets = [0, 0], sizes = [1, 128], strides = [1, 1]} : vector<3x128xf32> to vector<1x128xf32>
    %373 = vector.broadcast %372 : vector<1x128xf32> to vector<26x128xf32>
    %374 = arith.addf %371, %373 : vector<26x128xf32>
    %cst_131 = arith.constant 0.000000e+00 : f32
    %375 = vector.broadcast %cst_131 : f32 to vector<26x128xf32>
    %376 = arith.cmpf oge, %374, %375 : vector<26x128xf32>
    %cst_132 = arith.constant 0.00999999977 : f32
    %377 = vector.broadcast %cst_132 : f32 to vector<26x128xf32>
    %378 = arith.mulf %377, %374 : vector<26x128xf32>
    %379 = arith.select %376, %374, %378 : vector<26x128xi1>, vector<26x128xf32>
    %380 = vector.extract_strided_slice %365 {offsets = [1, 0], sizes = [1, 128], strides = [1, 1]} : vector<3x128xf32> to vector<1x128xf32>
    %381 = vector.broadcast %380 : vector<1x128xf32> to vector<26x128xf32>
    %382 = arith.mulf %379, %381 : vector<26x128xf32>
    %383 = vector.extract_strided_slice %365 {offsets = [2, 0], sizes = [1, 128], strides = [1, 1]} : vector<3x128xf32> to vector<1x128xf32>
    %384 = vector.broadcast %383 : vector<1x128xf32> to vector<26x128xf32>
    %385 = arith.addf %382, %384 : vector<26x128xf32>
    %386 = vector.extract_strided_slice %3 {offsets = [6, 0], sizes = [3, 128], strides = [1, 1]} : vector<9x128xf32> to vector<3x128xf32>
    %c25_i32_133 = arith.constant 25 : i32
    %387 = tpu.dynamic_rotate %385 by %c25_i32_133 dim 0 : vector<26x128xf32>, i32 -> vector<26x128xf32>
    %c24_i32_134 = arith.constant 24 : i32
    %388 = tpu.dynamic_rotate %385 by %c24_i32_134 dim 0 : vector<26x128xf32>, i32 -> vector<26x128xf32>
    %c23_i32_135 = arith.constant 23 : i32
    %389 = tpu.dynamic_rotate %385 by %c23_i32_135 dim 0 : vector<26x128xf32>, i32 -> vector<26x128xf32>
    %390 = tpu.concatenate %385, %387, %388, %389 in 1 : vector<26x128xf32>, vector<26x128xf32>, vector<26x128xf32>, vector<26x128xf32> -> vector<26x512xf32>
    %391 = arith.truncf %390 : vector<26x512xf32> to vector<26x512xbf16>
    %cst_136 = arith.constant dense<0.000000e+00> : vector<26x128xf32>
    %392 = tpu.matmul %391, %2, %cst_136 {dimension_numbers = #tpu.dot_dimension_numbers<[1], [0], [0], [1], [0, 0, 1, 1], [], []>} : vector<26x512xbf16>, vector<512x128xbf16>, vector<26x128xf32> -> vector<26x128xf32>
    %393 = vector.extract_strided_slice %386 {offsets = [0, 0], sizes = [1, 128], strides = [1, 1]} : vector<3x128xf32> to vector<1x128xf32>
    %394 = vector.broadcast %393 : vector<1x128xf32> to vector<26x128xf32>
    %395 = arith.addf %392, %394 : vector<26x128xf32>
    %cst_137 = arith.constant 0.000000e+00 : f32
    %396 = vector.broadcast %cst_137 : f32 to vector<26x128xf32>
    %397 = arith.cmpf oge, %395, %396 : vector<26x128xf32>
    %cst_138 = arith.constant 0.00999999977 : f32
    %398 = vector.broadcast %cst_138 : f32 to vector<26x128xf32>
    %399 = arith.mulf %398, %395 : vector<26x128xf32>
    %400 = arith.select %397, %395, %399 : vector<26x128xi1>, vector<26x128xf32>
    %401 = vector.extract_strided_slice %386 {offsets = [1, 0], sizes = [1, 128], strides = [1, 1]} : vector<3x128xf32> to vector<1x128xf32>
    %402 = vector.broadcast %401 : vector<1x128xf32> to vector<26x128xf32>
    %403 = arith.mulf %400, %402 : vector<26x128xf32>
    %404 = vector.extract_strided_slice %386 {offsets = [2, 0], sizes = [1, 128], strides = [1, 1]} : vector<3x128xf32> to vector<1x128xf32>
    %405 = vector.broadcast %404 : vector<1x128xf32> to vector<26x128xf32>
    %406 = arith.addf %403, %405 : vector<26x128xf32>
    %407 = vector.extract_strided_slice %7 {offsets = [0, 0], sizes = [3, 64], strides = [1, 1]} : vector<9x64xf32> to vector<3x64xf32>
    %408 = arith.truncf %406 : vector<26x128xf32> to vector<26x128xbf16>
    %cst_139 = arith.constant dense<0.000000e+00> : vector<26x64xf32>
    %409 = tpu.matmul %408, %4, %cst_139 {dimension_numbers = #tpu.dot_dimension_numbers<[1], [0], [0], [1], [0, 0, 1, 1], [], []>} : vector<26x128xbf16>, vector<128x64xbf16>, vector<26x64xf32> -> vector<26x64xf32>
    %410 = vector.extract_strided_slice %407 {offsets = [0, 0], sizes = [1, 64], strides = [1, 1]} : vector<3x64xf32> to vector<1x64xf32>
    %411 = vector.broadcast %410 : vector<1x64xf32> to vector<26x64xf32>
    %412 = arith.addf %409, %411 : vector<26x64xf32>
    %413 = math.tanh %412 : vector<26x64xf32>
    %414 = vector.extract_strided_slice %407 {offsets = [1, 0], sizes = [1, 64], strides = [1, 1]} : vector<3x64xf32> to vector<1x64xf32>
    %415 = vector.broadcast %414 : vector<1x64xf32> to vector<26x64xf32>
    %416 = arith.mulf %413, %415 : vector<26x64xf32>
    %417 = vector.extract_strided_slice %407 {offsets = [2, 0], sizes = [1, 64], strides = [1, 1]} : vector<3x64xf32> to vector<1x64xf32>
    %418 = vector.broadcast %417 : vector<1x64xf32> to vector<26x64xf32>
    %419 = arith.addf %416, %418 : vector<26x64xf32>
    %420 = vector.extract_strided_slice %7 {offsets = [3, 0], sizes = [3, 64], strides = [1, 1]} : vector<9x64xf32> to vector<3x64xf32>
    %c25_i32_140 = arith.constant 25 : i32
    %421 = tpu.dynamic_rotate %419 by %c25_i32_140 dim 0 : vector<26x64xf32>, i32 -> vector<26x64xf32>
    %c24_i32_141 = arith.constant 24 : i32
    %422 = tpu.dynamic_rotate %419 by %c24_i32_141 dim 0 : vector<26x64xf32>, i32 -> vector<26x64xf32>
    %c23_i32_142 = arith.constant 23 : i32
    %423 = tpu.dynamic_rotate %419 by %c23_i32_142 dim 0 : vector<26x64xf32>, i32 -> vector<26x64xf32>
    %424 = tpu.concatenate %419, %421, %422, %423 in 1 : vector<26x64xf32>, vector<26x64xf32>, vector<26x64xf32>, vector<26x64xf32> -> vector<26x256xf32>
    %425 = arith.truncf %424 : vector<26x256xf32> to vector<26x256xbf16>
    %cst_143 = arith.constant dense<0.000000e+00> : vector<26x64xf32>
    %426 = tpu.matmul %425, %5, %cst_143 {dimension_numbers = #tpu.dot_dimension_numbers<[1], [0], [0], [1], [0, 0, 1, 1], [], []>} : vector<26x256xbf16>, vector<256x64xbf16>, vector<26x64xf32> -> vector<26x64xf32>
    %427 = vector.extract_strided_slice %420 {offsets = [0, 0], sizes = [1, 64], strides = [1, 1]} : vector<3x64xf32> to vector<1x64xf32>
    %428 = vector.broadcast %427 : vector<1x64xf32> to vector<26x64xf32>
    %429 = arith.addf %426, %428 : vector<26x64xf32>
    %430 = math.tanh %429 : vector<26x64xf32>
    %431 = vector.extract_strided_slice %420 {offsets = [1, 0], sizes = [1, 64], strides = [1, 1]} : vector<3x64xf32> to vector<1x64xf32>
    %432 = vector.broadcast %431 : vector<1x64xf32> to vector<26x64xf32>
    %433 = arith.mulf %430, %432 : vector<26x64xf32>
    %434 = vector.extract_strided_slice %420 {offsets = [2, 0], sizes = [1, 64], strides = [1, 1]} : vector<3x64xf32> to vector<1x64xf32>
    %435 = vector.broadcast %434 : vector<1x64xf32> to vector<26x64xf32>
    %436 = arith.addf %433, %435 : vector<26x64xf32>
    %437 = vector.extract_strided_slice %7 {offsets = [6, 0], sizes = [3, 64], strides = [1, 1]} : vector<9x64xf32> to vector<3x64xf32>
    %c25_i32_144 = arith.constant 25 : i32
    %438 = tpu.dynamic_rotate %436 by %c25_i32_144 dim 0 : vector<26x64xf32>, i32 -> vector<26x64xf32>
    %c24_i32_145 = arith.constant 24 : i32
    %439 = tpu.dynamic_rotate %436 by %c24_i32_145 dim 0 : vector<26x64xf32>, i32 -> vector<26x64xf32>
    %c23_i32_146 = arith.constant 23 : i32
    %440 = tpu.dynamic_rotate %436 by %c23_i32_146 dim 0 : vector<26x64xf32>, i32 -> vector<26x64xf32>
    %441 = tpu.concatenate %436, %438, %439, %440 in 1 : vector<26x64xf32>, vector<26x64xf32>, vector<26x64xf32>, vector<26x64xf32> -> vector<26x256xf32>
    %442 = arith.truncf %441 : vector<26x256xf32> to vector<26x256xbf16>
    %cst_147 = arith.constant dense<0.000000e+00> : vector<26x64xf32>
    %443 = tpu.matmul %442, %6, %cst_147 {dimension_numbers = #tpu.dot_dimension_numbers<[1], [0], [0], [1], [0, 0, 1, 1], [], []>} : vector<26x256xbf16>, vector<256x64xbf16>, vector<26x64xf32> -> vector<26x64xf32>
    %444 = vector.extract_strided_slice %437 {offsets = [0, 0], sizes = [1, 64], strides = [1, 1]} : vector<3x64xf32> to vector<1x64xf32>
    %445 = vector.broadcast %444 : vector<1x64xf32> to vector<26x64xf32>
    %446 = arith.addf %443, %445 : vector<26x64xf32>
    %447 = math.tanh %446 : vector<26x64xf32>
    %448 = vector.extract_strided_slice %437 {offsets = [1, 0], sizes = [1, 64], strides = [1, 1]} : vector<3x64xf32> to vector<1x64xf32>
    %449 = vector.broadcast %448 : vector<1x64xf32> to vector<26x64xf32>
    %450 = arith.mulf %447, %449 : vector<26x64xf32>
    %451 = vector.extract_strided_slice %437 {offsets = [2, 0], sizes = [1, 64], strides = [1, 1]} : vector<3x64xf32> to vector<1x64xf32>
    %452 = vector.broadcast %451 : vector<1x64xf32> to vector<26x64xf32>
    %453 = arith.addf %450, %452 : vector<26x64xf32>
    %c0_148 = arith.constant 0 : index
    %c4 = arith.constant 4 : index
    %c0_149 = arith.constant 0 : index
    %c0_150 = arith.constant 0 : index
    %454 = vector.load %arg1[%c0_148, %c4, %c0_149, %c0_150] : memref<1x5x26x8xf32, #tpu.memory_space<vmem>>, vector<1x1x26x8xf32>
    %455 = vector.shape_cast %454 : vector<1x1x26x8xf32> to vector<26x8xf32>
    %456 = vector.extract_strided_slice %3 {offsets = [0, 0], sizes = [3, 128], strides = [1, 1]} : vector<9x128xf32> to vector<3x128xf32>
    %457 = arith.truncf %455 : vector<26x8xf32> to vector<26x8xbf16>
    %cst_151 = arith.constant dense<0.000000e+00> : vector<26x128xf32>
    %458 = tpu.matmul %457, %0, %cst_151 {dimension_numbers = #tpu.dot_dimension_numbers<[1], [0], [0], [1], [0, 0, 1, 1], [], []>} : vector<26x8xbf16>, vector<8x128xbf16>, vector<26x128xf32> -> vector<26x128xf32>
    %459 = vector.extract_strided_slice %456 {offsets = [0, 0], sizes = [1, 128], strides = [1, 1]} : vector<3x128xf32> to vector<1x128xf32>
    %460 = vector.broadcast %459 : vector<1x128xf32> to vector<26x128xf32>
    %461 = arith.addf %458, %460 : vector<26x128xf32>
    %cst_152 = arith.constant 0.000000e+00 : f32
    %462 = vector.broadcast %cst_152 : f32 to vector<26x128xf32>
    %463 = arith.cmpf oge, %461, %462 : vector<26x128xf32>
    %cst_153 = arith.constant 0.00999999977 : f32
    %464 = vector.broadcast %cst_153 : f32 to vector<26x128xf32>
    %465 = arith.mulf %464, %461 : vector<26x128xf32>
    %466 = arith.select %463, %461, %465 : vector<26x128xi1>, vector<26x128xf32>
    %467 = vector.extract_strided_slice %456 {offsets = [1, 0], sizes = [1, 128], strides = [1, 1]} : vector<3x128xf32> to vector<1x128xf32>
    %468 = vector.broadcast %467 : vector<1x128xf32> to vector<26x128xf32>
    %469 = arith.mulf %466, %468 : vector<26x128xf32>
    %470 = vector.extract_strided_slice %456 {offsets = [2, 0], sizes = [1, 128], strides = [1, 1]} : vector<3x128xf32> to vector<1x128xf32>
    %471 = vector.broadcast %470 : vector<1x128xf32> to vector<26x128xf32>
    %472 = arith.addf %469, %471 : vector<26x128xf32>
    %473 = vector.extract_strided_slice %3 {offsets = [3, 0], sizes = [3, 128], strides = [1, 1]} : vector<9x128xf32> to vector<3x128xf32>
    %c25_i32_154 = arith.constant 25 : i32
    %474 = tpu.dynamic_rotate %472 by %c25_i32_154 dim 0 : vector<26x128xf32>, i32 -> vector<26x128xf32>
    %c24_i32_155 = arith.constant 24 : i32
    %475 = tpu.dynamic_rotate %472 by %c24_i32_155 dim 0 : vector<26x128xf32>, i32 -> vector<26x128xf32>
    %c23_i32_156 = arith.constant 23 : i32
    %476 = tpu.dynamic_rotate %472 by %c23_i32_156 dim 0 : vector<26x128xf32>, i32 -> vector<26x128xf32>
    %477 = tpu.concatenate %472, %474, %475, %476 in 1 : vector<26x128xf32>, vector<26x128xf32>, vector<26x128xf32>, vector<26x128xf32> -> vector<26x512xf32>
    %478 = arith.truncf %477 : vector<26x512xf32> to vector<26x512xbf16>
    %cst_157 = arith.constant dense<0.000000e+00> : vector<26x128xf32>
    %479 = tpu.matmul %478, %1, %cst_157 {dimension_numbers = #tpu.dot_dimension_numbers<[1], [0], [0], [1], [0, 0, 1, 1], [], []>} : vector<26x512xbf16>, vector<512x128xbf16>, vector<26x128xf32> -> vector<26x128xf32>
    %480 = vector.extract_strided_slice %473 {offsets = [0, 0], sizes = [1, 128], strides = [1, 1]} : vector<3x128xf32> to vector<1x128xf32>
    %481 = vector.broadcast %480 : vector<1x128xf32> to vector<26x128xf32>
    %482 = arith.addf %479, %481 : vector<26x128xf32>
    %cst_158 = arith.constant 0.000000e+00 : f32
    %483 = vector.broadcast %cst_158 : f32 to vector<26x128xf32>
    %484 = arith.cmpf oge, %482, %483 : vector<26x128xf32>
    %cst_159 = arith.constant 0.00999999977 : f32
    %485 = vector.broadcast %cst_159 : f32 to vector<26x128xf32>
    %486 = arith.mulf %485, %482 : vector<26x128xf32>
    %487 = arith.select %484, %482, %486 : vector<26x128xi1>, vector<26x128xf32>
    %488 = vector.extract_strided_slice %473 {offsets = [1, 0], sizes = [1, 128], strides = [1, 1]} : vector<3x128xf32> to vector<1x128xf32>
    %489 = vector.broadcast %488 : vector<1x128xf32> to vector<26x128xf32>
    %490 = arith.mulf %487, %489 : vector<26x128xf32>
    %491 = vector.extract_strided_slice %473 {offsets = [2, 0], sizes = [1, 128], strides = [1, 1]} : vector<3x128xf32> to vector<1x128xf32>
    %492 = vector.broadcast %491 : vector<1x128xf32> to vector<26x128xf32>
    %493 = arith.addf %490, %492 : vector<26x128xf32>
    %494 = vector.extract_strided_slice %3 {offsets = [6, 0], sizes = [3, 128], strides = [1, 1]} : vector<9x128xf32> to vector<3x128xf32>
    %c25_i32_160 = arith.constant 25 : i32
    %495 = tpu.dynamic_rotate %493 by %c25_i32_160 dim 0 : vector<26x128xf32>, i32 -> vector<26x128xf32>
    %c24_i32_161 = arith.constant 24 : i32
    %496 = tpu.dynamic_rotate %493 by %c24_i32_161 dim 0 : vector<26x128xf32>, i32 -> vector<26x128xf32>
    %c23_i32_162 = arith.constant 23 : i32
    %497 = tpu.dynamic_rotate %493 by %c23_i32_162 dim 0 : vector<26x128xf32>, i32 -> vector<26x128xf32>
    %498 = tpu.concatenate %493, %495, %496, %497 in 1 : vector<26x128xf32>, vector<26x128xf32>, vector<26x128xf32>, vector<26x128xf32> -> vector<26x512xf32>
    %499 = arith.truncf %498 : vector<26x512xf32> to vector<26x512xbf16>
    %cst_163 = arith.constant dense<0.000000e+00> : vector<26x128xf32>
    %500 = tpu.matmul %499, %2, %cst_163 {dimension_numbers = #tpu.dot_dimension_numbers<[1], [0], [0], [1], [0, 0, 1, 1], [], []>} : vector<26x512xbf16>, vector<512x128xbf16>, vector<26x128xf32> -> vector<26x128xf32>
    %501 = vector.extract_strided_slice %494 {offsets = [0, 0], sizes = [1, 128], strides = [1, 1]} : vector<3x128xf32> to vector<1x128xf32>
    %502 = vector.broadcast %501 : vector<1x128xf32> to vector<26x128xf32>
    %503 = arith.addf %500, %502 : vector<26x128xf32>
    %cst_164 = arith.constant 0.000000e+00 : f32
    %504 = vector.broadcast %cst_164 : f32 to vector<26x128xf32>
    %505 = arith.cmpf oge, %503, %504 : vector<26x128xf32>
    %cst_165 = arith.constant 0.00999999977 : f32
    %506 = vector.broadcast %cst_165 : f32 to vector<26x128xf32>
    %507 = arith.mulf %506, %503 : vector<26x128xf32>
    %508 = arith.select %505, %503, %507 : vector<26x128xi1>, vector<26x128xf32>
    %509 = vector.extract_strided_slice %494 {offsets = [1, 0], sizes = [1, 128], strides = [1, 1]} : vector<3x128xf32> to vector<1x128xf32>
    %510 = vector.broadcast %509 : vector<1x128xf32> to vector<26x128xf32>
    %511 = arith.mulf %508, %510 : vector<26x128xf32>
    %512 = vector.extract_strided_slice %494 {offsets = [2, 0], sizes = [1, 128], strides = [1, 1]} : vector<3x128xf32> to vector<1x128xf32>
    %513 = vector.broadcast %512 : vector<1x128xf32> to vector<26x128xf32>
    %514 = arith.addf %511, %513 : vector<26x128xf32>
    %515 = vector.extract_strided_slice %7 {offsets = [0, 0], sizes = [3, 64], strides = [1, 1]} : vector<9x64xf32> to vector<3x64xf32>
    %516 = arith.truncf %514 : vector<26x128xf32> to vector<26x128xbf16>
    %cst_166 = arith.constant dense<0.000000e+00> : vector<26x64xf32>
    %517 = tpu.matmul %516, %4, %cst_166 {dimension_numbers = #tpu.dot_dimension_numbers<[1], [0], [0], [1], [0, 0, 1, 1], [], []>} : vector<26x128xbf16>, vector<128x64xbf16>, vector<26x64xf32> -> vector<26x64xf32>
    %518 = vector.extract_strided_slice %515 {offsets = [0, 0], sizes = [1, 64], strides = [1, 1]} : vector<3x64xf32> to vector<1x64xf32>
    %519 = vector.broadcast %518 : vector<1x64xf32> to vector<26x64xf32>
    %520 = arith.addf %517, %519 : vector<26x64xf32>
    %521 = math.tanh %520 : vector<26x64xf32>
    %522 = vector.extract_strided_slice %515 {offsets = [1, 0], sizes = [1, 64], strides = [1, 1]} : vector<3x64xf32> to vector<1x64xf32>
    %523 = vector.broadcast %522 : vector<1x64xf32> to vector<26x64xf32>
    %524 = arith.mulf %521, %523 : vector<26x64xf32>
    %525 = vector.extract_strided_slice %515 {offsets = [2, 0], sizes = [1, 64], strides = [1, 1]} : vector<3x64xf32> to vector<1x64xf32>
    %526 = vector.broadcast %525 : vector<1x64xf32> to vector<26x64xf32>
    %527 = arith.addf %524, %526 : vector<26x64xf32>
    %528 = vector.extract_strided_slice %7 {offsets = [3, 0], sizes = [3, 64], strides = [1, 1]} : vector<9x64xf32> to vector<3x64xf32>
    %c25_i32_167 = arith.constant 25 : i32
    %529 = tpu.dynamic_rotate %527 by %c25_i32_167 dim 0 : vector<26x64xf32>, i32 -> vector<26x64xf32>
    %c24_i32_168 = arith.constant 24 : i32
    %530 = tpu.dynamic_rotate %527 by %c24_i32_168 dim 0 : vector<26x64xf32>, i32 -> vector<26x64xf32>
    %c23_i32_169 = arith.constant 23 : i32
    %531 = tpu.dynamic_rotate %527 by %c23_i32_169 dim 0 : vector<26x64xf32>, i32 -> vector<26x64xf32>
    %532 = tpu.concatenate %527, %529, %530, %531 in 1 : vector<26x64xf32>, vector<26x64xf32>, vector<26x64xf32>, vector<26x64xf32> -> vector<26x256xf32>
    %533 = arith.truncf %532 : vector<26x256xf32> to vector<26x256xbf16>
    %cst_170 = arith.constant dense<0.000000e+00> : vector<26x64xf32>
    %534 = tpu.matmul %533, %5, %cst_170 {dimension_numbers = #tpu.dot_dimension_numbers<[1], [0], [0], [1], [0, 0, 1, 1], [], []>} : vector<26x256xbf16>, vector<256x64xbf16>, vector<26x64xf32> -> vector<26x64xf32>
    %535 = vector.extract_strided_slice %528 {offsets = [0, 0], sizes = [1, 64], strides = [1, 1]} : vector<3x64xf32> to vector<1x64xf32>
    %536 = vector.broadcast %535 : vector<1x64xf32> to vector<26x64xf32>
    %537 = arith.addf %534, %536 : vector<26x64xf32>
    %538 = math.tanh %537 : vector<26x64xf32>
    %539 = vector.extract_strided_slice %528 {offsets = [1, 0], sizes = [1, 64], strides = [1, 1]} : vector<3x64xf32> to vector<1x64xf32>
    %540 = vector.broadcast %539 : vector<1x64xf32> to vector<26x64xf32>
    %541 = arith.mulf %538, %540 : vector<26x64xf32>
    %542 = vector.extract_strided_slice %528 {offsets = [2, 0], sizes = [1, 64], strides = [1, 1]} : vector<3x64xf32> to vector<1x64xf32>
    %543 = vector.broadcast %542 : vector<1x64xf32> to vector<26x64xf32>
    %544 = arith.addf %541, %543 : vector<26x64xf32>
    %545 = vector.extract_strided_slice %7 {offsets = [6, 0], sizes = [3, 64], strides = [1, 1]} : vector<9x64xf32> to vector<3x64xf32>
    %c25_i32_171 = arith.constant 25 : i32
    %546 = tpu.dynamic_rotate %544 by %c25_i32_171 dim 0 : vector<26x64xf32>, i32 -> vector<26x64xf32>
    %c24_i32_172 = arith.constant 24 : i32
    %547 = tpu.dynamic_rotate %544 by %c24_i32_172 dim 0 : vector<26x64xf32>, i32 -> vector<26x64xf32>
    %c23_i32_173 = arith.constant 23 : i32
    %548 = tpu.dynamic_rotate %544 by %c23_i32_173 dim 0 : vector<26x64xf32>, i32 -> vector<26x64xf32>
    %549 = tpu.concatenate %544, %546, %547, %548 in 1 : vector<26x64xf32>, vector<26x64xf32>, vector<26x64xf32>, vector<26x64xf32> -> vector<26x256xf32>
    %550 = arith.truncf %549 : vector<26x256xf32> to vector<26x256xbf16>
    %cst_174 = arith.constant dense<0.000000e+00> : vector<26x64xf32>
    %551 = tpu.matmul %550, %6, %cst_174 {dimension_numbers = #tpu.dot_dimension_numbers<[1], [0], [0], [1], [0, 0, 1, 1], [], []>} : vector<26x256xbf16>, vector<256x64xbf16>, vector<26x64xf32> -> vector<26x64xf32>
    %552 = vector.extract_strided_slice %545 {offsets = [0, 0], sizes = [1, 64], strides = [1, 1]} : vector<3x64xf32> to vector<1x64xf32>
    %553 = vector.broadcast %552 : vector<1x64xf32> to vector<26x64xf32>
    %554 = arith.addf %551, %553 : vector<26x64xf32>
    %555 = math.tanh %554 : vector<26x64xf32>
    %556 = vector.extract_strided_slice %545 {offsets = [1, 0], sizes = [1, 64], strides = [1, 1]} : vector<3x64xf32> to vector<1x64xf32>
    %557 = vector.broadcast %556 : vector<1x64xf32> to vector<26x64xf32>
    %558 = arith.mulf %555, %557 : vector<26x64xf32>
    %559 = vector.extract_strided_slice %545 {offsets = [2, 0], sizes = [1, 64], strides = [1, 1]} : vector<3x64xf32> to vector<1x64xf32>
    %560 = vector.broadcast %559 : vector<1x64xf32> to vector<26x64xf32>
    %561 = arith.addf %558, %560 : vector<26x64xf32>
    %562 = tpu.concatenate %129, %237, %345, %453, %561 in 1 : vector<26x64xf32>, vector<26x64xf32>, vector<26x64xf32>, vector<26x64xf32>, vector<26x64xf32> -> vector<26x320xf32>
    %563 = vector.extract_strided_slice %11 {offsets = [0, 0], sizes = [3, 32], strides = [1, 1]} : vector<9x32xf32> to vector<3x32xf32>
    %564 = arith.truncf %562 : vector<26x320xf32> to vector<26x320xbf16>
    %cst_175 = arith.constant dense<0.000000e+00> : vector<26x32xf32>
    %565 = tpu.matmul %564, %8, %cst_175 {dimension_numbers = #tpu.dot_dimension_numbers<[1], [0], [0], [1], [0, 0, 1, 1], [], []>} : vector<26x320xbf16>, vector<320x32xbf16>, vector<26x32xf32> -> vector<26x32xf32>
    %566 = vector.extract_strided_slice %563 {offsets = [0, 0], sizes = [1, 32], strides = [1, 1]} : vector<3x32xf32> to vector<1x32xf32>
    %567 = vector.broadcast %566 : vector<1x32xf32> to vector<26x32xf32>
    %568 = arith.addf %565, %567 : vector<26x32xf32>
    %cst_176 = arith.constant 0.000000e+00 : f32
    %569 = vector.broadcast %cst_176 : f32 to vector<26x32xf32>
    %570 = arith.cmpf oge, %568, %569 : vector<26x32xf32>
    %cst_177 = arith.constant 0.00999999977 : f32
    %571 = vector.broadcast %cst_177 : f32 to vector<26x32xf32>
    %572 = arith.mulf %571, %568 : vector<26x32xf32>
    %573 = arith.select %570, %568, %572 : vector<26x32xi1>, vector<26x32xf32>
    %574 = vector.extract_strided_slice %563 {offsets = [1, 0], sizes = [1, 32], strides = [1, 1]} : vector<3x32xf32> to vector<1x32xf32>
    %575 = vector.broadcast %574 : vector<1x32xf32> to vector<26x32xf32>
    %576 = arith.mulf %573, %575 : vector<26x32xf32>
    %577 = vector.extract_strided_slice %563 {offsets = [2, 0], sizes = [1, 32], strides = [1, 1]} : vector<3x32xf32> to vector<1x32xf32>
    %578 = vector.broadcast %577 : vector<1x32xf32> to vector<26x32xf32>
    %579 = arith.addf %576, %578 : vector<26x32xf32>
    %580 = vector.extract_strided_slice %11 {offsets = [3, 0], sizes = [3, 32], strides = [1, 1]} : vector<9x32xf32> to vector<3x32xf32>
    %c25_i32_178 = arith.constant 25 : i32
    %581 = tpu.dynamic_rotate %579 by %c25_i32_178 dim 0 : vector<26x32xf32>, i32 -> vector<26x32xf32>
    %c24_i32_179 = arith.constant 24 : i32
    %582 = tpu.dynamic_rotate %579 by %c24_i32_179 dim 0 : vector<26x32xf32>, i32 -> vector<26x32xf32>
    %c23_i32_180 = arith.constant 23 : i32
    %583 = tpu.dynamic_rotate %579 by %c23_i32_180 dim 0 : vector<26x32xf32>, i32 -> vector<26x32xf32>
    %584 = tpu.concatenate %579, %581, %582, %583 in 1 : vector<26x32xf32>, vector<26x32xf32>, vector<26x32xf32>, vector<26x32xf32> -> vector<26x128xf32>
    %585 = arith.truncf %584 : vector<26x128xf32> to vector<26x128xbf16>
    %cst_181 = arith.constant dense<0.000000e+00> : vector<26x32xf32>
    %586 = tpu.matmul %585, %9, %cst_181 {dimension_numbers = #tpu.dot_dimension_numbers<[1], [0], [0], [1], [0, 0, 1, 1], [], []>} : vector<26x128xbf16>, vector<128x32xbf16>, vector<26x32xf32> -> vector<26x32xf32>
    %587 = vector.extract_strided_slice %580 {offsets = [0, 0], sizes = [1, 32], strides = [1, 1]} : vector<3x32xf32> to vector<1x32xf32>
    %588 = vector.broadcast %587 : vector<1x32xf32> to vector<26x32xf32>
    %589 = arith.addf %586, %588 : vector<26x32xf32>
    %cst_182 = arith.constant 0.000000e+00 : f32
    %590 = vector.broadcast %cst_182 : f32 to vector<26x32xf32>
    %591 = arith.cmpf oge, %589, %590 : vector<26x32xf32>
    %cst_183 = arith.constant 0.00999999977 : f32
    %592 = vector.broadcast %cst_183 : f32 to vector<26x32xf32>
    %593 = arith.mulf %592, %589 : vector<26x32xf32>
    %594 = arith.select %591, %589, %593 : vector<26x32xi1>, vector<26x32xf32>
    %595 = vector.extract_strided_slice %580 {offsets = [1, 0], sizes = [1, 32], strides = [1, 1]} : vector<3x32xf32> to vector<1x32xf32>
    %596 = vector.broadcast %595 : vector<1x32xf32> to vector<26x32xf32>
    %597 = arith.mulf %594, %596 : vector<26x32xf32>
    %598 = vector.extract_strided_slice %580 {offsets = [2, 0], sizes = [1, 32], strides = [1, 1]} : vector<3x32xf32> to vector<1x32xf32>
    %599 = vector.broadcast %598 : vector<1x32xf32> to vector<26x32xf32>
    %600 = arith.addf %597, %599 : vector<26x32xf32>
    %601 = vector.extract_strided_slice %11 {offsets = [6, 0], sizes = [3, 32], strides = [1, 1]} : vector<9x32xf32> to vector<3x32xf32>
    %c25_i32_184 = arith.constant 25 : i32
    %602 = tpu.dynamic_rotate %600 by %c25_i32_184 dim 0 : vector<26x32xf32>, i32 -> vector<26x32xf32>
    %c24_i32_185 = arith.constant 24 : i32
    %603 = tpu.dynamic_rotate %600 by %c24_i32_185 dim 0 : vector<26x32xf32>, i32 -> vector<26x32xf32>
    %c23_i32_186 = arith.constant 23 : i32
    %604 = tpu.dynamic_rotate %600 by %c23_i32_186 dim 0 : vector<26x32xf32>, i32 -> vector<26x32xf32>
    %605 = tpu.concatenate %600, %602, %603, %604 in 1 : vector<26x32xf32>, vector<26x32xf32>, vector<26x32xf32>, vector<26x32xf32> -> vector<26x128xf32>
    %606 = arith.truncf %605 : vector<26x128xf32> to vector<26x128xbf16>
    %cst_187 = arith.constant dense<0.000000e+00> : vector<26x32xf32>
    %607 = tpu.matmul %606, %10, %cst_187 {dimension_numbers = #tpu.dot_dimension_numbers<[1], [0], [0], [1], [0, 0, 1, 1], [], []>} : vector<26x128xbf16>, vector<128x32xbf16>, vector<26x32xf32> -> vector<26x32xf32>
    %608 = vector.extract_strided_slice %601 {offsets = [0, 0], sizes = [1, 32], strides = [1, 1]} : vector<3x32xf32> to vector<1x32xf32>
    %609 = vector.broadcast %608 : vector<1x32xf32> to vector<26x32xf32>
    %610 = arith.addf %607, %609 : vector<26x32xf32>
    %cst_188 = arith.constant 0.000000e+00 : f32
    %611 = vector.broadcast %cst_188 : f32 to vector<26x32xf32>
    %612 = arith.cmpf oge, %610, %611 : vector<26x32xf32>
    %cst_189 = arith.constant 0.00999999977 : f32
    %613 = vector.broadcast %cst_189 : f32 to vector<26x32xf32>
    %614 = arith.mulf %613, %610 : vector<26x32xf32>
    %615 = arith.select %612, %610, %614 : vector<26x32xi1>, vector<26x32xf32>
    %616 = vector.extract_strided_slice %601 {offsets = [1, 0], sizes = [1, 32], strides = [1, 1]} : vector<3x32xf32> to vector<1x32xf32>
    %617 = vector.broadcast %616 : vector<1x32xf32> to vector<26x32xf32>
    %618 = arith.mulf %615, %617 : vector<26x32xf32>
    %619 = vector.extract_strided_slice %601 {offsets = [2, 0], sizes = [1, 32], strides = [1, 1]} : vector<3x32xf32> to vector<1x32xf32>
    %620 = vector.broadcast %619 : vector<1x32xf32> to vector<26x32xf32>
    %621 = arith.addf %618, %620 : vector<26x32xf32>
    %c1_i32 = arith.constant 1 : i32
    %622 = tpu.dynamic_rotate %621 by %c1_i32 dim 0 : vector<26x32xf32>, i32 -> vector<26x32xf32>
    %623 = tpu.iota {dimensions = array<i32: 0>} : vector<26x32xi32>
    %c-1_i32 = arith.constant -1 : i32
    %624 = vector.broadcast %c-1_i32 : i32 to vector<26x32xi32>
    %625 = arith.addi %623, %624 : vector<26x32xi32>
    %c0_i32 = arith.constant 0 : i32
    %626 = vector.broadcast %c0_i32 : i32 to vector<26x32xi32>
    %627 = arith.cmpi sge, %625, %626 : vector<26x32xi32>
    %c-1_i32_190 = arith.constant -1 : i32
    %628 = vector.broadcast %c-1_i32_190 : i32 to vector<26x32xi32>
    %629 = arith.addi %623, %628 : vector<26x32xi32>
    %c7_i32 = arith.constant 7 : i32
    %630 = vector.broadcast %c7_i32 : i32 to vector<26x32xi32>
    %631 = arith.cmpi sle, %629, %630 : vector<26x32xi32>
    %632 = arith.andi %627, %631 : vector<26x32xi1>
    %cst_191 = arith.constant 0xFF800000 : f32
    %633 = vector.broadcast %cst_191 : f32 to vector<26x32xf32>
    %634 = arith.select %632, %622, %633 : vector<26x32xi1>, vector<26x32xf32>
    %635 = arith.maximumf %634, %621 : vector<26x32xf32>
    %c25_i32_192 = arith.constant 25 : i32
    %636 = tpu.dynamic_rotate %621 by %c25_i32_192 dim 0 : vector<26x32xf32>, i32 -> vector<26x32xf32>
    %637 = tpu.iota {dimensions = array<i32: 0>} : vector<26x32xi32>
    %c1_i32_193 = arith.constant 1 : i32
    %638 = vector.broadcast %c1_i32_193 : i32 to vector<26x32xi32>
    %639 = arith.addi %637, %638 : vector<26x32xi32>
    %c0_i32_194 = arith.constant 0 : i32
    %640 = vector.broadcast %c0_i32_194 : i32 to vector<26x32xi32>
    %641 = arith.cmpi sge, %639, %640 : vector<26x32xi32>
    %c1_i32_195 = arith.constant 1 : i32
    %642 = vector.broadcast %c1_i32_195 : i32 to vector<26x32xi32>
    %643 = arith.addi %637, %642 : vector<26x32xi32>
    %c7_i32_196 = arith.constant 7 : i32
    %644 = vector.broadcast %c7_i32_196 : i32 to vector<26x32xi32>
    %645 = arith.cmpi sle, %643, %644 : vector<26x32xi32>
    %646 = arith.andi %641, %645 : vector<26x32xi1>
    %cst_197 = arith.constant 0xFF800000 : f32
    %647 = vector.broadcast %cst_197 : f32 to vector<26x32xf32>
    %648 = arith.select %646, %636, %647 : vector<26x32xi1>, vector<26x32xf32>
    %649 = arith.maximumf %635, %648 : vector<26x32xf32>
    %650 = tpu.concatenate %621, %649 in 1 : vector<26x32xf32>, vector<26x32xf32> -> vector<26x64xf32>
    %651 = arith.truncf %650 : vector<26x64xf32> to vector<26x64xbf16>
    %cst_198 = arith.constant dense<0.000000e+00> : vector<26x192xf32>
    %652 = tpu.matmul %651, %12, %cst_198 {dimension_numbers = #tpu.dot_dimension_numbers<[1], [0], [0], [1], [0, 0, 1, 1], [], []>} : vector<26x64xbf16>, vector<64x192xbf16>, vector<26x192xf32> -> vector<26x192xf32>
    %653 = vector.extract_strided_slice %13 {offsets = [0, 0], sizes = [1, 192], strides = [1, 1]} : vector<3x192xf32> to vector<1x192xf32>
    %654 = vector.broadcast %653 : vector<1x192xf32> to vector<26x192xf32>
    %655 = arith.addf %652, %654 : vector<26x192xf32>
    %cst_199 = arith.constant 0.000000e+00 : f32
    %656 = vector.broadcast %cst_199 : f32 to vector<26x192xf32>
    %657 = arith.cmpf oge, %655, %656 : vector<26x192xf32>
    %cst_200 = arith.constant 0.00999999977 : f32
    %658 = vector.broadcast %cst_200 : f32 to vector<26x192xf32>
    %659 = arith.mulf %658, %655 : vector<26x192xf32>
    %660 = arith.select %657, %655, %659 : vector<26x192xi1>, vector<26x192xf32>
    %661 = vector.extract_strided_slice %13 {offsets = [1, 0], sizes = [1, 192], strides = [1, 1]} : vector<3x192xf32> to vector<1x192xf32>
    %662 = vector.broadcast %661 : vector<1x192xf32> to vector<26x192xf32>
    %663 = arith.mulf %660, %662 : vector<26x192xf32>
    %664 = vector.extract_strided_slice %13 {offsets = [2, 0], sizes = [1, 192], strides = [1, 1]} : vector<3x192xf32> to vector<1x192xf32>
    %665 = vector.broadcast %664 : vector<1x192xf32> to vector<26x192xf32>
    %666 = arith.addf %663, %665 : vector<26x192xf32>
    %667 = vector.extract_strided_slice %666 {offsets = [0, 0], sizes = [26, 64], strides = [1, 1]} : vector<26x192xf32> to vector<26x64xf32>
    %668 = vector.extract_strided_slice %666 {offsets = [0, 64], sizes = [26, 64], strides = [1, 1]} : vector<26x192xf32> to vector<26x64xf32>
    %669 = vector.extract_strided_slice %666 {offsets = [0, 128], sizes = [26, 64], strides = [1, 1]} : vector<26x192xf32> to vector<26x64xf32>
    %c1_i32_201 = arith.constant 1 : i32
    %670 = tpu.dynamic_rotate %667 by %c1_i32_201 dim 0 : vector<26x64xf32>, i32 -> vector<26x64xf32>
    %671 = tpu.iota {dimensions = array<i32: 0>} : vector<26x64xi32>
    %c-1_i32_202 = arith.constant -1 : i32
    %672 = vector.broadcast %c-1_i32_202 : i32 to vector<26x64xi32>
    %673 = arith.addi %671, %672 : vector<26x64xi32>
    %c0_i32_203 = arith.constant 0 : i32
    %674 = vector.broadcast %c0_i32_203 : i32 to vector<26x64xi32>
    %675 = arith.cmpi sge, %673, %674 : vector<26x64xi32>
    %c-1_i32_204 = arith.constant -1 : i32
    %676 = vector.broadcast %c-1_i32_204 : i32 to vector<26x64xi32>
    %677 = arith.addi %671, %676 : vector<26x64xi32>
    %c7_i32_205 = arith.constant 7 : i32
    %678 = vector.broadcast %c7_i32_205 : i32 to vector<26x64xi32>
    %679 = arith.cmpi sle, %677, %678 : vector<26x64xi32>
    %680 = arith.andi %675, %679 : vector<26x64xi1>
    %cst_206 = arith.constant 0.000000e+00 : f32
    %681 = vector.broadcast %cst_206 : f32 to vector<26x64xf32>
    %682 = arith.select %680, %670, %681 : vector<26x64xi1>, vector<26x64xf32>
    %683 = tpu.iota {dimensions = array<i32: 0>} : vector<26x64xi32>
    %c0_i32_207 = arith.constant 0 : i32
    %684 = vector.broadcast %c0_i32_207 : i32 to vector<26x64xi32>
    %685 = arith.addi %683, %684 : vector<26x64xi32>
    %c0_i32_208 = arith.constant 0 : i32
    %686 = vector.broadcast %c0_i32_208 : i32 to vector<26x64xi32>
    %687 = arith.cmpi sge, %685, %686 : vector<26x64xi32>
    %c0_i32_209 = arith.constant 0 : i32
    %688 = vector.broadcast %c0_i32_209 : i32 to vector<26x64xi32>
    %689 = arith.addi %683, %688 : vector<26x64xi32>
    %c7_i32_210 = arith.constant 7 : i32
    %690 = vector.broadcast %c7_i32_210 : i32 to vector<26x64xi32>
    %691 = arith.cmpi sle, %689, %690 : vector<26x64xi32>
    %692 = arith.andi %687, %691 : vector<26x64xi1>
    %cst_211 = arith.constant 0.000000e+00 : f32
    %693 = vector.broadcast %cst_211 : f32 to vector<26x64xf32>
    %694 = arith.select %692, %667, %693 : vector<26x64xi1>, vector<26x64xf32>
    %c25_i32_212 = arith.constant 25 : i32
    %695 = tpu.dynamic_rotate %667 by %c25_i32_212 dim 0 : vector<26x64xf32>, i32 -> vector<26x64xf32>
    %696 = tpu.iota {dimensions = array<i32: 0>} : vector<26x64xi32>
    %c1_i32_213 = arith.constant 1 : i32
    %697 = vector.broadcast %c1_i32_213 : i32 to vector<26x64xi32>
    %698 = arith.addi %696, %697 : vector<26x64xi32>
    %c0_i32_214 = arith.constant 0 : i32
    %699 = vector.broadcast %c0_i32_214 : i32 to vector<26x64xi32>
    %700 = arith.cmpi sge, %698, %699 : vector<26x64xi32>
    %c1_i32_215 = arith.constant 1 : i32
    %701 = vector.broadcast %c1_i32_215 : i32 to vector<26x64xi32>
    %702 = arith.addi %696, %701 : vector<26x64xi32>
    %c7_i32_216 = arith.constant 7 : i32
    %703 = vector.broadcast %c7_i32_216 : i32 to vector<26x64xi32>
    %704 = arith.cmpi sle, %702, %703 : vector<26x64xi32>
    %705 = arith.andi %700, %704 : vector<26x64xi1>
    %cst_217 = arith.constant 0.000000e+00 : f32
    %706 = vector.broadcast %cst_217 : f32 to vector<26x64xf32>
    %707 = arith.select %705, %695, %706 : vector<26x64xi1>, vector<26x64xf32>
    %708 = tpu.concatenate %682, %694, %707 in 1 : vector<26x64xf32>, vector<26x64xf32>, vector<26x64xf32> -> vector<26x192xf32>
    %709 = vector.extract_strided_slice %16 {offsets = [0, 0], sizes = [3, 64], strides = [1, 1]} : vector<6x64xf32> to vector<3x64xf32>
    %710 = arith.truncf %708 : vector<26x192xf32> to vector<26x192xbf16>
    %cst_218 = arith.constant dense<0.000000e+00> : vector<26x64xf32>
    %711 = tpu.matmul %710, %14, %cst_218 {dimension_numbers = #tpu.dot_dimension_numbers<[1], [0], [0], [1], [0, 0, 1, 1], [], []>} : vector<26x192xbf16>, vector<192x64xbf16>, vector<26x64xf32> -> vector<26x64xf32>
    %712 = vector.extract_strided_slice %709 {offsets = [0, 0], sizes = [1, 64], strides = [1, 1]} : vector<3x64xf32> to vector<1x64xf32>
    %713 = vector.broadcast %712 : vector<1x64xf32> to vector<26x64xf32>
    %714 = arith.addf %711, %713 : vector<26x64xf32>
    %cst_219 = arith.constant 0.000000e+00 : f32
    %715 = vector.broadcast %cst_219 : f32 to vector<26x64xf32>
    %716 = arith.cmpf oge, %714, %715 : vector<26x64xf32>
    %cst_220 = arith.constant 0.00999999977 : f32
    %717 = vector.broadcast %cst_220 : f32 to vector<26x64xf32>
    %718 = arith.mulf %717, %714 : vector<26x64xf32>
    %719 = arith.select %716, %714, %718 : vector<26x64xi1>, vector<26x64xf32>
    %720 = vector.extract_strided_slice %709 {offsets = [1, 0], sizes = [1, 64], strides = [1, 1]} : vector<3x64xf32> to vector<1x64xf32>
    %721 = vector.broadcast %720 : vector<1x64xf32> to vector<26x64xf32>
    %722 = arith.mulf %719, %721 : vector<26x64xf32>
    %723 = vector.extract_strided_slice %709 {offsets = [2, 0], sizes = [1, 64], strides = [1, 1]} : vector<3x64xf32> to vector<1x64xf32>
    %724 = vector.broadcast %723 : vector<1x64xf32> to vector<26x64xf32>
    %725 = arith.addf %722, %724 : vector<26x64xf32>
    %c2_i32 = arith.constant 2 : i32
    %726 = tpu.dynamic_rotate %668 by %c2_i32 dim 0 : vector<26x64xf32>, i32 -> vector<26x64xf32>
    %727 = tpu.iota {dimensions = array<i32: 0>} : vector<26x64xi32>
    %c-2_i32 = arith.constant -2 : i32
    %728 = vector.broadcast %c-2_i32 : i32 to vector<26x64xi32>
    %729 = arith.addi %727, %728 : vector<26x64xi32>
    %c0_i32_221 = arith.constant 0 : i32
    %730 = vector.broadcast %c0_i32_221 : i32 to vector<26x64xi32>
    %731 = arith.cmpi sge, %729, %730 : vector<26x64xi32>
    %c-2_i32_222 = arith.constant -2 : i32
    %732 = vector.broadcast %c-2_i32_222 : i32 to vector<26x64xi32>
    %733 = arith.addi %727, %732 : vector<26x64xi32>
    %c7_i32_223 = arith.constant 7 : i32
    %734 = vector.broadcast %c7_i32_223 : i32 to vector<26x64xi32>
    %735 = arith.cmpi sle, %733, %734 : vector<26x64xi32>
    %736 = arith.andi %731, %735 : vector<26x64xi1>
    %cst_224 = arith.constant 0.000000e+00 : f32
    %737 = vector.broadcast %cst_224 : f32 to vector<26x64xf32>
    %738 = arith.select %736, %726, %737 : vector<26x64xi1>, vector<26x64xf32>
    %c1_i32_225 = arith.constant 1 : i32
    %739 = tpu.dynamic_rotate %668 by %c1_i32_225 dim 0 : vector<26x64xf32>, i32 -> vector<26x64xf32>
    %740 = tpu.iota {dimensions = array<i32: 0>} : vector<26x64xi32>
    %c-1_i32_226 = arith.constant -1 : i32
    %741 = vector.broadcast %c-1_i32_226 : i32 to vector<26x64xi32>
    %742 = arith.addi %740, %741 : vector<26x64xi32>
    %c0_i32_227 = arith.constant 0 : i32
    %743 = vector.broadcast %c0_i32_227 : i32 to vector<26x64xi32>
    %744 = arith.cmpi sge, %742, %743 : vector<26x64xi32>
    %c-1_i32_228 = arith.constant -1 : i32
    %745 = vector.broadcast %c-1_i32_228 : i32 to vector<26x64xi32>
    %746 = arith.addi %740, %745 : vector<26x64xi32>
    %c7_i32_229 = arith.constant 7 : i32
    %747 = vector.broadcast %c7_i32_229 : i32 to vector<26x64xi32>
    %748 = arith.cmpi sle, %746, %747 : vector<26x64xi32>
    %749 = arith.andi %744, %748 : vector<26x64xi1>
    %cst_230 = arith.constant 0.000000e+00 : f32
    %750 = vector.broadcast %cst_230 : f32 to vector<26x64xf32>
    %751 = arith.select %749, %739, %750 : vector<26x64xi1>, vector<26x64xf32>
    %752 = tpu.iota {dimensions = array<i32: 0>} : vector<26x64xi32>
    %c0_i32_231 = arith.constant 0 : i32
    %753 = vector.broadcast %c0_i32_231 : i32 to vector<26x64xi32>
    %754 = arith.addi %752, %753 : vector<26x64xi32>
    %c0_i32_232 = arith.constant 0 : i32
    %755 = vector.broadcast %c0_i32_232 : i32 to vector<26x64xi32>
    %756 = arith.cmpi sge, %754, %755 : vector<26x64xi32>
    %c0_i32_233 = arith.constant 0 : i32
    %757 = vector.broadcast %c0_i32_233 : i32 to vector<26x64xi32>
    %758 = arith.addi %752, %757 : vector<26x64xi32>
    %c7_i32_234 = arith.constant 7 : i32
    %759 = vector.broadcast %c7_i32_234 : i32 to vector<26x64xi32>
    %760 = arith.cmpi sle, %758, %759 : vector<26x64xi32>
    %761 = arith.andi %756, %760 : vector<26x64xi1>
    %cst_235 = arith.constant 0.000000e+00 : f32
    %762 = vector.broadcast %cst_235 : f32 to vector<26x64xf32>
    %763 = arith.select %761, %668, %762 : vector<26x64xi1>, vector<26x64xf32>
    %c25_i32_236 = arith.constant 25 : i32
    %764 = tpu.dynamic_rotate %668 by %c25_i32_236 dim 0 : vector<26x64xf32>, i32 -> vector<26x64xf32>
    %765 = tpu.iota {dimensions = array<i32: 0>} : vector<26x64xi32>
    %c1_i32_237 = arith.constant 1 : i32
    %766 = vector.broadcast %c1_i32_237 : i32 to vector<26x64xi32>
    %767 = arith.addi %765, %766 : vector<26x64xi32>
    %c0_i32_238 = arith.constant 0 : i32
    %768 = vector.broadcast %c0_i32_238 : i32 to vector<26x64xi32>
    %769 = arith.cmpi sge, %767, %768 : vector<26x64xi32>
    %c1_i32_239 = arith.constant 1 : i32
    %770 = vector.broadcast %c1_i32_239 : i32 to vector<26x64xi32>
    %771 = arith.addi %765, %770 : vector<26x64xi32>
    %c7_i32_240 = arith.constant 7 : i32
    %772 = vector.broadcast %c7_i32_240 : i32 to vector<26x64xi32>
    %773 = arith.cmpi sle, %771, %772 : vector<26x64xi32>
    %774 = arith.andi %769, %773 : vector<26x64xi1>
    %cst_241 = arith.constant 0.000000e+00 : f32
    %775 = vector.broadcast %cst_241 : f32 to vector<26x64xf32>
    %776 = arith.select %774, %764, %775 : vector<26x64xi1>, vector<26x64xf32>
    %c24_i32_242 = arith.constant 24 : i32
    %777 = tpu.dynamic_rotate %668 by %c24_i32_242 dim 0 : vector<26x64xf32>, i32 -> vector<26x64xf32>
    %778 = tpu.iota {dimensions = array<i32: 0>} : vector<26x64xi32>
    %c2_i32_243 = arith.constant 2 : i32
    %779 = vector.broadcast %c2_i32_243 : i32 to vector<26x64xi32>
    %780 = arith.addi %778, %779 : vector<26x64xi32>
    %c0_i32_244 = arith.constant 0 : i32
    %781 = vector.broadcast %c0_i32_244 : i32 to vector<26x64xi32>
    %782 = arith.cmpi sge, %780, %781 : vector<26x64xi32>
    %c2_i32_245 = arith.constant 2 : i32
    %783 = vector.broadcast %c2_i32_245 : i32 to vector<26x64xi32>
    %784 = arith.addi %778, %783 : vector<26x64xi32>
    %c7_i32_246 = arith.constant 7 : i32
    %785 = vector.broadcast %c7_i32_246 : i32 to vector<26x64xi32>
    %786 = arith.cmpi sle, %784, %785 : vector<26x64xi32>
    %787 = arith.andi %782, %786 : vector<26x64xi1>
    %cst_247 = arith.constant 0.000000e+00 : f32
    %788 = vector.broadcast %cst_247 : f32 to vector<26x64xf32>
    %789 = arith.select %787, %777, %788 : vector<26x64xi1>, vector<26x64xf32>
    %790 = tpu.concatenate %738, %751, %763, %776, %789 in 1 : vector<26x64xf32>, vector<26x64xf32>, vector<26x64xf32>, vector<26x64xf32>, vector<26x64xf32> -> vector<26x320xf32>
    %791 = vector.extract_strided_slice %16 {offsets = [3, 0], sizes = [3, 64], strides = [1, 1]} : vector<6x64xf32> to vector<3x64xf32>
    %792 = arith.truncf %790 : vector<26x320xf32> to vector<26x320xbf16>
    %cst_248 = arith.constant dense<0.000000e+00> : vector<26x64xf32>
    %793 = tpu.matmul %792, %15, %cst_248 {dimension_numbers = #tpu.dot_dimension_numbers<[1], [0], [0], [1], [0, 0, 1, 1], [], []>} : vector<26x320xbf16>, vector<320x64xbf16>, vector<26x64xf32> -> vector<26x64xf32>
    %794 = vector.extract_strided_slice %791 {offsets = [0, 0], sizes = [1, 64], strides = [1, 1]} : vector<3x64xf32> to vector<1x64xf32>
    %795 = vector.broadcast %794 : vector<1x64xf32> to vector<26x64xf32>
    %796 = arith.addf %793, %795 : vector<26x64xf32>
    %cst_249 = arith.constant 0.000000e+00 : f32
    %797 = vector.broadcast %cst_249 : f32 to vector<26x64xf32>
    %798 = arith.cmpf oge, %796, %797 : vector<26x64xf32>
    %cst_250 = arith.constant 0.00999999977 : f32
    %799 = vector.broadcast %cst_250 : f32 to vector<26x64xf32>
    %800 = arith.mulf %799, %796 : vector<26x64xf32>
    %801 = arith.select %798, %796, %800 : vector<26x64xi1>, vector<26x64xf32>
    %802 = vector.extract_strided_slice %791 {offsets = [1, 0], sizes = [1, 64], strides = [1, 1]} : vector<3x64xf32> to vector<1x64xf32>
    %803 = vector.broadcast %802 : vector<1x64xf32> to vector<26x64xf32>
    %804 = arith.mulf %801, %803 : vector<26x64xf32>
    %805 = vector.extract_strided_slice %791 {offsets = [2, 0], sizes = [1, 64], strides = [1, 1]} : vector<3x64xf32> to vector<1x64xf32>
    %806 = vector.broadcast %805 : vector<1x64xf32> to vector<26x64xf32>
    %807 = arith.addf %804, %806 : vector<26x64xf32>
    %808 = tpu.concatenate %725, %807, %669 in 1 : vector<26x64xf32>, vector<26x64xf32>, vector<26x64xf32> -> vector<26x192xf32>
    %809 = arith.truncf %808 : vector<26x192xf32> to vector<26x192xbf16>
    %cst_251 = arith.constant dense<0.000000e+00> : vector<26x256xf32>
    %810 = tpu.matmul %809, %17, %cst_251 {dimension_numbers = #tpu.dot_dimension_numbers<[1], [0], [0], [1], [0, 0, 1, 1], [], []>} : vector<26x192xbf16>, vector<192x256xbf16>, vector<26x256xf32> -> vector<26x256xf32>
    %811 = vector.broadcast %18 : vector<1x256xf32> to vector<26x256xf32>
    %812 = arith.addf %810, %811 : vector<26x256xf32>
    %cst_252 = arith.constant 0.000000e+00 : f32
    %813 = vector.broadcast %cst_252 : f32 to vector<1x64xf32>
    %cst_253 = arith.constant 0.000000e+00 : f32
    %814 = vector.broadcast %cst_253 : f32 to vector<1x64xf32>
    %815 = tpu.iota {dimensions = array<i32: 1>} : vector<1x256xi32>
    %c128_i32 = arith.constant 128 : i32
    %816 = vector.broadcast %c128_i32 : i32 to vector<1x256xi32>
    %817 = arith.cmpi sge, %815, %816 : vector<1x256xi32>
    %c192_i32 = arith.constant 192 : i32
    %818 = vector.broadcast %c192_i32 : i32 to vector<1x256xi32>
    %819 = arith.cmpi slt, %815, %818 : vector<1x256xi32>
    %820 = arith.andi %817, %819 : vector<1x256xi1>
    %821 = vector.extract_strided_slice %812 {offsets = [0, 0], sizes = [1, 256], strides = [1, 1]} : vector<26x256xf32> to vector<1x256xf32>
    %cst_254 = arith.constant dense<0.000000e+00> : vector<1x256xf32>
    %822 = tpu.matmul %813, %19, %cst_254 {dimension_numbers = #tpu.dot_dimension_numbers<[1], [0], [0], [1], [0, 0, 1, 1], [], []>} : vector<1x64xf32>, vector<64x256xf32>, vector<1x256xf32> -> vector<1x256xf32>
    %823 = arith.addf %821, %822 : vector<1x256xf32>
    %824 = math.tanh %823 : vector<1x256xf32>
    %825 = arith.negf %823 : vector<1x256xf32>
    %826 = math.exp %825 : vector<1x256xf32>
    %cst_255 = arith.constant 1.000000e+00 : f32
    %827 = vector.broadcast %cst_255 : f32 to vector<1x256xf32>
    %828 = arith.addf %827, %826 : vector<1x256xf32>
    %829 = arith.divf %827, %828 : vector<1x256xf32>
    %830 = arith.select %820, %824, %829 : vector<1x256xi1>, vector<1x256xf32>
    %831 = vector.extract_strided_slice %830 {offsets = [0, 0], sizes = [1, 64], strides = [1, 1]} : vector<1x256xf32> to vector<1x64xf32>
    %832 = vector.extract_strided_slice %830 {offsets = [0, 64], sizes = [1, 64], strides = [1, 1]} : vector<1x256xf32> to vector<1x64xf32>
    %833 = vector.extract_strided_slice %830 {offsets = [0, 128], sizes = [1, 64], strides = [1, 1]} : vector<1x256xf32> to vector<1x64xf32>
    %834 = vector.extract_strided_slice %830 {offsets = [0, 192], sizes = [1, 64], strides = [1, 1]} : vector<1x256xf32> to vector<1x64xf32>
    %835 = arith.mulf %832, %814 : vector<1x64xf32>
    %836 = arith.mulf %831, %833 : vector<1x64xf32>
    %837 = arith.addf %835, %836 : vector<1x64xf32>
    %838 = math.tanh %837 : vector<1x64xf32>
    %839 = arith.mulf %834, %838 : vector<1x64xf32>
    %840 = vector.extract_strided_slice %812 {offsets = [1, 0], sizes = [1, 256], strides = [1, 1]} : vector<26x256xf32> to vector<1x256xf32>
    %cst_256 = arith.constant dense<0.000000e+00> : vector<1x256xf32>
    %841 = tpu.matmul %839, %19, %cst_256 {dimension_numbers = #tpu.dot_dimension_numbers<[1], [0], [0], [1], [0, 0, 1, 1], [], []>} : vector<1x64xf32>, vector<64x256xf32>, vector<1x256xf32> -> vector<1x256xf32>
    %842 = arith.addf %840, %841 : vector<1x256xf32>
    %843 = math.tanh %842 : vector<1x256xf32>
    %844 = arith.negf %842 : vector<1x256xf32>
    %845 = math.exp %844 : vector<1x256xf32>
    %cst_257 = arith.constant 1.000000e+00 : f32
    %846 = vector.broadcast %cst_257 : f32 to vector<1x256xf32>
    %847 = arith.addf %846, %845 : vector<1x256xf32>
    %848 = arith.divf %846, %847 : vector<1x256xf32>
    %849 = arith.select %820, %843, %848 : vector<1x256xi1>, vector<1x256xf32>
    %850 = vector.extract_strided_slice %849 {offsets = [0, 0], sizes = [1, 64], strides = [1, 1]} : vector<1x256xf32> to vector<1x64xf32>
    %851 = vector.extract_strided_slice %849 {offsets = [0, 64], sizes = [1, 64], strides = [1, 1]} : vector<1x256xf32> to vector<1x64xf32>
    %852 = vector.extract_strided_slice %849 {offsets = [0, 128], sizes = [1, 64], strides = [1, 1]} : vector<1x256xf32> to vector<1x64xf32>
    %853 = vector.extract_strided_slice %849 {offsets = [0, 192], sizes = [1, 64], strides = [1, 1]} : vector<1x256xf32> to vector<1x64xf32>
    %854 = arith.mulf %851, %837 : vector<1x64xf32>
    %855 = arith.mulf %850, %852 : vector<1x64xf32>
    %856 = arith.addf %854, %855 : vector<1x64xf32>
    %857 = math.tanh %856 : vector<1x64xf32>
    %858 = arith.mulf %853, %857 : vector<1x64xf32>
    %859 = vector.extract_strided_slice %812 {offsets = [2, 0], sizes = [1, 256], strides = [1, 1]} : vector<26x256xf32> to vector<1x256xf32>
    %cst_258 = arith.constant dense<0.000000e+00> : vector<1x256xf32>
    %860 = tpu.matmul %858, %19, %cst_258 {dimension_numbers = #tpu.dot_dimension_numbers<[1], [0], [0], [1], [0, 0, 1, 1], [], []>} : vector<1x64xf32>, vector<64x256xf32>, vector<1x256xf32> -> vector<1x256xf32>
    %861 = arith.addf %859, %860 : vector<1x256xf32>
    %862 = math.tanh %861 : vector<1x256xf32>
    %863 = arith.negf %861 : vector<1x256xf32>
    %864 = math.exp %863 : vector<1x256xf32>
    %cst_259 = arith.constant 1.000000e+00 : f32
    %865 = vector.broadcast %cst_259 : f32 to vector<1x256xf32>
    %866 = arith.addf %865, %864 : vector<1x256xf32>
    %867 = arith.divf %865, %866 : vector<1x256xf32>
    %868 = arith.select %820, %862, %867 : vector<1x256xi1>, vector<1x256xf32>
    %869 = vector.extract_strided_slice %868 {offsets = [0, 0], sizes = [1, 64], strides = [1, 1]} : vector<1x256xf32> to vector<1x64xf32>
    %870 = vector.extract_strided_slice %868 {offsets = [0, 64], sizes = [1, 64], strides = [1, 1]} : vector<1x256xf32> to vector<1x64xf32>
    %871 = vector.extract_strided_slice %868 {offsets = [0, 128], sizes = [1, 64], strides = [1, 1]} : vector<1x256xf32> to vector<1x64xf32>
    %872 = vector.extract_strided_slice %868 {offsets = [0, 192], sizes = [1, 64], strides = [1, 1]} : vector<1x256xf32> to vector<1x64xf32>
    %873 = arith.mulf %870, %856 : vector<1x64xf32>
    %874 = arith.mulf %869, %871 : vector<1x64xf32>
    %875 = arith.addf %873, %874 : vector<1x64xf32>
    %876 = math.tanh %875 : vector<1x64xf32>
    %877 = arith.mulf %872, %876 : vector<1x64xf32>
    %878 = vector.extract_strided_slice %812 {offsets = [3, 0], sizes = [1, 256], strides = [1, 1]} : vector<26x256xf32> to vector<1x256xf32>
    %cst_260 = arith.constant dense<0.000000e+00> : vector<1x256xf32>
    %879 = tpu.matmul %877, %19, %cst_260 {dimension_numbers = #tpu.dot_dimension_numbers<[1], [0], [0], [1], [0, 0, 1, 1], [], []>} : vector<1x64xf32>, vector<64x256xf32>, vector<1x256xf32> -> vector<1x256xf32>
    %880 = arith.addf %878, %879 : vector<1x256xf32>
    %881 = math.tanh %880 : vector<1x256xf32>
    %882 = arith.negf %880 : vector<1x256xf32>
    %883 = math.exp %882 : vector<1x256xf32>
    %cst_261 = arith.constant 1.000000e+00 : f32
    %884 = vector.broadcast %cst_261 : f32 to vector<1x256xf32>
    %885 = arith.addf %884, %883 : vector<1x256xf32>
    %886 = arith.divf %884, %885 : vector<1x256xf32>
    %887 = arith.select %820, %881, %886 : vector<1x256xi1>, vector<1x256xf32>
    %888 = vector.extract_strided_slice %887 {offsets = [0, 0], sizes = [1, 64], strides = [1, 1]} : vector<1x256xf32> to vector<1x64xf32>
    %889 = vector.extract_strided_slice %887 {offsets = [0, 64], sizes = [1, 64], strides = [1, 1]} : vector<1x256xf32> to vector<1x64xf32>
    %890 = vector.extract_strided_slice %887 {offsets = [0, 128], sizes = [1, 64], strides = [1, 1]} : vector<1x256xf32> to vector<1x64xf32>
    %891 = vector.extract_strided_slice %887 {offsets = [0, 192], sizes = [1, 64], strides = [1, 1]} : vector<1x256xf32> to vector<1x64xf32>
    %892 = arith.mulf %889, %875 : vector<1x64xf32>
    %893 = arith.mulf %888, %890 : vector<1x64xf32>
    %894 = arith.addf %892, %893 : vector<1x64xf32>
    %895 = math.tanh %894 : vector<1x64xf32>
    %896 = arith.mulf %891, %895 : vector<1x64xf32>
    %897 = vector.extract_strided_slice %812 {offsets = [4, 0], sizes = [1, 256], strides = [1, 1]} : vector<26x256xf32> to vector<1x256xf32>
    %cst_262 = arith.constant dense<0.000000e+00> : vector<1x256xf32>
    %898 = tpu.matmul %896, %19, %cst_262 {dimension_numbers = #tpu.dot_dimension_numbers<[1], [0], [0], [1], [0, 0, 1, 1], [], []>} : vector<1x64xf32>, vector<64x256xf32>, vector<1x256xf32> -> vector<1x256xf32>
    %899 = arith.addf %897, %898 : vector<1x256xf32>
    %900 = math.tanh %899 : vector<1x256xf32>
    %901 = arith.negf %899 : vector<1x256xf32>
    %902 = math.exp %901 : vector<1x256xf32>
    %cst_263 = arith.constant 1.000000e+00 : f32
    %903 = vector.broadcast %cst_263 : f32 to vector<1x256xf32>
    %904 = arith.addf %903, %902 : vector<1x256xf32>
    %905 = arith.divf %903, %904 : vector<1x256xf32>
    %906 = arith.select %820, %900, %905 : vector<1x256xi1>, vector<1x256xf32>
    %907 = vector.extract_strided_slice %906 {offsets = [0, 0], sizes = [1, 64], strides = [1, 1]} : vector<1x256xf32> to vector<1x64xf32>
    %908 = vector.extract_strided_slice %906 {offsets = [0, 64], sizes = [1, 64], strides = [1, 1]} : vector<1x256xf32> to vector<1x64xf32>
    %909 = vector.extract_strided_slice %906 {offsets = [0, 128], sizes = [1, 64], strides = [1, 1]} : vector<1x256xf32> to vector<1x64xf32>
    %910 = vector.extract_strided_slice %906 {offsets = [0, 192], sizes = [1, 64], strides = [1, 1]} : vector<1x256xf32> to vector<1x64xf32>
    %911 = arith.mulf %908, %894 : vector<1x64xf32>
    %912 = arith.mulf %907, %909 : vector<1x64xf32>
    %913 = arith.addf %911, %912 : vector<1x64xf32>
    %914 = math.tanh %913 : vector<1x64xf32>
    %915 = arith.mulf %910, %914 : vector<1x64xf32>
    %916 = vector.extract_strided_slice %812 {offsets = [5, 0], sizes = [1, 256], strides = [1, 1]} : vector<26x256xf32> to vector<1x256xf32>
    %cst_264 = arith.constant dense<0.000000e+00> : vector<1x256xf32>
    %917 = tpu.matmul %915, %19, %cst_264 {dimension_numbers = #tpu.dot_dimension_numbers<[1], [0], [0], [1], [0, 0, 1, 1], [], []>} : vector<1x64xf32>, vector<64x256xf32>, vector<1x256xf32> -> vector<1x256xf32>
    %918 = arith.addf %916, %917 : vector<1x256xf32>
    %919 = math.tanh %918 : vector<1x256xf32>
    %920 = arith.negf %918 : vector<1x256xf32>
    %921 = math.exp %920 : vector<1x256xf32>
    %cst_265 = arith.constant 1.000000e+00 : f32
    %922 = vector.broadcast %cst_265 : f32 to vector<1x256xf32>
    %923 = arith.addf %922, %921 : vector<1x256xf32>
    %924 = arith.divf %922, %923 : vector<1x256xf32>
    %925 = arith.select %820, %919, %924 : vector<1x256xi1>, vector<1x256xf32>
    %926 = vector.extract_strided_slice %925 {offsets = [0, 0], sizes = [1, 64], strides = [1, 1]} : vector<1x256xf32> to vector<1x64xf32>
    %927 = vector.extract_strided_slice %925 {offsets = [0, 64], sizes = [1, 64], strides = [1, 1]} : vector<1x256xf32> to vector<1x64xf32>
    %928 = vector.extract_strided_slice %925 {offsets = [0, 128], sizes = [1, 64], strides = [1, 1]} : vector<1x256xf32> to vector<1x64xf32>
    %929 = vector.extract_strided_slice %925 {offsets = [0, 192], sizes = [1, 64], strides = [1, 1]} : vector<1x256xf32> to vector<1x64xf32>
    %930 = arith.mulf %927, %913 : vector<1x64xf32>
    %931 = arith.mulf %926, %928 : vector<1x64xf32>
    %932 = arith.addf %930, %931 : vector<1x64xf32>
    %933 = math.tanh %932 : vector<1x64xf32>
    %934 = arith.mulf %929, %933 : vector<1x64xf32>
    %935 = vector.extract_strided_slice %812 {offsets = [6, 0], sizes = [1, 256], strides = [1, 1]} : vector<26x256xf32> to vector<1x256xf32>
    %cst_266 = arith.constant dense<0.000000e+00> : vector<1x256xf32>
    %936 = tpu.matmul %934, %19, %cst_266 {dimension_numbers = #tpu.dot_dimension_numbers<[1], [0], [0], [1], [0, 0, 1, 1], [], []>} : vector<1x64xf32>, vector<64x256xf32>, vector<1x256xf32> -> vector<1x256xf32>
    %937 = arith.addf %935, %936 : vector<1x256xf32>
    %938 = math.tanh %937 : vector<1x256xf32>
    %939 = arith.negf %937 : vector<1x256xf32>
    %940 = math.exp %939 : vector<1x256xf32>
    %cst_267 = arith.constant 1.000000e+00 : f32
    %941 = vector.broadcast %cst_267 : f32 to vector<1x256xf32>
    %942 = arith.addf %941, %940 : vector<1x256xf32>
    %943 = arith.divf %941, %942 : vector<1x256xf32>
    %944 = arith.select %820, %938, %943 : vector<1x256xi1>, vector<1x256xf32>
    %945 = vector.extract_strided_slice %944 {offsets = [0, 0], sizes = [1, 64], strides = [1, 1]} : vector<1x256xf32> to vector<1x64xf32>
    %946 = vector.extract_strided_slice %944 {offsets = [0, 64], sizes = [1, 64], strides = [1, 1]} : vector<1x256xf32> to vector<1x64xf32>
    %947 = vector.extract_strided_slice %944 {offsets = [0, 128], sizes = [1, 64], strides = [1, 1]} : vector<1x256xf32> to vector<1x64xf32>
    %948 = vector.extract_strided_slice %944 {offsets = [0, 192], sizes = [1, 64], strides = [1, 1]} : vector<1x256xf32> to vector<1x64xf32>
    %949 = arith.mulf %946, %932 : vector<1x64xf32>
    %950 = arith.mulf %945, %947 : vector<1x64xf32>
    %951 = arith.addf %949, %950 : vector<1x64xf32>
    %952 = math.tanh %951 : vector<1x64xf32>
    %953 = arith.mulf %948, %952 : vector<1x64xf32>
    %954 = vector.extract_strided_slice %812 {offsets = [7, 0], sizes = [1, 256], strides = [1, 1]} : vector<26x256xf32> to vector<1x256xf32>
    %cst_268 = arith.constant dense<0.000000e+00> : vector<1x256xf32>
    %955 = tpu.matmul %953, %19, %cst_268 {dimension_numbers = #tpu.dot_dimension_numbers<[1], [0], [0], [1], [0, 0, 1, 1], [], []>} : vector<1x64xf32>, vector<64x256xf32>, vector<1x256xf32> -> vector<1x256xf32>
    %956 = arith.addf %954, %955 : vector<1x256xf32>
    %957 = math.tanh %956 : vector<1x256xf32>
    %958 = arith.negf %956 : vector<1x256xf32>
    %959 = math.exp %958 : vector<1x256xf32>
    %cst_269 = arith.constant 1.000000e+00 : f32
    %960 = vector.broadcast %cst_269 : f32 to vector<1x256xf32>
    %961 = arith.addf %960, %959 : vector<1x256xf32>
    %962 = arith.divf %960, %961 : vector<1x256xf32>
    %963 = arith.select %820, %957, %962 : vector<1x256xi1>, vector<1x256xf32>
    %964 = vector.extract_strided_slice %963 {offsets = [0, 0], sizes = [1, 64], strides = [1, 1]} : vector<1x256xf32> to vector<1x64xf32>
    %965 = vector.extract_strided_slice %963 {offsets = [0, 64], sizes = [1, 64], strides = [1, 1]} : vector<1x256xf32> to vector<1x64xf32>
    %966 = vector.extract_strided_slice %963 {offsets = [0, 128], sizes = [1, 64], strides = [1, 1]} : vector<1x256xf32> to vector<1x64xf32>
    %967 = vector.extract_strided_slice %963 {offsets = [0, 192], sizes = [1, 64], strides = [1, 1]} : vector<1x256xf32> to vector<1x64xf32>
    %968 = arith.mulf %965, %951 : vector<1x64xf32>
    %969 = arith.mulf %964, %966 : vector<1x64xf32>
    %970 = arith.addf %968, %969 : vector<1x64xf32>
    %971 = math.tanh %970 : vector<1x64xf32>
    %972 = arith.mulf %967, %971 : vector<1x64xf32>
    %cst_270 = arith.constant dense<0.000000e+00> : vector<1x3xf32>
    %973 = tpu.matmul %972, %20, %cst_270 {dimension_numbers = #tpu.dot_dimension_numbers<[1], [0], [0], [1], [0, 0, 1, 1], [], []>} : vector<1x64xf32>, vector<64x3xf32>, vector<1x3xf32> -> vector<1x3xf32>
    %974 = arith.addf %973, %21 : vector<1x3xf32>
    %c0_271 = arith.constant 0 : index
    %c0_272 = arith.constant 0 : index
    %c0_273 = arith.constant 0 : index
    %975 = vector.load %arg24[%c0_271, %c0_272, %c0_273] : memref<1x1x3xf32, #tpu.memory_space<vmem>>, vector<1x1x3xf32>
    %976 = vector.shape_cast %975 : vector<1x1x3xf32> to vector<1x3xf32>
    %977 = vector.shape_cast %974 : vector<1x3xf32> to vector<1x1x3xf32>
    tpu.vector_store %arg24[%c0_271, %c0_272, %c0_273], %977 {strides = array<i32>} : memref<1x1x3xf32, #tpu.memory_space<vmem>>, vector<1x1x3xf32>,
    return
  }
  func.func @transform_0(%arg0: i32) -> (i32, i32, i32, i32) {
    %c0_i32 = arith.constant 0 : i32
    %c0_i32_0 = arith.constant 0 : i32
    %c0_i32_1 = arith.constant 0 : i32
    %c0_i32_2 = arith.constant 0 : i32
    return %arg0, %c0_i32, %c0_i32_0, %c0_i32_1 : i32, i32, i32, i32
  }
  func.func @transform_1(%arg0: i32) -> (i32, i32) {
    %c0_i32 = arith.constant 0 : i32
    %c0_i32_0 = arith.constant 0 : i32
    %c0_i32_1 = arith.constant 0 : i32
    return %c0_i32, %c0_i32_0 : i32, i32
  }
  func.func @transform_2(%arg0: i32) -> (i32, i32) {
    %c0_i32 = arith.constant 0 : i32
    %c0_i32_0 = arith.constant 0 : i32
    %c0_i32_1 = arith.constant 0 : i32
    return %c0_i32, %c0_i32_0 : i32, i32
  }
  func.func @transform_3(%arg0: i32) -> (i32, i32) {
    %c0_i32 = arith.constant 0 : i32
    %c0_i32_0 = arith.constant 0 : i32
    %c0_i32_1 = arith.constant 0 : i32
    return %c0_i32, %c0_i32_0 : i32, i32
  }
  func.func @transform_4(%arg0: i32) -> (i32, i32) {
    %c0_i32 = arith.constant 0 : i32
    %c0_i32_0 = arith.constant 0 : i32
    %c0_i32_1 = arith.constant 0 : i32
    return %c0_i32, %c0_i32_0 : i32, i32
  }
  func.func @transform_5(%arg0: i32) -> (i32, i32) {
    %c0_i32 = arith.constant 0 : i32
    %c0_i32_0 = arith.constant 0 : i32
    %c0_i32_1 = arith.constant 0 : i32
    return %c0_i32, %c0_i32_0 : i32, i32
  }
  func.func @transform_6(%arg0: i32) -> (i32, i32) {
    %c0_i32 = arith.constant 0 : i32
    %c0_i32_0 = arith.constant 0 : i32
    %c0_i32_1 = arith.constant 0 : i32
    return %c0_i32, %c0_i32_0 : i32, i32
  }
  func.func @transform_7(%arg0: i32) -> (i32, i32) {
    %c0_i32 = arith.constant 0 : i32
    %c0_i32_0 = arith.constant 0 : i32
    %c0_i32_1 = arith.constant 0 : i32
    return %c0_i32, %c0_i32_0 : i32, i32
  }
  func.func @transform_8(%arg0: i32) -> (i32, i32) {
    %c0_i32 = arith.constant 0 : i32
    %c0_i32_0 = arith.constant 0 : i32
    %c0_i32_1 = arith.constant 0 : i32
    return %c0_i32, %c0_i32_0 : i32, i32
  }
  func.func @transform_9(%arg0: i32) -> (i32, i32) {
    %c0_i32 = arith.constant 0 : i32
    %c0_i32_0 = arith.constant 0 : i32
    %c0_i32_1 = arith.constant 0 : i32
    return %c0_i32, %c0_i32_0 : i32, i32
  }
  func.func @transform_10(%arg0: i32) -> (i32, i32) {
    %c0_i32 = arith.constant 0 : i32
    %c0_i32_0 = arith.constant 0 : i32
    %c0_i32_1 = arith.constant 0 : i32
    return %c0_i32, %c0_i32_0 : i32, i32
  }
  func.func @transform_11(%arg0: i32) -> (i32, i32) {
    %c0_i32 = arith.constant 0 : i32
    %c0_i32_0 = arith.constant 0 : i32
    %c0_i32_1 = arith.constant 0 : i32
    return %c0_i32, %c0_i32_0 : i32, i32
  }
  func.func @transform_12(%arg0: i32) -> (i32, i32) {
    %c0_i32 = arith.constant 0 : i32
    %c0_i32_0 = arith.constant 0 : i32
    %c0_i32_1 = arith.constant 0 : i32
    return %c0_i32, %c0_i32_0 : i32, i32
  }
  func.func @transform_13(%arg0: i32) -> (i32, i32) {
    %c0_i32 = arith.constant 0 : i32
    %c0_i32_0 = arith.constant 0 : i32
    %c0_i32_1 = arith.constant 0 : i32
    return %c0_i32, %c0_i32_0 : i32, i32
  }
  func.func @transform_14(%arg0: i32) -> (i32, i32) {
    %c0_i32 = arith.constant 0 : i32
    %c0_i32_0 = arith.constant 0 : i32
    %c0_i32_1 = arith.constant 0 : i32
    return %c0_i32, %c0_i32_0 : i32, i32
  }
  func.func @transform_15(%arg0: i32) -> (i32, i32) {
    %c0_i32 = arith.constant 0 : i32
    %c0_i32_0 = arith.constant 0 : i32
    %c0_i32_1 = arith.constant 0 : i32
    return %c0_i32, %c0_i32_0 : i32, i32
  }
  func.func @transform_16(%arg0: i32) -> (i32, i32) {
    %c0_i32 = arith.constant 0 : i32
    %c0_i32_0 = arith.constant 0 : i32
    %c0_i32_1 = arith.constant 0 : i32
    return %c0_i32, %c0_i32_0 : i32, i32
  }
  func.func @transform_17(%arg0: i32) -> (i32, i32) {
    %c0_i32 = arith.constant 0 : i32
    %c0_i32_0 = arith.constant 0 : i32
    %c0_i32_1 = arith.constant 0 : i32
    return %c0_i32, %c0_i32_0 : i32, i32
  }
  func.func @transform_18(%arg0: i32) -> (i32, i32) {
    %c0_i32 = arith.constant 0 : i32
    %c0_i32_0 = arith.constant 0 : i32
    %c0_i32_1 = arith.constant 0 : i32
    return %c0_i32, %c0_i32_0 : i32, i32
  }
  func.func @transform_19(%arg0: i32) -> (i32, i32) {
    %c0_i32 = arith.constant 0 : i32
    %c0_i32_0 = arith.constant 0 : i32
    %c0_i32_1 = arith.constant 0 : i32
    return %c0_i32, %c0_i32_0 : i32, i32
  }
  func.func @transform_20(%arg0: i32) -> (i32, i32) {
    %c0_i32 = arith.constant 0 : i32
    %c0_i32_0 = arith.constant 0 : i32
    %c0_i32_1 = arith.constant 0 : i32
    return %c0_i32, %c0_i32_0 : i32, i32
  }
  func.func @transform_21(%arg0: i32) -> (i32, i32) {
    %c0_i32 = arith.constant 0 : i32
    %c0_i32_0 = arith.constant 0 : i32
    %c0_i32_1 = arith.constant 0 : i32
    return %c0_i32, %c0_i32_0 : i32, i32
  }
  func.func @transform_22(%arg0: i32) -> (i32, i32) {
    %c0_i32 = arith.constant 0 : i32
    %c0_i32_0 = arith.constant 0 : i32
    %c0_i32_1 = arith.constant 0 : i32
    return %c0_i32, %c0_i32_0 : i32, i32
  }
  func.func @transform_23(%arg0: i32) -> (i32, i32, i32) {
    %c0_i32 = arith.constant 0 : i32
    %c0_i32_0 = arith.constant 0 : i32
    %c0_i32_1 = arith.constant 0 : i32
    return %arg0, %c0_i32, %c0_i32_0 : i32, i32, i32
  }
}

</mosaic_0001>

<llo_original>
// kernel: tile.112
$region0: #{tile.112}
  #allocation0 [shape = 's32[1]{0}', space=sflag, size = 0x4, scoped, tag = 'scoped memory for tile.112']
  %s0 = inlined_call_operand.vmem [shape: f32[32], index: 0, kind: input, shape index: {}]
  %s1 = inlined_call_operand.vmem [shape: f32[4,32], index: 1, kind: output, shape index: {}]
  // Predicated region
  $region2: #{tile.112} parent=0 // pred_check
    _
  $region3: #{tile.112} parent=0 // pred_check_branch
    %3 = sbr.rel (0) target = $region5
  $region4: #{tile.112} parent=0 // pred_region
    _
  $region5: #{tile.112} parent=0 // pred_fallthru
    _
  %v4 = vld [vmem:[%s0] ss:$0 sm:$0xff]
  %5 = vst [vmem:[%s1] sm:$0xf] %v4

// kernel: tile.142
$region0: #{tile.142}
  %s0 = inlined_call_operand.vmem [shape: f32[4,32], index: 0, kind: input, shape index: {}]
  %s1 = inlined_call_operand.vmem [shape: f32[1,128], index: 1, kind: output, shape index: {}]
  $region1: #{tile.142} parent=0
    #allocation0 [shape = 'u8[4096]{0}', space=vmem, size = 0x1000, scoped, tag = 'scoped mem for output reshape']
    #allocation1 [shape = 'u8[4096]{0}', space=vmem, size = 0x1000, scoped, tag = 'scoped mem for input reshape']
    %s3 = sshllo.u32 0, 4
    %v4 = vld [vmem:[%s0] sm:%s3]
    %5 = vst [vmem:[#allocation1] sm:%s3] %v4
    %v6 = vld [vmem:[#allocation1] sm:$0x1]
    %vm7 = vcmask 261120
    %8 = vst.msk [vmem:[#allocation0] sm:$0x1] %vm7, %v6
    %s9 = scalar_lea.vmem [#allocation1], 3
    %v10 = vld [vmem:[%s9] sm:$0x1]
    %11 = vrot.lane.b32.xlu0 %v10, 96
    %v12 = vpop.permute.xlu0 %11
    %vm13 = vcmask 1048320
    %14 = vst.msk [vmem:[#allocation0] sm:$0x1] %vm13, %v12
    %s15 = scalar_lea.vmem [#allocation1], 2
    %v16 = vld [vmem:[%s15] sm:$0x1]
    %17 = vrot.lane.b32.xlu0 %v16, 64
    %v18 = vpop.permute.xlu0 %17
    %vm19 = vcmask 785920
    %20 = vst.msk [vmem:[#allocation0] sm:$0x1] %vm19, %v18
    %s21 = scalar_lea.vmem [#allocation1], 1
    %v22 = vld [vmem:[%s21] sm:$0x1]
    %23 = vrot.lane.b32.xlu0 %v22, 32
    %v24 = vpop.permute.xlu0 %23
    %vm25 = vcmask 523520
    %26 = vst.msk [vmem:[#allocation0] sm:$0x1] %vm25, %v24
    %s28 = sshllo.u32 0, 1
    %v30 = vld [vmem:[#allocation0] sm:%s28]
    %s31 = sshllo.u32 0, 1
    %32 = vst [vmem:[%s1] sm:%s31] %v30

// kernel: tile.157
$region0: #{tile.157}
  #allocation0 [shape = 's32[1]{0}', space=sflag, size = 0x4, scoped, tag = 'scoped memory for tile.157']
  %s0 = inlined_call_operand.vmem [shape: f32[32], index: 0, kind: input, shape index: {}]
  %s1 = inlined_call_operand.vmem [shape: f32[2,32], index: 1, kind: output, shape index: {}]
  // Predicated region
  $region2: #{tile.157} parent=0 // pred_check
    _
  $region3: #{tile.157} parent=0 // pred_check_branch
    %3 = sbr.rel (0) target = $region5
  $region4: #{tile.157} parent=0 // pred_region
    _
  $region5: #{tile.157} parent=0 // pred_fallthru
    _
  %v4 = vld [vmem:[%s0] ss:$0 sm:$0xff]
  %5 = vst [vmem:[%s1] sm:$0x3] %v4

// kernel: tile.187
$region0: #{tile.187}
  %s0 = inlined_call_operand.vmem [shape: f32[2,32], index: 0, kind: input, shape index: {}]
  %s1 = inlined_call_operand.vmem [shape: f32[1,64], index: 1, kind: output, shape index: {}]
  $region1: #{tile.187} parent=0
    #allocation0 [shape = 'u8[4096]{0}', space=vmem, size = 0x1000, scoped, tag = 'scoped mem for output reshape']
    #allocation1 [shape = 'u8[4096]{0}', space=vmem, size = 0x1000, scoped, tag = 'scoped mem for input reshape']
    %s3 = sshllo.u32 0, 2
    %v4 = vld [vmem:[%s0] sm:%s3]
    %5 = vst [vmem:[#allocation1] sm:%s3] %v4
    %v6 = vld [vmem:[#allocation1] sm:$0x1]
    %vm7 = vcmask 261120
    %8 = vst.msk [vmem:[#allocation0] sm:$0x1] %vm7, %v6
    %s9 = scalar_lea.vmem [#allocation1], 1
    %v10 = vld [vmem:[%s9] sm:$0x1]
    %11 = vrot.lane.b32.xlu0 %v10, 32
    %v12 = vpop.permute.xlu0 %11
    %vm13 = vcmask 523520
    %14 = vst.msk [vmem:[#allocation0] sm:$0x1] %vm13, %v12
    %s16 = sshllo.u32 0, 1
    %v18 = vld [vmem:[#allocation0] sm:%s16]
    %s19 = sshllo.u32 0, 1
    %20 = vst [vmem:[%s1] sm:%s19] %v18

// kernel: deeplob_forward_pallas.1
$region0: #{deeplob_forward_pallas.1}
  #allocation0 [shape = 'u32[]', space=smem, size = 0x4, offset = 0x4, fixed_abs, tag = 'smem constant byte address 0x4 - core index']
  #allocation1 [shape = 'u32[144,128]{1,0:T(1,128)}', space=vmem, size = 0x12000, scoped, tag = 'internal scratch']
  %s0 = inlined_call_operand.vmem [shape: f32[2,5,26,8], index: 0, kind: input, shape index: {}]
  %s1 = inlined_call_operand.vmem [shape: bf16[8,128], index: 1, kind: input, shape index: {}]
  %s2 = inlined_call_operand.vmem [shape: bf16[512,128], index: 2, kind: input, shape index: {}]
  %s3 = inlined_call_operand.vmem [shape: bf16[512,128], index: 3, kind: input, shape index: {}]
  %s4 = inlined_call_operand.vmem [shape: f32[9,128], index: 4, kind: input, shape index: {}]
  %s5 = inlined_call_operand.vmem [shape: bf16[128,64], index: 5, kind: input, shape index: {}]
  %s6 = inlined_call_operand.vmem [shape: bf16[256,64], index: 6, kind: input, shape index: {}]
  %s7 = inlined_call_operand.vmem [shape: bf16[256,64], index: 7, kind: input, shape index: {}]
  %s8 = inlined_call_operand.vmem [shape: f32[9,64], index: 8, kind: input, shape index: {}]
  %s9 = inlined_call_operand.vmem [shape: bf16[320,32], index: 9, kind: input, shape index: {}]
  %s10 = inlined_call_operand.vmem [shape: bf16[128,32], index: 10, kind: input, shape index: {}]
  %s11 = inlined_call_operand.vmem [shape: bf16[128,32], index: 11, kind: input, shape index: {}]
  %s12 = inlined_call_operand.vmem [shape: f32[9,32], index: 12, kind: input, shape index: {}]
  %s13 = inlined_call_operand.vmem [shape: bf16[64,192], index: 13, kind: input, shape index: {}]
  %s14 = inlined_call_operand.vmem [shape: f32[3,192], index: 14, kind: input, shape index: {}]
  %s15 = inlined_call_operand.vmem [shape: bf16[192,64], index: 15, kind: input, shape index: {}]
  %s16 = inlined_call_operand.vmem [shape: bf16[320,64], index: 16, kind: input, shape index: {}]
  %s17 = inlined_call_operand.vmem [shape: f32[6,64], index: 17, kind: input, shape index: {}]
  %s18 = inlined_call_operand.vmem [shape: bf16[192,256], index: 18, kind: input, shape index: {}]
  %s19 = inlined_call_operand.vmem [shape: f32[1,256], index: 19, kind: input, shape index: {}]
  %s20 = inlined_call_operand.vmem [shape: f32[64,256], index: 20, kind: input, shape index: {}]
  %s21 = inlined_call_operand.vmem [shape: f32[64,3], index: 21, kind: input, shape index: {}]
  %s22 = inlined_call_operand.vmem [shape: f32[1,3], index: 22, kind: input, shape index: {}]
  %s23 = inlined_call_operand.hbm [shape: f32[2,1,3], index: 23, kind: output, shape index: {}]
  %s24 = sld [smem:[#allocation0]]
  $region125: #{deeplob_forward_pallas.1} parent=0
    _
  %s26 = ssub.s32 1, %s24
  %s27 = scalar_select 0, %s26, %s24
  $region1: #{deeplob_forward_pallas.1} parent=0
    #allocation2 [shape = 'u8[1024]{0}', space=vmem, size = 0x400, scoped, tag = 'output window, operand 0']
    #allocation3 [shape = 's32[2]{0}', space=sflag, size = 0x8, scoped, tag = 'scoped memory for deeplob_forward_pallas.1']
    %28 = vsyncpa [#allocation3], 0
    %s29 = scalar_lea.sflag [#allocation3], 1
    %30 = vsyncpa %s29, 0
    loop: start=0, step=1, limit=4
    $region2: #{deeplob_forward_pallas.1} parent=1 // loop_pre_header
      _
    $region3: #{deeplob_forward_pallas.1} parent=1 // loop_header
      %s32 = sphi 0, %s36
      %p33 = scmp.ge.s32.totalorder %s32, 4
      %s42 = sphi 0, %s44
      %s45 = sphi 0, %s42
      %s46 = sphi 0, %s45
      %s62 = sphi 0, %s46
      %s66 = sphi 0, %s66
      %s68 = sphi 0, %s66
      %s69 = sphi 0, %s68
      %s83 = sphi 0, %s69
      %s87 = sphi 0, %s87
      %s89 = sphi 0, %s87
      %s90 = sphi 0, %s89
      %s104 = sphi 0, %s90
      %s108 = sphi 0, %s108
      %s110 = sphi 0, %s108
      %s111 = sphi 0, %s110
      %s125 = sphi 0, %s111
      %s129 = sphi 0, %s129
      %s131 = sphi 0, %s129
      %s132 = sphi 0, %s131
      %s146 = sphi 0, %s132
      %s150 = sphi 0, %s150
      %s152 = sphi 0, %s150
      %s153 = sphi 0, %s152
      %s167 = sphi 0, %s153
      %s171 = sphi 0, %s171
      %s173 = sphi 0, %s171
      %s174 = sphi 0, %s173
      %s188 = sphi 0, %s174
      %s192 = sphi 0, %s192
      %s194 = sphi 0, %s192
      %s195 = sphi 0, %s194
      %s209 = sphi 0, %s195
      %s213 = sphi 0, %s213
      %s215 = sphi 0, %s213
      %s216 = sphi 0, %s215
      %s230 = sphi 0, %s216
      %s234 = sphi 0, %s234
      %s236 = sphi 0, %s234
      %s237 = sphi 0, %s236
      %s251 = sphi 0, %s237
      %s255 = sphi 0, %s255
      %s257 = sphi 0, %s255
      %s258 = sphi 0, %s257
      %s272 = sphi 0, %s258
      %s276 = sphi 0, %s276
      %s278 = sphi 0, %s276
      %s279 = sphi 0, %s278
      %s293 = sphi 0, %s279
      %s297 = sphi 0, %s297
      %s299 = sphi 0, %s297
      %s300 = sphi 0, %s299
      %s314 = sphi 0, %s300
      %s318 = sphi 0, %s318
      %s320 = sphi 0, %s318
      %s321 = sphi 0, %s320
      %s335 = sphi 0, %s321
      %s339 = sphi 0, %s339
      %s341 = sphi 0, %s339
      %s342 = sphi 0, %s341
      %s356 = sphi 0, %s342
      %s360 = sphi 0, %s360
      %s362 = sphi 0, %s360
      %s363 = sphi 0, %s362
      %s377 = sphi 0, %s363
      %s381 = sphi 0, %s381
      %s383 = sphi 0, %s381
      %s384 = sphi 0, %s383
      %s398 = sphi 0, %s384
      %s402 = sphi 0, %s402
      %s404 = sphi 0, %s402
      %s405 = sphi 0, %s404
      %s419 = sphi 0, %s405
      %s423 = sphi 0, %s423
      %s425 = sphi 0, %s423
      %s426 = sphi 0, %s425
      %s440 = sphi 0, %s426
      %s444 = sphi 0, %s444
      %s446 = sphi 0, %s444
      %s447 = sphi 0, %s446
      %s461 = sphi 0, %s447
      %s465 = sphi 0, %s465
      %s467 = sphi 0, %s465
      %s468 = sphi 0, %s467
      %s482 = sphi 0, %s468
      %s486 = sphi 0, %s486
      %s488 = sphi 0, %s486
      %s489 = sphi 0, %s488
      %s503 = sphi 0, %s489
      %s507 = sphi 0, %s507
      %s509 = sphi 0, %s507
      %s510 = sphi 0, %s509
      %s524 = sphi 0, %s510
      %s530 = sphi 0, %s532
      %s533 = sphi 0, %s530
      %s534 = sphi 0, %s533
      %s550 = sphi 0, %s534
    $region4: #{deeplob_forward_pallas.1} parent=1 // loop_header_branch
      %35 = sbr.rel (%p33) target = $region8
    $region5: #{deeplob_forward_pallas.1} parent=1 // loop_body
      %s37 = ssub.s32 %s32, 1
      %s38 = ssub.s32 %s32, 2
      %s39 = sadd.s32 %s32, 1
      %s40 = ssub.s32 %s32, %s39
      %p41 = scmp.eq.s32.totalorder %s40, 0
      %s43 = sadd.s32 %s42, 1
      %s44 = scalar_select %p41, %s42, %s43
      %p47 = pneg %p41
      %p48 = scmp.eq.s32.totalorder %s32, 1
      %p49 = por %p47, %p48
      %p50 = scmp.ne.s32.totalorder %s42, %s45
      %p51 = scmp.eq.s32.totalorder %s32, 0
      %p52 = por %p50, %p51
      %p53 = scmp.ne.s32.totalorder %s42, %s45
      %p54 = scmp.eq.s32.totalorder %s37, 1
      %p55 = por %p53, %p54
      %p56 = scmp.ne.s32.totalorder %s45, %s46
      %p57 = scmp.eq.s32.totalorder %s37, 0
      %p58 = por %p56, %p57
      %p59 = scmp.ne.s32.totalorder %s45, %s46
      %p60 = scmp.eq.s32.totalorder %s38, 1
      %p61 = por %p59, %p60
      %p63 = scmp.ne.s32.totalorder %s46, %s62
      %p64 = scmp.eq.s32.totalorder %s38, 0
      %p65 = por %p63, %p64
      %s67 = sadd.s32 %s66, 1
      %p70 = scmp.eq.s32.totalorder %s32, 1
      %p71 = scmp.ne.s32.totalorder %s66, %s68
      %p72 = scmp.eq.s32.totalorder %s32, 0
      %p73 = por %p71, %p72
      %p74 = scmp.ne.s32.totalorder %s66, %s68
      %p75 = scmp.eq.s32.totalorder %s37, 1
      %p76 = por %p74, %p75
      %p77 = scmp.ne.s32.totalorder %s68, %s69
      %p78 = scmp.eq.s32.totalorder %s37, 0
      %p79 = por %p77, %p78
      %p80 = scmp.ne.s32.totalorder %s68, %s69
      %p81 = scmp.eq.s32.totalorder %s38, 1
      %p82 = por %p80, %p81
      %p84 = scmp.ne.s32.totalorder %s69, %s83
      %p85 = scmp.eq.s32.totalorder %s38, 0
      %p86 = por %p84, %p85
      %s88 = sadd.s32 %s87, 1
      %p91 = scmp.eq.s32.totalorder %s32, 1
      %p92 = scmp.ne.s32.totalorder %s87, %s89
      %p93 = scmp.eq.s32.totalorder %s32, 0
      %p94 = por %p92, %p93
      %p95 = scmp.ne.s32.totalorder %s87, %s89
      %p96 = scmp.eq.s32.totalorder %s37, 1
      %p97 = por %p95, %p96
      %p98 = scmp.ne.s32.totalorder %s89, %s90
      %p99 = scmp.eq.s32.totalorder %s37, 0
      %p100 = por %p98, %p99
      %p101 = scmp.ne.s32.totalorder %s89, %s90
      %p102 = scmp.eq.s32.totalorder %s38, 1
      %p103 = por %p101, %p102
      %p105 = scmp.ne.s32.totalorder %s90, %s104
      %p106 = scmp.eq.s32.totalorder %s38, 0
      %p107 = por %p105, %p106
      %s109 = sadd.s32 %s108, 1
      %p112 = scmp.eq.s32.totalorder %s32, 1
      %p113 = scmp.ne.s32.totalorder %s108, %s110
      %p114 = scmp.eq.s32.totalorder %s32, 0
      %p115 = por %p113, %p114
      %p116 = scmp.ne.s32.totalorder %s108, %s110
      %p117 = scmp.eq.s32.totalorder %s37, 1
      %p118 = por %p116, %p117
      %p119 = scmp.ne.s32.totalorder %s110, %s111
      %p120 = scmp.eq.s32.totalorder %s37, 0
      %p121 = por %p119, %p120
      %p122 = scmp.ne.s32.totalorder %s110, %s111
      %p123 = scmp.eq.s32.totalorder %s38, 1
      %p124 = por %p122, %p123
      %p126 = scmp.ne.s32.totalorder %s111, %s125
      %p127 = scmp.eq.s32.totalorder %s38, 0
      %p128 = por %p126, %p127
      %s130 = sadd.s32 %s129, 1
      %p133 = scmp.eq.s32.totalorder %s32, 1
      %p134 = scmp.ne.s32.totalorder %s129, %s131
      %p135 = scmp.eq.s32.totalorder %s32, 0
      %p136 = por %p134, %p135
      %p137 = scmp.ne.s32.totalorder %s129, %s131
      %p138 = scmp.eq.s32.totalorder %s37, 1
      %p139 = por %p137, %p138
      %p140 = scmp.ne.s32.totalorder %s131, %s132
      %p141 = scmp.eq.s32.totalorder %s37, 0
      %p142 = por %p140, %p141
      %p143 = scmp.ne.s32.totalorder %s131, %s132
      %p144 = scmp.eq.s32.totalorder %s38, 1
      %p145 = por %p143, %p144
      %p147 = scmp.ne.s32.totalorder %s132, %s146
      %p148 = scmp.eq.s32.totalorder %s38, 0
      %p149 = por %p147, %p148
      %s151 = sadd.s32 %s150, 1
      %p154 = scmp.eq.s32.totalorder %s32, 1
      %p155 = scmp.ne.s32.totalorder %s150, %s152
      %p156 = scmp.eq.s32.totalorder %s32, 0
      %p157 = por %p155, %p156
      %p158 = scmp.ne.s32.totalorder %s150, %s152
      %p159 = scmp.eq.s32.totalorder %s37, 1
      %p160 = por %p158, %p159
      %p161 = scmp.ne.s32.totalorder %s152, %s153
      %p162 = scmp.eq.s32.totalorder %s37, 0
      %p163 = por %p161, %p162
      %p164 = scmp.ne.s32.totalorder %s152, %s153
      %p165 = scmp.eq.s32.totalorder %s38, 1
      %p166 = por %p164, %p165
      %p168 = scmp.ne.s32.totalorder %s153, %s167
      %p169 = scmp.eq.s32.totalorder %s38, 0
      %p170 = por %p168, %p169
      %s172 = sadd.s32 %s171, 1
      %p175 = scmp.eq.s32.totalorder %s32, 1
      %p176 = scmp.ne.s32.totalorder %s171, %s173
      %p177 = scmp.eq.s32.totalorder %s32, 0
      %p178 = por %p176, %p177
      %p179 = scmp.ne.s32.totalorder %s171, %s173
      %p180 = scmp.eq.s32.totalorder %s37, 1
      %p181 = por %p179, %p180
      %p182 = scmp.ne.s32.totalorder %s173, %s174
      %p183 = scmp.eq.s32.totalorder %s37, 0
      %p184 = por %p182, %p183
      %p185 = scmp.ne.s32.totalorder %s173, %s174
      %p186 = scmp.eq.s32.totalorder %s38, 1
      %p187 = por %p185, %p186
      %p189 = scmp.ne.s32.totalorder %s174, %s188
      %p190 = scmp.eq.s32.totalorder %s38, 0
      %p191 = por %p189, %p190
      %s193 = sadd.s32 %s192, 1
      %p196 = scmp.eq.s32.totalorder %s32, 1
      %p197 = scmp.ne.s32.totalorder %s192, %s194
      %p198 = scmp.eq.s32.totalorder %s32, 0
      %p199 = por %p197, %p198
      %p200 = scmp.ne.s32.totalorder %s192, %s194
      %p201 = scmp.eq.s32.totalorder %s37, 1
      %p202 = por %p200, %p201
      %p203 = scmp.ne.s32.totalorder %s194, %s195
      %p204 = scmp.eq.s32.totalorder %s37, 0
      %p205 = por %p203, %p204
      %p206 = scmp.ne.s32.totalorder %s194, %s195
      %p207 = scmp.eq.s32.totalorder %s38, 1
      %p208 = por %p206, %p207
      %p210 = scmp.ne.s32.totalorder %s195, %s209
      %p211 = scmp.eq.s32.totalorder %s38, 0
      %p212 = por %p210, %p211
      %s214 = sadd.s32 %s213, 1
      %p217 = scmp.eq.s32.totalorder %s32, 1
      %p218 = scmp.ne.s32.totalorder %s213, %s215
      %p219 = scmp.eq.s32.totalorder %s32, 0
      %p220 = por %p218, %p219
      %p221 = scmp.ne.s32.totalorder %s213, %s215
      %p222 = scmp.eq.s32.totalorder %s37, 1
      %p223 = por %p221, %p222
      %p224 = scmp.ne.s32.totalorder %s215, %s216
      %p225 = scmp.eq.s32.totalorder %s37, 0
      %p226 = por %p224, %p225
      %p227 = scmp.ne.s32.totalorder %s215, %s216
      %p228 = scmp.eq.s32.totalorder %s38, 1
      %p229 = por %p227, %p228
      %p231 = scmp.ne.s32.totalorder %s216, %s230
      %p232 = scmp.eq.s32.totalorder %s38, 0
      %p233 = por %p231, %p232
      %s235 = sadd.s32 %s234, 1
      %p238 = scmp.eq.s32.totalorder %s32, 1
      %p239 = scmp.ne.s32.totalorder %s234, %s236
      %p240 = scmp.eq.s32.totalorder %s32, 0
      %p241 = por %p239, %p240
      %p242 = scmp.ne.s32.totalorder %s234, %s236
      %p243 = scmp.eq.s32.totalorder %s37, 1
      %p244 = por %p242, %p243
      %p245 = scmp.ne.s32.totalorder %s236, %s237
      %p246 = scmp.eq.s32.totalorder %s37, 0
      %p247 = por %p245, %p246
      %p248 = scmp.ne.s32.totalorder %s236, %s237
      %p249 = scmp.eq.s32.totalorder %s38, 1
      %p250 = por %p248, %p249
      %p252 = scmp.ne.s32.totalorder %s237, %s251
      %p253 = scmp.eq.s32.totalorder %s38, 0
      %p254 = por %p252, %p253
      %s256 = sadd.s32 %s255, 1
      %p259 = scmp.eq.s32.totalorder %s32, 1
      %p260 = scmp.ne.s32.totalorder %s255, %s257
      %p261 = scmp.eq.s32.totalorder %s32, 0
      %p262 = por %p260, %p261
      %p263 = scmp.ne.s32.totalorder %s255, %s257
      %p264 = scmp.eq.s32.totalorder %s37, 1
      %p265 = por %p263, %p264
      %p266 = scmp.ne.s32.totalorder %s257, %s258
      %p267 = scmp.eq.s32.totalorder %s37, 0
      %p268 = por %p266, %p267
      %p269 = scmp.ne.s32.totalorder %s257, %s258
      %p270 = scmp.eq.s32.totalorder %s38, 1
      %p271 = por %p269, %p270
      %p273 = scmp.ne.s32.totalorder %s258, %s272
      %p274 = scmp.eq.s32.totalorder %s38, 0
      %p275 = por %p273, %p274
      %s277 = sadd.s32 %s276, 1
      %p280 = scmp.eq.s32.totalorder %s32, 1
      %p281 = scmp.ne.s32.totalorder %s276, %s278
      %p282 = scmp.eq.s32.totalorder %s32, 0
      %p283 = por %p281, %p282
      %p284 = scmp.ne.s32.totalorder %s276, %s278
      %p285 = scmp.eq.s32.totalorder %s37, 1
      %p286 = por %p284, %p285
      %p287 = scmp.ne.s32.totalorder %s278, %s279
      %p288 = scmp.eq.s32.totalorder %s37, 0
      %p289 = por %p287, %p288
      %p290 = scmp.ne.s32.totalorder %s278, %s279
      %p291 = scmp.eq.s32.totalorder %s38, 1
      %p292 = por %p290, %p291
      %p294 = scmp.ne.s32.totalorder %s279, %s293
      %p295 = scmp.eq.s32.totalorder %s38, 0
      %p296 = por %p294, %p295
      %s298 = sadd.s32 %s297, 1
      %p301 = scmp.eq.s32.totalorder %s32, 1
      %p302 = scmp.ne.s32.totalorder %s297, %s299
      %p303 = scmp.eq.s32.totalorder %s32, 0
      %p304 = por %p302, %p303
      %p305 = scmp.ne.s32.totalorder %s297, %s299
      %p306 = scmp.eq.s32.totalorder %s37, 1
      %p307 = por %p305, %p306
      %p308 = scmp.ne.s32.totalorder %s299, %s300
      %p309 = scmp.eq.s32.totalorder %s37, 0
      %p310 = por %p308, %p309
      %p311 = scmp.ne.s32.totalorder %s299, %s300
      %p312 = scmp.eq.s32.totalorder %s38, 1
      %p313 = por %p311, %p312
      %p315 = scmp.ne.s32.totalorder %s300, %s314
      %p316 = scmp.eq.s32.totalorder %s38, 0
      %p317 = por %p315, %p316
      %s319 = sadd.s32 %s318, 1
      %p322 = scmp.eq.s32.totalorder %s32, 1
      %p323 = scmp.ne.s32.totalorder %s318, %s320
      %p324 = scmp.eq.s32.totalorder %s32, 0
      %p325 = por %p323, %p324
      %p326 = scmp.ne.s32.totalorder %s318, %s320
      %p327 = scmp.eq.s32.totalorder %s37, 1
      %p328 = por %p326, %p327
      %p329 = scmp.ne.s32.totalorder %s320, %s321
      %p330 = scmp.eq.s32.totalorder %s37, 0
      %p331 = por %p329, %p330
      %p332 = scmp.ne.s32.totalorder %s320, %s321
      %p333 = scmp.eq.s32.totalorder %s38, 1
      %p334 = por %p332, %p333
      %p336 = scmp.ne.s32.totalorder %s321, %s335
      %p337 = scmp.eq.s32.totalorder %s38, 0
      %p338 = por %p336, %p337
      %s340 = sadd.s32 %s339, 1
      %p343 = scmp.eq.s32.totalorder %s32, 1
      %p344 = scmp.ne.s32.totalorder %s339, %s341
      %p345 = scmp.eq.s32.totalorder %s32, 0
      %p346 = por %p344, %p345
      %p347 = scmp.ne.s32.totalorder %s339, %s341
      %p348 = scmp.eq.s32.totalorder %s37, 1
      %p349 = por %p347, %p348
      %p350 = scmp.ne.s32.totalorder %s341, %s342
      %p351 = scmp.eq.s32.totalorder %s37, 0
      %p352 = por %p350, %p351
      %p353 = scmp.ne.s32.totalorder %s341, %s342
      %p354 = scmp.eq.s32.totalorder %s38, 1
      %p355 = por %p353, %p354
      %p357 = scmp.ne.s32.totalorder %s342, %s356
      %p358 = scmp.eq.s32.totalorder %s38, 0
      %p359 = por %p357, %p358
      %s361 = sadd.s32 %s360, 1
      %p364 = scmp.eq.s32.totalorder %s32, 1
      %p365 = scmp.ne.s32.totalorder %s360, %s362
      %p366 = scmp.eq.s32.totalorder %s32, 0
      %p367 = por %p365, %p366
      %p368 = scmp.ne.s32.totalorder %s360, %s362
      %p369 = scmp.eq.s32.totalorder %s37, 1
      %p370 = por %p368, %p369
      %p371 = scmp.ne.s32.totalorder %s362, %s363
      %p372 = scmp.eq.s32.totalorder %s37, 0
      %p373 = por %p371, %p372
      %p374 = scmp.ne.s32.totalorder %s362, %s363
      %p375 = scmp.eq.s32.totalorder %s38, 1
      %p376 = por %p374, %p375
      %p378 = scmp.ne.s32.totalorder %s363, %s377
      %p379 = scmp.eq.s32.totalorder %s38, 0
      %p380 = por %p378, %p379
      %s382 = sadd.s32 %s381, 1
      %p385 = scmp.eq.s32.totalorder %s32, 1
      %p386 = scmp.ne.s32.totalorder %s381, %s383
      %p387 = scmp.eq.s32.totalorder %s32, 0
      %p388 = por %p386, %p387
      %p389 = scmp.ne.s32.totalorder %s381, %s383
      %p390 = scmp.eq.s32.totalorder %s37, 1
      %p391 = por %p389, %p390
      %p392 = scmp.ne.s32.totalorder %s383, %s384
      %p393 = scmp.eq.s32.totalorder %s37, 0
      %p394 = por %p392, %p393
      %p395 = scmp.ne.s32.totalorder %s383, %s384
      %p396 = scmp.eq.s32.totalorder %s38, 1
      %p397 = por %p395, %p396
      %p399 = scmp.ne.s32.totalorder %s384, %s398
      %p400 = scmp.eq.s32.totalorder %s38, 0
      %p401 = por %p399, %p400
      %s403 = sadd.s32 %s402, 1
      %p406 = scmp.eq.s32.totalorder %s32, 1
      %p407 = scmp.ne.s32.totalorder %s402, %s404
      %p408 = scmp.eq.s32.totalorder %s32, 0
      %p409 = por %p407, %p408
      %p410 = scmp.ne.s32.totalorder %s402, %s404
      %p411 = scmp.eq.s32.totalorder %s37, 1
      %p412 = por %p410, %p411
      %p413 = scmp.ne.s32.totalorder %s404, %s405
      %p414 = scmp.eq.s32.totalorder %s37, 0
      %p415 = por %p413, %p414
      %p416 = scmp.ne.s32.totalorder %s404, %s405
      %p417 = scmp.eq.s32.totalorder %s38, 1
      %p418 = por %p416, %p417
      %p420 = scmp.ne.s32.totalorder %s405, %s419
      %p421 = scmp.eq.s32.totalorder %s38, 0
      %p422 = por %p420, %p421
      %s424 = sadd.s32 %s423, 1
      %p427 = scmp.eq.s32.totalorder %s32, 1
      %p428 = scmp.ne.s32.totalorder %s423, %s425
      %p429 = scmp.eq.s32.totalorder %s32, 0
      %p430 = por %p428, %p429
      %p431 = scmp.ne.s32.totalorder %s423, %s425
      %p432 = scmp.eq.s32.totalorder %s37, 1
      %p433 = por %p431, %p432
      %p434 = scmp.ne.s32.totalorder %s425, %s426
      %p435 = scmp.eq.s32.totalorder %s37, 0
      %p436 = por %p434, %p435
      %p437 = scmp.ne.s32.totalorder %s425, %s426
      %p438 = scmp.eq.s32.totalorder %s38, 1
      %p439 = por %p437, %p438
      %p441 = scmp.ne.s32.totalorder %s426, %s440
      %p442 = scmp.eq.s32.totalorder %s38, 0
      %p443 = por %p441, %p442
      %s445 = sadd.s32 %s444, 1
      %p448 = scmp.eq.s32.totalorder %s32, 1
      %p449 = scmp.ne.s32.totalorder %s444, %s446
      %p450 = scmp.eq.s32.totalorder %s32, 0
      %p451 = por %p449, %p450
      %p452 = scmp.ne.s32.totalorder %s444, %s446
      %p453 = scmp.eq.s32.totalorder %s37, 1
      %p454 = por %p452, %p453
      %p455 = scmp.ne.s32.totalorder %s446, %s447
      %p456 = scmp.eq.s32.totalorder %s37, 0
      %p457 = por %p455, %p456
      %p458 = scmp.ne.s32.totalorder %s446, %s447
      %p459 = scmp.eq.s32.totalorder %s38, 1
      %p460 = por %p458, %p459
      %p462 = scmp.ne.s32.totalorder %s447, %s461
      %p463 = scmp.eq.s32.totalorder %s38, 0
      %p464 = por %p462, %p463
      %s466 = sadd.s32 %s465, 1
      %p469 = scmp.eq.s32.totalorder %s32, 1
      %p470 = scmp.ne.s32.totalorder %s465, %s467
      %p471 = scmp.eq.s32.totalorder %s32, 0
      %p472 = por %p470, %p471
      %p473 = scmp.ne.s32.totalorder %s465, %s467
      %p474 = scmp.eq.s32.totalorder %s37, 1
      %p475 = por %p473, %p474
      %p476 = scmp.ne.s32.totalorder %s467, %s468
      %p477 = scmp.eq.s32.totalorder %s37, 0
      %p478 = por %p476, %p477
      %p479 = scmp.ne.s32.totalorder %s467, %s468
      %p480 = scmp.eq.s32.totalorder %s38, 1
      %p481 = por %p479, %p480
      %p483 = scmp.ne.s32.totalorder %s468, %s482
      %p484 = scmp.eq.s32.totalorder %s38, 0
      %p485 = por %p483, %p484
      %s487 = sadd.s32 %s486, 1
      %p490 = scmp.eq.s32.totalorder %s32, 1
      %p491 = scmp.ne.s32.totalorder %s486, %s488
      %p492 = scmp.eq.s32.totalorder %s32, 0
      %p493 = por %p491, %p492
      %p494 = scmp.ne.s32.totalorder %s486, %s488
      %p495 = scmp.eq.s32.totalorder %s37, 1
      %p496 = por %p494, %p495
      %p497 = scmp.ne.s32.totalorder %s488, %s489
      %p498 = scmp.eq.s32.totalorder %s37, 0
      %p499 = por %p497, %p498
      %p500 = scmp.ne.s32.totalorder %s488, %s489
      %p501 = scmp.eq.s32.totalorder %s38, 1
      %p502 = por %p500, %p501
      %p504 = scmp.ne.s32.totalorder %s489, %s503
      %p505 = scmp.eq.s32.totalorder %s38, 0
      %p506 = por %p504, %p505
      %s508 = sadd.s32 %s507, 1
      %p511 = scmp.eq.s32.totalorder %s32, 1
      %p512 = scmp.ne.s32.totalorder %s507, %s509
      %p513 = scmp.eq.s32.totalorder %s32, 0
      %p514 = por %p512, %p513
      %p515 = scmp.ne.s32.totalorder %s507, %s509
      %p516 = scmp.eq.s32.totalorder %s37, 1
      %p517 = por %p515, %p516
      %p518 = scmp.ne.s32.totalorder %s509, %s510
      %p519 = scmp.eq.s32.totalorder %s37, 0
      %p520 = por %p518, %p519
      %p521 = scmp.ne.s32.totalorder %s509, %s510
      %p522 = scmp.eq.s32.totalorder %s38, 1
      %p523 = por %p521, %p522
      %p525 = scmp.ne.s32.totalorder %s510, %s524
      %p526 = scmp.eq.s32.totalorder %s38, 0
      %p527 = por %p525, %p526
      %s528 = ssub.s32 %s32, %s39
      %p529 = scmp.eq.s32.totalorder %s528, 0
      %s531 = sadd.s32 %s530, 1
      %s532 = scalar_select %p529, %s530, %s531
      %p535 = pneg %p529
      %p536 = scmp.eq.s32.totalorder %s32, 1
      %p537 = por %p535, %p536
      %p538 = scmp.ne.s32.totalorder %s530, %s533
      %p539 = scmp.eq.s32.totalorder %s32, 0
      %p540 = por %p538, %p539
      %p541 = scmp.ne.s32.totalorder %s530, %s533
      %p542 = scmp.eq.s32.totalorder %s37, 1
      %p543 = por %p541, %p542
      %p544 = scmp.ne.s32.totalorder %s533, %s534
      %p545 = scmp.eq.s32.totalorder %s37, 0
      %p546 = por %p544, %p545
      %p547 = scmp.ne.s32.totalorder %s533, %s534
      %p548 = scmp.eq.s32.totalorder %s38, 1
      %p549 = por %p547, %p548
      %p551 = scmp.ne.s32.totalorder %s534, %s550
      %p552 = scmp.eq.s32.totalorder %s38, 0
      %p553 = por %p551, %p552
      %p554 = scmp.le.s32.totalorder 1, %s32
      %p555 = scmp.lt.s32.totalorder %s32, 3
      %p556 = pnand %p554, %p555
      %p557 = pneg %p556
      // Predicated region
      $region9: #{deeplob_forward_pallas.1} parent=5 // pred_check
        _
      $region10: #{deeplob_forward_pallas.1} parent=5 // pred_check_branch
        %559 = sbr.rel (%p556) target = $region12
      $region11: #{deeplob_forward_pallas.1} parent=5 // pred_region
        %s560 = ssub.s32 %s32, 1
        // Predicated region
        $region13: #{deeplob_forward_pallas.1} parent=11 // pred_check
          %p561 = pneg %p79
        $region14: #{deeplob_forward_pallas.1} parent=11 // pred_check_branch
          %563 = sbr.rel (%p561) target = $region16
        $region15: #{deeplob_forward_pallas.1} parent=11 // pred_region
          _
        $region16: #{deeplob_forward_pallas.1} parent=11 // pred_fallthru
          _
        // Predicated region
        $region17: #{deeplob_forward_pallas.1} parent=11 // pred_check
          %p564 = pneg %p100
        $region18: #{deeplob_forward_pallas.1} parent=11 // pred_check_branch
          %566 = sbr.rel (%p564) target = $region20
        $region19: #{deeplob_forward_pallas.1} parent=11 // pred_region
          _
        $region20: #{deeplob_forward_pallas.1} parent=11 // pred_fallthru
          _
        // Predicated region
        $region21: #{deeplob_forward_pallas.1} parent=11 // pred_check
          %p567 = pneg %p121
        $region22: #{deeplob_forward_pallas.1} parent=11 // pred_check_branch
          %569 = sbr.rel (%p567) target = $region24
        $region23: #{deeplob_forward_pallas.1} parent=11 // pred_region
          _
        $region24: #{deeplob_forward_pallas.1} parent=11 // pred_fallthru
          _
        // Predicated region
        $region25: #{deeplob_forward_pallas.1} parent=11 // pred_check
          %p570 = pneg %p142
        $region26: #{deeplob_forward_pallas.1} parent=11 // pred_check_branch
          %572 = sbr.rel (%p570) target = $region28
        $region27: #{deeplob_forward_pallas.1} parent=11 // pred_region
          _
        $region28: #{deeplob_forward_pallas.1} parent=11 // pred_fallthru
          _
        // Predicated region
        $region29: #{deeplob_forward_pallas.1} parent=11 // pred_check
          %p573 = pneg %p163
        $region30: #{deeplob_forward_pallas.1} parent=11 // pred_check_branch
          %575 = sbr.rel (%p573) target = $region32
        $region31: #{deeplob_forward_pallas.1} parent=11 // pred_region
          _
        $region32: #{deeplob_forward_pallas.1} parent=11 // pred_fallthru
          _
        // Predicated region
        $region33: #{deeplob_forward_pallas.1} parent=11 // pred_check
          %p576 = pneg %p184
        $region34: #{deeplob_forward_pallas.1} parent=11 // pred_check_branch
          %578 = sbr.rel (%p576) target = $region36
        $region35: #{deeplob_forward_pallas.1} parent=11 // pred_region
          _
        $region36: #{deeplob_forward_pallas.1} parent=11 // pred_fallthru
          _
        // Predicated region
        $region37: #{deeplob_forward_pallas.1} parent=11 // pred_check
          %p579 = pneg %p205
        $region38: #{deeplob_forward_pallas.1} parent=11 // pred_check_branch
          %581 = sbr.rel (%p579) target = $region40
        $region39: #{deeplob_forward_pallas.1} parent=11 // pred_region
          _
        $region40: #{deeplob_forward_pallas.1} parent=11 // pred_fallthru
          _
        // Predicated region
        $region41: #{deeplob_forward_pallas.1} parent=11 // pred_check
          %p582 = pneg %p226
        $region42: #{deeplob_forward_pallas.1} parent=11 // pred_check_branch
          %584 = sbr.rel (%p582) target = $region44
        $region43: #{deeplob_forward_pallas.1} parent=11 // pred_region
          _
        $region44: #{deeplob_forward_pallas.1} parent=11 // pred_fallthru
          _
        // Predicated region
        $region45: #{deeplob_forward_pallas.1} parent=11 // pred_check
          %p585 = pneg %p247
        $region46: #{deeplob_forward_pallas.1} parent=11 // pred_check_branch
          %587 = sbr.rel (%p585) target = $region48
        $region47: #{deeplob_forward_pallas.1} parent=11 // pred_region
          _
        $region48: #{deeplob_forward_pallas.1} parent=11 // pred_fallthru
          _
        // Predicated region
        $region49: #{deeplob_forward_pallas.1} parent=11 // pred_check
          %p588 = pneg %p268
        $region50: #{deeplob_forward_pallas.1} parent=11 // pred_check_branch
          %590 = sbr.rel (%p588) target = $region52
        $region51: #{deeplob_forward_pallas.1} parent=11 // pred_region
          _
        $region52: #{deeplob_forward_pallas.1} parent=11 // pred_fallthru
          _
        // Predicated region
        $region53: #{deeplob_forward_pallas.1} parent=11 // pred_check
          %p591 = pneg %p289
        $region54: #{deeplob_forward_pallas.1} parent=11 // pred_check_branch
          %593 = sbr.rel (%p591) target = $region56
        $region55: #{deeplob_forward_pallas.1} parent=11 // pred_region
          _
        $region56: #{deeplob_forward_pallas.1} parent=11 // pred_fallthru
          _
        // Predicated region
        $region57: #{deeplob_forward_pallas.1} parent=11 // pred_check
          %p594 = pneg %p310
        $region58: #{deeplob_forward_pallas.1} parent=11 // pred_check_branch
          %596 = sbr.rel (%p594) target = $region60
        $region59: #{deeplob_forward_pallas.1} parent=11 // pred_region
          _
        $region60: #{deeplob_forward_pallas.1} parent=11 // pred_fallthru
          _
        // Predicated region
        $region61: #{deeplob_forward_pallas.1} parent=11 // pred_check
          %p597 = pneg %p331
        $region62: #{deeplob_forward_pallas.1} parent=11 // pred_check_branch
          %599 = sbr.rel (%p597) target = $region64
        $region63: #{deeplob_forward_pallas.1} parent=11 // pred_region
          _
        $region64: #{deeplob_forward_pallas.1} parent=11 // pred_fallthru
          _
        // Predicated region
        $region65: #{deeplob_forward_pallas.1} parent=11 // pred_check
          %p600 = pneg %p352
        $region66: #{deeplob_forward_pallas.1} parent=11 // pred_check_branch
          %602 = sbr.rel (%p600) target = $region68
        $region67: #{deeplob_forward_pallas.1} parent=11 // pred_region
          _
        $region68: #{deeplob_forward_pallas.1} parent=11 // pred_fallthru
          _
        // Predicated region
        $region69: #{deeplob_forward_pallas.1} parent=11 // pred_check
          %p603 = pneg %p373
        $region70: #{deeplob_forward_pallas.1} parent=11 // pred_check_branch
          %605 = sbr.rel (%p603) target = $region72
        $region71: #{deeplob_forward_pallas.1} parent=11 // pred_region
          _
        $region72: #{deeplob_forward_pallas.1} parent=11 // pred_fallthru
          _
        // Predicated region
        $region73: #{deeplob_forward_pallas.1} parent=11 // pred_check
          %p606 = pneg %p394
        $region74: #{deeplob_forward_pallas.1} parent=11 // pred_check_branch
          %608 = sbr.rel (%p606) target = $region76
        $region75: #{deeplob_forward_pallas.1} parent=11 // pred_region
          _
        $region76: #{deeplob_forward_pallas.1} parent=11 // pred_fallthru
          _
        // Predicated region
        $region77: #{deeplob_forward_pallas.1} parent=11 // pred_check
          %p609 = pneg %p415
        $region78: #{deeplob_forward_pallas.1} parent=11 // pred_check_branch
          %611 = sbr.rel (%p609) target = $region80
        $region79: #{deeplob_forward_pallas.1} parent=11 // pred_region
          _
        $region80: #{deeplob_forward_pallas.1} parent=11 // pred_fallthru
          _
        // Predicated region
        $region81: #{deeplob_forward_pallas.1} parent=11 // pred_check
          %p612 = pneg %p436
        $region82: #{deeplob_forward_pallas.1} parent=11 // pred_check_branch
          %614 = sbr.rel (%p612) target = $region84
        $region83: #{deeplob_forward_pallas.1} parent=11 // pred_region
          _
        $region84: #{deeplob_forward_pallas.1} parent=11 // pred_fallthru
          _
        // Predicated region
        $region85: #{deeplob_forward_pallas.1} parent=11 // pred_check
          %p615 = pneg %p457
        $region86: #{deeplob_forward_pallas.1} parent=11 // pred_check_branch
          %617 = sbr.rel (%p615) target = $region88
        $region87: #{deeplob_forward_pallas.1} parent=11 // pred_region
          _
        $region88: #{deeplob_forward_pallas.1} parent=11 // pred_fallthru
          _
        // Predicated region
        $region89: #{deeplob_forward_pallas.1} parent=11 // pred_check
          %p618 = pneg %p478
        $region90: #{deeplob_forward_pallas.1} parent=11 // pred_check_branch
          %620 = sbr.rel (%p618) target = $region92
        $region91: #{deeplob_forward_pallas.1} parent=11 // pred_region
          _
        $region92: #{deeplob_forward_pallas.1} parent=11 // pred_fallthru
          _
        // Predicated region
        $region93: #{deeplob_forward_pallas.1} parent=11 // pred_check
          %p621 = pneg %p499
        $region94: #{deeplob_forward_pallas.1} parent=11 // pred_check_branch
          %623 = sbr.rel (%p621) target = $region96
        $region95: #{deeplob_forward_pallas.1} parent=11 // pred_region
          _
        $region96: #{deeplob_forward_pallas.1} parent=11 // pred_fallthru
          _
        // Predicated region
        $region97: #{deeplob_forward_pallas.1} parent=11 // pred_check
          %p624 = pneg %p520
        $region98: #{deeplob_forward_pallas.1} parent=11 // pred_check_branch
          %626 = sbr.rel (%p624) target = $region100
        $region99: #{deeplob_forward_pallas.1} parent=11 // pred_region
          _
        $region100: #{deeplob_forward_pallas.1} parent=11 // pred_fallthru
          _
      $region12: #{deeplob_forward_pallas.1} parent=5 // pred_fallthru
        _
      %p627 = scmp.lt.s32.totalorder %s32, 2
      // Predicated region
      $region101: #{deeplob_forward_pallas.1} parent=5 // pred_check
        %p628 = pneg %p627
      $region102: #{deeplob_forward_pallas.1} parent=5 // pred_check_branch
        %630 = sbr.rel (%p628) target = $region104
      $region103: #{deeplob_forward_pallas.1} parent=5 // pred_region
        // Predicated region
        $region105: #{deeplob_forward_pallas.1} parent=103 // pred_check
          %p631 = pneg %p52
        $region106: #{deeplob_forward_pallas.1} parent=103 // pred_check_branch
          %633 = sbr.rel (%p631) target = $region108
        $region107: #{deeplob_forward_pallas.1} parent=103 // pred_region
          %p634 = scmp.lt.s32.totalorder %s32, 1
          %s635 = scalar_select %p634, %s32, 1
          %s636 = smul.addr %s635, 20
          %s637 = smul.addr %s636, 8
          %s638 = scalar_lea.vmem %s0, %s637
        $region108: #{deeplob_forward_pallas.1} parent=103 // pred_fallthru
          _
      $region104: #{deeplob_forward_pallas.1} parent=5 // pred_fallthru
        _
      %p639 = scmp.le.s32.totalorder 1, %s32
      %p640 = scmp.lt.s32.totalorder %s32, 3
      %p641 = pnand %p639, %p640
      %p642 = pneg %p641
      // Predicated region
      $region109: #{deeplob_forward_pallas.1} parent=5 // pred_check
        _
      $region110: #{deeplob_forward_pallas.1} parent=5 // pred_check_branch
        %644 = sbr.rel (%p641) target = $region112
      $region111: #{deeplob_forward_pallas.1} parent=5 // pred_region
        %s645 = ssub.s32 %s32, 1
        %p646 = scmp.lt.s32.totalorder %s37, 1
        %s647 = scalar_select %p646, %s37, 1
        %s648 = smul.addr %s647, 20
        %s649 = smul.addr %s648, 8
        %s650 = scalar_lea.vmem %s0, %s649
        %p651 = pneg %p58
        %p652 = pneg %p55
        %p653 = pneg %p79
        %p654 = pneg %p76
        %p655 = pneg %p100
        %p656 = pneg %p97
        %p657 = pneg %p121
        %p658 = pneg %p118
        %p659 = pneg %p142
        %p660 = pneg %p139
        %p661 = pneg %p163
        %p662 = pneg %p160
        %p663 = pneg %p184
        %p664 = pneg %p181
        %p665 = pneg %p205
        %p666 = pneg %p202
        %p667 = pneg %p226
        %p668 = pneg %p223
        %p669 = pneg %p247
        %p670 = pneg %p244
        %p671 = pneg %p268
        %p672 = pneg %p265
        %p673 = pneg %p289
        %p674 = pneg %p286
        %p675 = pneg %p310
        %p676 = pneg %p307
        %p677 = pneg %p331
        %p678 = pneg %p328
        %p679 = pneg %p352
        %p680 = pneg %p349
        %p681 = pneg %p373
        %p682 = pneg %p370
        %p683 = pneg %p394
        %p684 = pneg %p391
        %p685 = pneg %p415
        %p686 = pneg %p412
        %p687 = pneg %p436
        %p688 = pneg %p433
        %p689 = pneg %p457
        %p690 = pneg %p454
        %p691 = pneg %p478
        %p692 = pneg %p475
        %p693 = pneg %p499
        %p694 = pneg %p496
        %p695 = pneg %p520
        %p696 = pneg %p517
        %p697 = pneg %p546
        %p698 = pneg %p543
        %s699 = sand.u32 %s533, 1
        %s700 = scalar_lea.sflag [#allocation3], %s699
        %s701 = sand.u32 %s533, 1
        %s702 = scalar_lea.vmem [#allocation2], %s701
        %p703 = scmp.lt.s32.totalorder %s37, 1
        %s704 = scalar_select %p703, %s37, 1
        %s705 = smul.addr %s704, 20
        %s706 = smul.addr %s705, 8
        %s707 = scalar_lea.vmem %s0, %s706
        %v709 = vld [vmem:[%s1] sm:$0xf]
        %v710 = vld [vmem:[%s2] sm:$0xf]
        %v711 = vld [vmem:[%s2 + $0x4] sm:$0xf]
        %v712 = vld [vmem:[%s2 + $0x8] sm:$0xf]
        %v713 = vld [vmem:[%s2 + $0xc] sm:$0xf]
        %v714 = vld [vmem:[%s2 + $0x10] sm:$0xf]
        %v715 = vld [vmem:[%s2 + $0x14] sm:$0xf]
        %v716 = vld [vmem:[%s2 + $0x18] sm:$0xf]
        %v717 = vld [vmem:[%s2 + $0x1c] sm:$0xf]
        %v718 = vld [vmem:[%s2 + $0x20] sm:$0xf]
        %v719 = vld [vmem:[%s2 + $0x24] sm:$0xf]
        %v720 = vld [vmem:[%s2 + $0x28] sm:$0xf]
        %v721 = vld [vmem:[%s2 + $0x2c] sm:$0xf]
        %v722 = vld [vmem:[%s2 + $0x30] sm:$0xf]
        %v723 = vld [vmem:[%s2 + $0x34] sm:$0xf]
        %v724 = vld [vmem:[%s2 + $0x38] sm:$0xf]
        %v725 = vld [vmem:[%s2 + $0x3c] sm:$0xf]
        %v726 = vld [vmem:[%s2 + $0x40] sm:$0xf]
        %v727 = vld [vmem:[%s2 + $0x44] sm:$0xf]
        %v728 = vld [vmem:[%s2 + $0x48] sm:$0xf]
        %v729 = vld [vmem:[%s2 + $0x4c] sm:$0xf]
        %v730 = vld [vmem:[%s2 + $0x50] sm:$0xf]
        %v731 = vld [vmem:[%s2 + $0x54] sm:$0xf]
        %v732 = vld [vmem:[%s2 + $0x58] sm:$0xf]
        %v733 = vld [vmem:[%s2 + $0x5c] sm:$0xf]
        %v734 = vld [vmem:[%s2 + $0x60] sm:$0xf]
        %v735 = vld [vmem:[%s2 + $0x64] sm:$0xf]
        %v736 = vld [vmem:[%s2 + $0x68] sm:$0xf]
        %v737 = vld [vmem:[%s2 + $0x6c] sm:$0xf]
        %v738 = vld [vmem:[%s2 + $0x70] sm:$0xf]
        %v739 = vld [vmem:[%s2 + $0x74] sm:$0xf]
        %v740 = vld [vmem:[%s2 + $0x78] sm:$0xf]
        %v741 = vld [vmem:[%s2 + $0x7c] sm:$0xf]
        %v742 = vld [vmem:[%s2 + $0x80] sm:$0xf]
        %v743 = vld [vmem:[%s2 + $0x84] sm:$0xf]
        %v744 = vld [vmem:[%s2 + $0x88] sm:$0xf]
        %v745 = vld [vmem:[%s2 + $0x8c] sm:$0xf]
        %v746 = vld [vmem:[%s2 + $0x90] sm:$0xf]
        %v747 = vld [vmem:[%s2 + $0x94] sm:$0xf]
        %v748 = vld [vmem:[%s2 + $0x98] sm:$0xf]
        %v749 = vld [vmem:[%s2 + $0x9c] sm:$0xf]
        %v750 = vld [vmem:[%s2 + $0xa0] sm:$0xf]
        %v751 = vld [vmem:[%s2 + $0xa4] sm:$0xf]
        %v752 = vld [vmem:[%s2 + $0xa8] sm:$0xf]
        %v753 = vld [vmem:[%s2 + $0xac] sm:$0xf]
        %v754 = vld [vmem:[%s2 + $0xb0] sm:$0xf]
        %v755 = vld [vmem:[%s2 + $0xb4] sm:$0xf]
        %v756 = vld [vmem:[%s2 + $0xb8] sm:$0xf]
        %v757 = vld [vmem:[%s2 + $0xbc] sm:$0xf]
        %v758 = vld [vmem:[%s2 + $0xc0] sm:$0xf]
        %v759 = vld [vmem:[%s2 + $0xc4] sm:$0xf]
        %v760 = vld [vmem:[%s2 + $0xc8] sm:$0xf]
        %v761 = vld [vmem:[%s2 + $0xcc] sm:$0xf]
        %v762 = vld [vmem:[%s2 + $0xd0] sm:$0xf]
        %v763 = vld [vmem:[%s2 + $0xd4] sm:$0xf]
        %v764 = vld [vmem:[%s2 + $0xd8] sm:$0xf]
        %v765 = vld [vmem:[%s2 + $0xdc] sm:$0xf]
        %v766 = vld [vmem:[%s2 + $0xe0] sm:$0xf]
        %v767 = vld [vmem:[%s2 + $0xe4] sm:$0xf]
        %v768 = vld [vmem:[%s2 + $0xe8] sm:$0xf]
        %v769 = vld [vmem:[%s2 + $0xec] sm:$0xf]
        %v770 = vld [vmem:[%s2 + $0xf0] sm:$0xf]
        %v771 = vld [vmem:[%s2 + $0xf4] sm:$0xf]
        %v772 = vld [vmem:[%s2 + $0xf8] sm:$0xf]
        %v773 = vld [vmem:[%s2 + $0xfc] sm:$0xf]
        %v774 = vld [vmem:[%s3] sm:$0xf]
        %v775 = vld [vmem:[%s3 + $0x4] sm:$0xf]
        %v776 = vld [vmem:[%s3 + $0x8] sm:$0xf]
        %v777 = vld [vmem:[%s3 + $0xc] sm:$0xf]
        %v778 = vld [vmem:[%s3 + $0x10] sm:$0xf]
        %v779 = vld [vmem:[%s3 + $0x14] sm:$0xf]
        %v780 = vld [vmem:[%s3 + $0x18] sm:$0xf]
        %v781 = vld [vmem:[%s3 + $0x1c] sm:$0xf]
        %v782 = vld [vmem:[%s3 + $0x20] sm:$0xf]
        %v783 = vld [vmem:[%s3 + $0x24] sm:$0xf]
        %v784 = vld [vmem:[%s3 + $0x28] sm:$0xf]
        %v785 = vld [vmem:[%s3 + $0x2c] sm:$0xf]
        %v786 = vld [vmem:[%s3 + $0x30] sm:$0xf]
        %v787 = vld [vmem:[%s3 + $0x34] sm:$0xf]
        %v788 = vld [vmem:[%s3 + $0x38] sm:$0xf]
        %v789 = vld [vmem:[%s3 + $0x3c] sm:$0xf]
        %v790 = vld [vmem:[%s3 + $0x40] sm:$0xf]
        %v791 = vld [vmem:[%s3 + $0x44] sm:$0xf]
        %v792 = vld [vmem:[%s3 + $0x48] sm:$0xf]
        %v793 = vld [vmem:[%s3 + $0x4c] sm:$0xf]
        %v794 = vld [vmem:[%s3 + $0x50] sm:$0xf]
        %v795 = vld [vmem:[%s3 + $0x54] sm:$0xf]
        %v796 = vld [vmem:[%s3 + $0x58] sm:$0xf]
        %v797 = vld [vmem:[%s3 + $0x5c] sm:$0xf]
        %v798 = vld [vmem:[%s3 + $0x60] sm:$0xf]
        %v799 = vld [vmem:[%s3 + $0x64] sm:$0xf]
        %v800 = vld [vmem:[%s3 + $0x68] sm:$0xf]
        %v801 = vld [vmem:[%s3 + $0x6c] sm:$0xf]
        %v802 = vld [vmem:[%s3 + $0x70] sm:$0xf]
        %v803 = vld [vmem:[%s3 + $0x74] sm:$0xf]
        %v804 = vld [vmem:[%s3 + $0x78] sm:$0xf]
        %v805 = vld [vmem:[%s3 + $0x7c] sm:$0xf]
        %v806 = vld [vmem:[%s3 + $0x80] sm:$0xf]
        %v807 = vld [vmem:[%s3 + $0x84] sm:$0xf]
        %v808 = vld [vmem:[%s3 + $0x88] sm:$0xf]
        %v809 = vld [vmem:[%s3 + $0x8c] sm:$0xf]
        %v810 = vld [vmem:[%s3 + $0x90] sm:$0xf]
        %v811 = vld [vmem:[%s3 + $0x94] sm:$0xf]
        %v812 = vld [vmem:[%s3 + $0x98] sm:$0xf]
        %v813 = vld [vmem:[%s3 + $0x9c] sm:$0xf]
        %v814 = vld [vmem:[%s3 + $0xa0] sm:$0xf]
        %v815 = vld [vmem:[%s3 + $0xa4] sm:$0xf]
        %v816 = vld [vmem:[%s3 + $0xa8] sm:$0xf]
        %v817 = vld [vmem:[%s3 + $0xac] sm:$0xf]
        %v818 = vld [vmem:[%s3 + $0xb0] sm:$0xf]
        %v819 = vld [vmem:[%s3 + $0xb4] sm:$0xf]
        %v820 = vld [vmem:[%s3 + $0xb8] sm:$0xf]
        %v821 = vld [vmem:[%s3 + $0xbc] sm:$0xf]
        %v822 = vld [vmem:[%s3 + $0xc0] sm:$0xf]
        %v823 = vld [vmem:[%s3 + $0xc4] sm:$0xf]
        %v824 = vld [vmem:[%s3 + $0xc8] sm:$0xf]
        %v825 = vld [vmem:[%s3 + $0xcc] sm:$0xf]
        %v826 = vld [vmem:[%s3 + $0xd0] sm:$0xf]
        %v827 = vld [vmem:[%s3 + $0xd4] sm:$0xf]
        %v828 = vld [vmem:[%s3 + $0xd8] sm:$0xf]
        %v829 = vld [vmem:[%s3 + $0xdc] sm:$0xf]
        %v830 = vld [vmem:[%s3 + $0xe0] sm:$0xf]
        %v831 = vld [vmem:[%s3 + $0xe4] sm:$0xf]
        %v832 = vld [vmem:[%s3 + $0xe8] sm:$0xf]
        %v833 = vld [vmem:[%s3 + $0xec] sm:$0xf]
        %v834 = vld [vmem:[%s3 + $0xf0] sm:$0xf]
        %v835 = vld [vmem:[%s3 + $0xf4] sm:$0xf]
        %v836 = vld [vmem:[%s3 + $0xf8] sm:$0xf]
        %v837 = vld [vmem:[%s3 + $0xfc] sm:$0xf]
        %v838 = vld [vmem:[%s4] sm:$0xff]
        %v839 = vld [vmem:[%s4 + $0x8] sm:$0x1]
        %v840 = vld [vmem:[%s5] sm:$0xf]
        %v841 = vld [vmem:[%s5 + $0x4] sm:$0xf]
        %v842 = vld [vmem:[%s5 + $0x8] sm:$0xf]
        %v843 = vld [vmem:[%s5 + $0xc] sm:$0xf]
        %v844 = vld [vmem:[%s5 + $0x10] sm:$0xf]
        %v845 = vld [vmem:[%s5 + $0x14] sm:$0xf]
        %v846 = vld [vmem:[%s5 + $0x18] sm:$0xf]
        %v847 = vld [vmem:[%s5 + $0x1c] sm:$0xf]
        %v848 = vld [vmem:[%s5 + $0x20] sm:$0xf]
        %v849 = vld [vmem:[%s5 + $0x24] sm:$0xf]
        %v850 = vld [vmem:[%s5 + $0x28] sm:$0xf]
        %v851 = vld [vmem:[%s5 + $0x2c] sm:$0xf]
        %v852 = vld [vmem:[%s5 + $0x30] sm:$0xf]
        %v853 = vld [vmem:[%s5 + $0x34] sm:$0xf]
        %v854 = vld [vmem:[%s5 + $0x38] sm:$0xf]
        %v855 = vld [vmem:[%s5 + $0x3c] sm:$0xf]
        %v856 = vld [vmem:[%s6] sm:$0xf]
        %v857 = vld [vmem:[%s6 + $0x4] sm:$0xf]
        %v858 = vld [vmem:[%s6 + $0x8] sm:$0xf]
        %v859 = vld [vmem:[%s6 + $0xc] sm:$0xf]
        %v860 = vld [vmem:[%s6 + $0x10] sm:$0xf]
        %v861 = vld [vmem:[%s6 + $0x14] sm:$0xf]
        %v862 = vld [vmem:[%s6 + $0x18] sm:$0xf]
        %v863 = vld [vmem:[%s6 + $0x1c] sm:$0xf]
        %v864 = vld [vmem:[%s6 + $0x20] sm:$0xf]
        %v865 = vld [vmem:[%s6 + $0x24] sm:$0xf]
        %v866 = vld [vmem:[%s6 + $0x28] sm:$0xf]
        %v867 = vld [vmem:[%s6 + $0x2c] sm:$0xf]
        %v868 = vld [vmem:[%s6 + $0x30] sm:$0xf]
        %v869 = vld [vmem:[%s6 + $0x34] sm:$0xf]
        %v870 = vld [vmem:[%s6 + $0x38] sm:$0xf]
        %v871 = vld [vmem:[%s6 + $0x3c] sm:$0xf]
        %v872 = vld [vmem:[%s6 + $0x40] sm:$0xf]
        %v873 = vld [vmem:[%s6 + $0x44] sm:$0xf]
        %v874 = vld [vmem:[%s6 + $0x48] sm:$0xf]
        %v875 = vld [vmem:[%s6 + $0x4c] sm:$0xf]
        %v876 = vld [vmem:[%s6 + $0x50] sm:$0xf]
        %v877 = vld [vmem:[%s6 + $0x54] sm:$0xf]
        %v878 = vld [vmem:[%s6 + $0x58] sm:$0xf]
        %v879 = vld [vmem:[%s6 + $0x5c] sm:$0xf]
        %v880 = vld [vmem:[%s6 + $0x60] sm:$0xf]
        %v881 = vld [vmem:[%s6 + $0x64] sm:$0xf]
        %v882 = vld [vmem:[%s6 + $0x68] sm:$0xf]
        %v883 = vld [vmem:[%s6 + $0x6c] sm:$0xf]
        %v884 = vld [vmem:[%s6 + $0x70] sm:$0xf]
        %v885 = vld [vmem:[%s6 + $0x74] sm:$0xf]
        %v886 = vld [vmem:[%s6 + $0x78] sm:$0xf]
        %v887 = vld [vmem:[%s6 + $0x7c] sm:$0xf]
        %v888 = vld [vmem:[%s7] sm:$0xf]
        %v889 = vld [vmem:[%s7 + $0x4] sm:$0xf]
        %v890 = vld [vmem:[%s7 + $0x8] sm:$0xf]
        %v891 = vld [vmem:[%s7 + $0xc] sm:$0xf]
        %v892 = vld [vmem:[%s7 + $0x10] sm:$0xf]
        %v893 = vld [vmem:[%s7 + $0x14] sm:$0xf]
        %v894 = vld [vmem:[%s7 + $0x18] sm:$0xf]
        %v895 = vld [vmem:[%s7 + $0x1c] sm:$0xf]
        %v896 = vld [vmem:[%s7 + $0x20] sm:$0xf]
        %v897 = vld [vmem:[%s7 + $0x24] sm:$0xf]
        %v898 = vld [vmem:[%s7 + $0x28] sm:$0xf]
        %v899 = vld [vmem:[%s7 + $0x2c] sm:$0xf]
        %v900 = vld [vmem:[%s7 + $0x30] sm:$0xf]
        %v901 = vld [vmem:[%s7 + $0x34] sm:$0xf]
        %v902 = vld [vmem:[%s7 + $0x38] sm:$0xf]
        %v903 = vld [vmem:[%s7 + $0x3c] sm:$0xf]
        %v904 = vld [vmem:[%s7 + $0x40] sm:$0xf]
        %v905 = vld [vmem:[%s7 + $0x44] sm:$0xf]
        %v906 = vld [vmem:[%s7 + $0x48] sm:$0xf]
        %v907 = vld [vmem:[%s7 + $0x4c] sm:$0xf]
        %v908 = vld [vmem:[%s7 + $0x50] sm:$0xf]
        %v909 = vld [vmem:[%s7 + $0x54] sm:$0xf]
        %v910 = vld [vmem:[%s7 + $0x58] sm:$0xf]
        %v911 = vld [vmem:[%s7 + $0x5c] sm:$0xf]
        %v912 = vld [vmem:[%s7 + $0x60] sm:$0xf]
        %v913 = vld [vmem:[%s7 + $0x64] sm:$0xf]
        %v914 = vld [vmem:[%s7 + $0x68] sm:$0xf]
        %v915 = vld [vmem:[%s7 + $0x6c] sm:$0xf]
        %v916 = vld [vmem:[%s7 + $0x70] sm:$0xf]
        %v917 = vld [vmem:[%s7 + $0x74] sm:$0xf]
        %v918 = vld [vmem:[%s7 + $0x78] sm:$0xf]
        %v919 = vld [vmem:[%s7 + $0x7c] sm:$0xf]
        %v920 = vld [vmem:[%s8] sm:$0xff]
        %v921 = vld [vmem:[%s8 + $0x8] sm:$0x1]
        %v922 = vld [vmem:[%s9] sm:$0xf]
        %v923 = vld [vmem:[%s9 + $0x4] sm:$0xf]
        %v924 = vld [vmem:[%s9 + $0x8] sm:$0xf]
        %v925 = vld [vmem:[%s9 + $0xc] sm:$0xf]
        %v926 = vld [vmem:[%s9 + $0x10] sm:$0xf]
        %v927 = vld [vmem:[%s9 + $0x14] sm:$0xf]
        %v928 = vld [vmem:[%s9 + $0x18] sm:$0xf]
        %v929 = vld [vmem:[%s9 + $0x1c] sm:$0xf]
        %v930 = vld [vmem:[%s9 + $0x20] sm:$0xf]
        %v931 = vld [vmem:[%s9 + $0x24] sm:$0xf]
        %v932 = vld [vmem:[%s9 + $0x28] sm:$0xf]
        %v933 = vld [vmem:[%s9 + $0x2c] sm:$0xf]
        %v934 = vld [vmem:[%s9 + $0x30] sm:$0xf]
        %v935 = vld [vmem:[%s9 + $0x34] sm:$0xf]
        %v936 = vld [vmem:[%s9 + $0x38] sm:$0xf]
        %v937 = vld [vmem:[%s9 + $0x3c] sm:$0xf]
        %v938 = vld [vmem:[%s9 + $0x40] sm:$0xf]
        %v939 = vld [vmem:[%s9 + $0x44] sm:$0xf]
        %v940 = vld [vmem:[%s9 + $0x48] sm:$0xf]
        %v941 = vld [vmem:[%s9 + $0x4c] sm:$0xf]
        %v942 = vld [vmem:[%s9 + $0x50] sm:$0xf]
        %v943 = vld [vmem:[%s9 + $0x54] sm:$0xf]
        %v944 = vld [vmem:[%s9 + $0x58] sm:$0xf]
        %v945 = vld [vmem:[%s9 + $0x5c] sm:$0xf]
        %v946 = vld [vmem:[%s9 + $0x60] sm:$0xf]
        %v947 = vld [vmem:[%s9 + $0x64] sm:$0xf]
        %v948 = vld [vmem:[%s9 + $0x68] sm:$0xf]
        %v949 = vld [vmem:[%s9 + $0x6c] sm:$0xf]
        %v950 = vld [vmem:[%s9 + $0x70] sm:$0xf]
        %v951 = vld [vmem:[%s9 + $0x74] sm:$0xf]
        %v952 = vld [vmem:[%s9 + $0x78] sm:$0xf]
        %v953 = vld [vmem:[%s9 + $0x7c] sm:$0xf]
        %v954 = vld [vmem:[%s9 + $0x80] sm:$0xf]
        %v955 = vld [vmem:[%s9 + $0x84] sm:$0xf]
        %v956 = vld [vmem:[%s9 + $0x88] sm:$0xf]
        %v957 = vld [vmem:[%s9 + $0x8c] sm:$0xf]
        %v958 = vld [vmem:[%s9 + $0x90] sm:$0xf]
        %v959 = vld [vmem:[%s9 + $0x94] sm:$0xf]
        %v960 = vld [vmem:[%s9 + $0x98] sm:$0xf]
        %v961 = vld [vmem:[%s9 + $0x9c] sm:$0xf]
        %v962 = vld [vmem:[%s10] sm:$0xf]
        %v963 = vld [vmem:[%s10 + $0x4] sm:$0xf]
        %v964 = vld [vmem:[%s10 + $0x8] sm:$0xf]
        %v965 = vld [vmem:[%s10 + $0xc] sm:$0xf]
        %v966 = vld [vmem:[%s10 + $0x10] sm:$0xf]
        %v967 = vld [vmem:[%s10 + $0x14] sm:$0xf]
        %v968 = vld [vmem:[%s10 + $0x18] sm:$0xf]
        %v969 = vld [vmem:[%s10 + $0x1c] sm:$0xf]
        %v970 = vld [vmem:[%s10 + $0x20] sm:$0xf]
        %v971 = vld [vmem:[%s10 + $0x24] sm:$0xf]
        %v972 = vld [vmem:[%s10 + $0x28] sm:$0xf]
        %v973 = vld [vmem:[%s10 + $0x2c] sm:$0xf]
        %v974 = vld [vmem:[%s10 + $0x30] sm:$0xf]
        %v975 = vld [vmem:[%s10 + $0x34] sm:$0xf]
        %v976 = vld [vmem:[%s10 + $0x38] sm:$0xf]
        %v977 = vld [vmem:[%s10 + $0x3c] sm:$0xf]
        %v978 = vld [vmem:[%s11] sm:$0xf]
        %v979 = vld [vmem:[%s11 + $0x4] sm:$0xf]
        %v980 = vld [vmem:[%s11 + $0x8] sm:$0xf]
        %v981 = vld [vmem:[%s11 + $0xc] sm:$0xf]
        %v982 = vld [vmem:[%s11 + $0x10] sm:$0xf]
        %v983 = vld [vmem:[%s11 + $0x14] sm:$0xf]
        %v984 = vld [vmem:[%s11 + $0x18] sm:$0xf]
        %v985 = vld [vmem:[%s11 + $0x1c] sm:$0xf]
        %v986 = vld [vmem:[%s11 + $0x20] sm:$0xf]
        %v987 = vld [vmem:[%s11 + $0x24] sm:$0xf]
        %v988 = vld [vmem:[%s11 + $0x28] sm:$0xf]
        %v989 = vld [vmem:[%s11 + $0x2c] sm:$0xf]
        %v990 = vld [vmem:[%s11 + $0x30] sm:$0xf]
        %v991 = vld [vmem:[%s11 + $0x34] sm:$0xf]
        %v992 = vld [vmem:[%s11 + $0x38] sm:$0xf]
        %v993 = vld [vmem:[%s11 + $0x3c] sm:$0xf]
        %v994 = vld [vmem:[%s12] sm:$0xff]
        %v995 = vld [vmem:[%s12 + $0x8] sm:$0x1]
        %v996 = vld [vmem:[%s13] sm:$0xff]
        %v997 = vld [vmem:[%s13 + $0x8] sm:$0xff]
        %v998 = vld [vmem:[%s13 + $0x10] sm:$0xff]
        %v999 = vld [vmem:[%s13 + $0x18] sm:$0xff]
        %v1000 = vld [vmem:[%s13 + $0x20] sm:$0xff]
        %v1001 = vld [vmem:[%s13 + $0x28] sm:$0xff]
        %v1002 = vld [vmem:[%s13 + $0x30] sm:$0xff]
        %v1003 = vld [vmem:[%s13 + $0x38] sm:$0xff]
        %v1004 = vld [vmem:[%s14] sm:$0x77]
        %v1005 = vld [vmem:[%s15] sm:$0xf]
        %v1006 = vld [vmem:[%s15 + $0x4] sm:$0xf]
        %v1007 = vld [vmem:[%s15 + $0x8] sm:$0xf]
        %v1008 = vld [vmem:[%s15 + $0xc] sm:$0xf]
        %v1009 = vld [vmem:[%s15 + $0x10] sm:$0xf]
        %v1010 = vld [vmem:[%s15 + $0x14] sm:$0xf]
        %v1011 = vld [vmem:[%s15 + $0x18] sm:$0xf]
        %v1012 = vld [vmem:[%s15 + $0x1c] sm:$0xf]
        %v1013 = vld [vmem:[%s15 + $0x20] sm:$0xf]
        %v1014 = vld [vmem:[%s15 + $0x24] sm:$0xf]
        %v1015 = vld [vmem:[%s15 + $0x28] sm:$0xf]
        %v1016 = vld [vmem:[%s15 + $0x2c] sm:$0xf]
        %v1017 = vld [vmem:[%s15 + $0x30] sm:$0xf]
        %v1018 = vld [vmem:[%s15 + $0x34] sm:$0xf]
        %v1019 = vld [vmem:[%s15 + $0x38] sm:$0xf]
        %v1020 = vld [vmem:[%s15 + $0x3c] sm:$0xf]
        %v1021 = vld [vmem:[%s15 + $0x40] sm:$0xf]
        %v1022 = vld [vmem:[%s15 + $0x44] sm:$0xf]
        %v1023 = vld [vmem:[%s15 + $0x48] sm:$0xf]
        %v1024 = vld [vmem:[%s15 + $0x4c] sm:$0xf]
        %v1025 = vld [vmem:[%s15 + $0x50] sm:$0xf]
        %v1026 = vld [vmem:[%s15 + $0x54] sm:$0xf]
        %v1027 = vld [vmem:[%s15 + $0x58] sm:$0xf]
        %v1028 = vld [vmem:[%s15 + $0x5c] sm:$0xf]
        %v1029 = vld [vmem:[%s16] sm:$0xf]
        %v1030 = vld [vmem:[%s16 + $0x4] sm:$0xf]
        %v1031 = vld [vmem:[%s16 + $0x8] sm:$0xf]
        %v1032 = vld [vmem:[%s16 + $0xc] sm:$0xf]
        %v1033 = vld [vmem:[%s16 + $0x10] sm:$0xf]
        %v1034 = vld [vmem:[%s16 + $0x14] sm:$0xf]
        %v1035 = vld [vmem:[%s16 + $0x18] sm:$0xf]
        %v1036 = vld [vmem:[%s16 + $0x1c] sm:$0xf]
        %v1037 = vld [vmem:[%s16 + $0x20] sm:$0xf]
        %v1038 = vld [vmem:[%s16 + $0x24] sm:$0xf]
        %v1039 = vld [vmem:[%s16 + $0x28] sm:$0xf]
        %v1040 = vld [vmem:[%s16 + $0x2c] sm:$0xf]
        %v1041 = vld [vmem:[%s16 + $0x30] sm:$0xf]
        %v1042 = vld [vmem:[%s16 + $0x34] sm:$0xf]
        %v1043 = vld [vmem:[%s16 + $0x38] sm:$0xf]
        %v1044 = vld [vmem:[%s16 + $0x3c] sm:$0xf]
        %v1045 = vld [vmem:[%s16 + $0x40] sm:$0xf]
        %v1046 = vld [vmem:[%s16 + $0x44] sm:$0xf]
        %v1047 = vld [vmem:[%s16 + $0x48] sm:$0xf]
        %v1048 = vld [vmem:[%s16 + $0x4c] sm:$0xf]
        %v1049 = vld [vmem:[%s16 + $0x50] sm:$0xf]
        %v1050 = vld [vmem:[%s16 + $0x54] sm:$0xf]
        %v1051 = vld [vmem:[%s16 + $0x58] sm:$0xf]
        %v1052 = vld [vmem:[%s16 + $0x5c] sm:$0xf]
        %v1053 = vld [vmem:[%s16 + $0x60] sm:$0xf]
        %v1054 = vld [vmem:[%s16 + $0x64] sm:$0xf]
        %v1055 = vld [vmem:[%s16 + $0x68] sm:$0xf]
        %v1056 = vld [vmem:[%s16 + $0x6c] sm:$0xf]
        %v1057 = vld [vmem:[%s16 + $0x70] sm:$0xf]
        %v1058 = vld [vmem:[%s16 + $0x74] sm:$0xf]
        %v1059 = vld [vmem:[%s16 + $0x78] sm:$0xf]
        %v1060 = vld [vmem:[%s16 + $0x7c] sm:$0xf]
        %v1061 = vld [vmem:[%s16 + $0x80] sm:$0xf]
        %v1062 = vld [vmem:[%s16 + $0x84] sm:$0xf]
        %v1063 = vld [vmem:[%s16 + $0x88] sm:$0xf]
        %v1064 = vld [vmem:[%s16 + $0x8c] sm:$0xf]
        %v1065 = vld [vmem:[%s16 + $0x90] sm:$0xf]
        %v1066 = vld [vmem:[%s16 + $0x94] sm:$0xf]
        %v1067 = vld [vmem:[%s16 + $0x98] sm:$0xf]
        %v1068 = vld [vmem:[%s16 + $0x9c] sm:$0xf]
        %v1069 = vld [vmem:[%s17] sm:$0x3f]
        %v1070 = vld [vmem:[%s18] sm:$0xff]
        %v1071 = vld [vmem:[%s18 + $0x8] sm:$0xff]
        %v1072 = vld [vmem:[%s18 + $0x10] sm:$0xff]
        %v1073 = vld [vmem:[%s18 + $0x18] sm:$0xff]
        %v1074 = vld [vmem:[%s18 + $0x20] sm:$0xff]
        %v1075 = vld [vmem:[%s18 + $0x28] sm:$0xff]
        %v1076 = vld [vmem:[%s18 + $0x30] sm:$0xff]
        %v1077 = vld [vmem:[%s18 + $0x38] sm:$0xff]
        %v1078 = vld [vmem:[%s18 + $0x40] sm:$0xff]
        %v1079 = vld [vmem:[%s18 + $0x48] sm:$0xff]
        %v1080 = vld [vmem:[%s18 + $0x50] sm:$0xff]
        %v1081 = vld [vmem:[%s18 + $0x58] sm:$0xff]
        %v1082 = vld [vmem:[%s18 + $0x60] sm:$0xff]
        %v1083 = vld [vmem:[%s18 + $0x68] sm:$0xff]
        %v1084 = vld [vmem:[%s18 + $0x70] sm:$0xff]
        %v1085 = vld [vmem:[%s18 + $0x78] sm:$0xff]
        %v1086 = vld [vmem:[%s18 + $0x80] sm:$0xff]
        %v1087 = vld [vmem:[%s18 + $0x88] sm:$0xff]
        %v1088 = vld [vmem:[%s18 + $0x90] sm:$0xff]
        %v1089 = vld [vmem:[%s18 + $0x98] sm:$0xff]
        %v1090 = vld [vmem:[%s18 + $0xa0] sm:$0xff]
        %v1091 = vld [vmem:[%s18 + $0xa8] sm:$0xff]
        %v1092 = vld [vmem:[%s18 + $0xb0] sm:$0xff]
        %v1093 = vld [vmem:[%s18 + $0xb8] sm:$0xff]
        %v1094 = vld [vmem:[%s19] sm:$0x3]
        %v1095 = vld [vmem:[%s20] sm:$0xff]
        %v1096 = vld [vmem:[%s20 + $0x8] sm:$0xff]
        %v1097 = vld [vmem:[%s20 + $0x10] sm:$0xff]
        %v1098 = vld [vmem:[%s20 + $0x18] sm:$0xff]
        %v1099 = vld [vmem:[%s20 + $0x20] sm:$0xff]
        %v1100 = vld [vmem:[%s20 + $0x28] sm:$0xff]
        %v1101 = vld [vmem:[%s20 + $0x30] sm:$0xff]
        %v1102 = vld [vmem:[%s20 + $0x38] sm:$0xff]
        %v1103 = vld [vmem:[%s20 + $0x40] sm:$0xff]
        %v1104 = vld [vmem:[%s20 + $0x48] sm:$0xff]
        %v1105 = vld [vmem:[%s20 + $0x50] sm:$0xff]
        %v1106 = vld [vmem:[%s20 + $0x58] sm:$0xff]
        %v1107 = vld [vmem:[%s20 + $0x60] sm:$0xff]
        %v1108 = vld [vmem:[%s20 + $0x68] sm:$0xff]
        %v1109 = vld [vmem:[%s20 + $0x70] sm:$0xff]
        %v1110 = vld [vmem:[%s20 + $0x78] sm:$0xff]
        %v1111 = vld [vmem:[%s21] sm:$0xff]
        %v1112 = vld [vmem:[%s21 + $0x8] sm:$0xff]
        %v1113 = vld [vmem:[%s21 + $0x10] sm:$0xff]
        %v1114 = vld [vmem:[%s21 + $0x18] sm:$0xff]
        %v1115 = vld [vmem:[%s21 + $0x20] sm:$0xff]
        %v1116 = vld [vmem:[%s21 + $0x28] sm:$0xff]
        %v1117 = vld [vmem:[%s21 + $0x30] sm:$0xff]
        %v1118 = vld [vmem:[%s21 + $0x38] sm:$0xff]
        %v1119 = vld [vmem:[%s22] sm:$0x1]
        %v1120 = vld [vmem:[%s707] sm:$0xff]
        %v1121 = vld [vmem:[%s707 + $0x8] sm:$0xff]
        %v1122 = vld [vmem:[%s707 + $0x10] sm:$0xff]
        %v1123 = vld [vmem:[%s707 + $0x18] sm:$0x3]
        %v1124 = vpack.c.bf16 %v1121, %v1120
        %v1125 = vpack.c.bf16 %v1123, %v1122
        %v1126 = vlaneseq
        %v1127 = vshrl.u32 %v1126, 7
        %v1128 = vsub.s32 0, %v1127
        %v1129 = vrot.slane %v838, %v1128
        %vm1130 = vcmask 64512
        %v1132 = vsel %vm1130, %v1124, 0
        %v1135 = vsel %vm1130, %v1125, 0
        %vm1137 = vcmask 1043456
        %v1139 = vsel %vm1137, %v709, 0
        %1141 = vmatprep.subr.bf16.mxu0 0
        %1142 = vmatpush1.bf16.msra.mxu0 %v1139
        %1143 = vmatprep.subr.bf16.mxu0 0
        %1144 = vmatpush1.bf16.msra.mxu0 0
        %1145 = vmatprep.subr.bf16.mxu0 0
        %1146 = vmatpush1.bf16.msra.mxu0 0
        %1147 = vmatprep.subr.bf16.mxu0 0
        %1148 = vmatpush1.bf16.msra.mxu0 0
        %1149 = vmatprep.subr.bf16.mxu0 0
        %1150 = vmatpush1.bf16.msra.mxu0 0
        %1151 = vmatprep.subr.bf16.mxu0 0
        %1152 = vmatpush1.bf16.msra.mxu0 0
        %1153 = vmatprep.subr.bf16.mxu0 0
        %1154 = vmatpush1.bf16.msra.mxu0 0
        %1155 = vmatprep.subr.bf16.mxu0 0
        %1156 = vmatpush1.bf16.msra.mxu0 0
        %1157 = vmatprep.subr.bf16.mxu0 0
        %1158 = vmatpush1.bf16.msra.mxu0 0
        %1159 = vmatprep.subr.bf16.mxu0 0
        %1160 = vmatpush1.bf16.msra.mxu0 0
        %1161 = vmatprep.subr.bf16.mxu0 0
        %1162 = vmatpush1.bf16.msra.mxu0 0
        %1163 = vmatprep.subr.bf16.mxu0 0
        %1164 = vmatpush1.bf16.msra.mxu0 0
        %1165 = vmatprep.subr.bf16.mxu0 0
        %1166 = vmatpush1.bf16.msra.mxu0 0
        %1167 = vmatprep.subr.bf16.mxu0 0
        %1168 = vmatpush1.bf16.msra.mxu0 0
        %1169 = vmatprep.subr.bf16.mxu0 0
        %1170 = vmatpush1.bf16.msra.mxu0 0
        %1171 = vmatprep.subr.bf16.mxu0 0
        %1172 = vmatpush1.bf16.msra.mxu0 0
        %1173 = vmatprep.mubr.bf16.mxu0 0
        %1174 = vmatmul.mubr.bf16.gmra.mrb[0].mxu0 %v1132
        %v1175 = vpop.f32.mrb[0].mxu0
        %v1176 = vadd.f32 %v1129, %v1175
        %v1177 = vpop.f32.mrb[0].mxu0
        %v1178 = vpop.f32.mrb[0].mxu0
        %v1179 = vadd.f32 %v1129, %v1178
        %v1180 = vpop.f32.mrb[0].mxu0
        %1181 = vmatprep.mubr.bf16.mxu0 0
        %1182 = vmatmul.mubr.bf16.gmra.mrb[0].mxu0 %v1135
        %v1183 = vpop.f32.mrb[0].mxu0
        %v1184 = vadd.f32 %v1129, %v1183
        %v1185 = vpop.f32.mrb[0].mxu0
        %v1186 = vpop.f32.mrb[0].mxu0
        %v1187 = vadd.f32 %v1129, %v1186
        %v1188 = vpop.f32.mrb[0].mxu0
        %1189 = vdwg.mxu0
        %vm1190 = vcmp.ge.f32.partialorder %v1176, 0.0
        %vm1191 = vcmp.ge.f32.partialorder %v1179, 0.0
        %vm1192 = vcmp.ge.f32.partialorder %v1184, 0.0
        %vm1193 = vcmp.ge.f32.partialorder %v1187, 0.0
        %v1194 = vmul.f32 %v1176, 0.01
        %v1195 = vmul.f32 %v1179, 0.01
        %v1196 = vmul.f32 %v1184, 0.01
        %v1197 = vmul.f32 %v1187, 0.01
        %v1198 = vsel %vm1190, %v1176, %v1194
        %v1199 = vsel %vm1191, %v1179, %v1195
        %v1200 = vsel %vm1192, %v1184, %v1196
        %v1201 = vsel %vm1193, %v1187, %v1197
        %v1202 = vlaneseq
        %v1203 = vshrl.u32 %v1202, 7
        %v1204 = vsub.s32 1, %v1203
        %v1205 = vrot.slane %v838, %v1204
        %v1206 = vmul.f32 %v1198, %v1205
        %v1207 = vmul.f32 %v1199, %v1205
        %v1208 = vmul.f32 %v1200, %v1205
        %v1209 = vmul.f32 %v1201, %v1205
        %v1210 = vlaneseq
        %v1211 = vshrl.u32 %v1210, 7
        %v1212 = vsub.s32 2, %v1211
        %v1213 = vrot.slane %v838, %v1212
        %v1214 = vadd.f32 %v1206, %v1213
        %v1215 = vadd.f32 %v1207, %v1213
        %v1216 = vadd.f32 %v1208, %v1213
        %v1217 = vadd.f32 %v1209, %v1213
        %vm1218 = vcmask 1047554
        %v1219 = vrot.slane %v1214, 6
        %v1220 = vsel %vm1218, %v1219, %v1217
        %vm1225 = vcmask 1046528
        %v1226 = vrot.slane %v1214, 1
        %v1227 = vrot.slane %v1215, 1
        %v1228 = vsel %vm1225, %v1226, %v1227
        %v1229 = vrot.slane %v1216, 1
        %v1230 = vsel %vm1225, %v1227, %v1229
        %v1231 = vrot.slane %v1220, 1
        %v1232 = vsel %vm1225, %v1229, %v1231
        %vm1237 = vcmask 1045504
        %v1238 = vrot.slane %v1214, 2
        %v1239 = vrot.slane %v1215, 2
        %v1240 = vsel %vm1237, %v1238, %v1239
        %v1241 = vrot.slane %v1216, 2
        %v1242 = vsel %vm1237, %v1239, %v1241
        %v1243 = vrot.slane %v1220, 2
        %v1244 = vsel %vm1237, %v1241, %v1243
        %vm1249 = vcmask 1044480
        %v1250 = vrot.slane %v1214, 3
        %v1251 = vrot.slane %v1215, 3
        %v1252 = vsel %vm1249, %v1250, %v1251
        %v1253 = vrot.slane %v1216, 3
        %v1254 = vsel %vm1249, %v1251, %v1253
        %v1255 = vrot.slane %v1220, 3
        %v1256 = vsel %vm1249, %v1253, %v1255
        %v1261 = vpack.c.bf16 %v1215, %v1214
        %v1262 = vpack.c.bf16 %v1230, %v1228
        %v1263 = vpack.c.bf16 %v1242, %v1240
        %v1264 = vpack.c.bf16 %v1254, %v1252
        %v1265 = vpack.c.bf16 %v1217, %v1216
        %v1266 = vpack.c.bf16 %v1231, %v1232
        %v1267 = vpack.c.bf16 %v1243, %v1244
        %v1268 = vpack.c.bf16 %v1255, %v1256
        %v1269 = vlaneseq
        %v1270 = vshrl.u32 %v1269, 7
        %v1271 = vsub.s32 3, %v1270
        %v1272 = vrot.slane %v838, %v1271
        %v1337 = vunpack.c.l.b16 %v710
        %v1338 = vunpack.c.l.b16 %v711
        %v1339 = vunpack.c.l.b16 %v712
        %v1340 = vunpack.c.l.b16 %v713
        %v1341 = vunpack.c.l.b16 %v714
        %v1342 = vunpack.c.l.b16 %v715
        %v1343 = vunpack.c.l.b16 %v716
        %v1344 = vunpack.c.l.b16 %v717
        %v1345 = vunpack.c.l.b16 %v718
        %v1346 = vunpack.c.l.b16 %v719
        %v1347 = vunpack.c.l.b16 %v720
        %v1348 = vunpack.c.l.b16 %v721
        %v1349 = vunpack.c.l.b16 %v722
        %v1350 = vunpack.c.l.b16 %v723
        %v1351 = vunpack.c.l.b16 %v724
        %v1352 = vunpack.c.l.b16 %v725
        %v1353 = vunpack.c.l.b16 %v726
        %v1354 = vunpack.c.l.b16 %v727
        %v1355 = vunpack.c.l.b16 %v728
        %v1356 = vunpack.c.l.b16 %v729
        %v1357 = vunpack.c.l.b16 %v730
        %v1358 = vunpack.c.l.b16 %v731
        %v1359 = vunpack.c.l.b16 %v732
        %v1360 = vunpack.c.l.b16 %v733
        %v1361 = vunpack.c.l.b16 %v734
        %v1362 = vunpack.c.l.b16 %v735
        %v1363 = vunpack.c.l.b16 %v736
        %v1364 = vunpack.c.l.b16 %v737
        %v1365 = vunpack.c.l.b16 %v738
        %v1366 = vunpack.c.l.b16 %v739
        %v1367 = vunpack.c.l.b16 %v740
        %v1368 = vunpack.c.l.b16 %v741
        %v1369 = vunpack.c.l.b16 %v742
        %v1370 = vunpack.c.l.b16 %v743
        %v1371 = vunpack.c.l.b16 %v744
        %v1372 = vunpack.c.l.b16 %v745
        %v1373 = vunpack.c.l.b16 %v746
        %v1374 = vunpack.c.l.b16 %v747
        %v1375 = vunpack.c.l.b16 %v748
        %v1376 = vunpack.c.l.b16 %v749
        %v1377 = vunpack.c.l.b16 %v750
        %v1378 = vunpack.c.l.b16 %v751
        %v1379 = vunpack.c.l.b16 %v752
        %v1380 = vunpack.c.l.b16 %v753
        %v1381 = vunpack.c.l.b16 %v754
        %v1382 = vunpack.c.l.b16 %v755
        %v1383 = vunpack.c.l.b16 %v756
        %v1384 = vunpack.c.l.b16 %v757
        %v1385 = vunpack.c.l.b16 %v758
        %v1386 = vunpack.c.l.b16 %v759
        %v1387 = vunpack.c.l.b16 %v760
        %v1388 = vunpack.c.l.b16 %v761
        %v1389 = vunpack.c.l.b16 %v762
        %v1390 = vunpack.c.l.b16 %v763
        %v1391 = vunpack.c.l.b16 %v764
        %v1392 = vunpack.c.l.b16 %v765
        %v1393 = vunpack.c.l.b16 %v766
        %v1394 = vunpack.c.l.b16 %v767
        %v1395 = vunpack.c.l.b16 %v768
        %v1396 = vunpack.c.l.b16 %v769
        %v1397 = vunpack.c.l.b16 %v770
        %v1398 = vunpack.c.l.b16 %v771
        %v1399 = vunpack.c.l.b16 %v772
        %v1400 = vunpack.c.l.b16 %v773
        %v1401 = vpack.c.b16 %v1338, %v1337
        %v1402 = vpack.c.b16 %v1340, %v1339
        %v1403 = vpack.c.b16 %v1342, %v1341
        %v1404 = vpack.c.b16 %v1344, %v1343
        %v1405 = vpack.c.b16 %v1346, %v1345
        %v1406 = vpack.c.b16 %v1348, %v1347
        %v1407 = vpack.c.b16 %v1350, %v1349
        %v1408 = vpack.c.b16 %v1352, %v1351
        %v1409 = vpack.c.b16 %v1354, %v1353
        %v1410 = vpack.c.b16 %v1356, %v1355
        %v1411 = vpack.c.b16 %v1358, %v1357
        %v1412 = vpack.c.b16 %v1360, %v1359
        %v1413 = vpack.c.b16 %v1362, %v1361
        %v1414 = vpack.c.b16 %v1364, %v1363
        %v1415 = vpack.c.b16 %v1366, %v1365
        %v1416 = vpack.c.b16 %v1368, %v1367
        %v1417 = vpack.c.b16 %v1370, %v1369
        %v1418 = vpack.c.b16 %v1372, %v1371
        %v1419 = vpack.c.b16 %v1374, %v1373
        %v1420 = vpack.c.b16 %v1376, %v1375
        %v1421 = vpack.c.b16 %v1378, %v1377
        %v1422 = vpack.c.b16 %v1380, %v1379
        %v1423 = vpack.c.b16 %v1382, %v1381
        %v1424 = vpack.c.b16 %v1384, %v1383
        %v1425 = vpack.c.b16 %v1386, %v1385
        %v1426 = vpack.c.b16 %v1388, %v1387
        %v1427 = vpack.c.b16 %v1390, %v1389
        %v1428 = vpack.c.b16 %v1392, %v1391
        %v1429 = vpack.c.b16 %v1394, %v1393
        %v1430 = vpack.c.b16 %v1396, %v1395
        %v1431 = vpack.c.b16 %v1398, %v1397
        %v1432 = vpack.c.b16 %v1400, %v1399
        %1465 = vmatprep.subr.bf16.mxu0 0
        %1466 = vmatpush1.bf16.msra.mxu0 %v1401
        %1467 = vmatprep.subr.bf16.mxu0 0
        %1468 = vmatpush1.bf16.msra.mxu0 %v1402
        %1469 = vmatprep.subr.bf16.mxu0 0
        %1470 = vmatpush1.bf16.msra.mxu0 %v1403
        %1471 = vmatprep.subr.bf16.mxu0 0
        %1472 = vmatpush1.bf16.msra.mxu0 %v1404
        %1473 = vmatprep.subr.bf16.mxu0 0
        %1474 = vmatpush1.bf16.msra.mxu0 %v1405
        %1475 = vmatprep.subr.bf16.mxu0 0
        %1476 = vmatpush1.bf16.msra.mxu0 %v1406
        %1477 = vmatprep.subr.bf16.mxu0 0
        %1478 = vmatpush1.bf16.msra.mxu0 %v1407
        %1479 = vmatprep.subr.bf16.mxu0 0
        %1480 = vmatpush1.bf16.msra.mxu0 %v1408
        %1481 = vmatprep.subr.bf16.mxu0 0
        %1482 = vmatpush1.bf16.msra.mxu0 %v1409
        %1483 = vmatprep.subr.bf16.mxu0 0
        %1484 = vmatpush1.bf16.msra.mxu0 %v1410
        %1485 = vmatprep.subr.bf16.mxu0 0
        %1486 = vmatpush1.bf16.msra.mxu0 %v1411
        %1487 = vmatprep.subr.bf16.mxu0 0
        %1488 = vmatpush1.bf16.msra.mxu0 %v1412
        %1489 = vmatprep.subr.bf16.mxu0 0
        %1490 = vmatpush1.bf16.msra.mxu0 %v1413
        %1491 = vmatprep.subr.bf16.mxu0 0
        %1492 = vmatpush1.bf16.msra.mxu0 %v1414
        %1493 = vmatprep.subr.bf16.mxu0 0
        %1494 = vmatpush1.bf16.msra.mxu0 %v1415
        %1495 = vmatprep.subr.bf16.mxu0 0
        %1496 = vmatpush1.bf16.msra.mxu0 %v1416
        %1497 = vmatprep.mubr.bf16.mxu0 %v1262
        %1498 = vmatmul.mubr.bf16.gmra.mrb[0].mxu0 %v1261
        %v1499 = vpop.f32.mrb[0].mxu0
        %v1500 = vadd.f32 %v1272, %v1499
        %v1501 = vpop.f32.mrb[0].mxu0
        %v1502 = vpop.f32.mrb[0].mxu0
        %v1503 = vadd.f32 %v1272, %v1502
        %v1504 = vpop.f32.mrb[0].mxu0
        %1505 = vmatprep.mubr.bf16.mxu0 %v1266
        %1506 = vmatmul.mubr.bf16.gmra.mrb[0].mxu0 %v1265
        %v1507 = vpop.f32.mrb[0].mxu0
        %v1508 = vadd.f32 %v1272, %v1507
        %v1509 = vpop.f32.mrb[0].mxu0
        %v1510 = vpop.f32.mrb[0].mxu0
        %v1511 = vadd.f32 %v1272, %v1510
        %v1512 = vpop.f32.mrb[0].mxu0
        %1513 = vdwg.mxu0
        %1514 = vmatprep.subr.bf16.mxu0 0
        %1515 = vmatpush1.bf16.msra.mxu0 %v1417
        %1516 = vmatprep.subr.bf16.mxu0 0
        %1517 = vmatpush1.bf16.msra.mxu0 %v1418
        %1518 = vmatprep.subr.bf16.mxu0 0
        %1519 = vmatpush1.bf16.msra.mxu0 %v1419
        %1520 = vmatprep.subr.bf16.mxu0 0
        %1521 = vmatpush1.bf16.msra.mxu0 %v1420
        %1522 = vmatprep.subr.bf16.mxu0 0
        %1523 = vmatpush1.bf16.msra.mxu0 %v1421
        %1524 = vmatprep.subr.bf16.mxu0 0
        %1525 = vmatpush1.bf16.msra.mxu0 %v1422
        %1526 = vmatprep.subr.bf16.mxu0 0
        %1527 = vmatpush1.bf16.msra.mxu0 %v1423
        %1528 = vmatprep.subr.bf16.mxu0 0
        %1529 = vmatpush1.bf16.msra.mxu0 %v1424
        %1530 = vmatprep.subr.bf16.mxu0 0
        %1531 = vmatpush1.bf16.msra.mxu0 %v1425
        %1532 = vmatprep.subr.bf16.mxu0 0
        %1533 = vmatpush1.bf16.msra.mxu0 %v1426
        %1534 = vmatprep.subr.bf16.mxu0 0
        %1535 = vmatpush1.bf16.msra.mxu0 %v1427
        %1536 = vmatprep.subr.bf16.mxu0 0
        %1537 = vmatpush1.bf16.msra.mxu0 %v1428
        %1538 = vmatprep.subr.bf16.mxu0 0
        %1539 = vmatpush1.bf16.msra.mxu0 %v1429
        %1540 = vmatprep.subr.bf16.mxu0 0
        %1541 = vmatpush1.bf16.msra.mxu0 %v1430
        %1542 = vmatprep.subr.bf16.mxu0 0
        %1543 = vmatpush1.bf16.msra.mxu0 %v1431
        %1544 = vmatprep.subr.bf16.mxu0 0
        %1545 = vmatpush1.bf16.msra.mxu0 %v1432
        %1546 = vmatprep.mubr.bf16.mxu0 %v1264
        %1547 = vmatmul.mubr.bf16.gmra.mrb[0].mxu0 %v1263
        %v1548 = vpop.f32.mrb[0].mxu0
        %v1549 = vadd.f32 %v1500, %v1548
        %v1550 = vpop.f32.mrb[0].mxu0
        %v1551 = vpop.f32.mrb[0].mxu0
        %v1552 = vadd.f32 %v1503, %v1551
        %v1553 = vpop.f32.mrb[0].mxu0
        %1554 = vmatprep.mubr.bf16.mxu0 %v1268
        %1555 = vmatmul.mubr.bf16.gmra.mrb[0].mxu0 %v1267
        %v1556 = vpop.f32.mrb[0].mxu0
        %v1557 = vadd.f32 %v1508, %v1556
        %v1558 = vpop.f32.mrb[0].mxu0
        %v1559 = vpop.f32.mrb[0].mxu0
        %v1560 = vadd.f32 %v1511, %v1559
        %v1561 = vpop.f32.mrb[0].mxu0
        %1562 = vdwg.mxu0
        %vm1563 = vcmp.ge.f32.partialorder %v1549, 0.0
        %vm1564 = vcmp.ge.f32.partialorder %v1552, 0.0
        %vm1565 = vcmp.ge.f32.partialorder %v1557, 0.0
        %vm1566 = vcmp.ge.f32.partialorder %v1560, 0.0
        %v1567 = vmul.f32 %v1549, 0.01
        %v1568 = vmul.f32 %v1552, 0.01
        %v1569 = vmul.f32 %v1557, 0.01
        %v1570 = vmul.f32 %v1560, 0.01
        %v1571 = vsel %vm1563, %v1549, %v1567
        %v1572 = vsel %vm1564, %v1552, %v1568
        %v1573 = vsel %vm1565, %v1557, %v1569
        %v1574 = vsel %vm1566, %v1560, %v1570
        %v1575 = vlaneseq
        %v1576 = vshrl.u32 %v1575, 7
        %v1577 = vsub.s32 4, %v1576
        %v1578 = vrot.slane %v838, %v1577
        %v1579 = vmul.f32 %v1571, %v1578
        %v1580 = vmul.f32 %v1572, %v1578
        %v1581 = vmul.f32 %v1573, %v1578
        %v1582 = vmul.f32 %v1574, %v1578
        %v1583 = vlaneseq
        %v1584 = vshrl.u32 %v1583, 7
        %v1585 = vsub.s32 5, %v1584
        %v1586 = vrot.slane %v838, %v1585
        %v1587 = vadd.f32 %v1579, %v1586
        %v1588 = vadd.f32 %v1580, %v1586
        %v1589 = vadd.f32 %v1581, %v1586
        %v1590 = vadd.f32 %v1582, %v1586
        %v1591 = vrot.slane %v1587, 6
        %v1592 = vsel %vm1218, %v1591, %v1590
        %v1597 = vrot.slane %v1587, 1
        %v1598 = vrot.slane %v1588, 1
        %v1599 = vsel %vm1225, %v1597, %v1598
        %v1600 = vrot.slane %v1589, 1
        %v1601 = vsel %vm1225, %v1598, %v1600
        %v1602 = vrot.slane %v1592, 1
        %v1603 = vsel %vm1225, %v1600, %v1602
        %v1608 = vrot.slane %v1587, 2
        %v1609 = vrot.slane %v1588, 2
        %v1610 = vsel %vm1237, %v1608, %v1609
        %v1611 = vrot.slane %v1589, 2
        %v1612 = vsel %vm1237, %v1609, %v1611
        %v1613 = vrot.slane %v1592, 2
        %v1614 = vsel %vm1237, %v1611, %v1613
        %v1619 = vrot.slane %v1587, 3
        %v1620 = vrot.slane %v1588, 3
        %v1621 = vsel %vm1249, %v1619, %v1620
        %v1622 = vrot.slane %v1589, 3
        %v1623 = vsel %vm1249, %v1620, %v1622
        %v1624 = vrot.slane %v1592, 3
        %v1625 = vsel %vm1249, %v1622, %v1624
        %v1630 = vpack.c.bf16 %v1588, %v1587
        %v1631 = vpack.c.bf16 %v1601, %v1599
        %v1632 = vpack.c.bf16 %v1612, %v1610
        %v1633 = vpack.c.bf16 %v1623, %v1621
        %v1634 = vpack.c.bf16 %v1590, %v1589
        %v1635 = vpack.c.bf16 %v1602, %v1603
        %v1636 = vpack.c.bf16 %v1613, %v1614
        %v1637 = vpack.c.bf16 %v1624, %v1625
        %v1638 = vlaneseq
        %v1639 = vshrl.u32 %v1638, 7
        %v1640 = vsub.s32 6, %v1639
        %v1641 = vrot.slane %v838, %v1640
        %v1706 = vunpack.c.l.b16 %v774
        %v1707 = vunpack.c.l.b16 %v775
        %v1708 = vunpack.c.l.b16 %v776
        %v1709 = vunpack.c.l.b16 %v777
        %v1710 = vunpack.c.l.b16 %v778
        %v1711 = vunpack.c.l.b16 %v779
        %v1712 = vunpack.c.l.b16 %v780
        %v1713 = vunpack.c.l.b16 %v781
        %v1714 = vunpack.c.l.b16 %v782
        %v1715 = vunpack.c.l.b16 %v783
        %v1716 = vunpack.c.l.b16 %v784
        %v1717 = vunpack.c.l.b16 %v785
        %v1718 = vunpack.c.l.b16 %v786
        %v1719 = vunpack.c.l.b16 %v787
        %v1720 = vunpack.c.l.b16 %v788
        %v1721 = vunpack.c.l.b16 %v789
        %v1722 = vunpack.c.l.b16 %v790
        %v1723 = vunpack.c.l.b16 %v791
        %v1724 = vunpack.c.l.b16 %v792
        %v1725 = vunpack.c.l.b16 %v793
        %v1726 = vunpack.c.l.b16 %v794
        %v1727 = vunpack.c.l.b16 %v795
        %v1728 = vunpack.c.l.b16 %v796
        %v1729 = vunpack.c.l.b16 %v797
        %v1730 = vunpack.c.l.b16 %v798
        %v1731 = vunpack.c.l.b16 %v799
        %v1732 = vunpack.c.l.b16 %v800
        %v1733 = vunpack.c.l.b16 %v801
        %v1734 = vunpack.c.l.b16 %v802
        %v1735 = vunpack.c.l.b16 %v803
        %v1736 = vunpack.c.l.b16 %v804
        %v1737 = vunpack.c.l.b16 %v805
        %v1738 = vunpack.c.l.b16 %v806
        %v1739 = vunpack.c.l.b16 %v807
        %v1740 = vunpack.c.l.b16 %v808
        %v1741 = vunpack.c.l.b16 %v809
        %v1742 = vunpack.c.l.b16 %v810
        %v1743 = vunpack.c.l.b16 %v811
        %v1744 = vunpack.c.l.b16 %v812
        %v1745 = vunpack.c.l.b16 %v813
        %v1746 = vunpack.c.l.b16 %v814
        %v1747 = vunpack.c.l.b16 %v815
        %v1748 = vunpack.c.l.b16 %v816
        %v1749 = vunpack.c.l.b16 %v817
        %v1750 = vunpack.c.l.b16 %v818
        %v1751 = vunpack.c.l.b16 %v819
        %v1752 = vunpack.c.l.b16 %v820
        %v1753 = vunpack.c.l.b16 %v821
        %v1754 = vunpack.c.l.b16 %v822
        %v1755 = vunpack.c.l.b16 %v823
        %v1756 = vunpack.c.l.b16 %v824
        %v1757 = vunpack.c.l.b16 %v825
        %v1758 = vunpack.c.l.b16 %v826
        %v1759 = vunpack.c.l.b16 %v827
        %v1760 = vunpack.c.l.b16 %v828
        %v1761 = vunpack.c.l.b16 %v829
        %v1762 = vunpack.c.l.b16 %v830
        %v1763 = vunpack.c.l.b16 %v831
        %v1764 = vunpack.c.l.b16 %v832
        %v1765 = vunpack.c.l.b16 %v833
        %v1766 = vunpack.c.l.b16 %v834
        %v1767 = vunpack.c.l.b16 %v835
        %v1768 = vunpack.c.l.b16 %v836
        %v1769 = vunpack.c.l.b16 %v837
        %v1770 = vpack.c.b16 %v1707, %v1706
        %v1771 = vpack.c.b16 %v1709, %v1708
        %v1772 = vpack.c.b16 %v1711, %v1710
        %v1773 = vpack.c.b16 %v1713, %v1712
        %v1774 = vpack.c.b16 %v1715, %v1714
        %v1775 = vpack.c.b16 %v1717, %v1716
        %v1776 = vpack.c.b16 %v1719, %v1718
        %v1777 = vpack.c.b16 %v1721, %v1720
        %v1778 = vpack.c.b16 %v1723, %v1722
        %v1779 = vpack.c.b16 %v1725, %v1724
        %v1780 = vpack.c.b16 %v1727, %v1726
        %v1781 = vpack.c.b16 %v1729, %v1728
        %v1782 = vpack.c.b16 %v1731, %v1730
        %v1783 = vpack.c.b16 %v1733, %v1732
        %v1784 = vpack.c.b16 %v1735, %v1734
        %v1785 = vpack.c.b16 %v1737, %v1736
        %v1786 = vpack.c.b16 %v1739, %v1738
        %v1787 = vpack.c.b16 %v1741, %v1740
        %v1788 = vpack.c.b16 %v1743, %v1742
        %v1789 = vpack.c.b16 %v1745, %v1744
        %v1790 = vpack.c.b16 %v1747, %v1746
        %v1791 = vpack.c.b16 %v1749, %v1748
        %v1792 = vpack.c.b16 %v1751, %v1750
        %v1793 = vpack.c.b16 %v1753, %v1752
        %v1794 = vpack.c.b16 %v1755, %v1754
        %v1795 = vpack.c.b16 %v1757, %v1756
        %v1796 = vpack.c.b16 %v1759, %v1758
        %v1797 = vpack.c.b16 %v1761, %v1760
        %v1798 = vpack.c.b16 %v1763, %v1762
        %v1799 = vpack.c.b16 %v1765, %v1764
        %v1800 = vpack.c.b16 %v1767, %v1766
        %v1801 = vpack.c.b16 %v1769, %v1768
        %1834 = vmatprep.subr.bf16.mxu0 0
        %1835 = vmatpush1.bf16.msra.mxu0 %v1770
        %1836 = vmatprep.subr.bf16.mxu0 0
        %1837 = vmatpush1.bf16.msra.mxu0 %v1771
        %1838 = vmatprep.subr.bf16.mxu0 0
        %1839 = vmatpush1.bf16.msra.mxu0 %v1772
        %1840 = vmatprep.subr.bf16.mxu0 0
        %1841 = vmatpush1.bf16.msra.mxu0 %v1773
        %1842 = vmatprep.subr.bf16.mxu0 0
        %1843 = vmatpush1.bf16.msra.mxu0 %v1774
        %1844 = vmatprep.subr.bf16.mxu0 0
        %1845 = vmatpush1.bf16.msra.mxu0 %v1775
        %1846 = vmatprep.subr.bf16.mxu0 0
        %1847 = vmatpush1.bf16.msra.mxu0 %v1776
        %1848 = vmatprep.subr.bf16.mxu0 0
        %1849 = vmatpush1.bf16.msra.mxu0 %v1777
        %1850 = vmatprep.subr.bf16.mxu0 0
        %1851 = vmatpush1.bf16.msra.mxu0 %v1778
        %1852 = vmatprep.subr.bf16.mxu0 0
        %1853 = vmatpush1.bf16.msra.mxu0 %v1779
        %1854 = vmatprep.subr.bf16.mxu0 0
        %1855 = vmatpush1.bf16.msra.mxu0 %v1780
        %1856 = vmatprep.subr.bf16.mxu0 0
        %1857 = vmatpush1.bf16.msra.mxu0 %v1781
        %1858 = vmatprep.subr.bf16.mxu0 0
        %1859 = vmatpush1.bf16.msra.mxu0 %v1782
        %1860 = vmatprep.subr.bf16.mxu0 0
        %1861 = vmatpush1.bf16.msra.mxu0 %v1783
        %1862 = vmatprep.subr.bf16.mxu0 0
        %1863 = vmatpush1.bf16.msra.mxu0 %v1784
        %1864 = vmatprep.subr.bf16.mxu0 0
        %1865 = vmatpush1.bf16.msra.mxu0 %v1785
        %1866 = vmatprep.mubr.bf16.mxu0 %v1631
        %1867 = vmatmul.mubr.bf16.gmra.mrb[0].mxu0 %v1630
        %v1868 = vpop.f32.mrb[0].mxu0
        %v1869 = vadd.f32 %v1641, %v1868
        %v1870 = vpop.f32.mrb[0].mxu0
        %v1871 = vpop.f32.mrb[0].mxu0
        %v1872 = vadd.f32 %v1641, %v1871
        %v1873 = vpop.f32.mrb[0].mxu0
        %1874 = vmatprep.mubr.bf16.mxu0 %v1635
        %1875 = vmatmul.mubr.bf16.gmra.mrb[0].mxu0 %v1634
        %v1876 = vpop.f32.mrb[0].mxu0
        %v1877 = vadd.f32 %v1641, %v1876
        %v1878 = vpop.f32.mrb[0].mxu0
        %v1879 = vpop.f32.mrb[0].mxu0
        %v1880 = vadd.f32 %v1641, %v1879
        %v1881 = vpop.f32.mrb[0].mxu0
        %1882 = vdwg.mxu0
        %1883 = vmatprep.subr.bf16.mxu0 0
        %1884 = vmatpush1.bf16.msra.mxu0 %v1786
        %1885 = vmatprep.subr.bf16.mxu0 0
        %1886 = vmatpush1.bf16.msra.mxu0 %v1787
        %1887 = vmatprep.subr.bf16.mxu0 0
        %1888 = vmatpush1.bf16.msra.mxu0 %v1788
        %1889 = vmatprep.subr.bf16.mxu0 0
        %1890 = vmatpush1.bf16.msra.mxu0 %v1789
        %1891 = vmatprep.subr.bf16.mxu0 0
        %1892 = vmatpush1.bf16.msra.mxu0 %v1790
        %1893 = vmatprep.subr.bf16.mxu0 0
        %1894 = vmatpush1.bf16.msra.mxu0 %v1791
        %1895 = vmatprep.subr.bf16.mxu0 0
        %1896 = vmatpush1.bf16.msra.mxu0 %v1792
        %1897 = vmatprep.subr.bf16.mxu0 0
        %1898 = vmatpush1.bf16.msra.mxu0 %v1793
        %1899 = vmatprep.subr.bf16.mxu0 0
        %1900 = vmatpush1.bf16.msra.mxu0 %v1794
        %1901 = vmatprep.subr.bf16.mxu0 0
        %1902 = vmatpush1.bf16.msra.mxu0 %v1795
        %1903 = vmatprep.subr.bf16.mxu0 0
        %1904 = vmatpush1.bf16.msra.mxu0 %v1796
        %1905 = vmatprep.subr.bf16.mxu0 0
        %1906 = vmatpush1.bf16.msra.mxu0 %v1797
        %1907 = vmatprep.subr.bf16.mxu0 0
        %1908 = vmatpush1.bf16.msra.mxu0 %v1798
        %1909 = vmatprep.subr.bf16.mxu0 0
        %1910 = vmatpush1.bf16.msra.mxu0 %v1799
        %1911 = vmatprep.subr.bf16.mxu0 0
        %1912 = vmatpush1.bf16.msra.mxu0 %v1800
        %1913 = vmatprep.subr.bf16.mxu0 0
        %1914 = vmatpush1.bf16.msra.mxu0 %v1801
        %1915 = vmatprep.mubr.bf16.mxu0 %v1633
        %1916 = vmatmul.mubr.bf16.gmra.mrb[0].mxu0 %v1632
        %v1917 = vpop.f32.mrb[0].mxu0
        %v1918 = vadd.f32 %v1869, %v1917
        %v1919 = vpop.f32.mrb[0].mxu0
        %v1920 = vpop.f32.mrb[0].mxu0
        %v1921 = vadd.f32 %v1872, %v1920
        %v1922 = vpop.f32.mrb[0].mxu0
        %1923 = vmatprep.mubr.bf16.mxu0 %v1637
        %1924 = vmatmul.mubr.bf16.gmra.mrb[0].mxu0 %v1636
        %v1925 = vpop.f32.mrb[0].mxu0
        %v1926 = vadd.f32 %v1877, %v1925
        %v1927 = vpop.f32.mrb[0].mxu0
        %v1928 = vpop.f32.mrb[0].mxu0
        %v1929 = vadd.f32 %v1880, %v1928
        %v1930 = vpop.f32.mrb[0].mxu0
        %1931 = vdwg.mxu0
        %vm1932 = vcmp.ge.f32.partialorder %v1918, 0.0
        %vm1933 = vcmp.ge.f32.partialorder %v1921, 0.0
        %vm1934 = vcmp.ge.f32.partialorder %v1926, 0.0
        %vm1935 = vcmp.ge.f32.partialorder %v1929, 0.0
        %v1936 = vmul.f32 %v1918, 0.01
        %v1937 = vmul.f32 %v1921, 0.01
        %v1938 = vmul.f32 %v1926, 0.01
        %v1939 = vmul.f32 %v1929, 0.01
        %v1940 = vsel %vm1932, %v1918, %v1936
        %v1941 = vsel %vm1933, %v1921, %v1937
        %v1942 = vsel %vm1934, %v1926, %v1938
        %v1943 = vsel %vm1935, %v1929, %v1939
        %v1944 = vlaneseq
        %v1945 = vshrl.u32 %v1944, 7
        %v1946 = vsub.s32 7, %v1945
        %v1947 = vrot.slane %v838, %v1946
        %v1948 = vmul.f32 %v1940, %v1947
        %v1949 = vmul.f32 %v1941, %v1947
        %v1950 = vmul.f32 %v1942, %v1947
        %v1951 = vmul.f32 %v1943, %v1947
        %v1952 = vlaneseq
        %v1953 = vshrl.u32 %v1952, 7
        %v1954 = vsub.s32 0, %v1953
        %v1955 = vrot.slane %v839, %v1954
        %v1956 = vadd.f32 %v1948, %v1955
        %v1957 = vadd.f32 %v1949, %v1955
        %v1958 = vadd.f32 %v1950, %v1955
        %v1959 = vadd.f32 %v1951, %v1955
        %v1960 = vpack.c.bf16 %v1957, %v1956
        %v1961 = vpack.c.bf16 %v1959, %v1958
        %v1962 = vlaneseq
        %v1963 = vshrl.u32 %v1962, 7
        %v1964 = vsub.s32 0, %v1963
        %v1965 = vrot.slane %v920, %v1964
        %v1982 = vunpack.c.l.b16 %v840
        %v1983 = vunpack.c.l.b16 %v841
        %v1984 = vunpack.c.l.b16 %v842
        %v1985 = vunpack.c.l.b16 %v843
        %v1986 = vunpack.c.l.b16 %v844
        %v1987 = vunpack.c.l.b16 %v845
        %v1988 = vunpack.c.l.b16 %v846
        %v1989 = vunpack.c.l.b16 %v847
        %v1990 = vunpack.c.l.b16 %v848
        %v1991 = vunpack.c.l.b16 %v849
        %v1992 = vunpack.c.l.b16 %v850
        %v1993 = vunpack.c.l.b16 %v851
        %v1994 = vunpack.c.l.b16 %v852
        %v1995 = vunpack.c.l.b16 %v853
        %v1996 = vunpack.c.l.b16 %v854
        %v1997 = vunpack.c.l.b16 %v855
        %v1998 = vpack.c.b16 %v1983, %v1982
        %v1999 = vpack.c.b16 %v1985, %v1984
        %v2000 = vpack.c.b16 %v1987, %v1986
        %v2001 = vpack.c.b16 %v1989, %v1988
        %v2002 = vpack.c.b16 %v1991, %v1990
        %v2003 = vpack.c.b16 %v1993, %v1992
        %v2004 = vpack.c.b16 %v1995, %v1994
        %v2005 = vpack.c.b16 %v1997, %v1996
        %2014 = vmatprep.subr.bf16.mxu0 0
        %2015 = vmatpush1.bf16.msra.mxu0 %v1998
        %2016 = vmatprep.subr.bf16.mxu0 0
        %2017 = vmatpush1.bf16.msra.mxu0 %v1999
        %2018 = vmatprep.subr.bf16.mxu0 0
        %2019 = vmatpush1.bf16.msra.mxu0 %v2000
        %2020 = vmatprep.subr.bf16.mxu0 0
        %2021 = vmatpush1.bf16.msra.mxu0 %v2001
        %2022 = vmatprep.subr.bf16.mxu0 0
        %2023 = vmatpush1.bf16.msra.mxu0 %v2002
        %2024 = vmatprep.subr.bf16.mxu0 0
        %2025 = vmatpush1.bf16.msra.mxu0 %v2003
        %2026 = vmatprep.subr.bf16.mxu0 0
        %2027 = vmatpush1.bf16.msra.mxu0 %v2004
        %2028 = vmatprep.subr.bf16.mxu0 0
        %2029 = vmatpush1.bf16.msra.mxu0 %v2005
        %2030 = vmatprep.subr.bf16.mxu0 0
        %2031 = vmatpush1.bf16.msra.mxu0 0
        %2032 = vmatprep.subr.bf16.mxu0 0
        %2033 = vmatpush1.bf16.msra.mxu0 0
        %2034 = vmatprep.subr.bf16.mxu0 0
        %2035 = vmatpush1.bf16.msra.mxu0 0
        %2036 = vmatprep.subr.bf16.mxu0 0
        %2037 = vmatpush1.bf16.msra.mxu0 0
        %2038 = vmatprep.subr.bf16.mxu0 0
        %2039 = vmatpush1.bf16.msra.mxu0 0
        %2040 = vmatprep.subr.bf16.mxu0 0
        %2041 = vmatpush1.bf16.msra.mxu0 0
        %2042 = vmatprep.subr.bf16.mxu0 0
        %2043 = vmatpush1.bf16.msra.mxu0 0
        %2044 = vmatprep.subr.bf16.mxu0 0
        %2045 = vmatpush1.bf16.msra.mxu0 0
        %2046 = vmatprep.mubr.bf16.mxu0 0
        %2047 = vmatmul.mubr.bf16.gmra.mrb[0].mxu0 %v1960
        %v2048 = vpop.f32.mrb[0].mxu0
        %v2049 = vadd.f32 %v1965, %v2048
        %v2050 = vpop.f32.mrb[0].mxu0
        %v2051 = vpop.f32.mrb[0].mxu0
        %v2052 = vadd.f32 %v1965, %v2051
        %v2053 = vpop.f32.mrb[0].mxu0
        %2054 = vmatprep.mubr.bf16.mxu0 0
        %2055 = vmatmul.mubr.bf16.gmra.mrb[0].mxu0 %v1961
        %v2056 = vpop.f32.mrb[0].mxu0
        %v2057 = vadd.f32 %v1965, %v2056
        %v2058 = vpop.f32.mrb[0].mxu0
        %v2059 = vpop.f32.mrb[0].mxu0
        %v2060 = vadd.f32 %v1965, %v2059
        %v2061 = vpop.f32.mrb[0].mxu0
        %2062 = vdwg.mxu0
        %v2063 = vtanh.pop %v2049
        %v2064 = vtanh.pop %v2052
        %v2065 = vtanh.pop %v2057
        %v2066 = vtanh.pop %v2060
        %v2067 = vlaneseq
        %v2068 = vshrl.u32 %v2067, 7
        %v2069 = vsub.s32 1, %v2068
        %v2070 = vrot.slane %v920, %v2069
        %v2071 = vmul.f32 %v2063, %v2070
        %v2072 = vmul.f32 %v2064, %v2070
        %v2073 = vmul.f32 %v2065, %v2070
        %v2074 = vmul.f32 %v2066, %v2070
        %v2075 = vlaneseq
        %v2076 = vshrl.u32 %v2075, 7
        %v2077 = vsub.s32 2, %v2076
        %v2078 = vrot.slane %v920, %v2077
        %v2079 = vadd.f32 %v2071, %v2078
        %v2080 = vadd.f32 %v2072, %v2078
        %v2081 = vadd.f32 %v2073, %v2078
        %v2082 = vadd.f32 %v2074, %v2078
        %v2083 = vrot.slane %v2079, 6
        %v2084 = vsel %vm1218, %v2083, %v2082
        %v2089 = vrot.slane %v2079, 1
        %v2090 = vrot.slane %v2080, 1
        %v2091 = vsel %vm1225, %v2089, %v2090
        %v2092 = vrot.slane %v2081, 1
        %v2093 = vsel %vm1225, %v2090, %v2092
        %v2094 = vrot.slane %v2084, 1
        %v2095 = vsel %vm1225, %v2092, %v2094
        %2096 = vrot.lane.b32.xlu0 %v2091, 64
        %v2097 = vpop.permute.xlu0 %2096
        %2098 = vrot.lane.b32.xlu0 %v2093, 64
        %v2099 = vpop.permute.xlu0 %2098
        %2100 = vrot.lane.b32.xlu0 %v2095, 64
        %v2101 = vpop.permute.xlu0 %2100
        %2102 = vrot.lane.b32.xlu0 %v2094, 64
        %v2103 = vpop.permute.xlu0 %2102
        %v2108 = vrot.slane %v2079, 2
        %v2109 = vrot.slane %v2080, 2
        %v2110 = vsel %vm1237, %v2108, %v2109
        %v2111 = vrot.slane %v2081, 2
        %v2112 = vsel %vm1237, %v2109, %v2111
        %v2113 = vrot.slane %v2084, 2
        %v2114 = vsel %vm1237, %v2111, %v2113
        %v2119 = vrot.slane %v2079, 3
        %v2120 = vrot.slane %v2080, 3
        %v2121 = vsel %vm1249, %v2119, %v2120
        %v2122 = vrot.slane %v2081, 3
        %v2123 = vsel %vm1249, %v2120, %v2122
        %v2124 = vrot.slane %v2084, 3
        %v2125 = vsel %vm1249, %v2122, %v2124
        %2126 = vrot.lane.b32.xlu0 %v2121, 64
        %v2127 = vpop.permute.xlu0 %2126
        %2128 = vrot.lane.b32.xlu0 %v2123, 64
        %v2129 = vpop.permute.xlu0 %2128
        %2130 = vrot.lane.b32.xlu0 %v2125, 64
        %v2131 = vpop.permute.xlu0 %2130
        %2132 = vrot.lane.b32.xlu0 %v2124, 64
        %v2133 = vpop.permute.xlu0 %2132
        %vm2138 = vcmask 523264
        %v2139 = vsel %vm2138, %v2079, %v2097
        %v2140 = vsel %vm2138, %v2080, %v2099
        %v2141 = vsel %vm2138, %v2081, %v2101
        %v2142 = vsel %vm2138, %v2082, %v2103
        %v2143 = vsel %vm2138, %v2110, %v2127
        %v2144 = vsel %vm2138, %v2112, %v2129
        %v2145 = vsel %vm2138, %v2114, %v2131
        %v2146 = vsel %vm2138, %v2113, %v2133
        %v2147 = vpack.c.bf16 %v2140, %v2139
        %v2148 = vpack.c.bf16 %v2144, %v2143
        %v2149 = vpack.c.bf16 %v2142, %v2141
        %v2150 = vpack.c.bf16 %v2146, %v2145
        %v2151 = vlaneseq
        %v2152 = vshrl.u32 %v2151, 7
        %v2153 = vsub.s32 3, %v2152
        %v2154 = vrot.slane %v920, %v2153
        %v2187 = vunpack.c.l.b16 %v856
        %v2188 = vunpack.c.l.b16 %v857
        %v2189 = vunpack.c.l.b16 %v858
        %v2190 = vunpack.c.l.b16 %v859
        %v2191 = vunpack.c.l.b16 %v860
        %v2192 = vunpack.c.l.b16 %v861
        %v2193 = vunpack.c.l.b16 %v862
        %v2194 = vunpack.c.l.b16 %v863
        %v2195 = vunpack.c.l.b16 %v864
        %v2196 = vunpack.c.l.b16 %v865
        %v2197 = vunpack.c.l.b16 %v866
        %v2198 = vunpack.c.l.b16 %v867
        %v2199 = vunpack.c.l.b16 %v868
        %v2200 = vunpack.c.l.b16 %v869
        %v2201 = vunpack.c.l.b16 %v870
        %v2202 = vunpack.c.l.b16 %v871
        %v2203 = vunpack.c.l.b16 %v872
        %v2204 = vunpack.c.l.b16 %v873
        %v2205 = vunpack.c.l.b16 %v874
        %v2206 = vunpack.c.l.b16 %v875
        %v2207 = vunpack.c.l.b16 %v876
        %v2208 = vunpack.c.l.b16 %v877
        %v2209 = vunpack.c.l.b16 %v878
        %v2210 = vunpack.c.l.b16 %v879
        %v2211 = vunpack.c.l.b16 %v880
        %v2212 = vunpack.c.l.b16 %v881
        %v2213 = vunpack.c.l.b16 %v882
        %v2214 = vunpack.c.l.b16 %v883
        %v2215 = vunpack.c.l.b16 %v884
        %v2216 = vunpack.c.l.b16 %v885
        %v2217 = vunpack.c.l.b16 %v886
        %v2218 = vunpack.c.l.b16 %v887
        %v2219 = vpack.c.b16 %v2188, %v2187
        %v2220 = vpack.c.b16 %v2190, %v2189
        %v2221 = vpack.c.b16 %v2192, %v2191
        %v2222 = vpack.c.b16 %v2194, %v2193
        %v2223 = vpack.c.b16 %v2196, %v2195
        %v2224 = vpack.c.b16 %v2198, %v2197
        %v2225 = vpack.c.b16 %v2200, %v2199
        %v2226 = vpack.c.b16 %v2202, %v2201
        %v2227 = vpack.c.b16 %v2204, %v2203
        %v2228 = vpack.c.b16 %v2206, %v2205
        %v2229 = vpack.c.b16 %v2208, %v2207
        %v2230 = vpack.c.b16 %v2210, %v2209
        %v2231 = vpack.c.b16 %v2212, %v2211
        %v2232 = vpack.c.b16 %v2214, %v2213
        %v2233 = vpack.c.b16 %v2216, %v2215
        %v2234 = vpack.c.b16 %v2218, %v2217
        %2251 = vmatprep.subr.bf16.mxu0 0
        %2252 = vmatpush1.bf16.msra.mxu0 %v2219
        %2253 = vmatprep.subr.bf16.mxu0 0
        %2254 = vmatpush1.bf16.msra.mxu0 %v2220
        %2255 = vmatprep.subr.bf16.mxu0 0
        %2256 = vmatpush1.bf16.msra.mxu0 %v2221
        %2257 = vmatprep.subr.bf16.mxu0 0
        %2258 = vmatpush1.bf16.msra.mxu0 %v2222
        %2259 = vmatprep.subr.bf16.mxu0 0
        %2260 = vmatpush1.bf16.msra.mxu0 %v2223
        %2261 = vmatprep.subr.bf16.mxu0 0
        %2262 = vmatpush1.bf16.msra.mxu0 %v2224
        %2263 = vmatprep.subr.bf16.mxu0 0
        %2264 = vmatpush1.bf16.msra.mxu0 %v2225
        %2265 = vmatprep.subr.bf16.mxu0 0
        %2266 = vmatpush1.bf16.msra.mxu0 %v2226
        %2267 = vmatprep.subr.bf16.mxu0 0
        %2268 = vmatpush1.bf16.msra.mxu0 %v2227
        %2269 = vmatprep.subr.bf16.mxu0 0
        %2270 = vmatpush1.bf16.msra.mxu0 %v2228
        %2271 = vmatprep.subr.bf16.mxu0 0
        %2272 = vmatpush1.bf16.msra.mxu0 %v2229
        %2273 = vmatprep.subr.bf16.mxu0 0
        %2274 = vmatpush1.bf16.msra.mxu0 %v2230
        %2275 = vmatprep.subr.bf16.mxu0 0
        %2276 = vmatpush1.bf16.msra.mxu0 %v2231
        %2277 = vmatprep.subr.bf16.mxu0 0
        %2278 = vmatpush1.bf16.msra.mxu0 %v2232
        %2279 = vmatprep.subr.bf16.mxu0 0
        %2280 = vmatpush1.bf16.msra.mxu0 %v2233
        %2281 = vmatprep.subr.bf16.mxu0 0
        %2282 = vmatpush1.bf16.msra.mxu0 %v2234
        %2283 = vmatprep.mubr.bf16.mxu0 %v2148
        %2284 = vmatmul.mubr.bf16.gmra.mrb[0].mxu0 %v2147
        %v2285 = vpop.f32.mrb[0].mxu0
        %v2286 = vadd.f32 %v2154, %v2285
        %v2287 = vpop.f32.mrb[0].mxu0
        %v2288 = vpop.f32.mrb[0].mxu0
        %v2289 = vadd.f32 %v2154, %v2288
        %v2290 = vpop.f32.mrb[0].mxu0
        %2291 = vmatprep.mubr.bf16.mxu0 %v2150
        %2292 = vmatmul.mubr.bf16.gmra.mrb[0].mxu0 %v2149
        %v2293 = vpop.f32.mrb[0].mxu0
        %v2294 = vadd.f32 %v2154, %v2293
        %v2295 = vpop.f32.mrb[0].mxu0
        %v2296 = vpop.f32.mrb[0].mxu0
        %v2297 = vadd.f32 %v2154, %v2296
        %v2298 = vpop.f32.mrb[0].mxu0
        %2299 = vdwg.mxu0
        %v2300 = vtanh.pop %v2286
        %v2301 = vtanh.pop %v2289
        %v2302 = vtanh.pop %v2294
        %v2303 = vtanh.pop %v2297
        %v2304 = vlaneseq
        %v2305 = vshrl.u32 %v2304, 7
        %v2306 = vsub.s32 4, %v2305
        %v2307 = vrot.slane %v920, %v2306
        %v2308 = vmul.f32 %v2300, %v2307
        %v2309 = vmul.f32 %v2301, %v2307
        %v2310 = vmul.f32 %v2302, %v2307
        %v2311 = vmul.f32 %v2303, %v2307
        %v2312 = vlaneseq
        %v2313 = vshrl.u32 %v2312, 7
        %v2314 = vsub.s32 5, %v2313
        %v2315 = vrot.slane %v920, %v2314
        %v2316 = vadd.f32 %v2308, %v2315
        %v2317 = vadd.f32 %v2309, %v2315
        %v2318 = vadd.f32 %v2310, %v2315
        %v2319 = vadd.f32 %v2311, %v2315
        %v2320 = vrot.slane %v2316, 6
        %v2321 = vsel %vm1218, %v2320, %v2319
        %v2326 = vrot.slane %v2316, 1
        %v2327 = vrot.slane %v2317, 1
        %v2328 = vsel %vm1225, %v2326, %v2327
        %v2329 = vrot.slane %v2318, 1
        %v2330 = vsel %vm1225, %v2327, %v2329
        %v2331 = vrot.slane %v2321, 1
        %v2332 = vsel %vm1225, %v2329, %v2331
        %2333 = vrot.lane.b32.xlu0 %v2328, 64
        %v2334 = vpop.permute.xlu0 %2333
        %2335 = vrot.lane.b32.xlu0 %v2330, 64
        %v2336 = vpop.permute.xlu0 %2335
        %2337 = vrot.lane.b32.xlu0 %v2332, 64
        %v2338 = vpop.permute.xlu0 %2337
        %2339 = vrot.lane.b32.xlu0 %v2331, 64
        %v2340 = vpop.permute.xlu0 %2339
        %v2345 = vrot.slane %v2316, 2
        %v2346 = vrot.slane %v2317, 2
        %v2347 = vsel %vm1237, %v2345, %v2346
        %v2348 = vrot.slane %v2318, 2
        %v2349 = vsel %vm1237, %v2346, %v2348
        %v2350 = vrot.slane %v2321, 2
        %v2351 = vsel %vm1237, %v2348, %v2350
        %v2356 = vrot.slane %v2316, 3
        %v2357 = vrot.slane %v2317, 3
        %v2358 = vsel %vm1249, %v2356, %v2357
        %v2359 = vrot.slane %v2318, 3
        %v2360 = vsel %vm1249, %v2357, %v2359
        %v2361 = vrot.slane %v2321, 3
        %v2362 = vsel %vm1249, %v2359, %v2361
        %2363 = vrot.lane.b32.xlu0 %v2358, 64
        %v2364 = vpop.permute.xlu0 %2363
        %2365 = vrot.lane.b32.xlu0 %v2360, 64
        %v2366 = vpop.permute.xlu0 %2365
        %2367 = vrot.lane.b32.xlu0 %v2362, 64
        %v2368 = vpop.permute.xlu0 %2367
        %2369 = vrot.lane.b32.xlu0 %v2361, 64
        %v2370 = vpop.permute.xlu0 %2369
        %v2375 = vsel %vm2138, %v2316, %v2334
        %v2376 = vsel %vm2138, %v2317, %v2336
        %v2377 = vsel %vm2138, %v2318, %v2338
        %v2378 = vsel %vm2138, %v2319, %v2340
        %v2379 = vsel %vm2138, %v2347, %v2364
        %v2380 = vsel %vm2138, %v2349, %v2366
        %v2381 = vsel %vm2138, %v2351, %v2368
        %v2382 = vsel %vm2138, %v2350, %v2370
        %v2383 = vpack.c.bf16 %v2376, %v2375
        %v2384 = vpack.c.bf16 %v2380, %v2379
        %v2385 = vpack.c.bf16 %v2378, %v2377
        %v2386 = vpack.c.bf16 %v2382, %v2381
        %v2387 = vlaneseq
        %v2388 = vshrl.u32 %v2387, 7
        %v2389 = vsub.s32 6, %v2388
        %v2390 = vrot.slane %v920, %v2389
        %v2423 = vunpack.c.l.b16 %v888
        %v2424 = vunpack.c.l.b16 %v889
        %v2425 = vunpack.c.l.b16 %v890
        %v2426 = vunpack.c.l.b16 %v891
        %v2427 = vunpack.c.l.b16 %v892
        %v2428 = vunpack.c.l.b16 %v893
        %v2429 = vunpack.c.l.b16 %v894
        %v2430 = vunpack.c.l.b16 %v895
        %v2431 = vunpack.c.l.b16 %v896
        %v2432 = vunpack.c.l.b16 %v897
        %v2433 = vunpack.c.l.b16 %v898
        %v2434 = vunpack.c.l.b16 %v899
        %v2435 = vunpack.c.l.b16 %v900
        %v2436 = vunpack.c.l.b16 %v901
        %v2437 = vunpack.c.l.b16 %v902
        %v2438 = vunpack.c.l.b16 %v903
        %v2439 = vunpack.c.l.b16 %v904
        %v2440 = vunpack.c.l.b16 %v905
        %v2441 = vunpack.c.l.b16 %v906
        %v2442 = vunpack.c.l.b16 %v907
        %v2443 = vunpack.c.l.b16 %v908
        %v2444 = vunpack.c.l.b16 %v909
        %v2445 = vunpack.c.l.b16 %v910
        %v2446 = vunpack.c.l.b16 %v911
        %v2447 = vunpack.c.l.b16 %v912
        %v2448 = vunpack.c.l.b16 %v913
        %v2449 = vunpack.c.l.b16 %v914
        %v2450 = vunpack.c.l.b16 %v915
        %v2451 = vunpack.c.l.b16 %v916
        %v2452 = vunpack.c.l.b16 %v917
        %v2453 = vunpack.c.l.b16 %v918
        %v2454 = vunpack.c.l.b16 %v919
        %v2455 = vpack.c.b16 %v2424, %v2423
        %v2456 = vpack.c.b16 %v2426, %v2425
        %v2457 = vpack.c.b16 %v2428, %v2427
        %v2458 = vpack.c.b16 %v2430, %v2429
        %v2459 = vpack.c.b16 %v2432, %v2431
        %v2460 = vpack.c.b16 %v2434, %v2433
        %v2461 = vpack.c.b16 %v2436, %v2435
        %v2462 = vpack.c.b16 %v2438, %v2437
        %v2463 = vpack.c.b16 %v2440, %v2439
        %v2464 = vpack.c.b16 %v2442, %v2441
        %v2465 = vpack.c.b16 %v2444, %v2443
        %v2466 = vpack.c.b16 %v2446, %v2445
        %v2467 = vpack.c.b16 %v2448, %v2447
        %v2468 = vpack.c.b16 %v2450, %v2449
        %v2469 = vpack.c.b16 %v2452, %v2451
        %v2470 = vpack.c.b16 %v2454, %v2453
        %2487 = vmatprep.subr.bf16.mxu0 0
        %2488 = vmatpush1.bf16.msra.mxu0 %v2455
        %2489 = vmatprep.subr.bf16.mxu0 0
        %2490 = vmatpush1.bf16.msra.mxu0 %v2456
        %2491 = vmatprep.subr.bf16.mxu0 0
        %2492 = vmatpush1.bf16.msra.mxu0 %v2457
        %2493 = vmatprep.subr.bf16.mxu0 0
        %2494 = vmatpush1.bf16.msra.mxu0 %v2458
        %2495 = vmatprep.subr.bf16.mxu0 0
        %2496 = vmatpush1.bf16.msra.mxu0 %v2459
        %2497 = vmatprep.subr.bf16.mxu0 0
        %2498 = vmatpush1.bf16.msra.mxu0 %v2460
        %2499 = vmatprep.subr.bf16.mxu0 0
        %2500 = vmatpush1.bf16.msra.mxu0 %v2461
        %2501 = vmatprep.subr.bf16.mxu0 0
        %2502 = vmatpush1.bf16.msra.mxu0 %v2462
        %2503 = vmatprep.subr.bf16.mxu0 0
        %2504 = vmatpush1.bf16.msra.mxu0 %v2463
        %2505 = vmatprep.subr.bf16.mxu0 0
        %2506 = vmatpush1.bf16.msra.mxu0 %v2464
        %2507 = vmatprep.subr.bf16.mxu0 0
        %2508 = vmatpush1.bf16.msra.mxu0 %v2465
        %2509 = vmatprep.subr.bf16.mxu0 0
        %2510 = vmatpush1.bf16.msra.mxu0 %v2466
        %2511 = vmatprep.subr.bf16.mxu0 0
        %2512 = vmatpush1.bf16.msra.mxu0 %v2467
        %2513 = vmatprep.subr.bf16.mxu0 0
        %2514 = vmatpush1.bf16.msra.mxu0 %v2468
        %2515 = vmatprep.subr.bf16.mxu0 0
        %2516 = vmatpush1.bf16.msra.mxu0 %v2469
        %2517 = vmatprep.subr.bf16.mxu0 0
        %2518 = vmatpush1.bf16.msra.mxu0 %v2470
        %2519 = vmatprep.mubr.bf16.mxu0 %v2384
        %2520 = vmatmul.mubr.bf16.gmra.mrb[0].mxu0 %v2383
        %v2521 = vpop.f32.mrb[0].mxu0
        %v2522 = vadd.f32 %v2390, %v2521
        %v2523 = vpop.f32.mrb[0].mxu0
        %v2524 = vpop.f32.mrb[0].mxu0
        %v2525 = vadd.f32 %v2390, %v2524
        %v2526 = vpop.f32.mrb[0].mxu0
        %2527 = vmatprep.mubr.bf16.mxu0 %v2386
        %2528 = vmatmul.mubr.bf16.gmra.mrb[0].mxu0 %v2385
        %v2529 = vpop.f32.mrb[0].mxu0
        %v2530 = vadd.f32 %v2390, %v2529
        %v2531 = vpop.f32.mrb[0].mxu0
        %v2532 = vpop.f32.mrb[0].mxu0
        %v2533 = vadd.f32 %v2390, %v2532
        %v2534 = vpop.f32.mrb[0].mxu0
        %2535 = vdwg.mxu0
        %v2536 = vtanh.pop %v2522
        %v2537 = vtanh.pop %v2525
        %v2538 = vtanh.pop %v2530
        %v2539 = vtanh.pop %v2533
        %v2540 = vlaneseq
        %v2541 = vshrl.u32 %v2540, 7
        %v2542 = vsub.s32 7, %v2541
        %v2543 = vrot.slane %v920, %v2542
        %v2544 = vmul.f32 %v2536, %v2543
        %v2545 = vmul.f32 %v2537, %v2543
        %v2546 = vmul.f32 %v2538, %v2543
        %v2547 = vmul.f32 %v2539, %v2543
        %v2548 = vlaneseq
        %v2549 = vshrl.u32 %v2548, 7
        %v2550 = vsub.s32 0, %v2549
        %v2551 = vrot.slane %v921, %v2550
        %v2552 = vadd.f32 %v2544, %v2551
        %v2553 = vadd.f32 %v2545, %v2551
        %v2554 = vadd.f32 %v2546, %v2551
        %v2555 = vadd.f32 %v2547, %v2551
        %s2556 = scalar_lea.vmem %s707, 32
        %v2557 = vld [vmem:[%s2556] sm:$0xff]
        %v2558 = vld [vmem:[%s2556 + $0x8] sm:$0xff]
        %v2559 = vld [vmem:[%s2556 + $0x10] sm:$0xff]
        %v2560 = vld [vmem:[%s2556 + $0x18] sm:$0x3]
        %v2561 = vpack.c.bf16 %v2558, %v2557
        %v2562 = vpack.c.bf16 %v2560, %v2559
        %v2564 = vsel %vm1130, %v2561, 0
        %v2567 = vsel %vm1130, %v2562, 0
        %2569 = vmatprep.subr.bf16.mxu0 0
        %2570 = vmatpush1.bf16.msra.mxu0 %v1139
        %2571 = vmatprep.subr.bf16.mxu0 0
        %2572 = vmatpush1.bf16.msra.mxu0 0
        %2573 = vmatprep.subr.bf16.mxu0 0
        %2574 = vmatpush1.bf16.msra.mxu0 0
        %2575 = vmatprep.subr.bf16.mxu0 0
        %2576 = vmatpush1.bf16.msra.mxu0 0
        %2577 = vmatprep.subr.bf16.mxu0 0
        %2578 = vmatpush1.bf16.msra.mxu0 0
        %2579 = vmatprep.subr.bf16.mxu0 0
        %2580 = vmatpush1.bf16.msra.mxu0 0
        %2581 = vmatprep.subr.bf16.mxu0 0
        %2582 = vmatpush1.bf16.msra.mxu0 0
        %2583 = vmatprep.subr.bf16.mxu0 0
        %2584 = vmatpush1.bf16.msra.mxu0 0
        %2585 = vmatprep.subr.bf16.mxu0 0
        %2586 = vmatpush1.bf16.msra.mxu0 0
        %2587 = vmatprep.subr.bf16.mxu0 0
        %2588 = vmatpush1.bf16.msra.mxu0 0
        %2589 = vmatprep.subr.bf16.mxu0 0
        %2590 = vmatpush1.bf16.msra.mxu0 0
        %2591 = vmatprep.subr.bf16.mxu0 0
        %2592 = vmatpush1.bf16.msra.mxu0 0
        %2593 = vmatprep.subr.bf16.mxu0 0
        %2594 = vmatpush1.bf16.msra.mxu0 0
        %2595 = vmatprep.subr.bf16.mxu0 0
        %2596 = vmatpush1.bf16.msra.mxu0 0
        %2597 = vmatprep.subr.bf16.mxu0 0
        %2598 = vmatpush1.bf16.msra.mxu0 0
        %2599 = vmatprep.subr.bf16.mxu0 0
        %2600 = vmatpush1.bf16.msra.mxu0 0
        %2601 = vmatprep.mubr.bf16.mxu0 0
        %2602 = vmatmul.mubr.bf16.gmra.mrb[0].mxu0 %v2564
        %v2603 = vpop.f32.mrb[0].mxu0
        %v2604 = vadd.f32 %v1129, %v2603
        %v2605 = vpop.f32.mrb[0].mxu0
        %v2606 = vpop.f32.mrb[0].mxu0
        %v2607 = vadd.f32 %v1129, %v2606
        %v2608 = vpop.f32.mrb[0].mxu0
        %2609 = vmatprep.mubr.bf16.mxu0 0
        %2610 = vmatmul.mubr.bf16.gmra.mrb[0].mxu0 %v2567
        %v2611 = vpop.f32.mrb[0].mxu0
        %v2612 = vadd.f32 %v1129, %v2611
        %v2613 = vpop.f32.mrb[0].mxu0
        %v2614 = vpop.f32.mrb[0].mxu0
        %v2615 = vadd.f32 %v1129, %v2614
        %v2616 = vpop.f32.mrb[0].mxu0
        %2617 = vdwg.mxu0
        %vm2618 = vcmp.ge.f32.partialorder %v2604, 0.0
        %vm2619 = vcmp.ge.f32.partialorder %v2607, 0.0
        %vm2620 = vcmp.ge.f32.partialorder %v2612, 0.0
        %vm2621 = vcmp.ge.f32.partialorder %v2615, 0.0
        %v2622 = vmul.f32 %v2604, 0.01
        %v2623 = vmul.f32 %v2607, 0.01
        %v2624 = vmul.f32 %v2612, 0.01
        %v2625 = vmul.f32 %v2615, 0.01
        %v2626 = vsel %vm2618, %v2604, %v2622
        %v2627 = vsel %vm2619, %v2607, %v2623
        %v2628 = vsel %vm2620, %v2612, %v2624
        %v2629 = vsel %vm2621, %v2615, %v2625
        %v2630 = vmul.f32 %v2626, %v1205
        %v2631 = vmul.f32 %v2627, %v1205
        %v2632 = vmul.f32 %v2628, %v1205
        %v2633 = vmul.f32 %v2629, %v1205
        %v2634 = vadd.f32 %v2630, %v1213
        %v2635 = vadd.f32 %v2631, %v1213
        %v2636 = vadd.f32 %v2632, %v1213
        %v2637 = vadd.f32 %v2633, %v1213
        %v2638 = vrot.slane %v2634, 6
        %v2639 = vsel %vm1218, %v2638, %v2637
        %v2644 = vrot.slane %v2634, 1
        %v2645 = vrot.slane %v2635, 1
        %v2646 = vsel %vm1225, %v2644, %v2645
        %v2647 = vrot.slane %v2636, 1
        %v2648 = vsel %vm1225, %v2645, %v2647
        %v2649 = vrot.slane %v2639, 1
        %v2650 = vsel %vm1225, %v2647, %v2649
        %v2655 = vrot.slane %v2634, 2
        %v2656 = vrot.slane %v2635, 2
        %v2657 = vsel %vm1237, %v2655, %v2656
        %v2658 = vrot.slane %v2636, 2
        %v2659 = vsel %vm1237, %v2656, %v2658
        %v2660 = vrot.slane %v2639, 2
        %v2661 = vsel %vm1237, %v2658, %v2660
        %v2666 = vrot.slane %v2634, 3
        %v2667 = vrot.slane %v2635, 3
        %v2668 = vsel %vm1249, %v2666, %v2667
        %v2669 = vrot.slane %v2636, 3
        %v2670 = vsel %vm1249, %v2667, %v2669
        %v2671 = vrot.slane %v2639, 3
        %v2672 = vsel %vm1249, %v2669, %v2671
        %v2677 = vpack.c.bf16 %v2635, %v2634
        %v2678 = vpack.c.bf16 %v2648, %v2646
        %v2679 = vpack.c.bf16 %v2659, %v2657
        %v2680 = vpack.c.bf16 %v2670, %v2668
        %v2681 = vpack.c.bf16 %v2637, %v2636
        %v2682 = vpack.c.bf16 %v2649, %v2650
        %v2683 = vpack.c.bf16 %v2660, %v2661
        %v2684 = vpack.c.bf16 %v2671, %v2672
        %2685 = vmatprep.subr.bf16.mxu0 0
        %2686 = vmatpush1.bf16.msra.mxu0 %v1401
        %2687 = vmatprep.subr.bf16.mxu0 0
        %2688 = vmatpush1.bf16.msra.mxu0 %v1402
        %2689 = vmatprep.subr.bf16.mxu0 0
        %2690 = vmatpush1.bf16.msra.mxu0 %v1403
        %2691 = vmatprep.subr.bf16.mxu0 0
        %2692 = vmatpush1.bf16.msra.mxu0 %v1404
        %2693 = vmatprep.subr.bf16.mxu0 0
        %2694 = vmatpush1.bf16.msra.mxu0 %v1405
        %2695 = vmatprep.subr.bf16.mxu0 0
        %2696 = vmatpush1.bf16.msra.mxu0 %v1406
        %2697 = vmatprep.subr.bf16.mxu0 0
        %2698 = vmatpush1.bf16.msra.mxu0 %v1407
        %2699 = vmatprep.subr.bf16.mxu0 0
        %2700 = vmatpush1.bf16.msra.mxu0 %v1408
        %2701 = vmatprep.subr.bf16.mxu0 0
        %2702 = vmatpush1.bf16.msra.mxu0 %v1409
        %2703 = vmatprep.subr.bf16.mxu0 0
        %2704 = vmatpush1.bf16.msra.mxu0 %v1410
        %2705 = vmatprep.subr.bf16.mxu0 0
        %2706 = vmatpush1.bf16.msra.mxu0 %v1411
        %2707 = vmatprep.subr.bf16.mxu0 0
        %2708 = vmatpush1.bf16.msra.mxu0 %v1412
        %2709 = vmatprep.subr.bf16.mxu0 0
        %2710 = vmatpush1.bf16.msra.mxu0 %v1413
        %2711 = vmatprep.subr.bf16.mxu0 0
        %2712 = vmatpush1.bf16.msra.mxu0 %v1414
        %2713 = vmatprep.subr.bf16.mxu0 0
        %2714 = vmatpush1.bf16.msra.mxu0 %v1415
        %2715 = vmatprep.subr.bf16.mxu0 0
        %2716 = vmatpush1.bf16.msra.mxu0 %v1416
        %2717 = vmatprep.mubr.bf16.mxu0 %v2678
        %2718 = vmatmul.mubr.bf16.gmra.mrb[0].mxu0 %v2677
        %v2719 = vpop.f32.mrb[0].mxu0
        %v2720 = vadd.f32 %v1272, %v2719
        %v2721 = vpop.f32.mrb[0].mxu0
        %v2722 = vpop.f32.mrb[0].mxu0
        %v2723 = vadd.f32 %v1272, %v2722
        %v2724 = vpop.f32.mrb[0].mxu0
        %2725 = vmatprep.mubr.bf16.mxu0 %v2682
        %2726 = vmatmul.mubr.bf16.gmra.mrb[0].mxu0 %v2681
        %v2727 = vpop.f32.mrb[0].mxu0
        %v2728 = vadd.f32 %v1272, %v2727
        %v2729 = vpop.f32.mrb[0].mxu0
        %v2730 = vpop.f32.mrb[0].mxu0
        %v2731 = vadd.f32 %v1272, %v2730
        %v2732 = vpop.f32.mrb[0].mxu0
        %2733 = vdwg.mxu0
        %2734 = vmatprep.subr.bf16.mxu0 0
        %2735 = vmatpush1.bf16.msra.mxu0 %v1417
        %2736 = vmatprep.subr.bf16.mxu0 0
        %2737 = vmatpush1.bf16.msra.mxu0 %v1418
        %2738 = vmatprep.subr.bf16.mxu0 0
        %2739 = vmatpush1.bf16.msra.mxu0 %v1419
        %2740 = vmatprep.subr.bf16.mxu0 0
        %2741 = vmatpush1.bf16.msra.mxu0 %v1420
        %2742 = vmatprep.subr.bf16.mxu0 0
        %2743 = vmatpush1.bf16.msra.mxu0 %v1421
        %2744 = vmatprep.subr.bf16.mxu0 0
        %2745 = vmatpush1.bf16.msra.mxu0 %v1422
        %2746 = vmatprep.subr.bf16.mxu0 0
        %2747 = vmatpush1.bf16.msra.mxu0 %v1423
        %2748 = vmatprep.subr.bf16.mxu0 0
        %2749 = vmatpush1.bf16.msra.mxu0 %v1424
        %2750 = vmatprep.subr.bf16.mxu0 0
        %2751 = vmatpush1.bf16.msra.mxu0 %v1425
        %2752 = vmatprep.subr.bf16.mxu0 0
        %2753 = vmatpush1.bf16.msra.mxu0 %v1426
        %2754 = vmatprep.subr.bf16.mxu0 0
        %2755 = vmatpush1.bf16.msra.mxu0 %v1427
        %2756 = vmatprep.subr.bf16.mxu0 0
        %2757 = vmatpush1.bf16.msra.mxu0 %v1428
        %2758 = vmatprep.subr.bf16.mxu0 0
        %2759 = vmatpush1.bf16.msra.mxu0 %v1429
        %2760 = vmatprep.subr.bf16.mxu0 0
        %2761 = vmatpush1.bf16.msra.mxu0 %v1430
        %2762 = vmatprep.subr.bf16.mxu0 0
        %2763 = vmatpush1.bf16.msra.mxu0 %v1431
        %2764 = vmatprep.subr.bf16.mxu0 0
        %2765 = vmatpush1.bf16.msra.mxu0 %v1432
        %2766 = vmatprep.mubr.bf16.mxu0 %v2680
        %2767 = vmatmul.mubr.bf16.gmra.mrb[0].mxu0 %v2679
        %v2768 = vpop.f32.mrb[0].mxu0
        %v2769 = vadd.f32 %v2720, %v2768
        %v2770 = vpop.f32.mrb[0].mxu0
        %v2771 = vpop.f32.mrb[0].mxu0
        %v2772 = vadd.f32 %v2723, %v2771
        %v2773 = vpop.f32.mrb[0].mxu0
        %2774 = vmatprep.mubr.bf16.mxu0 %v2684
        %2775 = vmatmul.mubr.bf16.gmra.mrb[0].mxu0 %v2683
        %v2776 = vpop.f32.mrb[0].mxu0
        %v2777 = vadd.f32 %v2728, %v2776
        %v2778 = vpop.f32.mrb[0].mxu0
        %v2779 = vpop.f32.mrb[0].mxu0
        %v2780 = vadd.f32 %v2731, %v2779
        %v2781 = vpop.f32.mrb[0].mxu0
        %2782 = vdwg.mxu0
        %vm2783 = vcmp.ge.f32.partialorder %v2769, 0.0
        %vm2784 = vcmp.ge.f32.partialorder %v2772, 0.0
        %vm2785 = vcmp.ge.f32.partialorder %v2777, 0.0
        %vm2786 = vcmp.ge.f32.partialorder %v2780, 0.0
        %v2787 = vmul.f32 %v2769, 0.01
        %v2788 = vmul.f32 %v2772, 0.01
        %v2789 = vmul.f32 %v2777, 0.01
        %v2790 = vmul.f32 %v2780, 0.01
        %v2791 = vsel %vm2783, %v2769, %v2787
        %v2792 = vsel %vm2784, %v2772, %v2788
        %v2793 = vsel %vm2785, %v2777, %v2789
        %v2794 = vsel %vm2786, %v2780, %v2790
        %v2795 = vmul.f32 %v2791, %v1578
        %v2796 = vmul.f32 %v2792, %v1578
        %v2797 = vmul.f32 %v2793, %v1578
        %v2798 = vmul.f32 %v2794, %v1578
        %v2799 = vadd.f32 %v2795, %v1586
        %v2800 = vadd.f32 %v2796, %v1586
        %v2801 = vadd.f32 %v2797, %v1586
        %v2802 = vadd.f32 %v2798, %v1586
        %v2803 = vrot.slane %v2799, 6
        %v2804 = vsel %vm1218, %v2803, %v2802
        %v2809 = vrot.slane %v2799, 1
        %v2810 = vrot.slane %v2800, 1
        %v2811 = vsel %vm1225, %v2809, %v2810
        %v2812 = vrot.slane %v2801, 1
        %v2813 = vsel %vm1225, %v2810, %v2812
        %v2814 = vrot.slane %v2804, 1
        %v2815 = vsel %vm1225, %v2812, %v2814
        %v2820 = vrot.slane %v2799, 2
        %v2821 = vrot.slane %v2800, 2
        %v2822 = vsel %vm1237, %v2820, %v2821
        %v2823 = vrot.slane %v2801, 2
        %v2824 = vsel %vm1237, %v2821, %v2823
        %v2825 = vrot.slane %v2804, 2
        %v2826 = vsel %vm1237, %v2823, %v2825
        %v2831 = vrot.slane %v2799, 3
        %v2832 = vrot.slane %v2800, 3
        %v2833 = vsel %vm1249, %v2831, %v2832
        %v2834 = vrot.slane %v2801, 3
        %v2835 = vsel %vm1249, %v2832, %v2834
        %v2836 = vrot.slane %v2804, 3
        %v2837 = vsel %vm1249, %v2834, %v2836
        %v2842 = vpack.c.bf16 %v2800, %v2799
        %v2843 = vpack.c.bf16 %v2813, %v2811
        %v2844 = vpack.c.bf16 %v2824, %v2822
        %v2845 = vpack.c.bf16 %v2835, %v2833
        %v2846 = vpack.c.bf16 %v2802, %v2801
        %v2847 = vpack.c.bf16 %v2814, %v2815
        %v2848 = vpack.c.bf16 %v2825, %v2826
        %v2849 = vpack.c.bf16 %v2836, %v2837
        %2850 = vmatprep.subr.bf16.mxu0 0
        %2851 = vmatpush1.bf16.msra.mxu0 %v1770
        %2852 = vmatprep.subr.bf16.mxu0 0
        %2853 = vmatpush1.bf16.msra.mxu0 %v1771
        %2854 = vmatprep.subr.bf16.mxu0 0
        %2855 = vmatpush1.bf16.msra.mxu0 %v1772
        %2856 = vmatprep.subr.bf16.mxu0 0
        %2857 = vmatpush1.bf16.msra.mxu0 %v1773
        %2858 = vmatprep.subr.bf16.mxu0 0
        %2859 = vmatpush1.bf16.msra.mxu0 %v1774
        %2860 = vmatprep.subr.bf16.mxu0 0
        %2861 = vmatpush1.bf16.msra.mxu0 %v1775
        %2862 = vmatprep.subr.bf16.mxu0 0
        %2863 = vmatpush1.bf16.msra.mxu0 %v1776
        %2864 = vmatprep.subr.bf16.mxu0 0
        %2865 = vmatpush1.bf16.msra.mxu0 %v1777
        %2866 = vmatprep.subr.bf16.mxu0 0
        %2867 = vmatpush1.bf16.msra.mxu0 %v1778
        %2868 = vmatprep.subr.bf16.mxu0 0
        %2869 = vmatpush1.bf16.msra.mxu0 %v1779
        %2870 = vmatprep.subr.bf16.mxu0 0
        %2871 = vmatpush1.bf16.msra.mxu0 %v1780
        %2872 = vmatprep.subr.bf16.mxu0 0
        %2873 = vmatpush1.bf16.msra.mxu0 %v1781
        %2874 = vmatprep.subr.bf16.mxu0 0
        %2875 = vmatpush1.bf16.msra.mxu0 %v1782
        %2876 = vmatprep.subr.bf16.mxu0 0
        %2877 = vmatpush1.bf16.msra.mxu0 %v1783
        %2878 = vmatprep.subr.bf16.mxu0 0
        %2879 = vmatpush1.bf16.msra.mxu0 %v1784
        %2880 = vmatprep.subr.bf16.mxu0 0
        %2881 = vmatpush1.bf16.msra.mxu0 %v1785
        %2882 = vmatprep.mubr.bf16.mxu0 %v2843
        %2883 = vmatmul.mubr.bf16.gmra.mrb[0].mxu0 %v2842
        %v2884 = vpop.f32.mrb[0].mxu0
        %v2885 = vadd.f32 %v1641, %v2884
        %v2886 = vpop.f32.mrb[0].mxu0
        %v2887 = vpop.f32.mrb[0].mxu0
        %v2888 = vadd.f32 %v1641, %v2887
        %v2889 = vpop.f32.mrb[0].mxu0
        %2890 = vmatprep.mubr.bf16.mxu0 %v2847
        %2891 = vmatmul.mubr.bf16.gmra.mrb[0].mxu0 %v2846
        %v2892 = vpop.f32.mrb[0].mxu0
        %v2893 = vadd.f32 %v1641, %v2892
        %v2894 = vpop.f32.mrb[0].mxu0
        %v2895 = vpop.f32.mrb[0].mxu0
        %v2896 = vadd.f32 %v1641, %v2895
        %v2897 = vpop.f32.mrb[0].mxu0
        %2898 = vdwg.mxu0
        %2899 = vmatprep.subr.bf16.mxu0 0
        %2900 = vmatpush1.bf16.msra.mxu0 %v1786
        %2901 = vmatprep.subr.bf16.mxu0 0
        %2902 = vmatpush1.bf16.msra.mxu0 %v1787
        %2903 = vmatprep.subr.bf16.mxu0 0
        %2904 = vmatpush1.bf16.msra.mxu0 %v1788
        %2905 = vmatprep.subr.bf16.mxu0 0
        %2906 = vmatpush1.bf16.msra.mxu0 %v1789
        %2907 = vmatprep.subr.bf16.mxu0 0
        %2908 = vmatpush1.bf16.msra.mxu0 %v1790
        %2909 = vmatprep.subr.bf16.mxu0 0
        %2910 = vmatpush1.bf16.msra.mxu0 %v1791
        %2911 = vmatprep.subr.bf16.mxu0 0
        %2912 = vmatpush1.bf16.msra.mxu0 %v1792
        %2913 = vmatprep.subr.bf16.mxu0 0
        %2914 = vmatpush1.bf16.msra.mxu0 %v1793
        %2915 = vmatprep.subr.bf16.mxu0 0
        %2916 = vmatpush1.bf16.msra.mxu0 %v1794
        %2917 = vmatprep.subr.bf16.mxu0 0
        %2918 = vmatpush1.bf16.msra.mxu0 %v1795
        %2919 = vmatprep.subr.bf16.mxu0 0
        %2920 = vmatpush1.bf16.msra.mxu0 %v1796
        %2921 = vmatprep.subr.bf16.mxu0 0
        %2922 = vmatpush1.bf16.msra.mxu0 %v1797
        %2923 = vmatprep.subr.bf16.mxu0 0
        %2924 = vmatpush1.bf16.msra.mxu0 %v1798
        %2925 = vmatprep.subr.bf16.mxu0 0
        %2926 = vmatpush1.bf16.msra.mxu0 %v1799
        %2927 = vmatprep.subr.bf16.mxu0 0
        %2928 = vmatpush1.bf16.msra.mxu0 %v1800
        %2929 = vmatprep.subr.bf16.mxu0 0
        %2930 = vmatpush1.bf16.msra.mxu0 %v1801
        %2931 = vmatprep.mubr.bf16.mxu0 %v2845
        %2932 = vmatmul.mubr.bf16.gmra.mrb[0].mxu0 %v2844
        %v2933 = vpop.f32.mrb[0].mxu0
        %v2934 = vadd.f32 %v2885, %v2933
        %v2935 = vpop.f32.mrb[0].mxu0
        %v2936 = vpop.f32.mrb[0].mxu0
        %v2937 = vadd.f32 %v2888, %v2936
        %v2938 = vpop.f32.mrb[0].mxu0
        %2939 = vmatprep.mubr.bf16.mxu0 %v2849
        %2940 = vmatmul.mubr.bf16.gmra.mrb[0].mxu0 %v2848
        %v2941 = vpop.f32.mrb[0].mxu0
        %v2942 = vadd.f32 %v2893, %v2941
        %v2943 = vpop.f32.mrb[0].mxu0
        %v2944 = vpop.f32.mrb[0].mxu0
        %v2945 = vadd.f32 %v2896, %v2944
        %v2946 = vpop.f32.mrb[0].mxu0
        %2947 = vdwg.mxu0
        %vm2948 = vcmp.ge.f32.partialorder %v2934, 0.0
        %vm2949 = vcmp.ge.f32.partialorder %v2937, 0.0
        %vm2950 = vcmp.ge.f32.partialorder %v2942, 0.0
        %vm2951 = vcmp.ge.f32.partialorder %v2945, 0.0
        %v2952 = vmul.f32 %v2934, 0.01
        %v2953 = vmul.f32 %v2937, 0.01
        %v2954 = vmul.f32 %v2942, 0.01
        %v2955 = vmul.f32 %v2945, 0.01
        %v2956 = vsel %vm2948, %v2934, %v2952
        %v2957 = vsel %vm2949, %v2937, %v2953
        %v2958 = vsel %vm2950, %v2942, %v2954
        %v2959 = vsel %vm2951, %v2945, %v2955
        %v2960 = vmul.f32 %v2956, %v1947
        %v2961 = vmul.f32 %v2957, %v1947
        %v2962 = vmul.f32 %v2958, %v1947
        %v2963 = vmul.f32 %v2959, %v1947
        %v2964 = vadd.f32 %v2960, %v1955
        %v2965 = vadd.f32 %v2961, %v1955
        %v2966 = vadd.f32 %v2962, %v1955
        %v2967 = vadd.f32 %v2963, %v1955
        %v2968 = vpack.c.bf16 %v2965, %v2964
        %v2969 = vpack.c.bf16 %v2967, %v2966
        %2970 = vmatprep.subr.bf16.mxu0 0
        %2971 = vmatpush1.bf16.msra.mxu0 %v1998
        %2972 = vmatprep.subr.bf16.mxu0 0
        %2973 = vmatpush1.bf16.msra.mxu0 %v1999
        %2974 = vmatprep.subr.bf16.mxu0 0
        %2975 = vmatpush1.bf16.msra.mxu0 %v2000
        %2976 = vmatprep.subr.bf16.mxu0 0
        %2977 = vmatpush1.bf16.msra.mxu0 %v2001
        %2978 = vmatprep.subr.bf16.mxu0 0
        %2979 = vmatpush1.bf16.msra.mxu0 %v2002
        %2980 = vmatprep.subr.bf16.mxu0 0
        %2981 = vmatpush1.bf16.msra.mxu0 %v2003
        %2982 = vmatprep.subr.bf16.mxu0 0
        %2983 = vmatpush1.bf16.msra.mxu0 %v2004
        %2984 = vmatprep.subr.bf16.mxu0 0
        %2985 = vmatpush1.bf16.msra.mxu0 %v2005
        %2986 = vmatprep.subr.bf16.mxu0 0
        %2987 = vmatpush1.bf16.msra.mxu0 0
        %2988 = vmatprep.subr.bf16.mxu0 0
        %2989 = vmatpush1.bf16.msra.mxu0 0
        %2990 = vmatprep.subr.bf16.mxu0 0
        %2991 = vmatpush1.bf16.msra.mxu0 0
        %2992 = vmatprep.subr.bf16.mxu0 0
        %2993 = vmatpush1.bf16.msra.mxu0 0
        %2994 = vmatprep.subr.bf16.mxu0 0
        %2995 = vmatpush1.bf16.msra.mxu0 0
        %2996 = vmatprep.subr.bf16.mxu0 0
        %2997 = vmatpush1.bf16.msra.mxu0 0
        %2998 = vmatprep.subr.bf16.mxu0 0
        %2999 = vmatpush1.bf16.msra.mxu0 0
        %3000 = vmatprep.subr.bf16.mxu0 0
        %3001 = vmatpush1.bf16.msra.mxu0 0
        %3002 = vmatprep.mubr.bf16.mxu0 0
        %3003 = vmatmul.mubr.bf16.gmra.mrb[0].mxu0 %v2968
        %v3004 = vpop.f32.mrb[0].mxu0
        %v3005 = vadd.f32 %v1965, %v3004
        %v3006 = vpop.f32.mrb[0].mxu0
        %v3007 = vpop.f32.mrb[0].mxu0
        %v3008 = vadd.f32 %v1965, %v3007
        %v3009 = vpop.f32.mrb[0].mxu0
        %3010 = vmatprep.mubr.bf16.mxu0 0
        %3011 = vmatmul.mubr.bf16.gmra.mrb[0].mxu0 %v2969
        %v3012 = vpop.f32.mrb[0].mxu0
        %v3013 = vadd.f32 %v1965, %v3012
        %v3014 = vpop.f32.mrb[0].mxu0
        %v3015 = vpop.f32.mrb[0].mxu0
        %v3016 = vadd.f32 %v1965, %v3015
        %v3017 = vpop.f32.mrb[0].mxu0
        %3018 = vdwg.mxu0
        %v3019 = vtanh.pop %v3005
        %v3020 = vtanh.pop %v3008
        %v3021 = vtanh.pop %v3013
        %v3022 = vtanh.pop %v3016
        %v3023 = vmul.f32 %v3019, %v2070
        %v3024 = vmul.f32 %v3020, %v2070
        %v3025 = vmul.f32 %v3021, %v2070
        %v3026 = vmul.f32 %v3022, %v2070
        %v3027 = vadd.f32 %v3023, %v2078
        %v3028 = vadd.f32 %v3024, %v2078
        %v3029 = vadd.f32 %v3025, %v2078
        %v3030 = vadd.f32 %v3026, %v2078
        %v3031 = vrot.slane %v3027, 6
        %v3032 = vsel %vm1218, %v3031, %v3030
        %v3037 = vrot.slane %v3027, 1
        %v3038 = vrot.slane %v3028, 1
        %v3039 = vsel %vm1225, %v3037, %v3038
        %v3040 = vrot.slane %v3029, 1
        %v3041 = vsel %vm1225, %v3038, %v3040
        %v3042 = vrot.slane %v3032, 1
        %v3043 = vsel %vm1225, %v3040, %v3042
        %3044 = vrot.lane.b32.xlu0 %v3039, 64
        %v3045 = vpop.permute.xlu0 %3044
        %3046 = vrot.lane.b32.xlu0 %v3041, 64
        %v3047 = vpop.permute.xlu0 %3046
        %3048 = vrot.lane.b32.xlu0 %v3043, 64
        %v3049 = vpop.permute.xlu0 %3048
        %3050 = vrot.lane.b32.xlu0 %v3042, 64
        %v3051 = vpop.permute.xlu0 %3050
        %v3056 = vrot.slane %v3027, 2
        %v3057 = vrot.slane %v3028, 2
        %v3058 = vsel %vm1237, %v3056, %v3057
        %v3059 = vrot.slane %v3029, 2
        %v3060 = vsel %vm1237, %v3057, %v3059
        %v3061 = vrot.slane %v3032, 2
        %v3062 = vsel %vm1237, %v3059, %v3061
        %v3067 = vrot.slane %v3027, 3
        %v3068 = vrot.slane %v3028, 3
        %v3069 = vsel %vm1249, %v3067, %v3068
        %v3070 = vrot.slane %v3029, 3
        %v3071 = vsel %vm1249, %v3068, %v3070
        %v3072 = vrot.slane %v3032, 3
        %v3073 = vsel %vm1249, %v3070, %v3072
        %3074 = vrot.lane.b32.xlu0 %v3069, 64
        %v3075 = vpop.permute.xlu0 %3074
        %3076 = vrot.lane.b32.xlu0 %v3071, 64
        %v3077 = vpop.permute.xlu0 %3076
        %3078 = vrot.lane.b32.xlu0 %v3073, 64
        %v3079 = vpop.permute.xlu0 %3078
        %3080 = vrot.lane.b32.xlu0 %v3072, 64
        %v3081 = vpop.permute.xlu0 %3080
        %v3086 = vsel %vm2138, %v3027, %v3045
        %v3087 = vsel %vm2138, %v3028, %v3047
        %v3088 = vsel %vm2138, %v3029, %v3049
        %v3089 = vsel %vm2138, %v3030, %v3051
        %v3090 = vsel %vm2138, %v3058, %v3075
        %v3091 = vsel %vm2138, %v3060, %v3077
        %v3092 = vsel %vm2138, %v3062, %v3079
        %v3093 = vsel %vm2138, %v3061, %v3081
        %v3094 = vpack.c.bf16 %v3087, %v3086
        %v3095 = vpack.c.bf16 %v3091, %v3090
        %v3096 = vpack.c.bf16 %v3089, %v3088
        %v3097 = vpack.c.bf16 %v3093, %v3092
        %3098 = vmatprep.subr.bf16.mxu0 0
        %3099 = vmatpush1.bf16.msra.mxu0 %v2219
        %3100 = vmatprep.subr.bf16.mxu0 0
        %3101 = vmatpush1.bf16.msra.mxu0 %v2220
        %3102 = vmatprep.subr.bf16.mxu0 0
        %3103 = vmatpush1.bf16.msra.mxu0 %v2221
        %3104 = vmatprep.subr.bf16.mxu0 0
        %3105 = vmatpush1.bf16.msra.mxu0 %v2222
        %3106 = vmatprep.subr.bf16.mxu0 0
        %3107 = vmatpush1.bf16.msra.mxu0 %v2223
        %3108 = vmatprep.subr.bf16.mxu0 0
        %3109 = vmatpush1.bf16.msra.mxu0 %v2224
        %3110 = vmatprep.subr.bf16.mxu0 0
        %3111 = vmatpush1.bf16.msra.mxu0 %v2225
        %3112 = vmatprep.subr.bf16.mxu0 0
        %3113 = vmatpush1.bf16.msra.mxu0 %v2226
        %3114 = vmatprep.subr.bf16.mxu0 0
        %3115 = vmatpush1.bf16.msra.mxu0 %v2227
        %3116 = vmatprep.subr.bf16.mxu0 0
        %3117 = vmatpush1.bf16.msra.mxu0 %v2228
        %3118 = vmatprep.subr.bf16.mxu0 0
        %3119 = vmatpush1.bf16.msra.mxu0 %v2229
        %3120 = vmatprep.subr.bf16.mxu0 0
        %3121 = vmatpush1.bf16.msra.mxu0 %v2230
        %3122 = vmatprep.subr.bf16.mxu0 0
        %3123 = vmatpush1.bf16.msra.mxu0 %v2231
        %3124 = vmatprep.subr.bf16.mxu0 0
        %3125 = vmatpush1.bf16.msra.mxu0 %v2232
        %3126 = vmatprep.subr.bf16.mxu0 0
        %3127 = vmatpush1.bf16.msra.mxu0 %v2233
        %3128 = vmatprep.subr.bf16.mxu0 0
        %3129 = vmatpush1.bf16.msra.mxu0 %v2234
        %3130 = vmatprep.mubr.bf16.mxu0 %v3095
        %3131 = vmatmul.mubr.bf16.gmra.mrb[0].mxu0 %v3094
        %v3132 = vpop.f32.mrb[0].mxu0
        %v3133 = vadd.f32 %v2154, %v3132
        %v3134 = vpop.f32.mrb[0].mxu0
        %v3135 = vpop.f32.mrb[0].mxu0
        %v3136 = vadd.f32 %v2154, %v3135
        %v3137 = vpop.f32.mrb[0].mxu0
        %3138 = vmatprep.mubr.bf16.mxu0 %v3097
        %3139 = vmatmul.mubr.bf16.gmra.mrb[0].mxu0 %v3096
        %v3140 = vpop.f32.mrb[0].mxu0
        %v3141 = vadd.f32 %v2154, %v3140
        %v3142 = vpop.f32.mrb[0].mxu0
        %v3143 = vpop.f32.mrb[0].mxu0
        %v3144 = vadd.f32 %v2154, %v3143
        %v3145 = vpop.f32.mrb[0].mxu0
        %3146 = vdwg.mxu0
        %v3147 = vtanh.pop %v3133
        %v3148 = vtanh.pop %v3136
        %v3149 = vtanh.pop %v3141
        %v3150 = vtanh.pop %v3144
        %v3151 = vmul.f32 %v3147, %v2307
        %v3152 = vmul.f32 %v3148, %v2307
        %v3153 = vmul.f32 %v3149, %v2307
        %v3154 = vmul.f32 %v3150, %v2307
        %v3155 = vadd.f32 %v3151, %v2315
        %v3156 = vadd.f32 %v3152, %v2315
        %v3157 = vadd.f32 %v3153, %v2315
        %v3158 = vadd.f32 %v3154, %v2315
        %v3159 = vrot.slane %v3155, 6
        %v3160 = vsel %vm1218, %v3159, %v3158
        %v3165 = vrot.slane %v3155, 1
        %v3166 = vrot.slane %v3156, 1
        %v3167 = vsel %vm1225, %v3165, %v3166
        %v3168 = vrot.slane %v3157, 1
        %v3169 = vsel %vm1225, %v3166, %v3168
        %v3170 = vrot.slane %v3160, 1
        %v3171 = vsel %vm1225, %v3168, %v3170
        %3172 = vrot.lane.b32.xlu0 %v3167, 64
        %v3173 = vpop.permute.xlu0 %3172
        %3174 = vrot.lane.b32.xlu0 %v3169, 64
        %v3175 = vpop.permute.xlu0 %3174
        %3176 = vrot.lane.b32.xlu0 %v3171, 64
        %v3177 = vpop.permute.xlu0 %3176
        %3178 = vrot.lane.b32.xlu0 %v3170, 64
        %v3179 = vpop.permute.xlu0 %3178
        %v3184 = vrot.slane %v3155, 2
        %v3185 = vrot.slane %v3156, 2
        %v3186 = vsel %vm1237, %v3184, %v3185
        %v3187 = vrot.slane %v3157, 2
        %v3188 = vsel %vm1237, %v3185, %v3187
        %v3189 = vrot.slane %v3160, 2
        %v3190 = vsel %vm1237, %v3187, %v3189
        %v3195 = vrot.slane %v3155, 3
        %v3196 = vrot.slane %v3156, 3
        %v3197 = vsel %vm1249, %v3195, %v3196
        %v3198 = vrot.slane %v3157, 3
        %v3199 = vsel %vm1249, %v3196, %v3198
        %v3200 = vrot.slane %v3160, 3
        %v3201 = vsel %vm1249, %v3198, %v3200
        %3202 = vrot.lane.b32.xlu0 %v3197, 64
        %v3203 = vpop.permute.xlu0 %3202
        %3204 = vrot.lane.b32.xlu0 %v3199, 64
        %v3205 = vpop.permute.xlu0 %3204
        %3206 = vrot.lane.b32.xlu0 %v3201, 64
        %v3207 = vpop.permute.xlu0 %3206
        %3208 = vrot.lane.b32.xlu0 %v3200, 64
        %v3209 = vpop.permute.xlu0 %3208
        %v3214 = vsel %vm2138, %v3155, %v3173
        %v3215 = vsel %vm2138, %v3156, %v3175
        %v3216 = vsel %vm2138, %v3157, %v3177
        %v3217 = vsel %vm2138, %v3158, %v3179
        %v3218 = vsel %vm2138, %v3186, %v3203
        %v3219 = vsel %vm2138, %v3188, %v3205
        %v3220 = vsel %vm2138, %v3190, %v3207
        %v3221 = vsel %vm2138, %v3189, %v3209
        %v3222 = vpack.c.bf16 %v3215, %v3214
        %v3223 = vpack.c.bf16 %v3219, %v3218
        %v3224 = vpack.c.bf16 %v3217, %v3216
        %v3225 = vpack.c.bf16 %v3221, %v3220
        %3226 = vmatprep.subr.bf16.mxu0 0
        %3227 = vmatpush1.bf16.msra.mxu0 %v2455
        %3228 = vmatprep.subr.bf16.mxu0 0
        %3229 = vmatpush1.bf16.msra.mxu0 %v2456
        %3230 = vmatprep.subr.bf16.mxu0 0
        %3231 = vmatpush1.bf16.msra.mxu0 %v2457
        %3232 = vmatprep.subr.bf16.mxu0 0
        %3233 = vmatpush1.bf16.msra.mxu0 %v2458
        %3234 = vmatprep.subr.bf16.mxu0 0
        %3235 = vmatpush1.bf16.msra.mxu0 %v2459
        %3236 = vmatprep.subr.bf16.mxu0 0
        %3237 = vmatpush1.bf16.msra.mxu0 %v2460
        %3238 = vmatprep.subr.bf16.mxu0 0
        %3239 = vmatpush1.bf16.msra.mxu0 %v2461
        %3240 = vmatprep.subr.bf16.mxu0 0
        %3241 = vmatpush1.bf16.msra.mxu0 %v2462
        %3242 = vmatprep.subr.bf16.mxu0 0
        %3243 = vmatpush1.bf16.msra.mxu0 %v2463
        %3244 = vmatprep.subr.bf16.mxu0 0
        %3245 = vmatpush1.bf16.msra.mxu0 %v2464
        %3246 = vmatprep.subr.bf16.mxu0 0
        %3247 = vmatpush1.bf16.msra.mxu0 %v2465
        %3248 = vmatprep.subr.bf16.mxu0 0
        %3249 = vmatpush1.bf16.msra.mxu0 %v2466
        %3250 = vmatprep.subr.bf16.mxu0 0
        %3251 = vmatpush1.bf16.msra.mxu0 %v2467
        %3252 = vmatprep.subr.bf16.mxu0 0
        %3253 = vmatpush1.bf16.msra.mxu0 %v2468
        %3254 = vmatprep.subr.bf16.mxu0 0
        %3255 = vmatpush1.bf16.msra.mxu0 %v2469
        %3256 = vmatprep.subr.bf16.mxu0 0
        %3257 = vmatpush1.bf16.msra.mxu0 %v2470
        %3258 = vmatprep.mubr.bf16.mxu0 %v3223
        %3259 = vmatmul.mubr.bf16.gmra.mrb[0].mxu0 %v3222
        %v3260 = vpop.f32.mrb[0].mxu0
        %v3261 = vadd.f32 %v2390, %v3260
        %v3262 = vpop.f32.mrb[0].mxu0
        %v3263 = vpop.f32.mrb[0].mxu0
        %v3264 = vadd.f32 %v2390, %v3263
        %v3265 = vpop.f32.mrb[0].mxu0
        %3266 = vmatprep.mubr.bf16.mxu0 %v3225
        %3267 = vmatmul.mubr.bf16.gmra.mrb[0].mxu0 %v3224
        %v3268 = vpop.f32.mrb[0].mxu0
        %v3269 = vadd.f32 %v2390, %v3268
        %v3270 = vpop.f32.mrb[0].mxu0
        %v3271 = vpop.f32.mrb[0].mxu0
        %v3272 = vadd.f32 %v2390, %v3271
        %v3273 = vpop.f32.mrb[0].mxu0
        %3274 = vdwg.mxu0
        %v3275 = vtanh.pop %v3261
        %v3276 = vtanh.pop %v3264
        %v3277 = vtanh.pop %v3269
        %v3278 = vtanh.pop %v3272
        %v3279 = vmul.f32 %v3275, %v2543
        %v3280 = vmul.f32 %v3276, %v2543
        %v3281 = vmul.f32 %v3277, %v2543
        %v3282 = vmul.f32 %v3278, %v2543
        %v3283 = vadd.f32 %v3279, %v2551
        %v3284 = vadd.f32 %v3280, %v2551
        %v3285 = vadd.f32 %v3281, %v2551
        %v3286 = vadd.f32 %v3282, %v2551
        %s3287 = scalar_lea.vmem %s707, 64
        %v3288 = vld [vmem:[%s3287] sm:$0xff]
        %v3289 = vld [vmem:[%s3287 + $0x8] sm:$0xff]
        %v3290 = vld [vmem:[%s3287 + $0x10] sm:$0xff]
        %v3291 = vld [vmem:[%s3287 + $0x18] sm:$0x3]
        %v3292 = vpack.c.bf16 %v3289, %v3288
        %v3293 = vpack.c.bf16 %v3291, %v3290
        %v3295 = vsel %vm1130, %v3292, 0
        %v3298 = vsel %vm1130, %v3293, 0
        %3300 = vmatprep.subr.bf16.mxu0 0
        %3301 = vmatpush1.bf16.msra.mxu0 %v1139
        %3302 = vmatprep.subr.bf16.mxu0 0
        %3303 = vmatpush1.bf16.msra.mxu0 0
        %3304 = vmatprep.subr.bf16.mxu0 0
        %3305 = vmatpush1.bf16.msra.mxu0 0
        %3306 = vmatprep.subr.bf16.mxu0 0
        %3307 = vmatpush1.bf16.msra.mxu0 0
        %3308 = vmatprep.subr.bf16.mxu0 0
        %3309 = vmatpush1.bf16.msra.mxu0 0
        %3310 = vmatprep.subr.bf16.mxu0 0
        %3311 = vmatpush1.bf16.msra.mxu0 0
        %3312 = vmatprep.subr.bf16.mxu0 0
        %3313 = vmatpush1.bf16.msra.mxu0 0
        %3314 = vmatprep.subr.bf16.mxu0 0
        %3315 = vmatpush1.bf16.msra.mxu0 0
        %3316 = vmatprep.subr.bf16.mxu0 0
        %3317 = vmatpush1.bf16.msra.mxu0 0
        %3318 = vmatprep.subr.bf16.mxu0 0
        %3319 = vmatpush1.bf16.msra.mxu0 0
        %3320 = vmatprep.subr.bf16.mxu0 0
        %3321 = vmatpush1.bf16.msra.mxu0 0
        %3322 = vmatprep.subr.bf16.mxu0 0
        %3323 = vmatpush1.bf16.msra.mxu0 0
        %3324 = vmatprep.subr.bf16.mxu0 0
        %3325 = vmatpush1.bf16.msra.mxu0 0
        %3326 = vmatprep.subr.bf16.mxu0 0
        %3327 = vmatpush1.bf16.msra.mxu0 0
        %3328 = vmatprep.subr.bf16.mxu0 0
        %3329 = vmatpush1.bf16.msra.mxu0 0
        %3330 = vmatprep.subr.bf16.mxu0 0
        %3331 = vmatpush1.bf16.msra.mxu0 0
        %3332 = vmatprep.mubr.bf16.mxu0 0
        %3333 = vmatmul.mubr.bf16.gmra.mrb[0].mxu0 %v3295
        %v3334 = vpop.f32.mrb[0].mxu0
        %v3335 = vadd.f32 %v1129, %v3334
        %v3336 = vpop.f32.mrb[0].mxu0
        %v3337 = vpop.f32.mrb[0].mxu0
        %v3338 = vadd.f32 %v1129, %v3337
        %v3339 = vpop.f32.mrb[0].mxu0
        %3340 = vmatprep.mubr.bf16.mxu0 0
        %3341 = vmatmul.mubr.bf16.gmra.mrb[0].mxu0 %v3298
        %v3342 = vpop.f32.mrb[0].mxu0
        %v3343 = vadd.f32 %v1129, %v3342
        %v3344 = vpop.f32.mrb[0].mxu0
        %v3345 = vpop.f32.mrb[0].mxu0
        %v3346 = vadd.f32 %v1129, %v3345
        %v3347 = vpop.f32.mrb[0].mxu0
        %3348 = vdwg.mxu0
        %vm3349 = vcmp.ge.f32.partialorder %v3335, 0.0
        %vm3350 = vcmp.ge.f32.partialorder %v3338, 0.0
        %vm3351 = vcmp.ge.f32.partialorder %v3343, 0.0
        %vm3352 = vcmp.ge.f32.partialorder %v3346, 0.0
        %v3353 = vmul.f32 %v3335, 0.01
        %v3354 = vmul.f32 %v3338, 0.01
        %v3355 = vmul.f32 %v3343, 0.01
        %v3356 = vmul.f32 %v3346, 0.01
        %v3357 = vsel %vm3349, %v3335, %v3353
        %v3358 = vsel %vm3350, %v3338, %v3354
        %v3359 = vsel %vm3351, %v3343, %v3355
        %v3360 = vsel %vm3352, %v3346, %v3356
        %v3361 = vmul.f32 %v3357, %v1205
        %v3362 = vmul.f32 %v3358, %v1205
        %v3363 = vmul.f32 %v3359, %v1205
        %v3364 = vmul.f32 %v3360, %v1205
        %v3365 = vadd.f32 %v3361, %v1213
        %v3366 = vadd.f32 %v3362, %v1213
        %v3367 = vadd.f32 %v3363, %v1213
        %v3368 = vadd.f32 %v3364, %v1213
        %v3369 = vrot.slane %v3365, 6
        %v3370 = vsel %vm1218, %v3369, %v3368
        %v3375 = vrot.slane %v3365, 1
        %v3376 = vrot.slane %v3366, 1
        %v3377 = vsel %vm1225, %v3375, %v3376
        %v3378 = vrot.slane %v3367, 1
        %v3379 = vsel %vm1225, %v3376, %v3378
        %v3380 = vrot.slane %v3370, 1
        %v3381 = vsel %vm1225, %v3378, %v3380
        %v3386 = vrot.slane %v3365, 2
        %v3387 = vrot.slane %v3366, 2
        %v3388 = vsel %vm1237, %v3386, %v3387
        %v3389 = vrot.slane %v3367, 2
        %v3390 = vsel %vm1237, %v3387, %v3389
        %v3391 = vrot.slane %v3370, 2
        %v3392 = vsel %vm1237, %v3389, %v3391
        %v3397 = vrot.slane %v3365, 3
        %v3398 = vrot.slane %v3366, 3
        %v3399 = vsel %vm1249, %v3397, %v3398
        %v3400 = vrot.slane %v3367, 3
        %v3401 = vsel %vm1249, %v3398, %v3400
        %v3402 = vrot.slane %v3370, 3
        %v3403 = vsel %vm1249, %v3400, %v3402
        %v3408 = vpack.c.bf16 %v3366, %v3365
        %v3409 = vpack.c.bf16 %v3379, %v3377
        %v3410 = vpack.c.bf16 %v3390, %v3388
        %v3411 = vpack.c.bf16 %v3401, %v3399
        %v3412 = vpack.c.bf16 %v3368, %v3367
        %v3413 = vpack.c.bf16 %v3380, %v3381
        %v3414 = vpack.c.bf16 %v3391, %v3392
        %v3415 = vpack.c.bf16 %v3402, %v3403
        %3416 = vmatprep.subr.bf16.mxu0 0
        %3417 = vmatpush1.bf16.msra.mxu0 %v1401
        %3418 = vmatprep.subr.bf16.mxu0 0
        %3419 = vmatpush1.bf16.msra.mxu0 %v1402
        %3420 = vmatprep.subr.bf16.mxu0 0
        %3421 = vmatpush1.bf16.msra.mxu0 %v1403
        %3422 = vmatprep.subr.bf16.mxu0 0
        %3423 = vmatpush1.bf16.msra.mxu0 %v1404
        %3424 = vmatprep.subr.bf16.mxu0 0
        %3425 = vmatpush1.bf16.msra.mxu0 %v1405
        %3426 = vmatprep.subr.bf16.mxu0 0
        %3427 = vmatpush1.bf16.msra.mxu0 %v1406
        %3428 = vmatprep.subr.bf16.mxu0 0
        %3429 = vmatpush1.bf16.msra.mxu0 %v1407
        %3430 = vmatprep.subr.bf16.mxu0 0
        %3431 = vmatpush1.bf16.msra.mxu0 %v1408
        %3432 = vmatprep.subr.bf16.mxu0 0
        %3433 = vmatpush1.bf16.msra.mxu0 %v1409
        %3434 = vmatprep.subr.bf16.mxu0 0
        %3435 = vmatpush1.bf16.msra.mxu0 %v1410
        %3436 = vmatprep.subr.bf16.mxu0 0
        %3437 = vmatpush1.bf16.msra.mxu0 %v1411
        %3438 = vmatprep.subr.bf16.mxu0 0
        %3439 = vmatpush1.bf16.msra.mxu0 %v1412
        %3440 = vmatprep.subr.bf16.mxu0 0
        %3441 = vmatpush1.bf16.msra.mxu0 %v1413
        %3442 = vmatprep.subr.bf16.mxu0 0
        %3443 = vmatpush1.bf16.msra.mxu0 %v1414
        %3444 = vmatprep.subr.bf16.mxu0 0
        %3445 = vmatpush1.bf16.msra.mxu0 %v1415
        %3446 = vmatprep.subr.bf16.mxu0 0
        %3447 = vmatpush1.bf16.msra.mxu0 %v1416
        %3448 = vmatprep.mubr.bf16.mxu0 %v3409
        %3449 = vmatmul.mubr.bf16.gmra.mrb[0].mxu0 %v3408
        %v3450 = vpop.f32.mrb[0].mxu0
        %v3451 = vadd.f32 %v1272, %v3450
        %v3452 = vpop.f32.mrb[0].mxu0
        %v3453 = vpop.f32.mrb[0].mxu0
        %v3454 = vadd.f32 %v1272, %v3453
        %v3455 = vpop.f32.mrb[0].mxu0
        %3456 = vmatprep.mubr.bf16.mxu0 %v3413
        %3457 = vmatmul.mubr.bf16.gmra.mrb[0].mxu0 %v3412
        %v3458 = vpop.f32.mrb[0].mxu0
        %v3459 = vadd.f32 %v1272, %v3458
        %v3460 = vpop.f32.mrb[0].mxu0
        %v3461 = vpop.f32.mrb[0].mxu0
        %v3462 = vadd.f32 %v1272, %v3461
        %v3463 = vpop.f32.mrb[0].mxu0
        %3464 = vdwg.mxu0
        %3465 = vmatprep.subr.bf16.mxu0 0
        %3466 = vmatpush1.bf16.msra.mxu0 %v1417
        %3467 = vmatprep.subr.bf16.mxu0 0
        %3468 = vmatpush1.bf16.msra.mxu0 %v1418
        %3469 = vmatprep.subr.bf16.mxu0 0
        %3470 = vmatpush1.bf16.msra.mxu0 %v1419
        %3471 = vmatprep.subr.bf16.mxu0 0
        %3472 = vmatpush1.bf16.msra.mxu0 %v1420
        %3473 = vmatprep.subr.bf16.mxu0 0
        %3474 = vmatpush1.bf16.msra.mxu0 %v1421
        %3475 = vmatprep.subr.bf16.mxu0 0
        %3476 = vmatpush1.bf16.msra.mxu0 %v1422
        %3477 = vmatprep.subr.bf16.mxu0 0
        %3478 = vmatpush1.bf16.msra.mxu0 %v1423
        %3479 = vmatprep.subr.bf16.mxu0 0
        %3480 = vmatpush1.bf16.msra.mxu0 %v1424
        %3481 = vmatprep.subr.bf16.mxu0 0
        %3482 = vmatpush1.bf16.msra.mxu0 %v1425
        %3483 = vmatprep.subr.bf16.mxu0 0
        %3484 = vmatpush1.bf16.msra.mxu0 %v1426
        %3485 = vmatprep.subr.bf16.mxu0 0
        %3486 = vmatpush1.bf16.msra.mxu0 %v1427
        %3487 = vmatprep.subr.bf16.mxu0 0
        %3488 = vmatpush1.bf16.msra.mxu0 %v1428
        %3489 = vmatprep.subr.bf16.mxu0 0
        %3490 = vmatpush1.bf16.msra.mxu0 %v1429
        %3491 = vmatprep.subr.bf16.mxu0 0
        %3492 = vmatpush1.bf16.msra.mxu0 %v1430
        %3493 = vmatprep.subr.bf16.mxu0 0
        %3494 = vmatpush1.bf16.msra.mxu0 %v1431
        %3495 = vmatprep.subr.bf16.mxu0 0
        %3496 = vmatpush1.bf16.msra.mxu0 %v1432
        %3497 = vmatprep.mubr.bf16.mxu0 %v3411
        %3498 = vmatmul.mubr.bf16.gmra.mrb[0].mxu0 %v3410
        %v3499 = vpop.f32.mrb[0].mxu0
        %v3500 = vadd.f32 %v3451, %v3499
        %v3501 = vpop.f32.mrb[0].mxu0
        %v3502 = vpop.f32.mrb[0].mxu0
        %v3503 = vadd.f32 %v3454, %v3502
        %v3504 = vpop.f32.mrb[0].mxu0
        %3505 = vmatprep.mubr.bf16.mxu0 %v3415
        %3506 = vmatmul.mubr.bf16.gmra.mrb[0].mxu0 %v3414
        %v3507 = vpop.f32.mrb[0].mxu0
        %v3508 = vadd.f32 %v3459, %v3507
        %v3509 = vpop.f32.mrb[0].mxu0
        %v3510 = vpop.f32.mrb[0].mxu0
        %v3511 = vadd.f32 %v3462, %v3510
        %v3512 = vpop.f32.mrb[0].mxu0
        %3513 = vdwg.mxu0
        %vm3514 = vcmp.ge.f32.partialorder %v3500, 0.0
        %vm3515 = vcmp.ge.f32.partialorder %v3503, 0.0
        %vm3516 = vcmp.ge.f32.partialorder %v3508, 0.0
        %vm3517 = vcmp.ge.f32.partialorder %v3511, 0.0
        %v3518 = vmul.f32 %v3500, 0.01
        %v3519 = vmul.f32 %v3503, 0.01
        %v3520 = vmul.f32 %v3508, 0.01
        %v3521 = vmul.f32 %v3511, 0.01
        %v3522 = vsel %vm3514, %v3500, %v3518
        %v3523 = vsel %vm3515, %v3503, %v3519
        %v3524 = vsel %vm3516, %v3508, %v3520
        %v3525 = vsel %vm3517, %v3511, %v3521
        %v3526 = vmul.f32 %v3522, %v1578
        %v3527 = vmul.f32 %v3523, %v1578
        %v3528 = vmul.f32 %v3524, %v1578
        %v3529 = vmul.f32 %v3525, %v1578
        %v3530 = vadd.f32 %v3526, %v1586
        %v3531 = vadd.f32 %v3527, %v1586
        %v3532 = vadd.f32 %v3528, %v1586
        %v3533 = vadd.f32 %v3529, %v1586
        %v3534 = vrot.slane %v3530, 6
        %v3535 = vsel %vm1218, %v3534, %v3533
        %v3540 = vrot.slane %v3530, 1
        %v3541 = vrot.slane %v3531, 1
        %v3542 = vsel %vm1225, %v3540, %v3541
        %v3543 = vrot.slane %v3532, 1
        %v3544 = vsel %vm1225, %v3541, %v3543
        %v3545 = vrot.slane %v3535, 1
        %v3546 = vsel %vm1225, %v3543, %v3545
        %v3551 = vrot.slane %v3530, 2
        %v3552 = vrot.slane %v3531, 2
        %v3553 = vsel %vm1237, %v3551, %v3552
        %v3554 = vrot.slane %v3532, 2
        %v3555 = vsel %vm1237, %v3552, %v3554
        %v3556 = vrot.slane %v3535, 2
        %v3557 = vsel %vm1237, %v3554, %v3556
        %v3562 = vrot.slane %v3530, 3
        %v3563 = vrot.slane %v3531, 3
        %v3564 = vsel %vm1249, %v3562, %v3563
        %v3565 = vrot.slane %v3532, 3
        %v3566 = vsel %vm1249, %v3563, %v3565
        %v3567 = vrot.slane %v3535, 3
        %v3568 = vsel %vm1249, %v3565, %v3567
        %v3573 = vpack.c.bf16 %v3531, %v3530
        %v3574 = vpack.c.bf16 %v3544, %v3542
        %v3575 = vpack.c.bf16 %v3555, %v3553
        %v3576 = vpack.c.bf16 %v3566, %v3564
        %v3577 = vpack.c.bf16 %v3533, %v3532
        %v3578 = vpack.c.bf16 %v3545, %v3546
        %v3579 = vpack.c.bf16 %v3556, %v3557
        %v3580 = vpack.c.bf16 %v3567, %v3568
        %3581 = vmatprep.subr.bf16.mxu0 0
        %3582 = vmatpush1.bf16.msra.mxu0 %v1770
        %3583 = vmatprep.subr.bf16.mxu0 0
        %3584 = vmatpush1.bf16.msra.mxu0 %v1771
        %3585 = vmatprep.subr.bf16.mxu0 0
        %3586 = vmatpush1.bf16.msra.mxu0 %v1772
        %3587 = vmatprep.subr.bf16.mxu0 0
        %3588 = vmatpush1.bf16.msra.mxu0 %v1773
        %3589 = vmatprep.subr.bf16.mxu0 0
        %3590 = vmatpush1.bf16.msra.mxu0 %v1774
        %3591 = vmatprep.subr.bf16.mxu0 0
        %3592 = vmatpush1.bf16.msra.mxu0 %v1775
        %3593 = vmatprep.subr.bf16.mxu0 0
        %3594 = vmatpush1.bf16.msra.mxu0 %v1776
        %3595 = vmatprep.subr.bf16.mxu0 0
        %3596 = vmatpush1.bf16.msra.mxu0 %v1777
        %3597 = vmatprep.subr.bf16.mxu0 0
        %3598 = vmatpush1.bf16.msra.mxu0 %v1778
        %3599 = vmatprep.subr.bf16.mxu0 0
        %3600 = vmatpush1.bf16.msra.mxu0 %v1779
        %3601 = vmatprep.subr.bf16.mxu0 0
        %3602 = vmatpush1.bf16.msra.mxu0 %v1780
        %3603 = vmatprep.subr.bf16.mxu0 0
        %3604 = vmatpush1.bf16.msra.mxu0 %v1781
        %3605 = vmatprep.subr.bf16.mxu0 0
        %3606 = vmatpush1.bf16.msra.mxu0 %v1782
        %3607 = vmatprep.subr.bf16.mxu0 0
        %3608 = vmatpush1.bf16.msra.mxu0 %v1783
        %3609 = vmatprep.subr.bf16.mxu0 0
        %3610 = vmatpush1.bf16.msra.mxu0 %v1784
        %3611 = vmatprep.subr.bf16.mxu0 0
        %3612 = vmatpush1.bf16.msra.mxu0 %v1785
        %3613 = vmatprep.mubr.bf16.mxu0 %v3574
        %3614 = vmatmul.mubr.bf16.gmra.mrb[0].mxu0 %v3573
        %v3615 = vpop.f32.mrb[0].mxu0
        %v3616 = vadd.f32 %v1641, %v3615
        %v3617 = vpop.f32.mrb[0].mxu0
        %v3618 = vpop.f32.mrb[0].mxu0
        %v3619 = vadd.f32 %v1641, %v3618
        %v3620 = vpop.f32.mrb[0].mxu0
        %3621 = vmatprep.mubr.bf16.mxu0 %v3578
        %3622 = vmatmul.mubr.bf16.gmra.mrb[0].mxu0 %v3577
        %v3623 = vpop.f32.mrb[0].mxu0
        %v3624 = vadd.f32 %v1641, %v3623
        %v3625 = vpop.f32.mrb[0].mxu0
        %v3626 = vpop.f32.mrb[0].mxu0
        %v3627 = vadd.f32 %v1641, %v3626
        %v3628 = vpop.f32.mrb[0].mxu0
        %3629 = vdwg.mxu0
        %3630 = vmatprep.subr.bf16.mxu0 0
        %3631 = vmatpush1.bf16.msra.mxu0 %v1786
        %3632 = vmatprep.subr.bf16.mxu0 0
        %3633 = vmatpush1.bf16.msra.mxu0 %v1787
        %3634 = vmatprep.subr.bf16.mxu0 0
        %3635 = vmatpush1.bf16.msra.mxu0 %v1788
        %3636 = vmatprep.subr.bf16.mxu0 0
        %3637 = vmatpush1.bf16.msra.mxu0 %v1789
        %3638 = vmatprep.subr.bf16.mxu0 0
        %3639 = vmatpush1.bf16.msra.mxu0 %v1790
        %3640 = vmatprep.subr.bf16.mxu0 0
        %3641 = vmatpush1.bf16.msra.mxu0 %v1791
        %3642 = vmatprep.subr.bf16.mxu0 0
        %3643 = vmatpush1.bf16.msra.mxu0 %v1792
        %3644 = vmatprep.subr.bf16.mxu0 0
        %3645 = vmatpush1.bf16.msra.mxu0 %v1793
        %3646 = vmatprep.subr.bf16.mxu0 0
        %3647 = vmatpush1.bf16.msra.mxu0 %v1794
        %3648 = vmatprep.subr.bf16.mxu0 0
        %3649 = vmatpush1.bf16.msra.mxu0 %v1795
        %3650 = vmatprep.subr.bf16.mxu0 0
        %3651 = vmatpush1.bf16.msra.mxu0 %v1796
        %3652 = vmatprep.subr.bf16.mxu0 0
        %3653 = vmatpush1.bf16.msra.mxu0 %v1797
        %3654 = vmatprep.subr.bf16.mxu0 0
        %3655 = vmatpush1.bf16.msra.mxu0 %v1798
        %3656 = vmatprep.subr.bf16.mxu0 0
        %3657 = vmatpush1.bf16.msra.mxu0 %v1799
        %3658 = vmatprep.subr.bf16.mxu0 0
        %3659 = vmatpush1.bf16.msra.mxu0 %v1800
        %3660 = vmatprep.subr.bf16.mxu0 0
        %3661 = vmatpush1.bf16.msra.mxu0 %v1801
        %3662 = vmatprep.mubr.bf16.mxu0 %v3576
        %3663 = vmatmul.mubr.bf16.gmra.mrb[0].mxu0 %v3575
        %v3664 = vpop.f32.mrb[0].mxu0
        %v3665 = vadd.f32 %v3616, %v3664
        %v3666 = vpop.f32.mrb[0].mxu0
        %v3667 = vpop.f32.mrb[0].mxu0
        %v3668 = vadd.f32 %v3619, %v3667
        %v3669 = vpop.f32.mrb[0].mxu0
        %3670 = vmatprep.mubr.bf16.mxu0 %v3580
        %3671 = vmatmul.mubr.bf16.gmra.mrb[0].mxu0 %v3579
        %v3672 = vpop.f32.mrb[0].mxu0
        %v3673 = vadd.f32 %v3624, %v3672
        %v3674 = vpop.f32.mrb[0].mxu0
        %v3675 = vpop.f32.mrb[0].mxu0
        %v3676 = vadd.f32 %v3627, %v3675
        %v3677 = vpop.f32.mrb[0].mxu0
        %3678 = vdwg.mxu0
        %vm3679 = vcmp.ge.f32.partialorder %v3665, 0.0
        %vm3680 = vcmp.ge.f32.partialorder %v3668, 0.0
        %vm3681 = vcmp.ge.f32.partialorder %v3673, 0.0
        %vm3682 = vcmp.ge.f32.partialorder %v3676, 0.0
        %v3683 = vmul.f32 %v3665, 0.01
        %v3684 = vmul.f32 %v3668, 0.01
        %v3685 = vmul.f32 %v3673, 0.01
        %v3686 = vmul.f32 %v3676, 0.01
        %v3687 = vsel %vm3679, %v3665, %v3683
        %v3688 = vsel %vm3680, %v3668, %v3684
        %v3689 = vsel %vm3681, %v3673, %v3685
        %v3690 = vsel %vm3682, %v3676, %v3686
        %v3691 = vmul.f32 %v3687, %v1947
        %v3692 = vmul.f32 %v3688, %v1947
        %v3693 = vmul.f32 %v3689, %v1947
        %v3694 = vmul.f32 %v3690, %v1947
        %v3695 = vadd.f32 %v3691, %v1955
        %v3696 = vadd.f32 %v3692, %v1955
        %v3697 = vadd.f32 %v3693, %v1955
        %v3698 = vadd.f32 %v3694, %v1955
        %v3699 = vpack.c.bf16 %v3696, %v3695
        %v3700 = vpack.c.bf16 %v3698, %v3697
        %3701 = vmatprep.subr.bf16.mxu0 0
        %3702 = vmatpush1.bf16.msra.mxu0 %v1998
        %3703 = vmatprep.subr.bf16.mxu0 0
        %3704 = vmatpush1.bf16.msra.mxu0 %v1999
        %3705 = vmatprep.subr.bf16.mxu0 0
        %3706 = vmatpush1.bf16.msra.mxu0 %v2000
        %3707 = vmatprep.subr.bf16.mxu0 0
        %3708 = vmatpush1.bf16.msra.mxu0 %v2001
        %3709 = vmatprep.subr.bf16.mxu0 0
        %3710 = vmatpush1.bf16.msra.mxu0 %v2002
        %3711 = vmatprep.subr.bf16.mxu0 0
        %3712 = vmatpush1.bf16.msra.mxu0 %v2003
        %3713 = vmatprep.subr.bf16.mxu0 0
        %3714 = vmatpush1.bf16.msra.mxu0 %v2004
        %3715 = vmatprep.subr.bf16.mxu0 0
        %3716 = vmatpush1.bf16.msra.mxu0 %v2005
        %3717 = vmatprep.subr.bf16.mxu0 0
        %3718 = vmatpush1.bf16.msra.mxu0 0
        %3719 = vmatprep.subr.bf16.mxu0 0
        %3720 = vmatpush1.bf16.msra.mxu0 0
        %3721 = vmatprep.subr.bf16.mxu0 0
        %3722 = vmatpush1.bf16.msra.mxu0 0
        %3723 = vmatprep.subr.bf16.mxu0 0
        %3724 = vmatpush1.bf16.msra.mxu0 0
        %3725 = vmatprep.subr.bf16.mxu0 0
        %3726 = vmatpush1.bf16.msra.mxu0 0
        %3727 = vmatprep.subr.bf16.mxu0 0
        %3728 = vmatpush1.bf16.msra.mxu0 0
        %3729 = vmatprep.subr.bf16.mxu0 0
        %3730 = vmatpush1.bf16.msra.mxu0 0
        %3731 = vmatprep.subr.bf16.mxu0 0
        %3732 = vmatpush1.bf16.msra.mxu0 0
        %3733 = vmatprep.mubr.bf16.mxu0 0
        %3734 = vmatmul.mubr.bf16.gmra.mrb[0].mxu0 %v3699
        %v3735 = vpop.f32.mrb[0].mxu0
        %v3736 = vadd.f32 %v1965, %v3735
        %v3737 = vpop.f32.mrb[0].mxu0
        %v3738 = vpop.f32.mrb[0].mxu0
        %v3739 = vadd.f32 %v1965, %v3738
        %v3740 = vpop.f32.mrb[0].mxu0
        %3741 = vmatprep.mubr.bf16.mxu0 0
        %3742 = vmatmul.mubr.bf16.gmra.mrb[0].mxu0 %v3700
        %v3743 = vpop.f32.mrb[0].mxu0
        %v3744 = vadd.f32 %v1965, %v3743
        %v3745 = vpop.f32.mrb[0].mxu0
        %v3746 = vpop.f32.mrb[0].mxu0
        %v3747 = vadd.f32 %v1965, %v3746
        %v3748 = vpop.f32.mrb[0].mxu0
        %3749 = vdwg.mxu0
        %v3750 = vtanh.pop %v3736
        %v3751 = vtanh.pop %v3739
        %v3752 = vtanh.pop %v3744
        %v3753 = vtanh.pop %v3747
        %v3754 = vmul.f32 %v3750, %v2070
        %v3755 = vmul.f32 %v3751, %v2070
        %v3756 = vmul.f32 %v3752, %v2070
        %v3757 = vmul.f32 %v3753, %v2070
        %v3758 = vadd.f32 %v3754, %v2078
        %v3759 = vadd.f32 %v3755, %v2078
        %v3760 = vadd.f32 %v3756, %v2078
        %v3761 = vadd.f32 %v3757, %v2078
        %v3762 = vrot.slane %v3758, 6
        %v3763 = vsel %vm1218, %v3762, %v3761
        %v3768 = vrot.slane %v3758, 1
        %v3769 = vrot.slane %v3759, 1
        %v3770 = vsel %vm1225, %v3768, %v3769
        %v3771 = vrot.slane %v3760, 1
        %v3772 = vsel %vm1225, %v3769, %v3771
        %v3773 = vrot.slane %v3763, 1
        %v3774 = vsel %vm1225, %v3771, %v3773
        %3775 = vrot.lane.b32.xlu0 %v3770, 64
        %v3776 = vpop.permute.xlu0 %3775
        %3777 = vrot.lane.b32.xlu0 %v3772, 64
        %v3778 = vpop.permute.xlu0 %3777
        %3779 = vrot.lane.b32.xlu0 %v3774, 64
        %v3780 = vpop.permute.xlu0 %3779
        %3781 = vrot.lane.b32.xlu0 %v3773, 64
        %v3782 = vpop.permute.xlu0 %3781
        %v3787 = vrot.slane %v3758, 2
        %v3788 = vrot.slane %v3759, 2
        %v3789 = vsel %vm1237, %v3787, %v3788
        %v3790 = vrot.slane %v3760, 2
        %v3791 = vsel %vm1237, %v3788, %v3790
        %v3792 = vrot.slane %v3763, 2
        %v3793 = vsel %vm1237, %v3790, %v3792
        %v3798 = vrot.slane %v3758, 3
        %v3799 = vrot.slane %v3759, 3
        %v3800 = vsel %vm1249, %v3798, %v3799
        %v3801 = vrot.slane %v3760, 3
        %v3802 = vsel %vm1249, %v3799, %v3801
        %v3803 = vrot.slane %v3763, 3
        %v3804 = vsel %vm1249, %v3801, %v3803
        %3805 = vrot.lane.b32.xlu0 %v3800, 64
        %v3806 = vpop.permute.xlu0 %3805
        %3807 = vrot.lane.b32.xlu0 %v3802, 64
        %v3808 = vpop.permute.xlu0 %3807
        %3809 = vrot.lane.b32.xlu0 %v3804, 64
        %v3810 = vpop.permute.xlu0 %3809
        %3811 = vrot.lane.b32.xlu0 %v3803, 64
        %v3812 = vpop.permute.xlu0 %3811
        %v3817 = vsel %vm2138, %v3758, %v3776
        %v3818 = vsel %vm2138, %v3759, %v3778
        %v3819 = vsel %vm2138, %v3760, %v3780
        %v3820 = vsel %vm2138, %v3761, %v3782
        %v3821 = vsel %vm2138, %v3789, %v3806
        %v3822 = vsel %vm2138, %v3791, %v3808
        %v3823 = vsel %vm2138, %v3793, %v3810
        %v3824 = vsel %vm2138, %v3792, %v3812
        %v3825 = vpack.c.bf16 %v3818, %v3817
        %v3826 = vpack.c.bf16 %v3822, %v3821
        %v3827 = vpack.c.bf16 %v3820, %v3819
        %v3828 = vpack.c.bf16 %v3824, %v3823
        %3829 = vmatprep.subr.bf16.mxu0 0
        %3830 = vmatpush1.bf16.msra.mxu0 %v2219
        %3831 = vmatprep.subr.bf16.mxu0 0
        %3832 = vmatpush1.bf16.msra.mxu0 %v2220
        %3833 = vmatprep.subr.bf16.mxu0 0
        %3834 = vmatpush1.bf16.msra.mxu0 %v2221
        %3835 = vmatprep.subr.bf16.mxu0 0
        %3836 = vmatpush1.bf16.msra.mxu0 %v2222
        %3837 = vmatprep.subr.bf16.mxu0 0
        %3838 = vmatpush1.bf16.msra.mxu0 %v2223
        %3839 = vmatprep.subr.bf16.mxu0 0
        %3840 = vmatpush1.bf16.msra.mxu0 %v2224
        %3841 = vmatprep.subr.bf16.mxu0 0
        %3842 = vmatpush1.bf16.msra.mxu0 %v2225
        %3843 = vmatprep.subr.bf16.mxu0 0
        %3844 = vmatpush1.bf16.msra.mxu0 %v2226
        %3845 = vmatprep.subr.bf16.mxu0 0
        %3846 = vmatpush1.bf16.msra.mxu0 %v2227
        %3847 = vmatprep.subr.bf16.mxu0 0
        %3848 = vmatpush1.bf16.msra.mxu0 %v2228
        %3849 = vmatprep.subr.bf16.mxu0 0
        %3850 = vmatpush1.bf16.msra.mxu0 %v2229
        %3851 = vmatprep.subr.bf16.mxu0 0
        %3852 = vmatpush1.bf16.msra.mxu0 %v2230
        %3853 = vmatprep.subr.bf16.mxu0 0
        %3854 = vmatpush1.bf16.msra.mxu0 %v2231
        %3855 = vmatprep.subr.bf16.mxu0 0
        %3856 = vmatpush1.bf16.msra.mxu0 %v2232
        %3857 = vmatprep.subr.bf16.mxu0 0
        %3858 = vmatpush1.bf16.msra.mxu0 %v2233
        %3859 = vmatprep.subr.bf16.mxu0 0
        %3860 = vmatpush1.bf16.msra.mxu0 %v2234
        %3861 = vmatprep.mubr.bf16.mxu0 %v3826
        %3862 = vmatmul.mubr.bf16.gmra.mrb[0].mxu0 %v3825
        %v3863 = vpop.f32.mrb[0].mxu0
        %v3864 = vadd.f32 %v2154, %v3863
        %v3865 = vpop.f32.mrb[0].mxu0
        %v3866 = vpop.f32.mrb[0].mxu0
        %v3867 = vadd.f32 %v2154, %v3866
        %v3868 = vpop.f32.mrb[0].mxu0
        %3869 = vmatprep.mubr.bf16.mxu0 %v3828
        %3870 = vmatmul.mubr.bf16.gmra.mrb[0].mxu0 %v3827
        %v3871 = vpop.f32.mrb[0].mxu0
        %v3872 = vadd.f32 %v2154, %v3871
        %v3873 = vpop.f32.mrb[0].mxu0
        %v3874 = vpop.f32.mrb[0].mxu0
        %v3875 = vadd.f32 %v2154, %v3874
        %v3876 = vpop.f32.mrb[0].mxu0
        %3877 = vdwg.mxu0
        %v3878 = vtanh.pop %v3864
        %v3879 = vtanh.pop %v3867
        %v3880 = vtanh.pop %v3872
        %v3881 = vtanh.pop %v3875
        %v3882 = vmul.f32 %v3878, %v2307
        %v3883 = vmul.f32 %v3879, %v2307
        %v3884 = vmul.f32 %v3880, %v2307
        %v3885 = vmul.f32 %v3881, %v2307
        %v3886 = vadd.f32 %v3882, %v2315
        %v3887 = vadd.f32 %v3883, %v2315
        %v3888 = vadd.f32 %v3884, %v2315
        %v3889 = vadd.f32 %v3885, %v2315
        %v3890 = vrot.slane %v3886, 6
        %v3891 = vsel %vm1218, %v3890, %v3889
        %v3896 = vrot.slane %v3886, 1
        %v3897 = vrot.slane %v3887, 1
        %v3898 = vsel %vm1225, %v3896, %v3897
        %v3899 = vrot.slane %v3888, 1
        %v3900 = vsel %vm1225, %v3897, %v3899
        %v3901 = vrot.slane %v3891, 1
        %v3902 = vsel %vm1225, %v3899, %v3901
        %3903 = vrot.lane.b32.xlu0 %v3898, 64
        %v3904 = vpop.permute.xlu0 %3903
        %3905 = vrot.lane.b32.xlu0 %v3900, 64
        %v3906 = vpop.permute.xlu0 %3905
        %3907 = vrot.lane.b32.xlu0 %v3902, 64
        %v3908 = vpop.permute.xlu0 %3907
        %3909 = vrot.lane.b32.xlu0 %v3901, 64
        %v3910 = vpop.permute.xlu0 %3909
        %v3915 = vrot.slane %v3886, 2
        %v3916 = vrot.slane %v3887, 2
        %v3917 = vsel %vm1237, %v3915, %v3916
        %v3918 = vrot.slane %v3888, 2
        %v3919 = vsel %vm1237, %v3916, %v3918
        %v3920 = vrot.slane %v3891, 2
        %v3921 = vsel %vm1237, %v3918, %v3920
        %v3926 = vrot.slane %v3886, 3
        %v3927 = vrot.slane %v3887, 3
        %v3928 = vsel %vm1249, %v3926, %v3927
        %v3929 = vrot.slane %v3888, 3
        %v3930 = vsel %vm1249, %v3927, %v3929
        %v3931 = vrot.slane %v3891, 3
        %v3932 = vsel %vm1249, %v3929, %v3931
        %3933 = vrot.lane.b32.xlu0 %v3928, 64
        %v3934 = vpop.permute.xlu0 %3933
        %3935 = vrot.lane.b32.xlu0 %v3930, 64
        %v3936 = vpop.permute.xlu0 %3935
        %3937 = vrot.lane.b32.xlu0 %v3932, 64
        %v3938 = vpop.permute.xlu0 %3937
        %3939 = vrot.lane.b32.xlu0 %v3931, 64
        %v3940 = vpop.permute.xlu0 %3939
        %v3945 = vsel %vm2138, %v3886, %v3904
        %v3946 = vsel %vm2138, %v3887, %v3906
        %v3947 = vsel %vm2138, %v3888, %v3908
        %v3948 = vsel %vm2138, %v3889, %v3910
        %v3949 = vsel %vm2138, %v3917, %v3934
        %v3950 = vsel %vm2138, %v3919, %v3936
        %v3951 = vsel %vm2138, %v3921, %v3938
        %v3952 = vsel %vm2138, %v3920, %v3940
        %v3953 = vpack.c.bf16 %v3946, %v3945
        %v3954 = vpack.c.bf16 %v3950, %v3949
        %v3955 = vpack.c.bf16 %v3948, %v3947
        %v3956 = vpack.c.bf16 %v3952, %v3951
        %3957 = vmatprep.subr.bf16.mxu0 0
        %3958 = vmatpush1.bf16.msra.mxu0 %v2455
        %3959 = vmatprep.subr.bf16.mxu0 0
        %3960 = vmatpush1.bf16.msra.mxu0 %v2456
        %3961 = vmatprep.subr.bf16.mxu0 0
        %3962 = vmatpush1.bf16.msra.mxu0 %v2457
        %3963 = vmatprep.subr.bf16.mxu0 0
        %3964 = vmatpush1.bf16.msra.mxu0 %v2458
        %3965 = vmatprep.subr.bf16.mxu0 0
        %3966 = vmatpush1.bf16.msra.mxu0 %v2459
        %3967 = vmatprep.subr.bf16.mxu0 0
        %3968 = vmatpush1.bf16.msra.mxu0 %v2460
        %3969 = vmatprep.subr.bf16.mxu0 0
        %3970 = vmatpush1.bf16.msra.mxu0 %v2461
        %3971 = vmatprep.subr.bf16.mxu0 0
        %3972 = vmatpush1.bf16.msra.mxu0 %v2462
        %3973 = vmatprep.subr.bf16.mxu0 0
        %3974 = vmatpush1.bf16.msra.mxu0 %v2463
        %3975 = vmatprep.subr.bf16.mxu0 0
        %3976 = vmatpush1.bf16.msra.mxu0 %v2464
        %3977 = vmatprep.subr.bf16.mxu0 0
        %3978 = vmatpush1.bf16.msra.mxu0 %v2465
        %3979 = vmatprep.subr.bf16.mxu0 0
        %3980 = vmatpush1.bf16.msra.mxu0 %v2466
        %3981 = vmatprep.subr.bf16.mxu0 0
        %3982 = vmatpush1.bf16.msra.mxu0 %v2467
        %3983 = vmatprep.subr.bf16.mxu0 0
        %3984 = vmatpush1.bf16.msra.mxu0 %v2468
        %3985 = vmatprep.subr.bf16.mxu0 0
        %3986 = vmatpush1.bf16.msra.mxu0 %v2469
        %3987 = vmatprep.subr.bf16.mxu0 0
        %3988 = vmatpush1.bf16.msra.mxu0 %v2470
        %3989 = vmatprep.mubr.bf16.mxu0 %v3954
        %3990 = vmatmul.mubr.bf16.gmra.mrb[0].mxu0 %v3953
        %v3991 = vpop.f32.mrb[0].mxu0
        %v3992 = vadd.f32 %v2390, %v3991
        %v3993 = vpop.f32.mrb[0].mxu0
        %v3994 = vpop.f32.mrb[0].mxu0
        %v3995 = vadd.f32 %v2390, %v3994
        %v3996 = vpop.f32.mrb[0].mxu0
        %3997 = vmatprep.mubr.bf16.mxu0 %v3956
        %3998 = vmatmul.mubr.bf16.gmra.mrb[0].mxu0 %v3955
        %v3999 = vpop.f32.mrb[0].mxu0
        %v4000 = vadd.f32 %v2390, %v3999
        %v4001 = vpop.f32.mrb[0].mxu0
        %v4002 = vpop.f32.mrb[0].mxu0
        %v4003 = vadd.f32 %v2390, %v4002
        %v4004 = vpop.f32.mrb[0].mxu0
        %4005 = vdwg.mxu0
        %v4006 = vtanh.pop %v3992
        %v4007 = vtanh.pop %v3995
        %v4008 = vtanh.pop %v4000
        %v4009 = vtanh.pop %v4003
        %v4010 = vmul.f32 %v4006, %v2543
        %v4011 = vmul.f32 %v4007, %v2543
        %v4012 = vmul.f32 %v4008, %v2543
        %v4013 = vmul.f32 %v4009, %v2543
        %v4014 = vadd.f32 %v4010, %v2551
        %v4015 = vadd.f32 %v4011, %v2551
        %v4016 = vadd.f32 %v4012, %v2551
        %v4017 = vadd.f32 %v4013, %v2551
        %s4018 = scalar_lea.vmem %s707, 96
        %v4019 = vld [vmem:[%s4018] sm:$0xff]
        %v4020 = vld [vmem:[%s4018 + $0x8] sm:$0xff]
        %v4021 = vld [vmem:[%s4018 + $0x10] sm:$0xff]
        %v4022 = vld [vmem:[%s4018 + $0x18] sm:$0x3]
        %v4023 = vpack.c.bf16 %v4020, %v4019
        %v4024 = vpack.c.bf16 %v4022, %v4021
        %v4026 = vsel %vm1130, %v4023, 0
        %v4029 = vsel %vm1130, %v4024, 0
        %4031 = vmatprep.subr.bf16.mxu0 0
        %4032 = vmatpush1.bf16.msra.mxu0 %v1139
        %4033 = vmatprep.subr.bf16.mxu0 0
        %4034 = vmatpush1.bf16.msra.mxu0 0
        %4035 = vmatprep.subr.bf16.mxu0 0
        %4036 = vmatpush1.bf16.msra.mxu0 0
        %4037 = vmatprep.subr.bf16.mxu0 0
        %4038 = vmatpush1.bf16.msra.mxu0 0
        %4039 = vmatprep.subr.bf16.mxu0 0
        %4040 = vmatpush1.bf16.msra.mxu0 0
        %4041 = vmatprep.subr.bf16.mxu0 0
        %4042 = vmatpush1.bf16.msra.mxu0 0
        %4043 = vmatprep.subr.bf16.mxu0 0
        %4044 = vmatpush1.bf16.msra.mxu0 0
        %4045 = vmatprep.subr.bf16.mxu0 0
        %4046 = vmatpush1.bf16.msra.mxu0 0
        %4047 = vmatprep.subr.bf16.mxu0 0
        %4048 = vmatpush1.bf16.msra.mxu0 0
        %4049 = vmatprep.subr.bf16.mxu0 0
        %4050 = vmatpush1.bf16.msra.mxu0 0
        %4051 = vmatprep.subr.bf16.mxu0 0
        %4052 = vmatpush1.bf16.msra.mxu0 0
        %4053 = vmatprep.subr.bf16.mxu0 0
        %4054 = vmatpush1.bf16.msra.mxu0 0
        %4055 = vmatprep.subr.bf16.mxu0 0
        %4056 = vmatpush1.bf16.msra.mxu0 0
        %4057 = vmatprep.subr.bf16.mxu0 0
        %4058 = vmatpush1.bf16.msra.mxu0 0
        %4059 = vmatprep.subr.bf16.mxu0 0
        %4060 = vmatpush1.bf16.msra.mxu0 0
        %4061 = vmatprep.subr.bf16.mxu0 0
        %4062 = vmatpush1.bf16.msra.mxu0 0
        %4063 = vmatprep.mubr.bf16.mxu0 0
        %4064 = vmatmul.mubr.bf16.gmra.mrb[0].mxu0 %v4026
        %v4065 = vpop.f32.mrb[0].mxu0
        %v4066 = vadd.f32 %v1129, %v4065
        %v4067 = vpop.f32.mrb[0].mxu0
        %v4068 = vpop.f32.mrb[0].mxu0
        %v4069 = vadd.f32 %v1129, %v4068
        %v4070 = vpop.f32.mrb[0].mxu0
        %4071 = vmatprep.mubr.bf16.mxu0 0
        %4072 = vmatmul.mubr.bf16.gmra.mrb[0].mxu0 %v4029
        %v4073 = vpop.f32.mrb[0].mxu0
        %v4074 = vadd.f32 %v1129, %v4073
        %v4075 = vpop.f32.mrb[0].mxu0
        %v4076 = vpop.f32.mrb[0].mxu0
        %v4077 = vadd.f32 %v1129, %v4076
        %v4078 = vpop.f32.mrb[0].mxu0
        %4079 = vdwg.mxu0
        %vm4080 = vcmp.ge.f32.partialorder %v4066, 0.0
        %vm4081 = vcmp.ge.f32.partialorder %v4069, 0.0
        %vm4082 = vcmp.ge.f32.partialorder %v4074, 0.0
        %vm4083 = vcmp.ge.f32.partialorder %v4077, 0.0
        %v4084 = vmul.f32 %v4066, 0.01
        %v4085 = vmul.f32 %v4069, 0.01
        %v4086 = vmul.f32 %v4074, 0.01
        %v4087 = vmul.f32 %v4077, 0.01
        %v4088 = vsel %vm4080, %v4066, %v4084
        %v4089 = vsel %vm4081, %v4069, %v4085
        %v4090 = vsel %vm4082, %v4074, %v4086
        %v4091 = vsel %vm4083, %v4077, %v4087
        %v4092 = vmul.f32 %v4088, %v1205
        %v4093 = vmul.f32 %v4089, %v1205
        %v4094 = vmul.f32 %v4090, %v1205
        %v4095 = vmul.f32 %v4091, %v1205
        %v4096 = vadd.f32 %v4092, %v1213
        %v4097 = vadd.f32 %v4093, %v1213
        %v4098 = vadd.f32 %v4094, %v1213
        %v4099 = vadd.f32 %v4095, %v1213
        %v4100 = vrot.slane %v4096, 6
        %v4101 = vsel %vm1218, %v4100, %v4099
        %v4106 = vrot.slane %v4096, 1
        %v4107 = vrot.slane %v4097, 1
        %v4108 = vsel %vm1225, %v4106, %v4107
        %v4109 = vrot.slane %v4098, 1
        %v4110 = vsel %vm1225, %v4107, %v4109
        %v4111 = vrot.slane %v4101, 1
        %v4112 = vsel %vm1225, %v4109, %v4111
        %v4117 = vrot.slane %v4096, 2
        %v4118 = vrot.slane %v4097, 2
        %v4119 = vsel %vm1237, %v4117, %v4118
        %v4120 = vrot.slane %v4098, 2
        %v4121 = vsel %vm1237, %v4118, %v4120
        %v4122 = vrot.slane %v4101, 2
        %v4123 = vsel %vm1237, %v4120, %v4122
        %v4128 = vrot.slane %v4096, 3
        %v4129 = vrot.slane %v4097, 3
        %v4130 = vsel %vm1249, %v4128, %v4129
        %v4131 = vrot.slane %v4098, 3
        %v4132 = vsel %vm1249, %v4129, %v4131
        %v4133 = vrot.slane %v4101, 3
        %v4134 = vsel %vm1249, %v4131, %v4133
        %v4139 = vpack.c.bf16 %v4097, %v4096
        %v4140 = vpack.c.bf16 %v4110, %v4108
        %v4141 = vpack.c.bf16 %v4121, %v4119
        %v4142 = vpack.c.bf16 %v4132, %v4130
        %v4143 = vpack.c.bf16 %v4099, %v4098
        %v4144 = vpack.c.bf16 %v4111, %v4112
        %v4145 = vpack.c.bf16 %v4122, %v4123
        %v4146 = vpack.c.bf16 %v4133, %v4134
        %4147 = vmatprep.subr.bf16.mxu0 0
        %4148 = vmatpush1.bf16.msra.mxu0 %v1401
        %4149 = vmatprep.subr.bf16.mxu0 0
        %4150 = vmatpush1.bf16.msra.mxu0 %v1402
        %4151 = vmatprep.subr.bf16.mxu0 0
        %4152 = vmatpush1.bf16.msra.mxu0 %v1403
        %4153 = vmatprep.subr.bf16.mxu0 0
        %4154 = vmatpush1.bf16.msra.mxu0 %v1404
        %4155 = vmatprep.subr.bf16.mxu0 0
        %4156 = vmatpush1.bf16.msra.mxu0 %v1405
        %4157 = vmatprep.subr.bf16.mxu0 0
        %4158 = vmatpush1.bf16.msra.mxu0 %v1406
        %4159 = vmatprep.subr.bf16.mxu0 0
        %4160 = vmatpush1.bf16.msra.mxu0 %v1407
        %4161 = vmatprep.subr.bf16.mxu0 0
        %4162 = vmatpush1.bf16.msra.mxu0 %v1408
        %4163 = vmatprep.subr.bf16.mxu0 0
        %4164 = vmatpush1.bf16.msra.mxu0 %v1409
        %4165 = vmatprep.subr.bf16.mxu0 0
        %4166 = vmatpush1.bf16.msra.mxu0 %v1410
        %4167 = vmatprep.subr.bf16.mxu0 0
        %4168 = vmatpush1.bf16.msra.mxu0 %v1411
        %4169 = vmatprep.subr.bf16.mxu0 0
        %4170 = vmatpush1.bf16.msra.mxu0 %v1412
        %4171 = vmatprep.subr.bf16.mxu0 0
        %4172 = vmatpush1.bf16.msra.mxu0 %v1413
        %4173 = vmatprep.subr.bf16.mxu0 0
        %4174 = vmatpush1.bf16.msra.mxu0 %v1414
        %4175 = vmatprep.subr.bf16.mxu0 0
        %4176 = vmatpush1.bf16.msra.mxu0 %v1415
        %4177 = vmatprep.subr.bf16.mxu0 0
        %4178 = vmatpush1.bf16.msra.mxu0 %v1416
        %4179 = vmatprep.mubr.bf16.mxu0 %v4140
        %4180 = vmatmul.mubr.bf16.gmra.mrb[0].mxu0 %v4139
        %v4181 = vpop.f32.mrb[0].mxu0
        %v4182 = vadd.f32 %v1272, %v4181
        %v4183 = vpop.f32.mrb[0].mxu0
        %v4184 = vpop.f32.mrb[0].mxu0
        %v4185 = vadd.f32 %v1272, %v4184
        %v4186 = vpop.f32.mrb[0].mxu0
        %4187 = vmatprep.mubr.bf16.mxu0 %v4144
        %4188 = vmatmul.mubr.bf16.gmra.mrb[0].mxu0 %v4143
        %v4189 = vpop.f32.mrb[0].mxu0
        %v4190 = vadd.f32 %v1272, %v4189
        %v4191 = vpop.f32.mrb[0].mxu0
        %v4192 = vpop.f32.mrb[0].mxu0
        %v4193 = vadd.f32 %v1272, %v4192
        %v4194 = vpop.f32.mrb[0].mxu0
        %4195 = vdwg.mxu0
        %4196 = vmatprep.subr.bf16.mxu0 0
        %4197 = vmatpush1.bf16.msra.mxu0 %v1417
        %4198 = vmatprep.subr.bf16.mxu0 0
        %4199 = vmatpush1.bf16.msra.mxu0 %v1418
        %4200 = vmatprep.subr.bf16.mxu0 0
        %4201 = vmatpush1.bf16.msra.mxu0 %v1419
        %4202 = vmatprep.subr.bf16.mxu0 0
        %4203 = vmatpush1.bf16.msra.mxu0 %v1420
        %4204 = vmatprep.subr.bf16.mxu0 0
        %4205 = vmatpush1.bf16.msra.mxu0 %v1421
        %4206 = vmatprep.subr.bf16.mxu0 0
        %4207 = vmatpush1.bf16.msra.mxu0 %v1422
        %4208 = vmatprep.subr.bf16.mxu0 0
        %4209 = vmatpush1.bf16.msra.mxu0 %v1423
        %4210 = vmatprep.subr.bf16.mxu0 0
        %4211 = vmatpush1.bf16.msra.mxu0 %v1424
        %4212 = vmatprep.subr.bf16.mxu0 0
        %4213 = vmatpush1.bf16.msra.mxu0 %v1425
        %4214 = vmatprep.subr.bf16.mxu0 0
        %4215 = vmatpush1.bf16.msra.mxu0 %v1426
        %4216 = vmatprep.subr.bf16.mxu0 0
        %4217 = vmatpush1.bf16.msra.mxu0 %v1427
        %4218 = vmatprep.subr.bf16.mxu0 0
        %4219 = vmatpush1.bf16.msra.mxu0 %v1428
        %4220 = vmatprep.subr.bf16.mxu0 0
        %4221 = vmatpush1.bf16.msra.mxu0 %v1429
        %4222 = vmatprep.subr.bf16.mxu0 0
        %4223 = vmatpush1.bf16.msra.mxu0 %v1430
        %4224 = vmatprep.subr.bf16.mxu0 0
        %4225 = vmatpush1.bf16.msra.mxu0 %v1431
        %4226 = vmatprep.subr.bf16.mxu0 0
        %4227 = vmatpush1.bf16.msra.mxu0 %v1432
        %4228 = vmatprep.mubr.bf16.mxu0 %v4142
        %4229 = vmatmul.mubr.bf16.gmra.mrb[0].mxu0 %v4141
        %v4230 = vpop.f32.mrb[0].mxu0
        %v4231 = vadd.f32 %v4182, %v4230
        %v4232 = vpop.f32.mrb[0].mxu0
        %v4233 = vpop.f32.mrb[0].mxu0
        %v4234 = vadd.f32 %v4185, %v4233
        %v4235 = vpop.f32.mrb[0].mxu0
        %4236 = vmatprep.mubr.bf16.mxu0 %v4146
        %4237 = vmatmul.mubr.bf16.gmra.mrb[0].mxu0 %v4145
        %v4238 = vpop.f32.mrb[0].mxu0
        %v4239 = vadd.f32 %v4190, %v4238
        %v4240 = vpop.f32.mrb[0].mxu0
        %v4241 = vpop.f32.mrb[0].mxu0
        %v4242 = vadd.f32 %v4193, %v4241
        %v4243 = vpop.f32.mrb[0].mxu0
        %4244 = vdwg.mxu0
        %vm4245 = vcmp.ge.f32.partialorder %v4231, 0.0
        %vm4246 = vcmp.ge.f32.partialorder %v4234, 0.0
        %vm4247 = vcmp.ge.f32.partialorder %v4239, 0.0
        %vm4248 = vcmp.ge.f32.partialorder %v4242, 0.0
        %v4249 = vmul.f32 %v4231, 0.01
        %v4250 = vmul.f32 %v4234, 0.01
        %v4251 = vmul.f32 %v4239, 0.01
        %v4252 = vmul.f32 %v4242, 0.01
        %v4253 = vsel %vm4245, %v4231, %v4249
        %v4254 = vsel %vm4246, %v4234, %v4250
        %v4255 = vsel %vm4247, %v4239, %v4251
        %v4256 = vsel %vm4248, %v4242, %v4252
        %v4257 = vmul.f32 %v4253, %v1578
        %v4258 = vmul.f32 %v4254, %v1578
        %v4259 = vmul.f32 %v4255, %v1578
        %v4260 = vmul.f32 %v4256, %v1578
        %v4261 = vadd.f32 %v4257, %v1586
        %v4262 = vadd.f32 %v4258, %v1586
        %v4263 = vadd.f32 %v4259, %v1586
        %v4264 = vadd.f32 %v4260, %v1586
        %v4265 = vrot.slane %v4261, 6
        %v4266 = vsel %vm1218, %v4265, %v4264
        %v4271 = vrot.slane %v4261, 1
        %v4272 = vrot.slane %v4262, 1
        %v4273 = vsel %vm1225, %v4271, %v4272
        %v4274 = vrot.slane %v4263, 1
        %v4275 = vsel %vm1225, %v4272, %v4274
        %v4276 = vrot.slane %v4266, 1
        %v4277 = vsel %vm1225, %v4274, %v4276
        %v4282 = vrot.slane %v4261, 2
        %v4283 = vrot.slane %v4262, 2
        %v4284 = vsel %vm1237, %v4282, %v4283
        %v4285 = vrot.slane %v4263, 2
        %v4286 = vsel %vm1237, %v4283, %v4285
        %v4287 = vrot.slane %v4266, 2
        %v4288 = vsel %vm1237, %v4285, %v4287
        %v4293 = vrot.slane %v4261, 3
        %v4294 = vrot.slane %v4262, 3
        %v4295 = vsel %vm1249, %v4293, %v4294
        %v4296 = vrot.slane %v4263, 3
        %v4297 = vsel %vm1249, %v4294, %v4296
        %v4298 = vrot.slane %v4266, 3
        %v4299 = vsel %vm1249, %v4296, %v4298
        %v4304 = vpack.c.bf16 %v4262, %v4261
        %v4305 = vpack.c.bf16 %v4275, %v4273
        %v4306 = vpack.c.bf16 %v4286, %v4284
        %v4307 = vpack.c.bf16 %v4297, %v4295
        %v4308 = vpack.c.bf16 %v4264, %v4263
        %v4309 = vpack.c.bf16 %v4276, %v4277
        %v4310 = vpack.c.bf16 %v4287, %v4288
        %v4311 = vpack.c.bf16 %v4298, %v4299
        %4312 = vmatprep.subr.bf16.mxu0 0
        %4313 = vmatpush1.bf16.msra.mxu0 %v1770
        %4314 = vmatprep.subr.bf16.mxu0 0
        %4315 = vmatpush1.bf16.msra.mxu0 %v1771
        %4316 = vmatprep.subr.bf16.mxu0 0
        %4317 = vmatpush1.bf16.msra.mxu0 %v1772
        %4318 = vmatprep.subr.bf16.mxu0 0
        %4319 = vmatpush1.bf16.msra.mxu0 %v1773
        %4320 = vmatprep.subr.bf16.mxu0 0
        %4321 = vmatpush1.bf16.msra.mxu0 %v1774
        %4322 = vmatprep.subr.bf16.mxu0 0
        %4323 = vmatpush1.bf16.msra.mxu0 %v1775
        %4324 = vmatprep.subr.bf16.mxu0 0
        %4325 = vmatpush1.bf16.msra.mxu0 %v1776
        %4326 = vmatprep.subr.bf16.mxu0 0
        %4327 = vmatpush1.bf16.msra.mxu0 %v1777
        %4328 = vmatprep.subr.bf16.mxu0 0
        %4329 = vmatpush1.bf16.msra.mxu0 %v1778
        %4330 = vmatprep.subr.bf16.mxu0 0
        %4331 = vmatpush1.bf16.msra.mxu0 %v1779
        %4332 = vmatprep.subr.bf16.mxu0 0
        %4333 = vmatpush1.bf16.msra.mxu0 %v1780
        %4334 = vmatprep.subr.bf16.mxu0 0
        %4335 = vmatpush1.bf16.msra.mxu0 %v1781
        %4336 = vmatprep.subr.bf16.mxu0 0
        %4337 = vmatpush1.bf16.msra.mxu0 %v1782
        %4338 = vmatprep.subr.bf16.mxu0 0
        %4339 = vmatpush1.bf16.msra.mxu0 %v1783
        %4340 = vmatprep.subr.bf16.mxu0 0
        %4341 = vmatpush1.bf16.msra.mxu0 %v1784
        %4342 = vmatprep.subr.bf16.mxu0 0
        %4343 = vmatpush1.bf16.msra.mxu0 %v1785
        %4344 = vmatprep.mubr.bf16.mxu0 %v4305
        %4345 = vmatmul.mubr.bf16.gmra.mrb[0].mxu0 %v4304
        %v4346 = vpop.f32.mrb[0].mxu0
        %v4347 = vadd.f32 %v1641, %v4346
        %v4348 = vpop.f32.mrb[0].mxu0
        %v4349 = vpop.f32.mrb[0].mxu0
        %v4350 = vadd.f32 %v1641, %v4349
        %v4351 = vpop.f32.mrb[0].mxu0
        %4352 = vmatprep.mubr.bf16.mxu0 %v4309
        %4353 = vmatmul.mubr.bf16.gmra.mrb[0].mxu0 %v4308
        %v4354 = vpop.f32.mrb[0].mxu0
        %v4355 = vadd.f32 %v1641, %v4354
        %v4356 = vpop.f32.mrb[0].mxu0
        %v4357 = vpop.f32.mrb[0].mxu0
        %v4358 = vadd.f32 %v1641, %v4357
        %v4359 = vpop.f32.mrb[0].mxu0
        %4360 = vdwg.mxu0
        %4361 = vmatprep.subr.bf16.mxu0 0
        %4362 = vmatpush1.bf16.msra.mxu0 %v1786
        %4363 = vmatprep.subr.bf16.mxu0 0
        %4364 = vmatpush1.bf16.msra.mxu0 %v1787
        %4365 = vmatprep.subr.bf16.mxu0 0
        %4366 = vmatpush1.bf16.msra.mxu0 %v1788
        %4367 = vmatprep.subr.bf16.mxu0 0
        %4368 = vmatpush1.bf16.msra.mxu0 %v1789
        %4369 = vmatprep.subr.bf16.mxu0 0
        %4370 = vmatpush1.bf16.msra.mxu0 %v1790
        %4371 = vmatprep.subr.bf16.mxu0 0
        %4372 = vmatpush1.bf16.msra.mxu0 %v1791
        %4373 = vmatprep.subr.bf16.mxu0 0
        %4374 = vmatpush1.bf16.msra.mxu0 %v1792
        %4375 = vmatprep.subr.bf16.mxu0 0
        %4376 = vmatpush1.bf16.msra.mxu0 %v1793
        %4377 = vmatprep.subr.bf16.mxu0 0
        %4378 = vmatpush1.bf16.msra.mxu0 %v1794
        %4379 = vmatprep.subr.bf16.mxu0 0
        %4380 = vmatpush1.bf16.msra.mxu0 %v1795
        %4381 = vmatprep.subr.bf16.mxu0 0
        %4382 = vmatpush1.bf16.msra.mxu0 %v1796
        %4383 = vmatprep.subr.bf16.mxu0 0
        %4384 = vmatpush1.bf16.msra.mxu0 %v1797
        %4385 = vmatprep.subr.bf16.mxu0 0
        %4386 = vmatpush1.bf16.msra.mxu0 %v1798
        %4387 = vmatprep.subr.bf16.mxu0 0
        %4388 = vmatpush1.bf16.msra.mxu0 %v1799
        %4389 = vmatprep.subr.bf16.mxu0 0
        %4390 = vmatpush1.bf16.msra.mxu0 %v1800
        %4391 = vmatprep.subr.bf16.mxu0 0
        %4392 = vmatpush1.bf16.msra.mxu0 %v1801
        %4393 = vmatprep.mubr.bf16.mxu0 %v4307
        %4394 = vmatmul.mubr.bf16.gmra.mrb[0].mxu0 %v4306
        %v4395 = vpop.f32.mrb[0].mxu0
        %v4396 = vadd.f32 %v4347, %v4395
        %v4397 = vpop.f32.mrb[0].mxu0
        %v4398 = vpop.f32.mrb[0].mxu0
        %v4399 = vadd.f32 %v4350, %v4398
        %v4400 = vpop.f32.mrb[0].mxu0
        %4401 = vmatprep.mubr.bf16.mxu0 %v4311
        %4402 = vmatmul.mubr.bf16.gmra.mrb[0].mxu0 %v4310
        %v4403 = vpop.f32.mrb[0].mxu0
        %v4404 = vadd.f32 %v4355, %v4403
        %v4405 = vpop.f32.mrb[0].mxu0
        %v4406 = vpop.f32.mrb[0].mxu0
        %v4407 = vadd.f32 %v4358, %v4406
        %v4408 = vpop.f32.mrb[0].mxu0
        %4409 = vdwg.mxu0
        %vm4410 = vcmp.ge.f32.partialorder %v4396, 0.0
        %vm4411 = vcmp.ge.f32.partialorder %v4399, 0.0
        %vm4412 = vcmp.ge.f32.partialorder %v4404, 0.0
        %vm4413 = vcmp.ge.f32.partialorder %v4407, 0.0
        %v4414 = vmul.f32 %v4396, 0.01
        %v4415 = vmul.f32 %v4399, 0.01
        %v4416 = vmul.f32 %v4404, 0.01
        %v4417 = vmul.f32 %v4407, 0.01
        %v4418 = vsel %vm4410, %v4396, %v4414
        %v4419 = vsel %vm4411, %v4399, %v4415
        %v4420 = vsel %vm4412, %v4404, %v4416
        %v4421 = vsel %vm4413, %v4407, %v4417
        %v4422 = vmul.f32 %v4418, %v1947
        %v4423 = vmul.f32 %v4419, %v1947
        %v4424 = vmul.f32 %v4420, %v1947
        %v4425 = vmul.f32 %v4421, %v1947
        %v4426 = vadd.f32 %v4422, %v1955
        %v4427 = vadd.f32 %v4423, %v1955
        %v4428 = vadd.f32 %v4424, %v1955
        %v4429 = vadd.f32 %v4425, %v1955
        %v4430 = vpack.c.bf16 %v4427, %v4426
        %v4431 = vpack.c.bf16 %v4429, %v4428
        %4432 = vmatprep.subr.bf16.mxu0 0
        %4433 = vmatpush1.bf16.msra.mxu0 %v1998
        %4434 = vmatprep.subr.bf16.mxu0 0
        %4435 = vmatpush1.bf16.msra.mxu0 %v1999
        %4436 = vmatprep.subr.bf16.mxu0 0
        %4437 = vmatpush1.bf16.msra.mxu0 %v2000
        %4438 = vmatprep.subr.bf16.mxu0 0
        %4439 = vmatpush1.bf16.msra.mxu0 %v2001
        %4440 = vmatprep.subr.bf16.mxu0 0
        %4441 = vmatpush1.bf16.msra.mxu0 %v2002
        %4442 = vmatprep.subr.bf16.mxu0 0
        %4443 = vmatpush1.bf16.msra.mxu0 %v2003
        %4444 = vmatprep.subr.bf16.mxu0 0
        %4445 = vmatpush1.bf16.msra.mxu0 %v2004
        %4446 = vmatprep.subr.bf16.mxu0 0
        %4447 = vmatpush1.bf16.msra.mxu0 %v2005
        %4448 = vmatprep.subr.bf16.mxu0 0
        %4449 = vmatpush1.bf16.msra.mxu0 0
        %4450 = vmatprep.subr.bf16.mxu0 0
        %4451 = vmatpush1.bf16.msra.mxu0 0
        %4452 = vmatprep.subr.bf16.mxu0 0
        %4453 = vmatpush1.bf16.msra.mxu0 0
        %4454 = vmatprep.subr.bf16.mxu0 0
        %4455 = vmatpush1.bf16.msra.mxu0 0
        %4456 = vmatprep.subr.bf16.mxu0 0
        %4457 = vmatpush1.bf16.msra.mxu0 0
        %4458 = vmatprep.subr.bf16.mxu0 0
        %4459 = vmatpush1.bf16.msra.mxu0 0
        %4460 = vmatprep.subr.bf16.mxu0 0
        %4461 = vmatpush1.bf16.msra.mxu0 0
        %4462 = vmatprep.subr.bf16.mxu0 0
        %4463 = vmatpush1.bf16.msra.mxu0 0
        %4464 = vmatprep.mubr.bf16.mxu0 0
        %4465 = vmatmul.mubr.bf16.gmra.mrb[0].mxu0 %v4430
        %v4466 = vpop.f32.mrb[0].mxu0
        %v4467 = vadd.f32 %v1965, %v4466
        %v4468 = vpop.f32.mrb[0].mxu0
        %v4469 = vpop.f32.mrb[0].mxu0
        %v4470 = vadd.f32 %v1965, %v4469
        %v4471 = vpop.f32.mrb[0].mxu0
        %4472 = vmatprep.mubr.bf16.mxu0 0
        %4473 = vmatmul.mubr.bf16.gmra.mrb[0].mxu0 %v4431
        %v4474 = vpop.f32.mrb[0].mxu0
        %v4475 = vadd.f32 %v1965, %v4474
        %v4476 = vpop.f32.mrb[0].mxu0
        %v4477 = vpop.f32.mrb[0].mxu0
        %v4478 = vadd.f32 %v1965, %v4477
        %v4479 = vpop.f32.mrb[0].mxu0
        %4480 = vdwg.mxu0
        %v4481 = vtanh.pop %v4467
        %v4482 = vtanh.pop %v4470
        %v4483 = vtanh.pop %v4475
        %v4484 = vtanh.pop %v4478
        %v4485 = vmul.f32 %v4481, %v2070
        %v4486 = vmul.f32 %v4482, %v2070
        %v4487 = vmul.f32 %v4483, %v2070
        %v4488 = vmul.f32 %v4484, %v2070
        %v4489 = vadd.f32 %v4485, %v2078
        %v4490 = vadd.f32 %v4486, %v2078
        %v4491 = vadd.f32 %v4487, %v2078
        %v4492 = vadd.f32 %v4488, %v2078
        %v4493 = vrot.slane %v4489, 6
        %v4494 = vsel %vm1218, %v4493, %v4492
        %v4499 = vrot.slane %v4489, 1
        %v4500 = vrot.slane %v4490, 1
        %v4501 = vsel %vm1225, %v4499, %v4500
        %v4502 = vrot.slane %v4491, 1
        %v4503 = vsel %vm1225, %v4500, %v4502
        %v4504 = vrot.slane %v4494, 1
        %v4505 = vsel %vm1225, %v4502, %v4504
        %4506 = vrot.lane.b32.xlu0 %v4501, 64
        %v4507 = vpop.permute.xlu0 %4506
        %4508 = vrot.lane.b32.xlu0 %v4503, 64
        %v4509 = vpop.permute.xlu0 %4508
        %4510 = vrot.lane.b32.xlu0 %v4505, 64
        %v4511 = vpop.permute.xlu0 %4510
        %4512 = vrot.lane.b32.xlu0 %v4504, 64
        %v4513 = vpop.permute.xlu0 %4512
        %v4518 = vrot.slane %v4489, 2
        %v4519 = vrot.slane %v4490, 2
        %v4520 = vsel %vm1237, %v4518, %v4519
        %v4521 = vrot.slane %v4491, 2
        %v4522 = vsel %vm1237, %v4519, %v4521
        %v4523 = vrot.slane %v4494, 2
        %v4524 = vsel %vm1237, %v4521, %v4523
        %v4529 = vrot.slane %v4489, 3
        %v4530 = vrot.slane %v4490, 3
        %v4531 = vsel %vm1249, %v4529, %v4530
        %v4532 = vrot.slane %v4491, 3
        %v4533 = vsel %vm1249, %v4530, %v4532
        %v4534 = vrot.slane %v4494, 3
        %v4535 = vsel %vm1249, %v4532, %v4534
        %4536 = vrot.lane.b32.xlu0 %v4531, 64
        %v4537 = vpop.permute.xlu0 %4536
        %4538 = vrot.lane.b32.xlu0 %v4533, 64
        %v4539 = vpop.permute.xlu0 %4538
        %4540 = vrot.lane.b32.xlu0 %v4535, 64
        %v4541 = vpop.permute.xlu0 %4540
        %4542 = vrot.lane.b32.xlu0 %v4534, 64
        %v4543 = vpop.permute.xlu0 %4542
        %v4548 = vsel %vm2138, %v4489, %v4507
        %v4549 = vsel %vm2138, %v4490, %v4509
        %v4550 = vsel %vm2138, %v4491, %v4511
        %v4551 = vsel %vm2138, %v4492, %v4513
        %v4552 = vsel %vm2138, %v4520, %v4537
        %v4553 = vsel %vm2138, %v4522, %v4539
        %v4554 = vsel %vm2138, %v4524, %v4541
        %v4555 = vsel %vm2138, %v4523, %v4543
        %v4556 = vpack.c.bf16 %v4549, %v4548
        %v4557 = vpack.c.bf16 %v4553, %v4552
        %v4558 = vpack.c.bf16 %v4551, %v4550
        %v4559 = vpack.c.bf16 %v4555, %v4554
        %4560 = vmatprep.subr.bf16.mxu0 0
        %4561 = vmatpush1.bf16.msra.mxu0 %v2219
        %4562 = vmatprep.subr.bf16.mxu0 0
        %4563 = vmatpush1.bf16.msra.mxu0 %v2220
        %4564 = vmatprep.subr.bf16.mxu0 0
        %4565 = vmatpush1.bf16.msra.mxu0 %v2221
        %4566 = vmatprep.subr.bf16.mxu0 0
        %4567 = vmatpush1.bf16.msra.mxu0 %v2222
        %4568 = vmatprep.subr.bf16.mxu0 0
        %4569 = vmatpush1.bf16.msra.mxu0 %v2223
        %4570 = vmatprep.subr.bf16.mxu0 0
        %4571 = vmatpush1.bf16.msra.mxu0 %v2224
        %4572 = vmatprep.subr.bf16.mxu0 0
        %4573 = vmatpush1.bf16.msra.mxu0 %v2225
        %4574 = vmatprep.subr.bf16.mxu0 0
        %4575 = vmatpush1.bf16.msra.mxu0 %v2226
        %4576 = vmatprep.subr.bf16.mxu0 0
        %4577 = vmatpush1.bf16.msra.mxu0 %v2227
        %4578 = vmatprep.subr.bf16.mxu0 0
        %4579 = vmatpush1.bf16.msra.mxu0 %v2228
        %4580 = vmatprep.subr.bf16.mxu0 0
        %4581 = vmatpush1.bf16.msra.mxu0 %v2229
        %4582 = vmatprep.subr.bf16.mxu0 0
        %4583 = vmatpush1.bf16.msra.mxu0 %v2230
        %4584 = vmatprep.subr.bf16.mxu0 0
        %4585 = vmatpush1.bf16.msra.mxu0 %v2231
        %4586 = vmatprep.subr.bf16.mxu0 0
        %4587 = vmatpush1.bf16.msra.mxu0 %v2232
        %4588 = vmatprep.subr.bf16.mxu0 0
        %4589 = vmatpush1.bf16.msra.mxu0 %v2233
        %4590 = vmatprep.subr.bf16.mxu0 0
        %4591 = vmatpush1.bf16.msra.mxu0 %v2234
        %4592 = vmatprep.mubr.bf16.mxu0 %v4557
        %4593 = vmatmul.mubr.bf16.gmra.mrb[0].mxu0 %v4556
        %v4594 = vpop.f32.mrb[0].mxu0
        %v4595 = vadd.f32 %v2154, %v4594
        %v4596 = vpop.f32.mrb[0].mxu0
        %v4597 = vpop.f32.mrb[0].mxu0
        %v4598 = vadd.f32 %v2154, %v4597
        %v4599 = vpop.f32.mrb[0].mxu0
        %4600 = vmatprep.mubr.bf16.mxu0 %v4559
        %4601 = vmatmul.mubr.bf16.gmra.mrb[0].mxu0 %v4558
        %v4602 = vpop.f32.mrb[0].mxu0
        %v4603 = vadd.f32 %v2154, %v4602
        %v4604 = vpop.f32.mrb[0].mxu0
        %v4605 = vpop.f32.mrb[0].mxu0
        %v4606 = vadd.f32 %v2154, %v4605
        %v4607 = vpop.f32.mrb[0].mxu0
        %4608 = vdwg.mxu0
        %v4609 = vtanh.pop %v4595
        %v4610 = vtanh.pop %v4598
        %v4611 = vtanh.pop %v4603
        %v4612 = vtanh.pop %v4606
        %v4613 = vmul.f32 %v4609, %v2307
        %v4614 = vmul.f32 %v4610, %v2307
        %v4615 = vmul.f32 %v4611, %v2307
        %v4616 = vmul.f32 %v4612, %v2307
        %v4617 = vadd.f32 %v4613, %v2315
        %v4618 = vadd.f32 %v4614, %v2315
        %v4619 = vadd.f32 %v4615, %v2315
        %v4620 = vadd.f32 %v4616, %v2315
        %v4621 = vrot.slane %v4617, 6
        %v4622 = vsel %vm1218, %v4621, %v4620
        %v4627 = vrot.slane %v4617, 1
        %v4628 = vrot.slane %v4618, 1
        %v4629 = vsel %vm1225, %v4627, %v4628
        %v4630 = vrot.slane %v4619, 1
        %v4631 = vsel %vm1225, %v4628, %v4630
        %v4632 = vrot.slane %v4622, 1
        %v4633 = vsel %vm1225, %v4630, %v4632
        %4634 = vrot.lane.b32.xlu0 %v4629, 64
        %v4635 = vpop.permute.xlu0 %4634
        %4636 = vrot.lane.b32.xlu0 %v4631, 64
        %v4637 = vpop.permute.xlu0 %4636
        %4638 = vrot.lane.b32.xlu0 %v4633, 64
        %v4639 = vpop.permute.xlu0 %4638
        %4640 = vrot.lane.b32.xlu0 %v4632, 64
        %v4641 = vpop.permute.xlu0 %4640
        %v4646 = vrot.slane %v4617, 2
        %v4647 = vrot.slane %v4618, 2
        %v4648 = vsel %vm1237, %v4646, %v4647
        %v4649 = vrot.slane %v4619, 2
        %v4650 = vsel %vm1237, %v4647, %v4649
        %v4651 = vrot.slane %v4622, 2
        %v4652 = vsel %vm1237, %v4649, %v4651
        %v4657 = vrot.slane %v4617, 3
        %v4658 = vrot.slane %v4618, 3
        %v4659 = vsel %vm1249, %v4657, %v4658
        %v4660 = vrot.slane %v4619, 3
        %v4661 = vsel %vm1249, %v4658, %v4660
        %v4662 = vrot.slane %v4622, 3
        %v4663 = vsel %vm1249, %v4660, %v4662
        %4664 = vrot.lane.b32.xlu0 %v4659, 64
        %v4665 = vpop.permute.xlu0 %4664
        %4666 = vrot.lane.b32.xlu0 %v4661, 64
        %v4667 = vpop.permute.xlu0 %4666
        %4668 = vrot.lane.b32.xlu0 %v4663, 64
        %v4669 = vpop.permute.xlu0 %4668
        %4670 = vrot.lane.b32.xlu0 %v4662, 64
        %v4671 = vpop.permute.xlu0 %4670
        %v4676 = vsel %vm2138, %v4617, %v4635
        %v4677 = vsel %vm2138, %v4618, %v4637
        %v4678 = vsel %vm2138, %v4619, %v4639
        %v4679 = vsel %vm2138, %v4620, %v4641
        %v4680 = vsel %vm2138, %v4648, %v4665
        %v4681 = vsel %vm2138, %v4650, %v4667
        %v4682 = vsel %vm2138, %v4652, %v4669
        %v4683 = vsel %vm2138, %v4651, %v4671
        %v4684 = vpack.c.bf16 %v4677, %v4676
        %v4685 = vpack.c.bf16 %v4681, %v4680
        %v4686 = vpack.c.bf16 %v4679, %v4678
        %v4687 = vpack.c.bf16 %v4683, %v4682
        %4688 = vmatprep.subr.bf16.mxu0 0
        %4689 = vmatpush1.bf16.msra.mxu0 %v2455
        %4690 = vmatprep.subr.bf16.mxu0 0
        %4691 = vmatpush1.bf16.msra.mxu0 %v2456
        %4692 = vmatprep.subr.bf16.mxu0 0
        %4693 = vmatpush1.bf16.msra.mxu0 %v2457
        %4694 = vmatprep.subr.bf16.mxu0 0
        %4695 = vmatpush1.bf16.msra.mxu0 %v2458
        %4696 = vmatprep.subr.bf16.mxu0 0
        %4697 = vmatpush1.bf16.msra.mxu0 %v2459
        %4698 = vmatprep.subr.bf16.mxu0 0
        %4699 = vmatpush1.bf16.msra.mxu0 %v2460
        %4700 = vmatprep.subr.bf16.mxu0 0
        %4701 = vmatpush1.bf16.msra.mxu0 %v2461
        %4702 = vmatprep.subr.bf16.mxu0 0
        %4703 = vmatpush1.bf16.msra.mxu0 %v2462
        %4704 = vmatprep.subr.bf16.mxu0 0
        %4705 = vmatpush1.bf16.msra.mxu0 %v2463
        %4706 = vmatprep.subr.bf16.mxu0 0
        %4707 = vmatpush1.bf16.msra.mxu0 %v2464
        %4708 = vmatprep.subr.bf16.mxu0 0
        %4709 = vmatpush1.bf16.msra.mxu0 %v2465
        %4710 = vmatprep.subr.bf16.mxu0 0
        %4711 = vmatpush1.bf16.msra.mxu0 %v2466
        %4712 = vmatprep.subr.bf16.mxu0 0
        %4713 = vmatpush1.bf16.msra.mxu0 %v2467
        %4714 = vmatprep.subr.bf16.mxu0 0
        %4715 = vmatpush1.bf16.msra.mxu0 %v2468
        %4716 = vmatprep.subr.bf16.mxu0 0
        %4717 = vmatpush1.bf16.msra.mxu0 %v2469
        %4718 = vmatprep.subr.bf16.mxu0 0
        %4719 = vmatpush1.bf16.msra.mxu0 %v2470
        %4720 = vmatprep.mubr.bf16.mxu0 %v4685
        %4721 = vmatmul.mubr.bf16.gmra.mrb[0].mxu0 %v4684
        %v4722 = vpop.f32.mrb[0].mxu0
        %v4723 = vadd.f32 %v2390, %v4722
        %v4724 = vpop.f32.mrb[0].mxu0
        %v4725 = vpop.f32.mrb[0].mxu0
        %v4726 = vadd.f32 %v2390, %v4725
        %v4727 = vpop.f32.mrb[0].mxu0
        %4728 = vmatprep.mubr.bf16.mxu0 %v4687
        %4729 = vmatmul.mubr.bf16.gmra.mrb[0].mxu0 %v4686
        %v4730 = vpop.f32.mrb[0].mxu0
        %v4731 = vadd.f32 %v2390, %v4730
        %v4732 = vpop.f32.mrb[0].mxu0
        %v4733 = vpop.f32.mrb[0].mxu0
        %v4734 = vadd.f32 %v2390, %v4733
        %v4735 = vpop.f32.mrb[0].mxu0
        %4736 = vdwg.mxu0
        %v4737 = vtanh.pop %v4723
        %v4738 = vtanh.pop %v4726
        %v4739 = vtanh.pop %v4731
        %v4740 = vtanh.pop %v4734
        %v4741 = vmul.f32 %v4737, %v2543
        %v4742 = vmul.f32 %v4738, %v2543
        %v4743 = vmul.f32 %v4739, %v2543
        %v4744 = vmul.f32 %v4740, %v2543
        %v4745 = vadd.f32 %v4741, %v2551
        %v4746 = vadd.f32 %v4742, %v2551
        %v4747 = vadd.f32 %v4743, %v2551
        %v4748 = vadd.f32 %v4744, %v2551
        %s4749 = scalar_lea.vmem %s707, 128
        %v4750 = vld [vmem:[%s4749] sm:$0xff]
        %v4751 = vld [vmem:[%s4749 + $0x8] sm:$0xff]
        %v4752 = vld [vmem:[%s4749 + $0x10] sm:$0xff]
        %v4753 = vld [vmem:[%s4749 + $0x18] sm:$0x3]
        %v4754 = vpack.c.bf16 %v4751, %v4750
        %v4755 = vpack.c.bf16 %v4753, %v4752
        %v4757 = vsel %vm1130, %v4754, 0
        %v4760 = vsel %vm1130, %v4755, 0
        %4762 = vmatprep.subr.bf16.mxu0 0
        %4763 = vmatpush1.bf16.msra.mxu0 %v1139
        %4764 = vmatprep.subr.bf16.mxu0 0
        %4765 = vmatpush1.bf16.msra.mxu0 0
        %4766 = vmatprep.subr.bf16.mxu0 0
        %4767 = vmatpush1.bf16.msra.mxu0 0
        %4768 = vmatprep.subr.bf16.mxu0 0
        %4769 = vmatpush1.bf16.msra.mxu0 0
        %4770 = vmatprep.subr.bf16.mxu0 0
        %4771 = vmatpush1.bf16.msra.mxu0 0
        %4772 = vmatprep.subr.bf16.mxu0 0
        %4773 = vmatpush1.bf16.msra.mxu0 0
        %4774 = vmatprep.subr.bf16.mxu0 0
        %4775 = vmatpush1.bf16.msra.mxu0 0
        %4776 = vmatprep.subr.bf16.mxu0 0
        %4777 = vmatpush1.bf16.msra.mxu0 0
        %4778 = vmatprep.subr.bf16.mxu0 0
        %4779 = vmatpush1.bf16.msra.mxu0 0
        %4780 = vmatprep.subr.bf16.mxu0 0
        %4781 = vmatpush1.bf16.msra.mxu0 0
        %4782 = vmatprep.subr.bf16.mxu0 0
        %4783 = vmatpush1.bf16.msra.mxu0 0
        %4784 = vmatprep.subr.bf16.mxu0 0
        %4785 = vmatpush1.bf16.msra.mxu0 0
        %4786 = vmatprep.subr.bf16.mxu0 0
        %4787 = vmatpush1.bf16.msra.mxu0 0
        %4788 = vmatprep.subr.bf16.mxu0 0
        %4789 = vmatpush1.bf16.msra.mxu0 0
        %4790 = vmatprep.subr.bf16.mxu0 0
        %4791 = vmatpush1.bf16.msra.mxu0 0
        %4792 = vmatprep.subr.bf16.mxu0 0
        %4793 = vmatpush1.bf16.msra.mxu0 0
        %4794 = vmatprep.mubr.bf16.mxu0 0
        %4795 = vmatmul.mubr.bf16.gmra.mrb[0].mxu0 %v4757
        %v4796 = vpop.f32.mrb[0].mxu0
        %v4797 = vadd.f32 %v1129, %v4796
        %v4798 = vpop.f32.mrb[0].mxu0
        %v4799 = vpop.f32.mrb[0].mxu0
        %v4800 = vadd.f32 %v1129, %v4799
        %v4801 = vpop.f32.mrb[0].mxu0
        %4802 = vmatprep.mubr.bf16.mxu0 0
        %4803 = vmatmul.mubr.bf16.gmra.mrb[0].mxu0 %v4760
        %v4804 = vpop.f32.mrb[0].mxu0
        %v4805 = vadd.f32 %v1129, %v4804
        %v4806 = vpop.f32.mrb[0].mxu0
        %v4807 = vpop.f32.mrb[0].mxu0
        %v4808 = vadd.f32 %v1129, %v4807
        %v4809 = vpop.f32.mrb[0].mxu0
        %4810 = vdwg.mxu0
        %vm4811 = vcmp.ge.f32.partialorder %v4797, 0.0
        %vm4812 = vcmp.ge.f32.partialorder %v4800, 0.0
        %vm4813 = vcmp.ge.f32.partialorder %v4805, 0.0
        %vm4814 = vcmp.ge.f32.partialorder %v4808, 0.0
        %v4815 = vmul.f32 %v4797, 0.01
        %v4816 = vmul.f32 %v4800, 0.01
        %v4817 = vmul.f32 %v4805, 0.01
        %v4818 = vmul.f32 %v4808, 0.01
        %v4819 = vsel %vm4811, %v4797, %v4815
        %v4820 = vsel %vm4812, %v4800, %v4816
        %v4821 = vsel %vm4813, %v4805, %v4817
        %v4822 = vsel %vm4814, %v4808, %v4818
        %v4823 = vmul.f32 %v4819, %v1205
        %v4824 = vmul.f32 %v4820, %v1205
        %v4825 = vmul.f32 %v4821, %v1205
        %v4826 = vmul.f32 %v4822, %v1205
        %v4827 = vadd.f32 %v4823, %v1213
        %v4828 = vadd.f32 %v4824, %v1213
        %v4829 = vadd.f32 %v4825, %v1213
        %v4830 = vadd.f32 %v4826, %v1213
        %v4831 = vrot.slane %v4827, 6
        %v4832 = vsel %vm1218, %v4831, %v4830
        %v4837 = vrot.slane %v4827, 1
        %v4838 = vrot.slane %v4828, 1
        %v4839 = vsel %vm1225, %v4837, %v4838
        %v4840 = vrot.slane %v4829, 1
        %v4841 = vsel %vm1225, %v4838, %v4840
        %v4842 = vrot.slane %v4832, 1
        %v4843 = vsel %vm1225, %v4840, %v4842
        %v4848 = vrot.slane %v4827, 2
        %v4849 = vrot.slane %v4828, 2
        %v4850 = vsel %vm1237, %v4848, %v4849
        %v4851 = vrot.slane %v4829, 2
        %v4852 = vsel %vm1237, %v4849, %v4851
        %v4853 = vrot.slane %v4832, 2
        %v4854 = vsel %vm1237, %v4851, %v4853
        %v4859 = vrot.slane %v4827, 3
        %v4860 = vrot.slane %v4828, 3
        %v4861 = vsel %vm1249, %v4859, %v4860
        %v4862 = vrot.slane %v4829, 3
        %v4863 = vsel %vm1249, %v4860, %v4862
        %v4864 = vrot.slane %v4832, 3
        %v4865 = vsel %vm1249, %v4862, %v4864
        %v4870 = vpack.c.bf16 %v4828, %v4827
        %v4871 = vpack.c.bf16 %v4841, %v4839
        %v4872 = vpack.c.bf16 %v4852, %v4850
        %v4873 = vpack.c.bf16 %v4863, %v4861
        %v4874 = vpack.c.bf16 %v4830, %v4829
        %v4875 = vpack.c.bf16 %v4842, %v4843
        %v4876 = vpack.c.bf16 %v4853, %v4854
        %v4877 = vpack.c.bf16 %v4864, %v4865
        %4878 = vmatprep.subr.bf16.mxu0 0
        %4879 = vmatpush1.bf16.msra.mxu0 %v1401
        %4880 = vmatprep.subr.bf16.mxu0 0
        %4881 = vmatpush1.bf16.msra.mxu0 %v1402
        %4882 = vmatprep.subr.bf16.mxu0 0
        %4883 = vmatpush1.bf16.msra.mxu0 %v1403
        %4884 = vmatprep.subr.bf16.mxu0 0
        %4885 = vmatpush1.bf16.msra.mxu0 %v1404
        %4886 = vmatprep.subr.bf16.mxu0 0
        %4887 = vmatpush1.bf16.msra.mxu0 %v1405
        %4888 = vmatprep.subr.bf16.mxu0 0
        %4889 = vmatpush1.bf16.msra.mxu0 %v1406
        %4890 = vmatprep.subr.bf16.mxu0 0
        %4891 = vmatpush1.bf16.msra.mxu0 %v1407
        %4892 = vmatprep.subr.bf16.mxu0 0
        %4893 = vmatpush1.bf16.msra.mxu0 %v1408
        %4894 = vmatprep.subr.bf16.mxu0 0
        %4895 = vmatpush1.bf16.msra.mxu0 %v1409
        %4896 = vmatprep.subr.bf16.mxu0 0
        %4897 = vmatpush1.bf16.msra.mxu0 %v1410
        %4898 = vmatprep.subr.bf16.mxu0 0
        %4899 = vmatpush1.bf16.msra.mxu0 %v1411
        %4900 = vmatprep.subr.bf16.mxu0 0
        %4901 = vmatpush1.bf16.msra.mxu0 %v1412
        %4902 = vmatprep.subr.bf16.mxu0 0
        %4903 = vmatpush1.bf16.msra.mxu0 %v1413
        %4904 = vmatprep.subr.bf16.mxu0 0
        %4905 = vmatpush1.bf16.msra.mxu0 %v1414
        %4906 = vmatprep.subr.bf16.mxu0 0
        %4907 = vmatpush1.bf16.msra.mxu0 %v1415
        %4908 = vmatprep.subr.bf16.mxu0 0
        %4909 = vmatpush1.bf16.msra.mxu0 %v1416
        %4910 = vmatprep.mubr.bf16.mxu0 %v4871
        %4911 = vmatmul.mubr.bf16.gmra.mrb[0].mxu0 %v4870
        %v4912 = vpop.f32.mrb[0].mxu0
        %v4913 = vadd.f32 %v1272, %v4912
        %v4914 = vpop.f32.mrb[0].mxu0
        %v4915 = vpop.f32.mrb[0].mxu0
        %v4916 = vadd.f32 %v1272, %v4915
        %v4917 = vpop.f32.mrb[0].mxu0
        %4918 = vmatprep.mubr.bf16.mxu0 %v4875
        %4919 = vmatmul.mubr.bf16.gmra.mrb[0].mxu0 %v4874
        %v4920 = vpop.f32.mrb[0].mxu0
        %v4921 = vadd.f32 %v1272, %v4920
        %v4922 = vpop.f32.mrb[0].mxu0
        %v4923 = vpop.f32.mrb[0].mxu0
        %v4924 = vadd.f32 %v1272, %v4923
        %v4925 = vpop.f32.mrb[0].mxu0
        %4926 = vdwg.mxu0
        %4927 = vmatprep.subr.bf16.mxu0 0
        %4928 = vmatpush1.bf16.msra.mxu0 %v1417
        %4929 = vmatprep.subr.bf16.mxu0 0
        %4930 = vmatpush1.bf16.msra.mxu0 %v1418
        %4931 = vmatprep.subr.bf16.mxu0 0
        %4932 = vmatpush1.bf16.msra.mxu0 %v1419
        %4933 = vmatprep.subr.bf16.mxu0 0
        %4934 = vmatpush1.bf16.msra.mxu0 %v1420
        %4935 = vmatprep.subr.bf16.mxu0 0
        %4936 = vmatpush1.bf16.msra.mxu0 %v1421
        %4937 = vmatprep.subr.bf16.mxu0 0
        %4938 = vmatpush1.bf16.msra.mxu0 %v1422
        %4939 = vmatprep.subr.bf16.mxu0 0
        %4940 = vmatpush1.bf16.msra.mxu0 %v1423
        %4941 = vmatprep.subr.bf16.mxu0 0
        %4942 = vmatpush1.bf16.msra.mxu0 %v1424
        %4943 = vmatprep.subr.bf16.mxu0 0
        %4944 = vmatpush1.bf16.msra.mxu0 %v1425
        %4945 = vmatprep.subr.bf16.mxu0 0
        %4946 = vmatpush1.bf16.msra.mxu0 %v1426
        %4947 = vmatprep.subr.bf16.mxu0 0
        %4948 = vmatpush1.bf16.msra.mxu0 %v1427
        %4949 = vmatprep.subr.bf16.mxu0 0
        %4950 = vmatpush1.bf16.msra.mxu0 %v1428
        %4951 = vmatprep.subr.bf16.mxu0 0
        %4952 = vmatpush1.bf16.msra.mxu0 %v1429
        %4953 = vmatprep.subr.bf16.mxu0 0
        %4954 = vmatpush1.bf16.msra.mxu0 %v1430
        %4955 = vmatprep.subr.bf16.mxu0 0
        %4956 = vmatpush1.bf16.msra.mxu0 %v1431
        %4957 = vmatprep.subr.bf16.mxu0 0
        %4958 = vmatpush1.bf16.msra.mxu0 %v1432
        %4959 = vmatprep.mubr.bf16.mxu0 %v4873
        %4960 = vmatmul.mubr.bf16.gmra.mrb[0].mxu0 %v4872
        %v4961 = vpop.f32.mrb[0].mxu0
        %v4962 = vadd.f32 %v4913, %v4961
        %v4963 = vpop.f32.mrb[0].mxu0
        %v4964 = vpop.f32.mrb[0].mxu0
        %v4965 = vadd.f32 %v4916, %v4964
        %v4966 = vpop.f32.mrb[0].mxu0
        %4967 = vmatprep.mubr.bf16.mxu0 %v4877
        %4968 = vmatmul.mubr.bf16.gmra.mrb[0].mxu0 %v4876
        %v4969 = vpop.f32.mrb[0].mxu0
        %v4970 = vadd.f32 %v4921, %v4969
        %v4971 = vpop.f32.mrb[0].mxu0
        %v4972 = vpop.f32.mrb[0].mxu0
        %v4973 = vadd.f32 %v4924, %v4972
        %v4974 = vpop.f32.mrb[0].mxu0
        %4975 = vdwg.mxu0
        %vm4976 = vcmp.ge.f32.partialorder %v4962, 0.0
        %vm4977 = vcmp.ge.f32.partialorder %v4965, 0.0
        %vm4978 = vcmp.ge.f32.partialorder %v4970, 0.0
        %vm4979 = vcmp.ge.f32.partialorder %v4973, 0.0
        %v4980 = vmul.f32 %v4962, 0.01
        %v4981 = vmul.f32 %v4965, 0.01
        %v4982 = vmul.f32 %v4970, 0.01
        %v4983 = vmul.f32 %v4973, 0.01
        %v4984 = vsel %vm4976, %v4962, %v4980
        %v4985 = vsel %vm4977, %v4965, %v4981
        %v4986 = vsel %vm4978, %v4970, %v4982
        %v4987 = vsel %vm4979, %v4973, %v4983
        %v4988 = vmul.f32 %v4984, %v1578
        %v4989 = vmul.f32 %v4985, %v1578
        %v4990 = vmul.f32 %v4986, %v1578
        %v4991 = vmul.f32 %v4987, %v1578
        %v4992 = vadd.f32 %v4988, %v1586
        %v4993 = vadd.f32 %v4989, %v1586
        %v4994 = vadd.f32 %v4990, %v1586
        %v4995 = vadd.f32 %v4991, %v1586
        %v4996 = vrot.slane %v4992, 6
        %v4997 = vsel %vm1218, %v4996, %v4995
        %v5002 = vrot.slane %v4992, 1
        %v5003 = vrot.slane %v4993, 1
        %v5004 = vsel %vm1225, %v5002, %v5003
        %v5005 = vrot.slane %v4994, 1
        %v5006 = vsel %vm1225, %v5003, %v5005
        %v5007 = vrot.slane %v4997, 1
        %v5008 = vsel %vm1225, %v5005, %v5007
        %v5013 = vrot.slane %v4992, 2
        %v5014 = vrot.slane %v4993, 2
        %v5015 = vsel %vm1237, %v5013, %v5014
        %v5016 = vrot.slane %v4994, 2
        %v5017 = vsel %vm1237, %v5014, %v5016
        %v5018 = vrot.slane %v4997, 2
        %v5019 = vsel %vm1237, %v5016, %v5018
        %v5024 = vrot.slane %v4992, 3
        %v5025 = vrot.slane %v4993, 3
        %v5026 = vsel %vm1249, %v5024, %v5025
        %v5027 = vrot.slane %v4994, 3
        %v5028 = vsel %vm1249, %v5025, %v5027
        %v5029 = vrot.slane %v4997, 3
        %v5030 = vsel %vm1249, %v5027, %v5029
        %v5035 = vpack.c.bf16 %v4993, %v4992
        %v5036 = vpack.c.bf16 %v5006, %v5004
        %v5037 = vpack.c.bf16 %v5017, %v5015
        %v5038 = vpack.c.bf16 %v5028, %v5026
        %v5039 = vpack.c.bf16 %v4995, %v4994
        %v5040 = vpack.c.bf16 %v5007, %v5008
        %v5041 = vpack.c.bf16 %v5018, %v5019
        %v5042 = vpack.c.bf16 %v5029, %v5030
        %5043 = vmatprep.subr.bf16.mxu0 0
        %5044 = vmatpush1.bf16.msra.mxu0 %v1770
        %5045 = vmatprep.subr.bf16.mxu0 0
        %5046 = vmatpush1.bf16.msra.mxu0 %v1771
        %5047 = vmatprep.subr.bf16.mxu0 0
        %5048 = vmatpush1.bf16.msra.mxu0 %v1772
        %5049 = vmatprep.subr.bf16.mxu0 0
        %5050 = vmatpush1.bf16.msra.mxu0 %v1773
        %5051 = vmatprep.subr.bf16.mxu0 0
        %5052 = vmatpush1.bf16.msra.mxu0 %v1774
        %5053 = vmatprep.subr.bf16.mxu0 0
        %5054 = vmatpush1.bf16.msra.mxu0 %v1775
        %5055 = vmatprep.subr.bf16.mxu0 0
        %5056 = vmatpush1.bf16.msra.mxu0 %v1776
        %5057 = vmatprep.subr.bf16.mxu0 0
        %5058 = vmatpush1.bf16.msra.mxu0 %v1777
        %5059 = vmatprep.subr.bf16.mxu0 0
        %5060 = vmatpush1.bf16.msra.mxu0 %v1778
        %5061 = vmatprep.subr.bf16.mxu0 0
        %5062 = vmatpush1.bf16.msra.mxu0 %v1779
        %5063 = vmatprep.subr.bf16.mxu0 0
        %5064 = vmatpush1.bf16.msra.mxu0 %v1780
        %5065 = vmatprep.subr.bf16.mxu0 0
        %5066 = vmatpush1.bf16.msra.mxu0 %v1781
        %5067 = vmatprep.subr.bf16.mxu0 0
        %5068 = vmatpush1.bf16.msra.mxu0 %v1782
        %5069 = vmatprep.subr.bf16.mxu0 0
        %5070 = vmatpush1.bf16.msra.mxu0 %v1783
        %5071 = vmatprep.subr.bf16.mxu0 0
        %5072 = vmatpush1.bf16.msra.mxu0 %v1784
        %5073 = vmatprep.subr.bf16.mxu0 0
        %5074 = vmatpush1.bf16.msra.mxu0 %v1785
        %5075 = vmatprep.mubr.bf16.mxu0 %v5036
        %5076 = vmatmul.mubr.bf16.gmra.mrb[0].mxu0 %v5035
        %v5077 = vpop.f32.mrb[0].mxu0
        %v5078 = vadd.f32 %v1641, %v5077
        %v5079 = vpop.f32.mrb[0].mxu0
        %v5080 = vpop.f32.mrb[0].mxu0
        %v5081 = vadd.f32 %v1641, %v5080
        %v5082 = vpop.f32.mrb[0].mxu0
        %5083 = vmatprep.mubr.bf16.mxu0 %v5040
        %5084 = vmatmul.mubr.bf16.gmra.mrb[0].mxu0 %v5039
        %v5085 = vpop.f32.mrb[0].mxu0
        %v5086 = vadd.f32 %v1641, %v5085
        %v5087 = vpop.f32.mrb[0].mxu0
        %v5088 = vpop.f32.mrb[0].mxu0
        %v5089 = vadd.f32 %v1641, %v5088
        %v5090 = vpop.f32.mrb[0].mxu0
        %5091 = vdwg.mxu0
        %5092 = vmatprep.subr.bf16.mxu0 0
        %5093 = vmatpush1.bf16.msra.mxu0 %v1786
        %5094 = vmatprep.subr.bf16.mxu0 0
        %5095 = vmatpush1.bf16.msra.mxu0 %v1787
        %5096 = vmatprep.subr.bf16.mxu0 0
        %5097 = vmatpush1.bf16.msra.mxu0 %v1788
        %5098 = vmatprep.subr.bf16.mxu0 0
        %5099 = vmatpush1.bf16.msra.mxu0 %v1789
        %5100 = vmatprep.subr.bf16.mxu0 0
        %5101 = vmatpush1.bf16.msra.mxu0 %v1790
        %5102 = vmatprep.subr.bf16.mxu0 0
        %5103 = vmatpush1.bf16.msra.mxu0 %v1791
        %5104 = vmatprep.subr.bf16.mxu0 0
        %5105 = vmatpush1.bf16.msra.mxu0 %v1792
        %5106 = vmatprep.subr.bf16.mxu0 0
        %5107 = vmatpush1.bf16.msra.mxu0 %v1793
        %5108 = vmatprep.subr.bf16.mxu0 0
        %5109 = vmatpush1.bf16.msra.mxu0 %v1794
        %5110 = vmatprep.subr.bf16.mxu0 0
        %5111 = vmatpush1.bf16.msra.mxu0 %v1795
        %5112 = vmatprep.subr.bf16.mxu0 0
        %5113 = vmatpush1.bf16.msra.mxu0 %v1796
        %5114 = vmatprep.subr.bf16.mxu0 0
        %5115 = vmatpush1.bf16.msra.mxu0 %v1797
        %5116 = vmatprep.subr.bf16.mxu0 0
        %5117 = vmatpush1.bf16.msra.mxu0 %v1798
        %5118 = vmatprep.subr.bf16.mxu0 0
        %5119 = vmatpush1.bf16.msra.mxu0 %v1799
        %5120 = vmatprep.subr.bf16.mxu0 0
        %5121 = vmatpush1.bf16.msra.mxu0 %v1800
        %5122 = vmatprep.subr.bf16.mxu0 0
        %5123 = vmatpush1.bf16.msra.mxu0 %v1801
        %5124 = vmatprep.mubr.bf16.mxu0 %v5038
        %5125 = vmatmul.mubr.bf16.gmra.mrb[0].mxu0 %v5037
        %v5126 = vpop.f32.mrb[0].mxu0
        %v5127 = vadd.f32 %v5078, %v5126
        %v5128 = vpop.f32.mrb[0].mxu0
        %v5129 = vpop.f32.mrb[0].mxu0
        %v5130 = vadd.f32 %v5081, %v5129
        %v5131 = vpop.f32.mrb[0].mxu0
        %5132 = vmatprep.mubr.bf16.mxu0 %v5042
        %5133 = vmatmul.mubr.bf16.gmra.mrb[0].mxu0 %v5041
        %v5134 = vpop.f32.mrb[0].mxu0
        %v5135 = vadd.f32 %v5086, %v5134
        %v5136 = vpop.f32.mrb[0].mxu0
        %v5137 = vpop.f32.mrb[0].mxu0
        %v5138 = vadd.f32 %v5089, %v5137
        %v5139 = vpop.f32.mrb[0].mxu0
        %5140 = vdwg.mxu0
        %vm5141 = vcmp.ge.f32.partialorder %v5127, 0.0
        %vm5142 = vcmp.ge.f32.partialorder %v5130, 0.0
        %vm5143 = vcmp.ge.f32.partialorder %v5135, 0.0
        %vm5144 = vcmp.ge.f32.partialorder %v5138, 0.0
        %v5145 = vmul.f32 %v5127, 0.01
        %v5146 = vmul.f32 %v5130, 0.01
        %v5147 = vmul.f32 %v5135, 0.01
        %v5148 = vmul.f32 %v5138, 0.01
        %v5149 = vsel %vm5141, %v5127, %v5145
        %v5150 = vsel %vm5142, %v5130, %v5146
        %v5151 = vsel %vm5143, %v5135, %v5147
        %v5152 = vsel %vm5144, %v5138, %v5148
        %v5153 = vmul.f32 %v5149, %v1947
        %v5154 = vmul.f32 %v5150, %v1947
        %v5155 = vmul.f32 %v5151, %v1947
        %v5156 = vmul.f32 %v5152, %v1947
        %v5157 = vadd.f32 %v5153, %v1955
        %v5158 = vadd.f32 %v5154, %v1955
        %v5159 = vadd.f32 %v5155, %v1955
        %v5160 = vadd.f32 %v5156, %v1955
        %v5161 = vpack.c.bf16 %v5158, %v5157
        %v5162 = vpack.c.bf16 %v5160, %v5159
        %5163 = vmatprep.subr.bf16.mxu0 0
        %5164 = vmatpush1.bf16.msra.mxu0 %v1998
        %5165 = vmatprep.subr.bf16.mxu0 0
        %5166 = vmatpush1.bf16.msra.mxu0 %v1999
        %5167 = vmatprep.subr.bf16.mxu0 0
        %5168 = vmatpush1.bf16.msra.mxu0 %v2000
        %5169 = vmatprep.subr.bf16.mxu0 0
        %5170 = vmatpush1.bf16.msra.mxu0 %v2001
        %5171 = vmatprep.subr.bf16.mxu0 0
        %5172 = vmatpush1.bf16.msra.mxu0 %v2002
        %5173 = vmatprep.subr.bf16.mxu0 0
        %5174 = vmatpush1.bf16.msra.mxu0 %v2003
        %5175 = vmatprep.subr.bf16.mxu0 0
        %5176 = vmatpush1.bf16.msra.mxu0 %v2004
        %5177 = vmatprep.subr.bf16.mxu0 0
        %5178 = vmatpush1.bf16.msra.mxu0 %v2005
        %5179 = vmatprep.subr.bf16.mxu0 0
        %5180 = vmatpush1.bf16.msra.mxu0 0
        %5181 = vmatprep.subr.bf16.mxu0 0
        %5182 = vmatpush1.bf16.msra.mxu0 0
        %5183 = vmatprep.subr.bf16.mxu0 0
        %5184 = vmatpush1.bf16.msra.mxu0 0
        %5185 = vmatprep.subr.bf16.mxu0 0
        %5186 = vmatpush1.bf16.msra.mxu0 0
        %5187 = vmatprep.subr.bf16.mxu0 0
        %5188 = vmatpush1.bf16.msra.mxu0 0
        %5189 = vmatprep.subr.bf16.mxu0 0
        %5190 = vmatpush1.bf16.msra.mxu0 0
        %5191 = vmatprep.subr.bf16.mxu0 0
        %5192 = vmatpush1.bf16.msra.mxu0 0
        %5193 = vmatprep.subr.bf16.mxu0 0
        %5194 = vmatpush1.bf16.msra.mxu0 0
        %5195 = vmatprep.mubr.bf16.mxu0 0
        %5196 = vmatmul.mubr.bf16.gmra.mrb[0].mxu0 %v5161
        %v5197 = vpop.f32.mrb[0].mxu0
        %v5198 = vadd.f32 %v1965, %v5197
        %v5199 = vpop.f32.mrb[0].mxu0
        %v5200 = vpop.f32.mrb[0].mxu0
        %v5201 = vadd.f32 %v1965, %v5200
        %v5202 = vpop.f32.mrb[0].mxu0
        %5203 = vmatprep.mubr.bf16.mxu0 0
        %5204 = vmatmul.mubr.bf16.gmra.mrb[0].mxu0 %v5162
        %v5205 = vpop.f32.mrb[0].mxu0
        %v5206 = vadd.f32 %v1965, %v5205
        %v5207 = vpop.f32.mrb[0].mxu0
        %v5208 = vpop.f32.mrb[0].mxu0
        %v5209 = vadd.f32 %v1965, %v5208
        %v5210 = vpop.f32.mrb[0].mxu0
        %5211 = vdwg.mxu0
        %v5212 = vtanh.pop %v5198
        %v5213 = vtanh.pop %v5201
        %v5214 = vtanh.pop %v5206
        %v5215 = vtanh.pop %v5209
        %v5216 = vmul.f32 %v5212, %v2070
        %v5217 = vmul.f32 %v5213, %v2070
        %v5218 = vmul.f32 %v5214, %v2070
        %v5219 = vmul.f32 %v5215, %v2070
        %v5220 = vadd.f32 %v5216, %v2078
        %v5221 = vadd.f32 %v5217, %v2078
        %v5222 = vadd.f32 %v5218, %v2078
        %v5223 = vadd.f32 %v5219, %v2078
        %v5224 = vrot.slane %v5220, 6
        %v5225 = vsel %vm1218, %v5224, %v5223
        %v5230 = vrot.slane %v5220, 1
        %v5231 = vrot.slane %v5221, 1
        %v5232 = vsel %vm1225, %v5230, %v5231
        %v5233 = vrot.slane %v5222, 1
        %v5234 = vsel %vm1225, %v5231, %v5233
        %v5235 = vrot.slane %v5225, 1
        %v5236 = vsel %vm1225, %v5233, %v5235
        %5237 = vrot.lane.b32.xlu0 %v5232, 64
        %v5238 = vpop.permute.xlu0 %5237
        %5239 = vrot.lane.b32.xlu0 %v5234, 64
        %v5240 = vpop.permute.xlu0 %5239
        %5241 = vrot.lane.b32.xlu0 %v5236, 64
        %v5242 = vpop.permute.xlu0 %5241
        %5243 = vrot.lane.b32.xlu0 %v5235, 64
        %v5244 = vpop.permute.xlu0 %5243
        %v5249 = vrot.slane %v5220, 2
        %v5250 = vrot.slane %v5221, 2
        %v5251 = vsel %vm1237, %v5249, %v5250
        %v5252 = vrot.slane %v5222, 2
        %v5253 = vsel %vm1237, %v5250, %v5252
        %v5254 = vrot.slane %v5225, 2
        %v5255 = vsel %vm1237, %v5252, %v5254
        %v5260 = vrot.slane %v5220, 3
        %v5261 = vrot.slane %v5221, 3
        %v5262 = vsel %vm1249, %v5260, %v5261
        %v5263 = vrot.slane %v5222, 3
        %v5264 = vsel %vm1249, %v5261, %v5263
        %v5265 = vrot.slane %v5225, 3
        %v5266 = vsel %vm1249, %v5263, %v5265
        %5267 = vrot.lane.b32.xlu0 %v5262, 64
        %v5268 = vpop.permute.xlu0 %5267
        %5269 = vrot.lane.b32.xlu0 %v5264, 64
        %v5270 = vpop.permute.xlu0 %5269
        %5271 = vrot.lane.b32.xlu0 %v5266, 64
        %v5272 = vpop.permute.xlu0 %5271
        %5273 = vrot.lane.b32.xlu0 %v5265, 64
        %v5274 = vpop.permute.xlu0 %5273
        %v5279 = vsel %vm2138, %v5220, %v5238
        %v5280 = vsel %vm2138, %v5221, %v5240
        %v5281 = vsel %vm2138, %v5222, %v5242
        %v5282 = vsel %vm2138, %v5223, %v5244
        %v5283 = vsel %vm2138, %v5251, %v5268
        %v5284 = vsel %vm2138, %v5253, %v5270
        %v5285 = vsel %vm2138, %v5255, %v5272
        %v5286 = vsel %vm2138, %v5254, %v5274
        %v5287 = vpack.c.bf16 %v5280, %v5279
        %v5288 = vpack.c.bf16 %v5284, %v5283
        %v5289 = vpack.c.bf16 %v5282, %v5281
        %v5290 = vpack.c.bf16 %v5286, %v5285
        %5291 = vmatprep.subr.bf16.mxu0 0
        %5292 = vmatpush1.bf16.msra.mxu0 %v2219
        %5293 = vmatprep.subr.bf16.mxu0 0
        %5294 = vmatpush1.bf16.msra.mxu0 %v2220
        %5295 = vmatprep.subr.bf16.mxu0 0
        %5296 = vmatpush1.bf16.msra.mxu0 %v2221
        %5297 = vmatprep.subr.bf16.mxu0 0
        %5298 = vmatpush1.bf16.msra.mxu0 %v2222
        %5299 = vmatprep.subr.bf16.mxu0 0
        %5300 = vmatpush1.bf16.msra.mxu0 %v2223
        %5301 = vmatprep.subr.bf16.mxu0 0
        %5302 = vmatpush1.bf16.msra.mxu0 %v2224
        %5303 = vmatprep.subr.bf16.mxu0 0
        %5304 = vmatpush1.bf16.msra.mxu0 %v2225
        %5305 = vmatprep.subr.bf16.mxu0 0
        %5306 = vmatpush1.bf16.msra.mxu0 %v2226
        %5307 = vmatprep.subr.bf16.mxu0 0
        %5308 = vmatpush1.bf16.msra.mxu0 %v2227
        %5309 = vmatprep.subr.bf16.mxu0 0
        %5310 = vmatpush1.bf16.msra.mxu0 %v2228
        %5311 = vmatprep.subr.bf16.mxu0 0
        %5312 = vmatpush1.bf16.msra.mxu0 %v2229
        %5313 = vmatprep.subr.bf16.mxu0 0
        %5314 = vmatpush1.bf16.msra.mxu0 %v2230
        %5315 = vmatprep.subr.bf16.mxu0 0
        %5316 = vmatpush1.bf16.msra.mxu0 %v2231
        %5317 = vmatprep.subr.bf16.mxu0 0
        %5318 = vmatpush1.bf16.msra.mxu0 %v2232
        %5319 = vmatprep.subr.bf16.mxu0 0
        %5320 = vmatpush1.bf16.msra.mxu0 %v2233
        %5321 = vmatprep.subr.bf16.mxu0 0
        %5322 = vmatpush1.bf16.msra.mxu0 %v2234
        %5323 = vmatprep.mubr.bf16.mxu0 %v5288
        %5324 = vmatmul.mubr.bf16.gmra.mrb[0].mxu0 %v5287
        %v5325 = vpop.f32.mrb[0].mxu0
        %v5326 = vadd.f32 %v2154, %v5325
        %v5327 = vpop.f32.mrb[0].mxu0
        %v5328 = vpop.f32.mrb[0].mxu0
        %v5329 = vadd.f32 %v2154, %v5328
        %v5330 = vpop.f32.mrb[0].mxu0
        %5331 = vmatprep.mubr.bf16.mxu0 %v5290
        %5332 = vmatmul.mubr.bf16.gmra.mrb[0].mxu0 %v5289
        %v5333 = vpop.f32.mrb[0].mxu0
        %v5334 = vadd.f32 %v2154, %v5333
        %v5335 = vpop.f32.mrb[0].mxu0
        %v5336 = vpop.f32.mrb[0].mxu0
        %v5337 = vadd.f32 %v2154, %v5336
        %v5338 = vpop.f32.mrb[0].mxu0
        %5339 = vdwg.mxu0
        %v5340 = vtanh.pop %v5326
        %v5341 = vtanh.pop %v5329
        %v5342 = vtanh.pop %v5334
        %v5343 = vtanh.pop %v5337
        %v5344 = vmul.f32 %v5340, %v2307
        %v5345 = vmul.f32 %v5341, %v2307
        %v5346 = vmul.f32 %v5342, %v2307
        %v5347 = vmul.f32 %v5343, %v2307
        %v5348 = vadd.f32 %v5344, %v2315
        %v5349 = vadd.f32 %v5345, %v2315
        %v5350 = vadd.f32 %v5346, %v2315
        %v5351 = vadd.f32 %v5347, %v2315
        %v5352 = vrot.slane %v5348, 6
        %v5353 = vsel %vm1218, %v5352, %v5351
        %v5358 = vrot.slane %v5348, 1
        %v5359 = vrot.slane %v5349, 1
        %v5360 = vsel %vm1225, %v5358, %v5359
        %v5361 = vrot.slane %v5350, 1
        %v5362 = vsel %vm1225, %v5359, %v5361
        %v5363 = vrot.slane %v5353, 1
        %v5364 = vsel %vm1225, %v5361, %v5363
        %5365 = vrot.lane.b32.xlu0 %v5360, 64
        %v5366 = vpop.permute.xlu0 %5365
        %5367 = vrot.lane.b32.xlu0 %v5362, 64
        %v5368 = vpop.permute.xlu0 %5367
        %5369 = vrot.lane.b32.xlu0 %v5364, 64
        %v5370 = vpop.permute.xlu0 %5369
        %5371 = vrot.lane.b32.xlu0 %v5363, 64
        %v5372 = vpop.permute.xlu0 %5371
        %v5377 = vrot.slane %v5348, 2
        %v5378 = vrot.slane %v5349, 2
        %v5379 = vsel %vm1237, %v5377, %v5378
        %v5380 = vrot.slane %v5350, 2
        %v5381 = vsel %vm1237, %v5378, %v5380
        %v5382 = vrot.slane %v5353, 2
        %v5383 = vsel %vm1237, %v5380, %v5382
        %v5388 = vrot.slane %v5348, 3
        %v5389 = vrot.slane %v5349, 3
        %v5390 = vsel %vm1249, %v5388, %v5389
        %v5391 = vrot.slane %v5350, 3
        %v5392 = vsel %vm1249, %v5389, %v5391
        %v5393 = vrot.slane %v5353, 3
        %v5394 = vsel %vm1249, %v5391, %v5393
        %5395 = vrot.lane.b32.xlu0 %v5390, 64
        %v5396 = vpop.permute.xlu0 %5395
        %5397 = vrot.lane.b32.xlu0 %v5392, 64
        %v5398 = vpop.permute.xlu0 %5397
        %5399 = vrot.lane.b32.xlu0 %v5394, 64
        %v5400 = vpop.permute.xlu0 %5399
        %5401 = vrot.lane.b32.xlu0 %v5393, 64
        %v5402 = vpop.permute.xlu0 %5401
        %v5407 = vsel %vm2138, %v5348, %v5366
        %v5408 = vsel %vm2138, %v5349, %v5368
        %v5409 = vsel %vm2138, %v5350, %v5370
        %v5410 = vsel %vm2138, %v5351, %v5372
        %v5411 = vsel %vm2138, %v5379, %v5396
        %v5412 = vsel %vm2138, %v5381, %v5398
        %v5413 = vsel %vm2138, %v5383, %v5400
        %v5414 = vsel %vm2138, %v5382, %v5402
        %v5415 = vpack.c.bf16 %v5408, %v5407
        %v5416 = vpack.c.bf16 %v5412, %v5411
        %v5417 = vpack.c.bf16 %v5410, %v5409
        %v5418 = vpack.c.bf16 %v5414, %v5413
        %5419 = vmatprep.subr.bf16.mxu0 0
        %5420 = vmatpush1.bf16.msra.mxu0 %v2455
        %5421 = vmatprep.subr.bf16.mxu0 0
        %5422 = vmatpush1.bf16.msra.mxu0 %v2456
        %5423 = vmatprep.subr.bf16.mxu0 0
        %5424 = vmatpush1.bf16.msra.mxu0 %v2457
        %5425 = vmatprep.subr.bf16.mxu0 0
        %5426 = vmatpush1.bf16.msra.mxu0 %v2458
        %5427 = vmatprep.subr.bf16.mxu0 0
        %5428 = vmatpush1.bf16.msra.mxu0 %v2459
        %5429 = vmatprep.subr.bf16.mxu0 0
        %5430 = vmatpush1.bf16.msra.mxu0 %v2460
        %5431 = vmatprep.subr.bf16.mxu0 0
        %5432 = vmatpush1.bf16.msra.mxu0 %v2461
        %5433 = vmatprep.subr.bf16.mxu0 0
        %5434 = vmatpush1.bf16.msra.mxu0 %v2462
        %5435 = vmatprep.subr.bf16.mxu0 0
        %5436 = vmatpush1.bf16.msra.mxu0 %v2463
        %5437 = vmatprep.subr.bf16.mxu0 0
        %5438 = vmatpush1.bf16.msra.mxu0 %v2464
        %5439 = vmatprep.subr.bf16.mxu0 0
        %5440 = vmatpush1.bf16.msra.mxu0 %v2465
        %5441 = vmatprep.subr.bf16.mxu0 0
        %5442 = vmatpush1.bf16.msra.mxu0 %v2466
        %5443 = vmatprep.subr.bf16.mxu0 0
        %5444 = vmatpush1.bf16.msra.mxu0 %v2467
        %5445 = vmatprep.subr.bf16.mxu0 0
        %5446 = vmatpush1.bf16.msra.mxu0 %v2468
        %5447 = vmatprep.subr.bf16.mxu0 0
        %5448 = vmatpush1.bf16.msra.mxu0 %v2469
        %5449 = vmatprep.subr.bf16.mxu0 0
        %5450 = vmatpush1.bf16.msra.mxu0 %v2470
        %5451 = vmatprep.mubr.bf16.mxu0 %v5416
        %5452 = vmatmul.mubr.bf16.gmra.mrb[0].mxu0 %v5415
        %v5453 = vpop.f32.mrb[0].mxu0
        %v5454 = vadd.f32 %v2390, %v5453
        %v5455 = vpop.f32.mrb[0].mxu0
        %v5456 = vpop.f32.mrb[0].mxu0
        %v5457 = vadd.f32 %v2390, %v5456
        %v5458 = vpop.f32.mrb[0].mxu0
        %5459 = vmatprep.mubr.bf16.mxu0 %v5418
        %5460 = vmatmul.mubr.bf16.gmra.mrb[0].mxu0 %v5417
        %v5461 = vpop.f32.mrb[0].mxu0
        %v5462 = vadd.f32 %v2390, %v5461
        %v5463 = vpop.f32.mrb[0].mxu0
        %v5464 = vpop.f32.mrb[0].mxu0
        %v5465 = vadd.f32 %v2390, %v5464
        %v5466 = vpop.f32.mrb[0].mxu0
        %5467 = vdwg.mxu0
        %v5468 = vtanh.pop %v5454
        %v5469 = vtanh.pop %v5457
        %v5470 = vtanh.pop %v5462
        %v5471 = vtanh.pop %v5465
        %v5472 = vmul.f32 %v5468, %v2543
        %v5473 = vmul.f32 %v5469, %v2543
        %v5474 = vmul.f32 %v5470, %v2543
        %v5475 = vmul.f32 %v5471, %v2543
        %v5476 = vadd.f32 %v5472, %v2551
        %v5477 = vadd.f32 %v5473, %v2551
        %v5478 = vadd.f32 %v5474, %v2551
        %v5479 = vadd.f32 %v5475, %v2551
        %5484 = vrot.lane.b32.xlu0 %v3283, 64
        %v5485 = vpop.permute.xlu0 %5484
        %5486 = vrot.lane.b32.xlu0 %v3284, 64
        %v5487 = vpop.permute.xlu0 %5486
        %5488 = vrot.lane.b32.xlu0 %v3285, 64
        %v5489 = vpop.permute.xlu0 %5488
        %5490 = vrot.lane.b32.xlu0 %v3286, 64
        %v5491 = vpop.permute.xlu0 %5490
        %5500 = vrot.lane.b32.xlu0 %v4745, 64
        %v5501 = vpop.permute.xlu0 %5500
        %5502 = vrot.lane.b32.xlu0 %v4746, 64
        %v5503 = vpop.permute.xlu0 %5502
        %5504 = vrot.lane.b32.xlu0 %v4747, 64
        %v5505 = vpop.permute.xlu0 %5504
        %5506 = vrot.lane.b32.xlu0 %v4748, 64
        %v5507 = vpop.permute.xlu0 %5506
        %v5512 = vsel %vm2138, %v2552, %v5485
        %v5513 = vsel %vm2138, %v2553, %v5487
        %v5514 = vsel %vm2138, %v2554, %v5489
        %v5515 = vsel %vm2138, %v2555, %v5491
        %v5516 = vsel %vm2138, %v4014, %v5501
        %v5517 = vsel %vm2138, %v4015, %v5503
        %v5518 = vsel %vm2138, %v4016, %v5505
        %v5519 = vsel %vm2138, %v4017, %v5507
        %v5520 = vpack.c.bf16 %v5513, %v5512
        %v5521 = vpack.c.bf16 %v5517, %v5516
        %v5522 = vpack.c.bf16 %v5477, %v5476
        %v5523 = vpack.c.bf16 %v5515, %v5514
        %v5524 = vpack.c.bf16 %v5519, %v5518
        %v5525 = vpack.c.bf16 %v5479, %v5478
        %v5526 = vlaneseq
        %v5527 = vshrl.u32 %v5526, 7
        %v5528 = vsub.s32 0, %v5527
        %v5529 = vrot.slane %v994, %v5528
        %v5570 = vunpack.c.l.b16 %v922
        %v5571 = vunpack.c.l.b16 %v923
        %v5572 = vunpack.c.l.b16 %v924
        %v5573 = vunpack.c.l.b16 %v925
        %v5574 = vunpack.c.l.b16 %v926
        %v5575 = vunpack.c.l.b16 %v927
        %v5576 = vunpack.c.l.b16 %v928
        %v5577 = vunpack.c.l.b16 %v929
        %v5578 = vunpack.c.l.b16 %v930
        %v5579 = vunpack.c.l.b16 %v931
        %v5580 = vunpack.c.l.b16 %v932
        %v5581 = vunpack.c.l.b16 %v933
        %v5582 = vunpack.c.l.b16 %v934
        %v5583 = vunpack.c.l.b16 %v935
        %v5584 = vunpack.c.l.b16 %v936
        %v5585 = vunpack.c.l.b16 %v937
        %v5586 = vunpack.c.l.b16 %v938
        %v5587 = vunpack.c.l.b16 %v939
        %v5588 = vunpack.c.l.b16 %v940
        %v5589 = vunpack.c.l.b16 %v941
        %v5590 = vunpack.c.l.b16 %v942
        %v5591 = vunpack.c.l.b16 %v943
        %v5592 = vunpack.c.l.b16 %v944
        %v5593 = vunpack.c.l.b16 %v945
        %v5594 = vunpack.c.l.b16 %v946
        %v5595 = vunpack.c.l.b16 %v947
        %v5596 = vunpack.c.l.b16 %v948
        %v5597 = vunpack.c.l.b16 %v949
        %v5598 = vunpack.c.l.b16 %v950
        %v5599 = vunpack.c.l.b16 %v951
        %v5600 = vunpack.c.l.b16 %v952
        %v5601 = vunpack.c.l.b16 %v953
        %v5602 = vunpack.c.l.b16 %v954
        %v5603 = vunpack.c.l.b16 %v955
        %v5604 = vunpack.c.l.b16 %v956
        %v5605 = vunpack.c.l.b16 %v957
        %v5606 = vunpack.c.l.b16 %v958
        %v5607 = vunpack.c.l.b16 %v959
        %v5608 = vunpack.c.l.b16 %v960
        %v5609 = vunpack.c.l.b16 %v961
        %v5610 = vpack.c.b16 %v5571, %v5570
        %v5611 = vpack.c.b16 %v5573, %v5572
        %v5612 = vpack.c.b16 %v5575, %v5574
        %v5613 = vpack.c.b16 %v5577, %v5576
        %v5614 = vpack.c.b16 %v5579, %v5578
        %v5615 = vpack.c.b16 %v5581, %v5580
        %v5616 = vpack.c.b16 %v5583, %v5582
        %v5617 = vpack.c.b16 %v5585, %v5584
        %v5618 = vpack.c.b16 %v5587, %v5586
        %v5619 = vpack.c.b16 %v5589, %v5588
        %v5620 = vpack.c.b16 %v5591, %v5590
        %v5621 = vpack.c.b16 %v5593, %v5592
        %v5622 = vpack.c.b16 %v5595, %v5594
        %v5623 = vpack.c.b16 %v5597, %v5596
        %v5624 = vpack.c.b16 %v5599, %v5598
        %v5625 = vpack.c.b16 %v5601, %v5600
        %v5626 = vpack.c.b16 %v5603, %v5602
        %v5627 = vpack.c.b16 %v5605, %v5604
        %v5628 = vpack.c.b16 %v5607, %v5606
        %v5629 = vpack.c.b16 %v5609, %v5608
        %v5651 = vsel %vm2138, %v5522, 0
        %v5654 = vsel %vm2138, %v5525, 0
        %5656 = vmatprep.subr.bf16.mxu0 0
        %5657 = vmatpush1.bf16.msra.mxu0 %v5610
        %5658 = vmatprep.subr.bf16.mxu0 0
        %5659 = vmatpush1.bf16.msra.mxu0 %v5611
        %5660 = vmatprep.subr.bf16.mxu0 0
        %5661 = vmatpush1.bf16.msra.mxu0 %v5612
        %5662 = vmatprep.subr.bf16.mxu0 0
        %5663 = vmatpush1.bf16.msra.mxu0 %v5613
        %5664 = vmatprep.subr.bf16.mxu0 0
        %5665 = vmatpush1.bf16.msra.mxu0 %v5614
        %5666 = vmatprep.subr.bf16.mxu0 0
        %5667 = vmatpush1.bf16.msra.mxu0 %v5615
        %5668 = vmatprep.subr.bf16.mxu0 0
        %5669 = vmatpush1.bf16.msra.mxu0 %v5616
        %5670 = vmatprep.subr.bf16.mxu0 0
        %5671 = vmatpush1.bf16.msra.mxu0 %v5617
        %5672 = vmatprep.subr.bf16.mxu0 0
        %5673 = vmatpush1.bf16.msra.mxu0 %v5618
        %5674 = vmatprep.subr.bf16.mxu0 0
        %5675 = vmatpush1.bf16.msra.mxu0 %v5619
        %5676 = vmatprep.subr.bf16.mxu0 0
        %5677 = vmatpush1.bf16.msra.mxu0 %v5620
        %5678 = vmatprep.subr.bf16.mxu0 0
        %5679 = vmatpush1.bf16.msra.mxu0 %v5621
        %5680 = vmatprep.subr.bf16.mxu0 0
        %5681 = vmatpush1.bf16.msra.mxu0 %v5622
        %5682 = vmatprep.subr.bf16.mxu0 0
        %5683 = vmatpush1.bf16.msra.mxu0 %v5623
        %5684 = vmatprep.subr.bf16.mxu0 0
        %5685 = vmatpush1.bf16.msra.mxu0 %v5624
        %5686 = vmatprep.subr.bf16.mxu0 0
        %5687 = vmatpush1.bf16.msra.mxu0 %v5625
        %5688 = vmatprep.mubr.bf16.mxu0 %v5521
        %5689 = vmatmul.mubr.bf16.gmra.mrb[0].mxu0 %v5520
        %v5690 = vpop.f32.mrb[0].mxu0
        %v5691 = vadd.f32 %v5529, %v5690
        %v5692 = vpop.f32.mrb[0].mxu0
        %v5693 = vpop.f32.mrb[0].mxu0
        %v5694 = vadd.f32 %v5529, %v5693
        %v5695 = vpop.f32.mrb[0].mxu0
        %5696 = vmatprep.mubr.bf16.mxu0 %v5524
        %5697 = vmatmul.mubr.bf16.gmra.mrb[0].mxu0 %v5523
        %v5698 = vpop.f32.mrb[0].mxu0
        %v5699 = vadd.f32 %v5529, %v5698
        %v5700 = vpop.f32.mrb[0].mxu0
        %v5701 = vpop.f32.mrb[0].mxu0
        %v5702 = vadd.f32 %v5529, %v5701
        %v5703 = vpop.f32.mrb[0].mxu0
        %5704 = vdwg.mxu0
        %5705 = vmatprep.subr.bf16.mxu0 0
        %5706 = vmatpush1.bf16.msra.mxu0 %v5626
        %5707 = vmatprep.subr.bf16.mxu0 0
        %5708 = vmatpush1.bf16.msra.mxu0 %v5627
        %5709 = vmatprep.subr.bf16.mxu0 0
        %5710 = vmatpush1.bf16.msra.mxu0 %v5628
        %5711 = vmatprep.subr.bf16.mxu0 0
        %5712 = vmatpush1.bf16.msra.mxu0 %v5629
        %5713 = vmatprep.subr.bf16.mxu0 0
        %5714 = vmatpush1.bf16.msra.mxu0 0
        %5715 = vmatprep.subr.bf16.mxu0 0
        %5716 = vmatpush1.bf16.msra.mxu0 0
        %5717 = vmatprep.subr.bf16.mxu0 0
        %5718 = vmatpush1.bf16.msra.mxu0 0
        %5719 = vmatprep.subr.bf16.mxu0 0
        %5720 = vmatpush1.bf16.msra.mxu0 0
        %5721 = vmatprep.subr.bf16.mxu0 0
        %5722 = vmatpush1.bf16.msra.mxu0 0
        %5723 = vmatprep.subr.bf16.mxu0 0
        %5724 = vmatpush1.bf16.msra.mxu0 0
        %5725 = vmatprep.subr.bf16.mxu0 0
        %5726 = vmatpush1.bf16.msra.mxu0 0
        %5727 = vmatprep.subr.bf16.mxu0 0
        %5728 = vmatpush1.bf16.msra.mxu0 0
        %5729 = vmatprep.subr.bf16.mxu0 0
        %5730 = vmatpush1.bf16.msra.mxu0 0
        %5731 = vmatprep.subr.bf16.mxu0 0
        %5732 = vmatpush1.bf16.msra.mxu0 0
        %5733 = vmatprep.subr.bf16.mxu0 0
        %5734 = vmatpush1.bf16.msra.mxu0 0
        %5735 = vmatprep.subr.bf16.mxu0 0
        %5736 = vmatpush1.bf16.msra.mxu0 0
        %5737 = vmatprep.mubr.bf16.mxu0 0
        %5738 = vmatmul.mubr.bf16.gmra.mrb[0].mxu0 %v5651
        %v5739 = vpop.f32.mrb[0].mxu0
        %v5740 = vadd.f32 %v5691, %v5739
        %v5741 = vpop.f32.mrb[0].mxu0
        %v5742 = vpop.f32.mrb[0].mxu0
        %v5743 = vadd.f32 %v5694, %v5742
        %v5744 = vpop.f32.mrb[0].mxu0
        %5745 = vmatprep.mubr.bf16.mxu0 0
        %5746 = vmatmul.mubr.bf16.gmra.mrb[0].mxu0 %v5654
        %v5747 = vpop.f32.mrb[0].mxu0
        %v5748 = vadd.f32 %v5699, %v5747
        %v5749 = vpop.f32.mrb[0].mxu0
        %v5750 = vpop.f32.mrb[0].mxu0
        %v5751 = vadd.f32 %v5702, %v5750
        %v5752 = vpop.f32.mrb[0].mxu0
        %5753 = vdwg.mxu0
        %vm5754 = vcmp.ge.f32.partialorder %v5740, 0.0
        %vm5755 = vcmp.ge.f32.partialorder %v5743, 0.0
        %vm5756 = vcmp.ge.f32.partialorder %v5748, 0.0
        %vm5757 = vcmp.ge.f32.partialorder %v5751, 0.0
        %v5758 = vmul.f32 %v5740, 0.01
        %v5759 = vmul.f32 %v5743, 0.01
        %v5760 = vmul.f32 %v5748, 0.01
        %v5761 = vmul.f32 %v5751, 0.01
        %v5762 = vsel %vm5754, %v5740, %v5758
        %v5763 = vsel %vm5755, %v5743, %v5759
        %v5764 = vsel %vm5756, %v5748, %v5760
        %v5765 = vsel %vm5757, %v5751, %v5761
        %v5766 = vlaneseq
        %v5767 = vshrl.u32 %v5766, 7
        %v5768 = vsub.s32 1, %v5767
        %v5769 = vrot.slane %v994, %v5768
        %v5770 = vmul.f32 %v5762, %v5769
        %v5771 = vmul.f32 %v5763, %v5769
        %v5772 = vmul.f32 %v5764, %v5769
        %v5773 = vmul.f32 %v5765, %v5769
        %v5774 = vlaneseq
        %v5775 = vshrl.u32 %v5774, 7
        %v5776 = vsub.s32 2, %v5775
        %v5777 = vrot.slane %v994, %v5776
        %v5778 = vadd.f32 %v5770, %v5777
        %v5779 = vadd.f32 %v5771, %v5777
        %v5780 = vadd.f32 %v5772, %v5777
        %v5781 = vadd.f32 %v5773, %v5777
        %v5782 = vrot.slane %v5778, 6
        %v5783 = vsel %vm1218, %v5782, %v5781
        %v5788 = vrot.slane %v5778, 1
        %v5789 = vrot.slane %v5779, 1
        %v5790 = vsel %vm1225, %v5788, %v5789
        %v5791 = vrot.slane %v5780, 1
        %v5792 = vsel %vm1225, %v5789, %v5791
        %v5793 = vrot.slane %v5783, 1
        %v5794 = vsel %vm1225, %v5791, %v5793
        %5795 = vrot.lane.b32.xlu0 %v5790, 32
        %v5796 = vpop.permute.xlu0 %5795
        %5797 = vrot.lane.b32.xlu0 %v5792, 32
        %v5798 = vpop.permute.xlu0 %5797
        %5799 = vrot.lane.b32.xlu0 %v5794, 32
        %v5800 = vpop.permute.xlu0 %5799
        %5801 = vrot.lane.b32.xlu0 %v5793, 32
        %v5802 = vpop.permute.xlu0 %5801
        %v5807 = vrot.slane %v5778, 2
        %v5808 = vrot.slane %v5779, 2
        %v5809 = vsel %vm1237, %v5807, %v5808
        %v5810 = vrot.slane %v5780, 2
        %v5811 = vsel %vm1237, %v5808, %v5810
        %v5812 = vrot.slane %v5783, 2
        %v5813 = vsel %vm1237, %v5810, %v5812
        %5814 = vrot.lane.b32.xlu0 %v5809, 64
        %v5815 = vpop.permute.xlu0 %5814
        %5816 = vrot.lane.b32.xlu0 %v5811, 64
        %v5817 = vpop.permute.xlu0 %5816
        %5818 = vrot.lane.b32.xlu0 %v5813, 64
        %v5819 = vpop.permute.xlu0 %5818
        %5820 = vrot.lane.b32.xlu0 %v5812, 64
        %v5821 = vpop.permute.xlu0 %5820
        %v5826 = vrot.slane %v5778, 3
        %v5827 = vrot.slane %v5779, 3
        %v5828 = vsel %vm1249, %v5826, %v5827
        %v5829 = vrot.slane %v5780, 3
        %v5830 = vsel %vm1249, %v5827, %v5829
        %v5831 = vrot.slane %v5783, 3
        %v5832 = vsel %vm1249, %v5829, %v5831
        %5833 = vrot.lane.b32.xlu0 %v5828, 96
        %v5834 = vpop.permute.xlu0 %5833
        %5835 = vrot.lane.b32.xlu0 %v5830, 96
        %v5836 = vpop.permute.xlu0 %5835
        %5837 = vrot.lane.b32.xlu0 %v5832, 96
        %v5838 = vpop.permute.xlu0 %5837
        %5839 = vrot.lane.b32.xlu0 %v5831, 96
        %v5840 = vpop.permute.xlu0 %5839
        %vm5845 = vcmask 261120
        %v5846 = vsel %vm5845, %v5778, %v5796
        %v5847 = vsel %vm5845, %v5779, %v5798
        %v5848 = vsel %vm5845, %v5780, %v5800
        %v5849 = vsel %vm5845, %v5781, %v5802
        %v5850 = vsel %vm2138, %v5846, %v5815
        %v5851 = vsel %vm2138, %v5847, %v5817
        %v5852 = vsel %vm2138, %v5848, %v5819
        %v5853 = vsel %vm2138, %v5849, %v5821
        %vm5854 = vcmask 785408
        %v5855 = vsel %vm5854, %v5850, %v5834
        %v5856 = vsel %vm5854, %v5851, %v5836
        %v5857 = vsel %vm5854, %v5852, %v5838
        %v5858 = vsel %vm5854, %v5853, %v5840
        %v5859 = vpack.c.bf16 %v5856, %v5855
        %v5860 = vpack.c.bf16 %v5858, %v5857
        %v5861 = vlaneseq
        %v5862 = vshrl.u32 %v5861, 7
        %v5863 = vsub.s32 3, %v5862
        %v5864 = vrot.slane %v994, %v5863
        %v5881 = vunpack.c.l.b16 %v962
        %v5882 = vunpack.c.l.b16 %v963
        %v5883 = vunpack.c.l.b16 %v964
        %v5884 = vunpack.c.l.b16 %v965
        %v5885 = vunpack.c.l.b16 %v966
        %v5886 = vunpack.c.l.b16 %v967
        %v5887 = vunpack.c.l.b16 %v968
        %v5888 = vunpack.c.l.b16 %v969
        %v5889 = vunpack.c.l.b16 %v970
        %v5890 = vunpack.c.l.b16 %v971
        %v5891 = vunpack.c.l.b16 %v972
        %v5892 = vunpack.c.l.b16 %v973
        %v5893 = vunpack.c.l.b16 %v974
        %v5894 = vunpack.c.l.b16 %v975
        %v5895 = vunpack.c.l.b16 %v976
        %v5896 = vunpack.c.l.b16 %v977
        %v5897 = vpack.c.b16 %v5882, %v5881
        %v5898 = vpack.c.b16 %v5884, %v5883
        %v5899 = vpack.c.b16 %v5886, %v5885
        %v5900 = vpack.c.b16 %v5888, %v5887
        %v5901 = vpack.c.b16 %v5890, %v5889
        %v5902 = vpack.c.b16 %v5892, %v5891
        %v5903 = vpack.c.b16 %v5894, %v5893
        %v5904 = vpack.c.b16 %v5896, %v5895
        %5913 = vmatprep.subr.bf16.mxu0 0
        %5914 = vmatpush1.bf16.msra.mxu0 %v5897
        %5915 = vmatprep.subr.bf16.mxu0 0
        %5916 = vmatpush1.bf16.msra.mxu0 %v5898
        %5917 = vmatprep.subr.bf16.mxu0 0
        %5918 = vmatpush1.bf16.msra.mxu0 %v5899
        %5919 = vmatprep.subr.bf16.mxu0 0
        %5920 = vmatpush1.bf16.msra.mxu0 %v5900
        %5921 = vmatprep.subr.bf16.mxu0 0
        %5922 = vmatpush1.bf16.msra.mxu0 %v5901
        %5923 = vmatprep.subr.bf16.mxu0 0
        %5924 = vmatpush1.bf16.msra.mxu0 %v5902
        %5925 = vmatprep.subr.bf16.mxu0 0
        %5926 = vmatpush1.bf16.msra.mxu0 %v5903
        %5927 = vmatprep.subr.bf16.mxu0 0
        %5928 = vmatpush1.bf16.msra.mxu0 %v5904
        %5929 = vmatprep.subr.bf16.mxu0 0
        %5930 = vmatpush1.bf16.msra.mxu0 0
        %5931 = vmatprep.subr.bf16.mxu0 0
        %5932 = vmatpush1.bf16.msra.mxu0 0
        %5933 = vmatprep.subr.bf16.mxu0 0
        %5934 = vmatpush1.bf16.msra.mxu0 0
        %5935 = vmatprep.subr.bf16.mxu0 0
        %5936 = vmatpush1.bf16.msra.mxu0 0
        %5937 = vmatprep.subr.bf16.mxu0 0
        %5938 = vmatpush1.bf16.msra.mxu0 0
        %5939 = vmatprep.subr.bf16.mxu0 0
        %5940 = vmatpush1.bf16.msra.mxu0 0
        %5941 = vmatprep.subr.bf16.mxu0 0
        %5942 = vmatpush1.bf16.msra.mxu0 0
        %5943 = vmatprep.subr.bf16.mxu0 0
        %5944 = vmatpush1.bf16.msra.mxu0 0
        %5945 = vmatprep.mubr.bf16.mxu0 0
        %5946 = vmatmul.mubr.bf16.gmra.mrb[0].mxu0 %v5859
        %v5947 = vpop.f32.mrb[0].mxu0
        %v5948 = vadd.f32 %v5864, %v5947
        %v5949 = vpop.f32.mrb[0].mxu0
        %v5950 = vpop.f32.mrb[0].mxu0
        %v5951 = vadd.f32 %v5864, %v5950
        %v5952 = vpop.f32.mrb[0].mxu0
        %5953 = vmatprep.mubr.bf16.mxu0 0
        %5954 = vmatmul.mubr.bf16.gmra.mrb[0].mxu0 %v5860
        %v5955 = vpop.f32.mrb[0].mxu0
        %v5956 = vadd.f32 %v5864, %v5955
        %v5957 = vpop.f32.mrb[0].mxu0
        %v5958 = vpop.f32.mrb[0].mxu0
        %v5959 = vadd.f32 %v5864, %v5958
        %v5960 = vpop.f32.mrb[0].mxu0
        %5961 = vdwg.mxu0
        %vm5962 = vcmp.ge.f32.partialorder %v5948, 0.0
        %vm5963 = vcmp.ge.f32.partialorder %v5951, 0.0
        %vm5964 = vcmp.ge.f32.partialorder %v5956, 0.0
        %vm5965 = vcmp.ge.f32.partialorder %v5959, 0.0
        %v5966 = vmul.f32 %v5948, 0.01
        %v5967 = vmul.f32 %v5951, 0.01
        %v5968 = vmul.f32 %v5956, 0.01
        %v5969 = vmul.f32 %v5959, 0.01
        %v5970 = vsel %vm5962, %v5948, %v5966
        %v5971 = vsel %vm5963, %v5951, %v5967
        %v5972 = vsel %vm5964, %v5956, %v5968
        %v5973 = vsel %vm5965, %v5959, %v5969
        %v5974 = vlaneseq
        %v5975 = vshrl.u32 %v5974, 7
        %v5976 = vsub.s32 4, %v5975
        %v5977 = vrot.slane %v994, %v5976
        %v5978 = vmul.f32 %v5970, %v5977
        %v5979 = vmul.f32 %v5971, %v5977
        %v5980 = vmul.f32 %v5972, %v5977
        %v5981 = vmul.f32 %v5973, %v5977
        %v5982 = vlaneseq
        %v5983 = vshrl.u32 %v5982, 7
        %v5984 = vsub.s32 5, %v5983
        %v5985 = vrot.slane %v994, %v5984
        %v5986 = vadd.f32 %v5978, %v5985
        %v5987 = vadd.f32 %v5979, %v5985
        %v5988 = vadd.f32 %v5980, %v5985
        %v5989 = vadd.f32 %v5981, %v5985
        %v5990 = vrot.slane %v5986, 6
        %v5991 = vsel %vm1218, %v5990, %v5989
        %v5996 = vrot.slane %v5986, 1
        %v5997 = vrot.slane %v5987, 1
        %v5998 = vsel %vm1225, %v5996, %v5997
        %v5999 = vrot.slane %v5988, 1
        %v6000 = vsel %vm1225, %v5997, %v5999
        %v6001 = vrot.slane %v5991, 1
        %v6002 = vsel %vm1225, %v5999, %v6001
        %6003 = vrot.lane.b32.xlu0 %v5998, 32
        %v6004 = vpop.permute.xlu0 %6003
        %6005 = vrot.lane.b32.xlu0 %v6000, 32
        %v6006 = vpop.permute.xlu0 %6005
        %6007 = vrot.lane.b32.xlu0 %v6002, 32
        %v6008 = vpop.permute.xlu0 %6007
        %6009 = vrot.lane.b32.xlu0 %v6001, 32
        %v6010 = vpop.permute.xlu0 %6009
        %v6015 = vrot.slane %v5986, 2
        %v6016 = vrot.slane %v5987, 2
        %v6017 = vsel %vm1237, %v6015, %v6016
        %v6018 = vrot.slane %v5988, 2
        %v6019 = vsel %vm1237, %v6016, %v6018
        %v6020 = vrot.slane %v5991, 2
        %v6021 = vsel %vm1237, %v6018, %v6020
        %6022 = vrot.lane.b32.xlu0 %v6017, 64
        %v6023 = vpop.permute.xlu0 %6022
        %6024 = vrot.lane.b32.xlu0 %v6019, 64
        %v6025 = vpop.permute.xlu0 %6024
        %6026 = vrot.lane.b32.xlu0 %v6021, 64
        %v6027 = vpop.permute.xlu0 %6026
        %6028 = vrot.lane.b32.xlu0 %v6020, 64
        %v6029 = vpop.permute.xlu0 %6028
        %v6034 = vrot.slane %v5986, 3
        %v6035 = vrot.slane %v5987, 3
        %v6036 = vsel %vm1249, %v6034, %v6035
        %v6037 = vrot.slane %v5988, 3
        %v6038 = vsel %vm1249, %v6035, %v6037
        %v6039 = vrot.slane %v5991, 3
        %v6040 = vsel %vm1249, %v6037, %v6039
        %6041 = vrot.lane.b32.xlu0 %v6036, 96
        %v6042 = vpop.permute.xlu0 %6041
        %6043 = vrot.lane.b32.xlu0 %v6038, 96
        %v6044 = vpop.permute.xlu0 %6043
        %6045 = vrot.lane.b32.xlu0 %v6040, 96
        %v6046 = vpop.permute.xlu0 %6045
        %6047 = vrot.lane.b32.xlu0 %v6039, 96
        %v6048 = vpop.permute.xlu0 %6047
        %v6053 = vsel %vm5845, %v5986, %v6004
        %v6054 = vsel %vm5845, %v5987, %v6006
        %v6055 = vsel %vm5845, %v5988, %v6008
        %v6056 = vsel %vm5845, %v5989, %v6010
        %v6057 = vsel %vm2138, %v6053, %v6023
        %v6058 = vsel %vm2138, %v6054, %v6025
        %v6059 = vsel %vm2138, %v6055, %v6027
        %v6060 = vsel %vm2138, %v6056, %v6029
        %v6061 = vsel %vm5854, %v6057, %v6042
        %v6062 = vsel %vm5854, %v6058, %v6044
        %v6063 = vsel %vm5854, %v6059, %v6046
        %v6064 = vsel %vm5854, %v6060, %v6048
        %v6065 = vpack.c.bf16 %v6062, %v6061
        %v6066 = vpack.c.bf16 %v6064, %v6063
        %v6067 = vlaneseq
        %v6068 = vshrl.u32 %v6067, 7
        %v6069 = vsub.s32 6, %v6068
        %v6070 = vrot.slane %v994, %v6069
        %v6087 = vunpack.c.l.b16 %v978
        %v6088 = vunpack.c.l.b16 %v979
        %v6089 = vunpack.c.l.b16 %v980
        %v6090 = vunpack.c.l.b16 %v981
        %v6091 = vunpack.c.l.b16 %v982
        %v6092 = vunpack.c.l.b16 %v983
        %v6093 = vunpack.c.l.b16 %v984
        %v6094 = vunpack.c.l.b16 %v985
        %v6095 = vunpack.c.l.b16 %v986
        %v6096 = vunpack.c.l.b16 %v987
        %v6097 = vunpack.c.l.b16 %v988
        %v6098 = vunpack.c.l.b16 %v989
        %v6099 = vunpack.c.l.b16 %v990
        %v6100 = vunpack.c.l.b16 %v991
        %v6101 = vunpack.c.l.b16 %v992
        %v6102 = vunpack.c.l.b16 %v993
        %v6103 = vpack.c.b16 %v6088, %v6087
        %v6104 = vpack.c.b16 %v6090, %v6089
        %v6105 = vpack.c.b16 %v6092, %v6091
        %v6106 = vpack.c.b16 %v6094, %v6093
        %v6107 = vpack.c.b16 %v6096, %v6095
        %v6108 = vpack.c.b16 %v6098, %v6097
        %v6109 = vpack.c.b16 %v6100, %v6099
        %v6110 = vpack.c.b16 %v6102, %v6101
        %6119 = vmatprep.subr.bf16.mxu0 0
        %6120 = vmatpush1.bf16.msra.mxu0 %v6103
        %6121 = vmatprep.subr.bf16.mxu0 0
        %6122 = vmatpush1.bf16.msra.mxu0 %v6104
        %6123 = vmatprep.subr.bf16.mxu0 0
        %6124 = vmatpush1.bf16.msra.mxu0 %v6105
        %6125 = vmatprep.subr.bf16.mxu0 0
        %6126 = vmatpush1.bf16.msra.mxu0 %v6106
        %6127 = vmatprep.subr.bf16.mxu0 0
        %6128 = vmatpush1.bf16.msra.mxu0 %v6107
        %6129 = vmatprep.subr.bf16.mxu0 0
        %6130 = vmatpush1.bf16.msra.mxu0 %v6108
        %6131 = vmatprep.subr.bf16.mxu0 0
        %6132 = vmatpush1.bf16.msra.mxu0 %v6109
        %6133 = vmatprep.subr.bf16.mxu0 0
        %6134 = vmatpush1.bf16.msra.mxu0 %v6110
        %6135 = vmatprep.subr.bf16.mxu0 0
        %6136 = vmatpush1.bf16.msra.mxu0 0
        %6137 = vmatprep.subr.bf16.mxu0 0
        %6138 = vmatpush1.bf16.msra.mxu0 0
        %6139 = vmatprep.subr.bf16.mxu0 0
        %6140 = vmatpush1.bf16.msra.mxu0 0
        %6141 = vmatprep.subr.bf16.mxu0 0
        %6142 = vmatpush1.bf16.msra.mxu0 0
        %6143 = vmatprep.subr.bf16.mxu0 0
        %6144 = vmatpush1.bf16.msra.mxu0 0
        %6145 = vmatprep.subr.bf16.mxu0 0
        %6146 = vmatpush1.bf16.msra.mxu0 0
        %6147 = vmatprep.subr.bf16.mxu0 0
        %6148 = vmatpush1.bf16.msra.mxu0 0
        %6149 = vmatprep.subr.bf16.mxu0 0
        %6150 = vmatpush1.bf16.msra.mxu0 0
        %6151 = vmatprep.mubr.bf16.mxu0 0
        %6152 = vmatmul.mubr.bf16.gmra.mrb[0].mxu0 %v6065
        %v6153 = vpop.f32.mrb[0].mxu0
        %v6154 = vadd.f32 %v6070, %v6153
        %v6155 = vpop.f32.mrb[0].mxu0
        %v6156 = vpop.f32.mrb[0].mxu0
        %v6157 = vadd.f32 %v6070, %v6156
        %v6158 = vpop.f32.mrb[0].mxu0
        %6159 = vmatprep.mubr.bf16.mxu0 0
        %6160 = vmatmul.mubr.bf16.gmra.mrb[0].mxu0 %v6066
        %v6161 = vpop.f32.mrb[0].mxu0
        %v6162 = vadd.f32 %v6070, %v6161
        %v6163 = vpop.f32.mrb[0].mxu0
        %v6164 = vpop.f32.mrb[0].mxu0
        %v6165 = vadd.f32 %v6070, %v6164
        %v6166 = vpop.f32.mrb[0].mxu0
        %6167 = vdwg.mxu0
        %vm6168 = vcmp.ge.f32.partialorder %v6154, 0.0
        %vm6169 = vcmp.ge.f32.partialorder %v6157, 0.0
        %vm6170 = vcmp.ge.f32.partialorder %v6162, 0.0
        %vm6171 = vcmp.ge.f32.partialorder %v6165, 0.0
        %v6172 = vmul.f32 %v6154, 0.01
        %v6173 = vmul.f32 %v6157, 0.01
        %v6174 = vmul.f32 %v6162, 0.01
        %v6175 = vmul.f32 %v6165, 0.01
        %v6176 = vsel %vm6168, %v6154, %v6172
        %v6177 = vsel %vm6169, %v6157, %v6173
        %v6178 = vsel %vm6170, %v6162, %v6174
        %v6179 = vsel %vm6171, %v6165, %v6175
        %v6180 = vlaneseq
        %v6181 = vshrl.u32 %v6180, 7
        %v6182 = vsub.s32 7, %v6181
        %v6183 = vrot.slane %v994, %v6182
        %v6184 = vmul.f32 %v6176, %v6183
        %v6185 = vmul.f32 %v6177, %v6183
        %v6186 = vmul.f32 %v6178, %v6183
        %v6187 = vmul.f32 %v6179, %v6183
        %v6188 = vlaneseq
        %v6189 = vshrl.u32 %v6188, 7
        %v6190 = vsub.s32 0, %v6189
        %v6191 = vrot.slane %v995, %v6190
        %v6192 = vadd.f32 %v6184, %v6191
        %v6193 = vadd.f32 %v6185, %v6191
        %v6194 = vadd.f32 %v6186, %v6191
        %v6195 = vadd.f32 %v6187, %v6191
        %v6196 = vrot.slane %v6192, 6
        %v6197 = vsel %vm1218, %v6196, %v6195
        %v6198 = vrot.slane %v6193, 6
        %v6199 = vrot.slane %v6194, 6
        %v6200 = vrot.slane %v6197, 6
        %v6201 = vsel %vm1218, %v6198, %v6196
        %v6202 = vsel %vm1218, %v6199, %v6198
        %v6203 = vsel %vm1218, %v6200, %v6199
        %v6204 = vlaneseq
        %v6205 = vshrl.u32 %v6204, 7
        %v6206 = vadd.s32 %v6205, 8
        %v6207 = vadd.s32 %v6205, 16
        %v6208 = vadd.s32 %v6205, 24
        %v6209 = vadd.s32 %v6205, 4294967295
        %v6210 = vadd.s32 %v6206, 4294967295
        %v6211 = vadd.s32 %v6207, 4294967295
        %v6212 = vadd.s32 %v6208, 4294967295
        %vm6213 = vcmp.ge.s32.totalorder %v6209, 0
        %vm6214 = vcmp.ge.s32.totalorder %v6210, 0
        %vm6215 = vcmp.ge.s32.totalorder %v6211, 0
        %vm6216 = vcmp.ge.s32.totalorder %v6212, 0
        %vm6217 = vcmp.le.s32.totalorder %v6209, 7
        %vm6218 = vcmp.le.s32.totalorder %v6210, 7
        %vm6219 = vcmp.le.s32.totalorder %v6211, 7
        %vm6220 = vcmp.le.s32.totalorder %v6212, 7
        %vm6221 = vmand %vm6213, %vm6217
        %vm6222 = vmand %vm6214, %vm6218
        %vm6223 = vmand %vm6215, %vm6219
        %vm6224 = vmand %vm6216, %vm6220
        %v6229 = vrot.slane %v6197, 1
        %v6230 = vrot.slane %v6201, 1
        %v6231 = vsel %vm1225, %v6229, %v6230
        %v6232 = vrot.slane %v6202, 1
        %v6233 = vsel %vm1225, %v6230, %v6232
        %v6234 = vrot.slane %v6203, 1
        %v6235 = vsel %vm1225, %v6232, %v6234
        %v6240 = vsel %vm6221, %v6231, -inf
        %v6241 = vsel %vm6222, %v6233, -inf
        %v6242 = vsel %vm6223, %v6235, -inf
        %v6243 = vsel %vm6224, %v6234, -inf
        %v6244 = vmax.f32 %v6240, %v6192
        %v6245 = vmax.f32 %v6241, %v6193
        %v6246 = vmax.f32 %v6242, %v6194
        %v6247 = vmax.f32 %v6243, %v6195
        %v6248 = vadd.s32 %v6205, 1
        %v6249 = vadd.s32 %v6206, 1
        %v6250 = vadd.s32 %v6207, 1
        %v6251 = vadd.s32 %v6208, 1
        %vm6252 = vcmp.ge.s32.totalorder %v6248, 0
        %vm6253 = vcmp.ge.s32.totalorder %v6249, 0
        %vm6254 = vcmp.ge.s32.totalorder %v6250, 0
        %vm6255 = vcmp.ge.s32.totalorder %v6251, 0
        %vm6256 = vcmp.le.s32.totalorder %v6248, 7
        %vm6257 = vcmp.le.s32.totalorder %v6249, 7
        %vm6258 = vcmp.le.s32.totalorder %v6250, 7
        %vm6259 = vcmp.le.s32.totalorder %v6251, 7
        %vm6260 = vmand %vm6252, %vm6256
        %vm6261 = vmand %vm6253, %vm6257
        %vm6262 = vmand %vm6254, %vm6258
        %vm6263 = vmand %vm6255, %vm6259
        %v6267 = vrot.slane %v6192, 1
        %v6268 = vrot.slane %v6193, 1
        %v6269 = vsel %vm1225, %v6267, %v6268
        %v6270 = vrot.slane %v6194, 1
        %v6271 = vsel %vm1225, %v6268, %v6270
        %v6272 = vsel %vm1225, %v6270, %v6229
        %v6277 = vsel %vm6260, %v6269, -inf
        %v6278 = vsel %vm6261, %v6271, -inf
        %v6279 = vsel %vm6262, %v6272, -inf
        %v6280 = vsel %vm6263, %v6229, -inf
        %v6281 = vmax.f32 %v6244, %v6277
        %v6282 = vmax.f32 %v6245, %v6278
        %v6283 = vmax.f32 %v6246, %v6279
        %v6284 = vmax.f32 %v6247, %v6280
        %6289 = vrot.lane.b32.xlu0 %v6281, 32
        %v6290 = vpop.permute.xlu0 %6289
        %6291 = vrot.lane.b32.xlu0 %v6282, 32
        %v6292 = vpop.permute.xlu0 %6291
        %6293 = vrot.lane.b32.xlu0 %v6283, 32
        %v6294 = vpop.permute.xlu0 %6293
        %6295 = vrot.lane.b32.xlu0 %v6284, 32
        %v6296 = vpop.permute.xlu0 %6295
        %v6301 = vsel %vm5845, %v6192, %v6290
        %v6302 = vsel %vm5845, %v6193, %v6292
        %v6303 = vsel %vm5845, %v6194, %v6294
        %v6304 = vsel %vm5845, %v6195, %v6296
        %v6305 = vpack.c.bf16 %v6302, %v6301
        %v6306 = vpack.c.bf16 %v6304, %v6303
        %v6308 = vlaneseq
        %v6309 = vshrl.u32 %v6308, 7
        %v6310 = vsub.s32 0, %v6309
        %v6311 = vrot.slane %v1004, %v6310
        %v6312 = vlaneseq
        %v6313 = vshrl.u32 %v6312, 7
        %v6314 = vsub.s32 4, %v6313
        %v6315 = vrot.slane %v1004, %v6314
        %v6318 = vlaneseq
        %v6319 = vshrl.u32 %v6318, 7
        %v6320 = vsub.s32 0, %v6319
        %v6321 = vrot.slane %v6311, %v6320
        %v6322 = vlaneseq
        %v6323 = vshrl.u32 %v6322, 7
        %v6324 = vsub.s32 0, %v6323
        %v6325 = vrot.slane %v6315, %v6324
        %v6334 = vunpack.c.l.b16 %v996
        %v6335 = vunpack.c.h.b16 %v996
        %v6336 = vunpack.c.l.b16 %v997
        %v6337 = vunpack.c.h.b16 %v997
        %v6338 = vunpack.c.l.b16 %v998
        %v6339 = vunpack.c.h.b16 %v998
        %v6340 = vunpack.c.l.b16 %v999
        %v6341 = vunpack.c.h.b16 %v999
        %v6342 = vunpack.c.l.b16 %v1000
        %v6343 = vunpack.c.h.b16 %v1000
        %v6344 = vunpack.c.l.b16 %v1001
        %v6345 = vunpack.c.h.b16 %v1001
        %v6346 = vunpack.c.l.b16 %v1002
        %v6347 = vunpack.c.h.b16 %v1002
        %v6348 = vunpack.c.l.b16 %v1003
        %v6349 = vunpack.c.h.b16 %v1003
        %v6350 = vpack.c.b16 %v6336, %v6334
        %v6351 = vpack.c.b16 %v6337, %v6335
        %v6352 = vpack.c.b16 %v6340, %v6338
        %v6353 = vpack.c.b16 %v6341, %v6339
        %v6354 = vpack.c.b16 %v6344, %v6342
        %v6355 = vpack.c.b16 %v6345, %v6343
        %v6356 = vpack.c.b16 %v6348, %v6346
        %v6357 = vpack.c.b16 %v6349, %v6347
        %v6367 = vsel %vm2138, %v6305, 0
        %v6370 = vsel %vm2138, %v6306, 0
        %6372 = vmatprep.subr.bf16.mxu0 %v6351
        %6373 = vmatpush1.bf16.msra.mxu0 %v6350
        %6374 = vmatprep.subr.bf16.mxu0 %v6353
        %6375 = vmatpush1.bf16.msra.mxu0 %v6352
        %6376 = vmatprep.subr.bf16.mxu0 %v6355
        %6377 = vmatpush1.bf16.msra.mxu0 %v6354
        %6378 = vmatprep.subr.bf16.mxu0 %v6357
        %6379 = vmatpush1.bf16.msra.mxu0 %v6356
        %6380 = vmatprep.subr.bf16.mxu0 0
        %6381 = vmatpush1.bf16.msra.mxu0 0
        %6382 = vmatprep.subr.bf16.mxu0 0
        %6383 = vmatpush1.bf16.msra.mxu0 0
        %6384 = vmatprep.subr.bf16.mxu0 0
        %6385 = vmatpush1.bf16.msra.mxu0 0
        %6386 = vmatprep.subr.bf16.mxu0 0
        %6387 = vmatpush1.bf16.msra.mxu0 0
        %6388 = vmatprep.subr.bf16.mxu0 0
        %6389 = vmatpush1.bf16.msra.mxu0 0
        %6390 = vmatprep.subr.bf16.mxu0 0
        %6391 = vmatpush1.bf16.msra.mxu0 0
        %6392 = vmatprep.subr.bf16.mxu0 0
        %6393 = vmatpush1.bf16.msra.mxu0 0
        %6394 = vmatprep.subr.bf16.mxu0 0
        %6395 = vmatpush1.bf16.msra.mxu0 0
        %6396 = vmatprep.subr.bf16.mxu0 0
        %6397 = vmatpush1.bf16.msra.mxu0 0
        %6398 = vmatprep.subr.bf16.mxu0 0
        %6399 = vmatpush1.bf16.msra.mxu0 0
        %6400 = vmatprep.subr.bf16.mxu0 0
        %6401 = vmatpush1.bf16.msra.mxu0 0
        %6402 = vmatprep.subr.bf16.mxu0 0
        %6403 = vmatpush1.bf16.msra.mxu0 0
        %6404 = vmatprep.mubr.bf16.mxu0 0
        %6405 = vmatmul.mubr.bf16.gmra.mrb[0].mxu0 %v6367
        %v6406 = vpop.f32.mrb[0].mxu0
        %v6407 = vadd.f32 %v6321, %v6406
        %v6408 = vpop.f32.mrb[0].mxu0
        %v6409 = vadd.f32 %v6325, %v6408
        %v6410 = vpop.f32.mrb[0].mxu0
        %v6411 = vadd.f32 %v6321, %v6410
        %v6412 = vpop.f32.mrb[0].mxu0
        %v6413 = vadd.f32 %v6325, %v6412
        %6414 = vmatprep.mubr.bf16.mxu0 0
        %6415 = vmatmul.mubr.bf16.gmra.mrb[0].mxu0 %v6370
        %v6416 = vpop.f32.mrb[0].mxu0
        %v6417 = vadd.f32 %v6321, %v6416
        %v6418 = vpop.f32.mrb[0].mxu0
        %v6419 = vadd.f32 %v6325, %v6418
        %v6420 = vpop.f32.mrb[0].mxu0
        %v6421 = vadd.f32 %v6321, %v6420
        %v6422 = vpop.f32.mrb[0].mxu0
        %v6423 = vadd.f32 %v6325, %v6422
        %6424 = vdwg.mxu0
        %vm6425 = vcmp.ge.f32.partialorder %v6407, 0.0
        %vm6426 = vcmp.ge.f32.partialorder %v6409, 0.0
        %vm6427 = vcmp.ge.f32.partialorder %v6411, 0.0
        %vm6428 = vcmp.ge.f32.partialorder %v6413, 0.0
        %vm6429 = vcmp.ge.f32.partialorder %v6417, 0.0
        %vm6430 = vcmp.ge.f32.partialorder %v6419, 0.0
        %vm6431 = vcmp.ge.f32.partialorder %v6421, 0.0
        %vm6432 = vcmp.ge.f32.partialorder %v6423, 0.0
        %v6433 = vmul.f32 %v6407, 0.01
        %v6434 = vmul.f32 %v6409, 0.01
        %v6435 = vmul.f32 %v6411, 0.01
        %v6436 = vmul.f32 %v6413, 0.01
        %v6437 = vmul.f32 %v6417, 0.01
        %v6438 = vmul.f32 %v6419, 0.01
        %v6439 = vmul.f32 %v6421, 0.01
        %v6440 = vmul.f32 %v6423, 0.01
        %v6441 = vsel %vm6425, %v6407, %v6433
        %v6442 = vsel %vm6426, %v6409, %v6434
        %v6443 = vsel %vm6427, %v6411, %v6435
        %v6444 = vsel %vm6428, %v6413, %v6436
        %v6445 = vsel %vm6429, %v6417, %v6437
        %v6446 = vsel %vm6430, %v6419, %v6438
        %v6447 = vsel %vm6431, %v6421, %v6439
        %v6448 = vsel %vm6432, %v6423, %v6440
        %v6449 = vlaneseq
        %v6450 = vshrl.u32 %v6449, 7
        %v6451 = vsub.s32 1, %v6450
        %v6452 = vrot.slane %v1004, %v6451
        %v6453 = vlaneseq
        %v6454 = vshrl.u32 %v6453, 7
        %v6455 = vsub.s32 5, %v6454
        %v6456 = vrot.slane %v1004, %v6455
        %v6459 = vlaneseq
        %v6460 = vshrl.u32 %v6459, 7
        %v6461 = vsub.s32 1, %v6460
        %v6462 = vrot.slane %v6452, %v6461
        %v6463 = vlaneseq
        %v6464 = vshrl.u32 %v6463, 7
        %v6465 = vsub.s32 1, %v6464
        %v6466 = vrot.slane %v6456, %v6465
        %v6467 = vmul.f32 %v6441, %v6462
        %v6468 = vmul.f32 %v6442, %v6466
        %v6469 = vmul.f32 %v6443, %v6462
        %v6470 = vmul.f32 %v6444, %v6466
        %v6471 = vmul.f32 %v6445, %v6462
        %v6472 = vmul.f32 %v6446, %v6466
        %v6473 = vmul.f32 %v6447, %v6462
        %v6474 = vmul.f32 %v6448, %v6466
        %v6475 = vlaneseq
        %v6476 = vshrl.u32 %v6475, 7
        %v6477 = vsub.s32 2, %v6476
        %v6478 = vrot.slane %v1004, %v6477
        %v6479 = vlaneseq
        %v6480 = vshrl.u32 %v6479, 7
        %v6481 = vsub.s32 6, %v6480
        %v6482 = vrot.slane %v1004, %v6481
        %v6485 = vlaneseq
        %v6486 = vshrl.u32 %v6485, 7
        %v6487 = vsub.s32 2, %v6486
        %v6488 = vrot.slane %v6478, %v6487
        %v6489 = vlaneseq
        %v6490 = vshrl.u32 %v6489, 7
        %v6491 = vsub.s32 2, %v6490
        %v6492 = vrot.slane %v6482, %v6491
        %v6493 = vadd.f32 %v6467, %v6488
        %v6494 = vadd.f32 %v6468, %v6492
        %v6495 = vadd.f32 %v6469, %v6488
        %v6496 = vadd.f32 %v6470, %v6492
        %v6497 = vadd.f32 %v6471, %v6488
        %v6498 = vadd.f32 %v6472, %v6492
        %v6499 = vadd.f32 %v6473, %v6488
        %v6500 = vadd.f32 %v6474, %v6492
        %v6501 = vrot.slane %v6493, 6
        %v6502 = vsel %vm1218, %v6501, %v6499
        %v6503 = vrot.slane %v6495, 6
        %v6504 = vrot.slane %v6497, 6
        %v6505 = vrot.slane %v6502, 6
        %v6506 = vsel %vm1218, %v6503, %v6501
        %v6507 = vsel %vm1218, %v6504, %v6503
        %v6508 = vsel %vm1218, %v6505, %v6504
        %v6513 = vrot.slane %v6502, 1
        %v6514 = vrot.slane %v6506, 1
        %v6515 = vsel %vm1225, %v6513, %v6514
        %v6516 = vrot.slane %v6507, 1
        %v6517 = vsel %vm1225, %v6514, %v6516
        %v6518 = vrot.slane %v6508, 1
        %v6519 = vsel %vm1225, %v6516, %v6518
        %v6524 = vsel %vm6221, %v6515, 0.0
        %v6525 = vsel %vm6222, %v6517, 0.0
        %v6526 = vsel %vm6223, %v6519, 0.0
        %v6527 = vsel %vm6224, %v6518, 0.0
        %vm6528 = vcmp.ge.s32.totalorder %v6205, 0
        %vm6529 = vcmp.ge.s32.totalorder %v6206, 0
        %vm6530 = vcmp.ge.s32.totalorder %v6207, 0
        %vm6531 = vcmp.ge.s32.totalorder %v6208, 0
        %vm6532 = vcmp.le.s32.totalorder %v6205, 7
        %vm6533 = vcmp.le.s32.totalorder %v6206, 7
        %vm6534 = vcmp.le.s32.totalorder %v6207, 7
        %vm6535 = vcmp.le.s32.totalorder %v6208, 7
        %vm6536 = vmand %vm6528, %vm6532
        %vm6537 = vmand %vm6529, %vm6533
        %vm6538 = vmand %vm6530, %vm6534
        %vm6539 = vmand %vm6531, %vm6535
        %v6540 = vsel %vm6536, %v6493, 0.0
        %v6541 = vsel %vm6537, %v6495, 0.0
        %v6542 = vsel %vm6538, %v6497, 0.0
        %v6543 = vsel %vm6539, %v6499, 0.0
        %v6547 = vrot.slane %v6493, 1
        %v6548 = vrot.slane %v6495, 1
        %v6549 = vsel %vm1225, %v6547, %v6548
        %v6550 = vrot.slane %v6497, 1
        %v6551 = vsel %vm1225, %v6548, %v6550
        %v6552 = vsel %vm1225, %v6550, %v6513
        %v6557 = vsel %vm6260, %v6549, 0.0
        %v6558 = vsel %vm6261, %v6551, 0.0
        %v6559 = vsel %vm6262, %v6552, 0.0
        %v6560 = vsel %vm6263, %v6513, 0.0
        %6565 = vrot.lane.b32.xlu0 %v6540, 64
        %v6566 = vpop.permute.xlu0 %6565
        %6567 = vrot.lane.b32.xlu0 %v6541, 64
        %v6568 = vpop.permute.xlu0 %6567
        %6569 = vrot.lane.b32.xlu0 %v6542, 64
        %v6570 = vpop.permute.xlu0 %6569
        %6571 = vrot.lane.b32.xlu0 %v6543, 64
        %v6572 = vpop.permute.xlu0 %6571
        %v6577 = vsel %vm2138, %v6524, %v6566
        %v6578 = vsel %vm2138, %v6525, %v6568
        %v6579 = vsel %vm2138, %v6526, %v6570
        %v6580 = vsel %vm2138, %v6527, %v6572
        %v6581 = vpack.c.bf16 %v6578, %v6577
        %v6582 = vpack.c.bf16 %v6558, %v6557
        %v6583 = vpack.c.bf16 %v6580, %v6579
        %v6584 = vpack.c.bf16 %v6560, %v6559
        %v6585 = vlaneseq
        %v6586 = vshrl.u32 %v6585, 7
        %v6587 = vsub.s32 0, %v6586
        %v6588 = vrot.slane %v1069, %v6587
        %v6613 = vunpack.c.l.b16 %v1005
        %v6614 = vunpack.c.l.b16 %v1006
        %v6615 = vunpack.c.l.b16 %v1007
        %v6616 = vunpack.c.l.b16 %v1008
        %v6617 = vunpack.c.l.b16 %v1009
        %v6618 = vunpack.c.l.b16 %v1010
        %v6619 = vunpack.c.l.b16 %v1011
        %v6620 = vunpack.c.l.b16 %v1012
        %v6621 = vunpack.c.l.b16 %v1013
        %v6622 = vunpack.c.l.b16 %v1014
        %v6623 = vunpack.c.l.b16 %v1015
        %v6624 = vunpack.c.l.b16 %v1016
        %v6625 = vunpack.c.l.b16 %v1017
        %v6626 = vunpack.c.l.b16 %v1018
        %v6627 = vunpack.c.l.b16 %v1019
        %v6628 = vunpack.c.l.b16 %v1020
        %v6629 = vunpack.c.l.b16 %v1021
        %v6630 = vunpack.c.l.b16 %v1022
        %v6631 = vunpack.c.l.b16 %v1023
        %v6632 = vunpack.c.l.b16 %v1024
        %v6633 = vunpack.c.l.b16 %v1025
        %v6634 = vunpack.c.l.b16 %v1026
        %v6635 = vunpack.c.l.b16 %v1027
        %v6636 = vunpack.c.l.b16 %v1028
        %v6637 = vpack.c.b16 %v6614, %v6613
        %v6638 = vpack.c.b16 %v6616, %v6615
        %v6639 = vpack.c.b16 %v6618, %v6617
        %v6640 = vpack.c.b16 %v6620, %v6619
        %v6641 = vpack.c.b16 %v6622, %v6621
        %v6642 = vpack.c.b16 %v6624, %v6623
        %v6643 = vpack.c.b16 %v6626, %v6625
        %v6644 = vpack.c.b16 %v6628, %v6627
        %v6645 = vpack.c.b16 %v6630, %v6629
        %v6646 = vpack.c.b16 %v6632, %v6631
        %v6647 = vpack.c.b16 %v6634, %v6633
        %v6648 = vpack.c.b16 %v6636, %v6635
        %v6662 = vsel %vm2138, %v6582, 0
        %v6665 = vsel %vm2138, %v6584, 0
        %6667 = vmatprep.subr.bf16.mxu0 0
        %6668 = vmatpush1.bf16.msra.mxu0 %v6637
        %6669 = vmatprep.subr.bf16.mxu0 0
        %6670 = vmatpush1.bf16.msra.mxu0 %v6638
        %6671 = vmatprep.subr.bf16.mxu0 0
        %6672 = vmatpush1.bf16.msra.mxu0 %v6639
        %6673 = vmatprep.subr.bf16.mxu0 0
        %6674 = vmatpush1.bf16.msra.mxu0 %v6640
        %6675 = vmatprep.subr.bf16.mxu0 0
        %6676 = vmatpush1.bf16.msra.mxu0 %v6641
        %6677 = vmatprep.subr.bf16.mxu0 0
        %6678 = vmatpush1.bf16.msra.mxu0 %v6642
        %6679 = vmatprep.subr.bf16.mxu0 0
        %6680 = vmatpush1.bf16.msra.mxu0 %v6643
        %6681 = vmatprep.subr.bf16.mxu0 0
        %6682 = vmatpush1.bf16.msra.mxu0 %v6644
        %6683 = vmatprep.subr.bf16.mxu0 0
        %6684 = vmatpush1.bf16.msra.mxu0 %v6645
        %6685 = vmatprep.subr.bf16.mxu0 0
        %6686 = vmatpush1.bf16.msra.mxu0 %v6646
        %6687 = vmatprep.subr.bf16.mxu0 0
        %6688 = vmatpush1.bf16.msra.mxu0 %v6647
        %6689 = vmatprep.subr.bf16.mxu0 0
        %6690 = vmatpush1.bf16.msra.mxu0 %v6648
        %6691 = vmatprep.subr.bf16.mxu0 0
        %6692 = vmatpush1.bf16.msra.mxu0 0
        %6693 = vmatprep.subr.bf16.mxu0 0
        %6694 = vmatpush1.bf16.msra.mxu0 0
        %6695 = vmatprep.subr.bf16.mxu0 0
        %6696 = vmatpush1.bf16.msra.mxu0 0
        %6697 = vmatprep.subr.bf16.mxu0 0
        %6698 = vmatpush1.bf16.msra.mxu0 0
        %6699 = vmatprep.mubr.bf16.mxu0 %v6662
        %6700 = vmatmul.mubr.bf16.gmra.mrb[0].mxu0 %v6581
        %v6701 = vpop.f32.mrb[0].mxu0
        %v6702 = vadd.f32 %v6588, %v6701
        %v6703 = vpop.f32.mrb[0].mxu0
        %v6704 = vpop.f32.mrb[0].mxu0
        %v6705 = vadd.f32 %v6588, %v6704
        %v6706 = vpop.f32.mrb[0].mxu0
        %6707 = vmatprep.mubr.bf16.mxu0 %v6665
        %6708 = vmatmul.mubr.bf16.gmra.mrb[0].mxu0 %v6583
        %v6709 = vpop.f32.mrb[0].mxu0
        %v6710 = vadd.f32 %v6588, %v6709
        %v6711 = vpop.f32.mrb[0].mxu0
        %v6712 = vpop.f32.mrb[0].mxu0
        %v6713 = vadd.f32 %v6588, %v6712
        %v6714 = vpop.f32.mrb[0].mxu0
        %6715 = vdwg.mxu0
        %vm6716 = vcmp.ge.f32.partialorder %v6702, 0.0
        %vm6717 = vcmp.ge.f32.partialorder %v6705, 0.0
        %vm6718 = vcmp.ge.f32.partialorder %v6710, 0.0
        %vm6719 = vcmp.ge.f32.partialorder %v6713, 0.0
        %v6720 = vmul.f32 %v6702, 0.01
        %v6721 = vmul.f32 %v6705, 0.01
        %v6722 = vmul.f32 %v6710, 0.01
        %v6723 = vmul.f32 %v6713, 0.01
        %v6724 = vsel %vm6716, %v6702, %v6720
        %v6725 = vsel %vm6717, %v6705, %v6721
        %v6726 = vsel %vm6718, %v6710, %v6722
        %v6727 = vsel %vm6719, %v6713, %v6723
        %v6728 = vlaneseq
        %v6729 = vshrl.u32 %v6728, 7
        %v6730 = vsub.s32 1, %v6729
        %v6731 = vrot.slane %v1069, %v6730
        %v6732 = vmul.f32 %v6724, %v6731
        %v6733 = vmul.f32 %v6725, %v6731
        %v6734 = vmul.f32 %v6726, %v6731
        %v6735 = vmul.f32 %v6727, %v6731
        %v6736 = vlaneseq
        %v6737 = vshrl.u32 %v6736, 7
        %v6738 = vsub.s32 2, %v6737
        %v6739 = vrot.slane %v1069, %v6738
        %v6740 = vadd.f32 %v6732, %v6739
        %v6741 = vadd.f32 %v6733, %v6739
        %v6742 = vadd.f32 %v6734, %v6739
        %v6743 = vadd.f32 %v6735, %v6739
        %6745 = vrot.lane.b32.xlu0 %v6493, 64
        %v6746 = vpop.permute.xlu0 %6745
        %6747 = vrot.lane.b32.xlu0 %v6495, 64
        %v6748 = vpop.permute.xlu0 %6747
        %6749 = vrot.lane.b32.xlu0 %v6497, 64
        %v6750 = vpop.permute.xlu0 %6749
        %6751 = vrot.lane.b32.xlu0 %v6499, 64
        %v6752 = vpop.permute.xlu0 %6751
        %v6757 = vrot.slane %v6746, 6
        %v6758 = vsel %vm1218, %v6757, %v6752
        %v6759 = vrot.slane %v6748, 6
        %v6760 = vrot.slane %v6750, 6
        %v6761 = vrot.slane %v6758, 6
        %v6762 = vsel %vm1218, %v6759, %v6757
        %v6763 = vsel %vm1218, %v6760, %v6759
        %v6764 = vsel %vm1218, %v6761, %v6760
        %v6765 = vadd.s32 %v6205, 4294967294
        %v6766 = vadd.s32 %v6206, 4294967294
        %v6767 = vadd.s32 %v6207, 4294967294
        %v6768 = vadd.s32 %v6208, 4294967294
        %vm6769 = vcmp.ge.s32.totalorder %v6765, 0
        %vm6770 = vcmp.ge.s32.totalorder %v6766, 0
        %vm6771 = vcmp.ge.s32.totalorder %v6767, 0
        %vm6772 = vcmp.ge.s32.totalorder %v6768, 0
        %vm6773 = vcmp.le.s32.totalorder %v6765, 7
        %vm6774 = vcmp.le.s32.totalorder %v6766, 7
        %vm6775 = vcmp.le.s32.totalorder %v6767, 7
        %vm6776 = vcmp.le.s32.totalorder %v6768, 7
        %vm6777 = vmand %vm6769, %vm6773
        %vm6778 = vmand %vm6770, %vm6774
        %vm6779 = vmand %vm6771, %vm6775
        %vm6780 = vmand %vm6772, %vm6776
        %v6781 = vsel %vm6777, %v6758, 0.0
        %v6782 = vsel %vm6778, %v6762, 0.0
        %v6783 = vsel %vm6779, %v6763, 0.0
        %v6784 = vsel %vm6780, %v6764, 0.0
        %v6789 = vrot.slane %v6758, 1
        %v6790 = vrot.slane %v6762, 1
        %v6791 = vsel %vm1225, %v6789, %v6790
        %v6792 = vrot.slane %v6763, 1
        %v6793 = vsel %vm1225, %v6790, %v6792
        %v6794 = vrot.slane %v6764, 1
        %v6795 = vsel %vm1225, %v6792, %v6794
        %v6800 = vsel %vm6221, %v6791, 0.0
        %v6801 = vsel %vm6222, %v6793, 0.0
        %v6802 = vsel %vm6223, %v6795, 0.0
        %v6803 = vsel %vm6224, %v6794, 0.0
        %v6804 = vrot.slane %v6746, 1
        %v6805 = vrot.slane %v6748, 1
        %v6806 = vsel %vm1225, %v6804, %v6805
        %v6807 = vrot.slane %v6750, 1
        %v6808 = vsel %vm1225, %v6805, %v6807
        %v6809 = vsel %vm1225, %v6807, %v6789
        %v6814 = vsel %vm6260, %v6806, 0.0
        %v6815 = vsel %vm6261, %v6808, 0.0
        %v6816 = vsel %vm6262, %v6809, 0.0
        %v6817 = vsel %vm6263, %v6789, 0.0
        %v6818 = vadd.s32 %v6205, 2
        %v6819 = vadd.s32 %v6206, 2
        %v6820 = vadd.s32 %v6207, 2
        %v6821 = vadd.s32 %v6208, 2
        %vm6822 = vcmp.ge.s32.totalorder %v6818, 0
        %vm6823 = vcmp.ge.s32.totalorder %v6819, 0
        %vm6824 = vcmp.ge.s32.totalorder %v6820, 0
        %vm6825 = vcmp.ge.s32.totalorder %v6821, 0
        %vm6826 = vcmp.le.s32.totalorder %v6818, 7
        %vm6827 = vcmp.le.s32.totalorder %v6819, 7
        %vm6828 = vcmp.le.s32.totalorder %v6820, 7
        %vm6829 = vcmp.le.s32.totalorder %v6821, 7
        %vm6830 = vmand %vm6822, %vm6826
        %vm6831 = vmand %vm6823, %vm6827
        %vm6832 = vmand %vm6824, %vm6828
        %vm6833 = vmand %vm6825, %vm6829
        %v6834 = vrot.slane %v6746, 2
        %v6835 = vrot.slane %v6748, 2
        %v6836 = vsel %vm1237, %v6834, %v6835
        %v6837 = vrot.slane %v6750, 2
        %v6838 = vsel %vm1237, %v6835, %v6837
        %v6839 = vrot.slane %v6758, 2
        %v6840 = vsel %vm1237, %v6837, %v6839
        %v6845 = vsel %vm6830, %v6836, 0.0
        %v6846 = vsel %vm6831, %v6838, 0.0
        %v6847 = vsel %vm6832, %v6840, 0.0
        %v6848 = vsel %vm6833, %v6839, 0.0
        %6853 = vrot.lane.b32.xlu0 %v6800, 64
        %v6854 = vpop.permute.xlu0 %6853
        %6855 = vrot.lane.b32.xlu0 %v6801, 64
        %v6856 = vpop.permute.xlu0 %6855
        %6857 = vrot.lane.b32.xlu0 %v6802, 64
        %v6858 = vpop.permute.xlu0 %6857
        %6859 = vrot.lane.b32.xlu0 %v6803, 64
        %v6860 = vpop.permute.xlu0 %6859
        %6869 = vrot.lane.b32.xlu0 %v6814, 64
        %v6870 = vpop.permute.xlu0 %6869
        %6871 = vrot.lane.b32.xlu0 %v6815, 64
        %v6872 = vpop.permute.xlu0 %6871
        %6873 = vrot.lane.b32.xlu0 %v6816, 64
        %v6874 = vpop.permute.xlu0 %6873
        %6875 = vrot.lane.b32.xlu0 %v6817, 64
        %v6876 = vpop.permute.xlu0 %6875
        %v6881 = vsel %vm2138, %v6781, %v6854
        %v6882 = vsel %vm2138, %v6782, %v6856
        %v6883 = vsel %vm2138, %v6783, %v6858
        %v6884 = vsel %vm2138, %v6784, %v6860
        %v6885 = vsel %vm2138, %v6566, %v6870
        %v6886 = vsel %vm2138, %v6568, %v6872
        %v6887 = vsel %vm2138, %v6570, %v6874
        %v6888 = vsel %vm2138, %v6572, %v6876
        %v6889 = vpack.c.bf16 %v6882, %v6881
        %v6890 = vpack.c.bf16 %v6886, %v6885
        %v6891 = vpack.c.bf16 %v6846, %v6845
        %v6892 = vpack.c.bf16 %v6884, %v6883
        %v6893 = vpack.c.bf16 %v6888, %v6887
        %v6894 = vpack.c.bf16 %v6848, %v6847
        %v6895 = vlaneseq
        %v6896 = vshrl.u32 %v6895, 7
        %v6897 = vsub.s32 3, %v6896
        %v6898 = vrot.slane %v1069, %v6897
        %v6939 = vunpack.c.l.b16 %v1029
        %v6940 = vunpack.c.l.b16 %v1030
        %v6941 = vunpack.c.l.b16 %v1031
        %v6942 = vunpack.c.l.b16 %v1032
        %v6943 = vunpack.c.l.b16 %v1033
        %v6944 = vunpack.c.l.b16 %v1034
        %v6945 = vunpack.c.l.b16 %v1035
        %v6946 = vunpack.c.l.b16 %v1036
        %v6947 = vunpack.c.l.b16 %v1037
        %v6948 = vunpack.c.l.b16 %v1038
        %v6949 = vunpack.c.l.b16 %v1039
        %v6950 = vunpack.c.l.b16 %v1040
        %v6951 = vunpack.c.l.b16 %v1041
        %v6952 = vunpack.c.l.b16 %v1042
        %v6953 = vunpack.c.l.b16 %v1043
        %v6954 = vunpack.c.l.b16 %v1044
        %v6955 = vunpack.c.l.b16 %v1045
        %v6956 = vunpack.c.l.b16 %v1046
        %v6957 = vunpack.c.l.b16 %v1047
        %v6958 = vunpack.c.l.b16 %v1048
        %v6959 = vunpack.c.l.b16 %v1049
        %v6960 = vunpack.c.l.b16 %v1050
        %v6961 = vunpack.c.l.b16 %v1051
        %v6962 = vunpack.c.l.b16 %v1052
        %v6963 = vunpack.c.l.b16 %v1053
        %v6964 = vunpack.c.l.b16 %v1054
        %v6965 = vunpack.c.l.b16 %v1055
        %v6966 = vunpack.c.l.b16 %v1056
        %v6967 = vunpack.c.l.b16 %v1057
        %v6968 = vunpack.c.l.b16 %v1058
        %v6969 = vunpack.c.l.b16 %v1059
        %v6970 = vunpack.c.l.b16 %v1060
        %v6971 = vunpack.c.l.b16 %v1061
        %v6972 = vunpack.c.l.b16 %v1062
        %v6973 = vunpack.c.l.b16 %v1063
        %v6974 = vunpack.c.l.b16 %v1064
        %v6975 = vunpack.c.l.b16 %v1065
        %v6976 = vunpack.c.l.b16 %v1066
        %v6977 = vunpack.c.l.b16 %v1067
        %v6978 = vunpack.c.l.b16 %v1068
        %v6979 = vpack.c.b16 %v6940, %v6939
        %v6980 = vpack.c.b16 %v6942, %v6941
        %v6981 = vpack.c.b16 %v6944, %v6943
        %v6982 = vpack.c.b16 %v6946, %v6945
        %v6983 = vpack.c.b16 %v6948, %v6947
        %v6984 = vpack.c.b16 %v6950, %v6949
        %v6985 = vpack.c.b16 %v6952, %v6951
        %v6986 = vpack.c.b16 %v6954, %v6953
        %v6987 = vpack.c.b16 %v6956, %v6955
        %v6988 = vpack.c.b16 %v6958, %v6957
        %v6989 = vpack.c.b16 %v6960, %v6959
        %v6990 = vpack.c.b16 %v6962, %v6961
        %v6991 = vpack.c.b16 %v6964, %v6963
        %v6992 = vpack.c.b16 %v6966, %v6965
        %v6993 = vpack.c.b16 %v6968, %v6967
        %v6994 = vpack.c.b16 %v6970, %v6969
        %v6995 = vpack.c.b16 %v6972, %v6971
        %v6996 = vpack.c.b16 %v6974, %v6973
        %v6997 = vpack.c.b16 %v6976, %v6975
        %v6998 = vpack.c.b16 %v6978, %v6977
        %v7020 = vsel %vm2138, %v6891, 0
        %v7023 = vsel %vm2138, %v6894, 0
        %7025 = vmatprep.subr.bf16.mxu0 0
        %7026 = vmatpush1.bf16.msra.mxu0 %v6979
        %7027 = vmatprep.subr.bf16.mxu0 0
        %7028 = vmatpush1.bf16.msra.mxu0 %v6980
        %7029 = vmatprep.subr.bf16.mxu0 0
        %7030 = vmatpush1.bf16.msra.mxu0 %v6981
        %7031 = vmatprep.subr.bf16.mxu0 0
        %7032 = vmatpush1.bf16.msra.mxu0 %v6982
        %7033 = vmatprep.subr.bf16.mxu0 0
        %7034 = vmatpush1.bf16.msra.mxu0 %v6983
        %7035 = vmatprep.subr.bf16.mxu0 0
        %7036 = vmatpush1.bf16.msra.mxu0 %v6984
        %7037 = vmatprep.subr.bf16.mxu0 0
        %7038 = vmatpush1.bf16.msra.mxu0 %v6985
        %7039 = vmatprep.subr.bf16.mxu0 0
        %7040 = vmatpush1.bf16.msra.mxu0 %v6986
        %7041 = vmatprep.subr.bf16.mxu0 0
        %7042 = vmatpush1.bf16.msra.mxu0 %v6987
        %7043 = vmatprep.subr.bf16.mxu0 0
        %7044 = vmatpush1.bf16.msra.mxu0 %v6988
        %7045 = vmatprep.subr.bf16.mxu0 0
        %7046 = vmatpush1.bf16.msra.mxu0 %v6989
        %7047 = vmatprep.subr.bf16.mxu0 0
        %7048 = vmatpush1.bf16.msra.mxu0 %v6990
        %7049 = vmatprep.subr.bf16.mxu0 0
        %7050 = vmatpush1.bf16.msra.mxu0 %v6991
        %7051 = vmatprep.subr.bf16.mxu0 0
        %7052 = vmatpush1.bf16.msra.mxu0 %v6992
        %7053 = vmatprep.subr.bf16.mxu0 0
        %7054 = vmatpush1.bf16.msra.mxu0 %v6993
        %7055 = vmatprep.subr.bf16.mxu0 0
        %7056 = vmatpush1.bf16.msra.mxu0 %v6994
        %7057 = vmatprep.mubr.bf16.mxu0 %v6890
        %7058 = vmatmul.mubr.bf16.gmra.mrb[0].mxu0 %v6889
        %v7059 = vpop.f32.mrb[0].mxu0
        %v7060 = vadd.f32 %v6898, %v7059
        %v7061 = vpop.f32.mrb[0].mxu0
        %v7062 = vpop.f32.mrb[0].mxu0
        %v7063 = vadd.f32 %v6898, %v7062
        %v7064 = vpop.f32.mrb[0].mxu0
        %7065 = vmatprep.mubr.bf16.mxu0 %v6893
        %7066 = vmatmul.mubr.bf16.gmra.mrb[0].mxu0 %v6892
        %v7067 = vpop.f32.mrb[0].mxu0
        %v7068 = vadd.f32 %v6898, %v7067
        %v7069 = vpop.f32.mrb[0].mxu0
        %v7070 = vpop.f32.mrb[0].mxu0
        %v7071 = vadd.f32 %v6898, %v7070
        %v7072 = vpop.f32.mrb[0].mxu0
        %7073 = vdwg.mxu0
        %7074 = vmatprep.subr.bf16.mxu0 0
        %7075 = vmatpush1.bf16.msra.mxu0 %v6995
        %7076 = vmatprep.subr.bf16.mxu0 0
        %7077 = vmatpush1.bf16.msra.mxu0 %v6996
        %7078 = vmatprep.subr.bf16.mxu0 0
        %7079 = vmatpush1.bf16.msra.mxu0 %v6997
        %7080 = vmatprep.subr.bf16.mxu0 0
        %7081 = vmatpush1.bf16.msra.mxu0 %v6998
        %7082 = vmatprep.subr.bf16.mxu0 0
        %7083 = vmatpush1.bf16.msra.mxu0 0
        %7084 = vmatprep.subr.bf16.mxu0 0
        %7085 = vmatpush1.bf16.msra.mxu0 0
        %7086 = vmatprep.subr.bf16.mxu0 0
        %7087 = vmatpush1.bf16.msra.mxu0 0
        %7088 = vmatprep.subr.bf16.mxu0 0
        %7089 = vmatpush1.bf16.msra.mxu0 0
        %7090 = vmatprep.subr.bf16.mxu0 0
        %7091 = vmatpush1.bf16.msra.mxu0 0
        %7092 = vmatprep.subr.bf16.mxu0 0
        %7093 = vmatpush1.bf16.msra.mxu0 0
        %7094 = vmatprep.subr.bf16.mxu0 0
        %7095 = vmatpush1.bf16.msra.mxu0 0
        %7096 = vmatprep.subr.bf16.mxu0 0
        %7097 = vmatpush1.bf16.msra.mxu0 0
        %7098 = vmatprep.subr.bf16.mxu0 0
        %7099 = vmatpush1.bf16.msra.mxu0 0
        %7100 = vmatprep.subr.bf16.mxu0 0
        %7101 = vmatpush1.bf16.msra.mxu0 0
        %7102 = vmatprep.subr.bf16.mxu0 0
        %7103 = vmatpush1.bf16.msra.mxu0 0
        %7104 = vmatprep.subr.bf16.mxu0 0
        %7105 = vmatpush1.bf16.msra.mxu0 0
        %7106 = vmatprep.mubr.bf16.mxu0 0
        %7107 = vmatmul.mubr.bf16.gmra.mrb[0].mxu0 %v7020
        %v7108 = vpop.f32.mrb[0].mxu0
        %v7109 = vadd.f32 %v7060, %v7108
        %v7110 = vpop.f32.mrb[0].mxu0
        %v7111 = vpop.f32.mrb[0].mxu0
        %v7112 = vadd.f32 %v7063, %v7111
        %v7113 = vpop.f32.mrb[0].mxu0
        %7114 = vmatprep.mubr.bf16.mxu0 0
        %7115 = vmatmul.mubr.bf16.gmra.mrb[0].mxu0 %v7023
        %v7116 = vpop.f32.mrb[0].mxu0
        %v7117 = vadd.f32 %v7068, %v7116
        %v7118 = vpop.f32.mrb[0].mxu0
        %v7119 = vpop.f32.mrb[0].mxu0
        %v7120 = vadd.f32 %v7071, %v7119
        %v7121 = vpop.f32.mrb[0].mxu0
        %7122 = vdwg.mxu0
        %vm7123 = vcmp.ge.f32.partialorder %v7109, 0.0
        %vm7124 = vcmp.ge.f32.partialorder %v7112, 0.0
        %vm7125 = vcmp.ge.f32.partialorder %v7117, 0.0
        %vm7126 = vcmp.ge.f32.partialorder %v7120, 0.0
        %v7127 = vmul.f32 %v7109, 0.01
        %v7128 = vmul.f32 %v7112, 0.01
        %v7129 = vmul.f32 %v7117, 0.01
        %v7130 = vmul.f32 %v7120, 0.01
        %v7131 = vsel %vm7123, %v7109, %v7127
        %v7132 = vsel %vm7124, %v7112, %v7128
        %v7133 = vsel %vm7125, %v7117, %v7129
        %v7134 = vsel %vm7126, %v7120, %v7130
        %v7135 = vlaneseq
        %v7136 = vshrl.u32 %v7135, 7
        %v7137 = vsub.s32 4, %v7136
        %v7138 = vrot.slane %v1069, %v7137
        %v7139 = vmul.f32 %v7131, %v7138
        %v7140 = vmul.f32 %v7132, %v7138
        %v7141 = vmul.f32 %v7133, %v7138
        %v7142 = vmul.f32 %v7134, %v7138
        %v7143 = vlaneseq
        %v7144 = vshrl.u32 %v7143, 7
        %v7145 = vsub.s32 5, %v7144
        %v7146 = vrot.slane %v1069, %v7145
        %v7147 = vadd.f32 %v7139, %v7146
        %v7148 = vadd.f32 %v7140, %v7146
        %v7149 = vadd.f32 %v7141, %v7146
        %v7150 = vadd.f32 %v7142, %v7146
        %7155 = vrot.lane.b32.xlu0 %v7147, 64
        %v7156 = vpop.permute.xlu0 %7155
        %7157 = vrot.lane.b32.xlu0 %v7148, 64
        %v7158 = vpop.permute.xlu0 %7157
        %7159 = vrot.lane.b32.xlu0 %v7149, 64
        %v7160 = vpop.permute.xlu0 %7159
        %7161 = vrot.lane.b32.xlu0 %v7150, 64
        %v7162 = vpop.permute.xlu0 %7161
        %v7167 = vsel %vm2138, %v6740, %v7156
        %v7168 = vsel %vm2138, %v6741, %v7158
        %v7169 = vsel %vm2138, %v6742, %v7160
        %v7170 = vsel %vm2138, %v6743, %v7162
        %v7171 = vpack.c.bf16 %v7168, %v7167
        %v7172 = vpack.c.bf16 %v6496, %v6494
        %v7173 = vpack.c.bf16 %v7170, %v7169
        %v7174 = vpack.c.bf16 %v6500, %v6498
        %v7176 = vlaneseq
        %v7177 = vshrl.u32 %v7176, 7
        %v7178 = vsub.s32 0, %v7177
        %v7179 = vrot.slane %v1094, %v7178
        %v7180 = vlaneseq
        %v7181 = vshrl.u32 %v7180, 7
        %v7182 = vsub.s32 1, %v7181
        %v7183 = vrot.slane %v1094, %v7182
        %v7210 = vunpack.c.l.b16 %v1070
        %v7211 = vunpack.c.h.b16 %v1070
        %v7212 = vunpack.c.l.b16 %v1071
        %v7213 = vunpack.c.h.b16 %v1071
        %v7214 = vunpack.c.l.b16 %v1072
        %v7215 = vunpack.c.h.b16 %v1072
        %v7216 = vunpack.c.l.b16 %v1073
        %v7217 = vunpack.c.h.b16 %v1073
        %v7218 = vunpack.c.l.b16 %v1074
        %v7219 = vunpack.c.h.b16 %v1074
        %v7220 = vunpack.c.l.b16 %v1075
        %v7221 = vunpack.c.h.b16 %v1075
        %v7222 = vunpack.c.l.b16 %v1076
        %v7223 = vunpack.c.h.b16 %v1076
        %v7224 = vunpack.c.l.b16 %v1077
        %v7225 = vunpack.c.h.b16 %v1077
        %v7226 = vunpack.c.l.b16 %v1078
        %v7227 = vunpack.c.h.b16 %v1078
        %v7228 = vunpack.c.l.b16 %v1079
        %v7229 = vunpack.c.h.b16 %v1079
        %v7230 = vunpack.c.l.b16 %v1080
        %v7231 = vunpack.c.h.b16 %v1080
        %v7232 = vunpack.c.l.b16 %v1081
        %v7233 = vunpack.c.h.b16 %v1081
        %v7234 = vunpack.c.l.b16 %v1082
        %v7235 = vunpack.c.h.b16 %v1082
        %v7236 = vunpack.c.l.b16 %v1083
        %v7237 = vunpack.c.h.b16 %v1083
        %v7238 = vunpack.c.l.b16 %v1084
        %v7239 = vunpack.c.h.b16 %v1084
        %v7240 = vunpack.c.l.b16 %v1085
        %v7241 = vunpack.c.h.b16 %v1085
        %v7242 = vunpack.c.l.b16 %v1086
        %v7243 = vunpack.c.h.b16 %v1086
        %v7244 = vunpack.c.l.b16 %v1087
        %v7245 = vunpack.c.h.b16 %v1087
        %v7246 = vunpack.c.l.b16 %v1088
        %v7247 = vunpack.c.h.b16 %v1088
        %v7248 = vunpack.c.l.b16 %v1089
        %v7249 = vunpack.c.h.b16 %v1089
        %v7250 = vunpack.c.l.b16 %v1090
        %v7251 = vunpack.c.h.b16 %v1090
        %v7252 = vunpack.c.l.b16 %v1091
        %v7253 = vunpack.c.h.b16 %v1091
        %v7254 = vunpack.c.l.b16 %v1092
        %v7255 = vunpack.c.h.b16 %v1092
        %v7256 = vunpack.c.l.b16 %v1093
        %v7257 = vunpack.c.h.b16 %v1093
        %v7258 = vpack.c.b16 %v7212, %v7210
        %v7259 = vpack.c.b16 %v7213, %v7211
        %v7260 = vpack.c.b16 %v7216, %v7214
        %v7261 = vpack.c.b16 %v7217, %v7215
        %v7262 = vpack.c.b16 %v7220, %v7218
        %v7263 = vpack.c.b16 %v7221, %v7219
        %v7264 = vpack.c.b16 %v7224, %v7222
        %v7265 = vpack.c.b16 %v7225, %v7223
        %v7266 = vpack.c.b16 %v7228, %v7226
        %v7267 = vpack.c.b16 %v7229, %v7227
        %v7268 = vpack.c.b16 %v7232, %v7230
        %v7269 = vpack.c.b16 %v7233, %v7231
        %v7270 = vpack.c.b16 %v7236, %v7234
        %v7271 = vpack.c.b16 %v7237, %v7235
        %v7272 = vpack.c.b16 %v7240, %v7238
        %v7273 = vpack.c.b16 %v7241, %v7239
        %v7274 = vpack.c.b16 %v7244, %v7242
        %v7275 = vpack.c.b16 %v7245, %v7243
        %v7276 = vpack.c.b16 %v7248, %v7246
        %v7277 = vpack.c.b16 %v7249, %v7247
        %v7278 = vpack.c.b16 %v7252, %v7250
        %v7279 = vpack.c.b16 %v7253, %v7251
        %v7280 = vpack.c.b16 %v7256, %v7254
        %v7281 = vpack.c.b16 %v7257, %v7255
        %v7307 = vsel %vm2138, %v7172, 0
        %v7310 = vsel %vm2138, %v7174, 0
        %7312 = vmatprep.subr.bf16.mxu0 %v7259
        %7313 = vmatpush1.bf16.msra.mxu0 %v7258
        %7314 = vmatprep.subr.bf16.mxu0 %v7261
        %7315 = vmatpush1.bf16.msra.mxu0 %v7260
        %7316 = vmatprep.subr.bf16.mxu0 %v7263
        %7317 = vmatpush1.bf16.msra.mxu0 %v7262
        %7318 = vmatprep.subr.bf16.mxu0 %v7265
        %7319 = vmatpush1.bf16.msra.mxu0 %v7264
        %7320 = vmatprep.subr.bf16.mxu0 %v7267
        %7321 = vmatpush1.bf16.msra.mxu0 %v7266
        %7322 = vmatprep.subr.bf16.mxu0 %v7269
        %7323 = vmatpush1.bf16.msra.mxu0 %v7268
        %7324 = vmatprep.subr.bf16.mxu0 %v7271
        %7325 = vmatpush1.bf16.msra.mxu0 %v7270
        %7326 = vmatprep.subr.bf16.mxu0 %v7273
        %7327 = vmatpush1.bf16.msra.mxu0 %v7272
        %7328 = vmatprep.subr.bf16.mxu0 %v7275
        %7329 = vmatpush1.bf16.msra.mxu0 %v7274
        %7330 = vmatprep.subr.bf16.mxu0 %v7277
        %7331 = vmatpush1.bf16.msra.mxu0 %v7276
        %7332 = vmatprep.subr.bf16.mxu0 %v7279
        %7333 = vmatpush1.bf16.msra.mxu0 %v7278
        %7334 = vmatprep.subr.bf16.mxu0 %v7281
        %7335 = vmatpush1.bf16.msra.mxu0 %v7280
        %7336 = vmatprep.subr.bf16.mxu0 0
        %7337 = vmatpush1.bf16.msra.mxu0 0
        %7338 = vmatprep.subr.bf16.mxu0 0
        %7339 = vmatpush1.bf16.msra.mxu0 0
        %7340 = vmatprep.subr.bf16.mxu0 0
        %7341 = vmatpush1.bf16.msra.mxu0 0
        %7342 = vmatprep.subr.bf16.mxu0 0
        %7343 = vmatpush1.bf16.msra.mxu0 0
        %7344 = vmatprep.mubr.bf16.mxu0 %v7307
        %7345 = vmatmul.mubr.bf16.gmra.mrb[0].mxu0 %v7171
        %v7346 = vpop.f32.mrb[0].mxu0
        %v7347 = vadd.f32 %v7179, %v7346
        %v7348 = vpop.f32.mrb[0].mxu0
        %v7349 = vadd.f32 %v7183, %v7348
        %v7350 = vpop.f32.mrb[0].mxu0
        %v7351 = vpop.f32.mrb[0].mxu0
        %7352 = vmatprep.mubr.bf16.mxu0 %v7310
        %7353 = vmatmul.mubr.bf16.gmra.mrb[0].mxu0 %v7173
        %v7354 = vpop.f32.mrb[0].mxu0
        %v7355 = vpop.f32.mrb[0].mxu0
        %v7356 = vpop.f32.mrb[0].mxu0
        %v7357 = vpop.f32.mrb[0].mxu0
        %7358 = vdwg.mxu0
        %v7359 = vlaneseq
        %v7360 = vand.u32 %v7359, 127
        %v7361 = vadd.s32 %v7360, 128
        %vm7362 = vcmp.ge.s32.totalorder %v7360, 128
        %vm7363 = vcmp.ge.s32.totalorder %v7361, 128
        %vm7364 = vcmp.lt.s32.totalorder %v7360, 192
        %vm7365 = vcmp.lt.s32.totalorder %v7361, 192
        %vm7366 = vmand %vm7362, %vm7364
        %vm7367 = vmand %vm7363, %vm7365
        %v7369 = vsel %vm2138, 0.0, 0
        %7371 = vmatprep.subr.mxu0 %v1096
        %7372 = vmatpush1.msra.mxu0 %v1095
        %7373 = vmatprep.subr.mxu0 %v1098
        %7374 = vmatpush1.msra.mxu0 %v1097
        %7375 = vmatprep.subr.mxu0 %v1100
        %7376 = vmatpush1.msra.mxu0 %v1099
        %7377 = vmatprep.subr.mxu0 %v1102
        %7378 = vmatpush1.msra.mxu0 %v1101
        %7379 = vmatprep.subr.mxu0 %v1104
        %7380 = vmatpush1.msra.mxu0 %v1103
        %7381 = vmatprep.subr.mxu0 %v1106
        %7382 = vmatpush1.msra.mxu0 %v1105
        %7383 = vmatprep.subr.mxu0 %v1108
        %7384 = vmatpush1.msra.mxu0 %v1107
        %7385 = vmatprep.subr.mxu0 %v1110
        %7386 = vmatpush1.msra.mxu0 %v1109
        %7387 = vmatprep.subr.mxu0 0.0
        %7388 = vmatpush1.msra.mxu0 0.0
        %7389 = vmatprep.subr.mxu0 0.0
        %7390 = vmatpush1.msra.mxu0 0.0
        %7391 = vmatprep.subr.mxu0 0.0
        %7392 = vmatpush1.msra.mxu0 0.0
        %7393 = vmatprep.subr.mxu0 0.0
        %7394 = vmatpush1.msra.mxu0 0.0
        %7395 = vmatprep.subr.mxu0 0.0
        %7396 = vmatpush1.msra.mxu0 0.0
        %7397 = vmatprep.subr.mxu0 0.0
        %7398 = vmatpush1.msra.mxu0 0.0
        %7399 = vmatprep.subr.mxu0 0.0
        %7400 = vmatpush1.msra.mxu0 0.0
        %7401 = vmatprep.subr.mxu0 0.0
        %7402 = vmatpush1.msra.mxu0 0.0
        %7403 = vmatprep.subr.mxu0 0.0
        %7404 = vmatpush1.msra.mxu0 0.0
        %7405 = vmatprep.subr.mxu0 0.0
        %7406 = vmatpush1.msra.mxu0 0.0
        %7407 = vmatprep.subr.mxu0 0.0
        %7408 = vmatpush1.msra.mxu0 0.0
        %7409 = vmatprep.subr.mxu0 0.0
        %7410 = vmatpush1.msra.mxu0 0.0
        %7411 = vmatprep.subr.mxu0 0.0
        %7412 = vmatpush1.msra.mxu0 0.0
        %7413 = vmatprep.subr.mxu0 0.0
        %7414 = vmatpush1.msra.mxu0 0.0
        %7415 = vmatprep.subr.mxu0 0.0
        %7416 = vmatpush1.msra.mxu0 0.0
        %7417 = vmatprep.subr.mxu0 0.0
        %7418 = vmatpush1.msra.mxu0 0.0
        %7419 = vmatprep.subr.mxu0 0.0
        %7420 = vmatpush1.msra.mxu0 0.0
        %7421 = vmatprep.subr.mxu0 0.0
        %7422 = vmatpush1.msra.mxu0 0.0
        %7423 = vmatprep.subr.mxu0 0.0
        %7424 = vmatpush1.msra.mxu0 0.0
        %7425 = vmatprep.subr.mxu0 0.0
        %7426 = vmatpush1.msra.mxu0 0.0
        %7427 = vmatprep.subr.mxu0 0.0
        %7428 = vmatpush1.msra.mxu0 0.0
        %7429 = vmatprep.subr.mxu0 0.0
        %7430 = vmatpush1.msra.mxu0 0.0
        %7431 = vmatprep.subr.mxu0 0.0
        %7432 = vmatpush1.msra.mxu0 0.0
        %7433 = vmatprep.subr.mxu0 0.0
        %7434 = vmatpush1.msra.mxu0 0.0
        %7435 = vmatprep.mubr.f32.mxu0 0.0
        %7436 = vmatmul.mubr.f32.gmra.mrb[0].mxu0 %v7369
        %v7437 = vpop.f32.mrb[0].mxu0
        %v7438 = vadd.f32 0.0, %v7437
        %v7439 = vpop.f32.mrb[0].mxu0
        %v7440 = vadd.f32 0.0, %v7439
        %7441 = vdwg.mxu0
        %v7442 = vadd.f32 %v7347, %v7438
        %v7443 = vadd.f32 %v7349, %v7440
        %v7444 = vtanh.pop %v7442
        %v7445 = vtanh.pop %v7443
        %v7446 = vxor.u32 %v7442, 2147483648
        %v7447 = vxor.u32 %v7443, 2147483648
        %v7448 = vmul.f32 %v7446, 1.442695
        %v7449 = vpow.pop %v7448
        %v7450 = vmul.f32 %v7447, 1.442695
        %v7451 = vpow.pop %v7450
        %v7452 = vadd.f32 %v7449, 1.0
        %v7453 = vadd.f32 %v7451, 1.0
        %v7454 = vrcp.pop %v7452
        %v7455 = vmul.f32 1.0, %v7454
        %v7456 = vrcp.pop %v7453
        %v7457 = vmul.f32 1.0, %v7456
        %v7458 = vsel %vm7366, %v7444, %v7455
        %v7459 = vsel %vm7367, %v7445, %v7457
        %v7460 = vmul.f32 %v7458, 0.0
        %v7461 = vmul.f32 %v7458, %v7459
        %7463 = vrot.lane.b32.xlu0 %v7461, 64
        %v7464 = vpop.permute.xlu0 %7463
        %v7466 = vadd.f32 %v7460, %v7464
        %v7467 = vtanh.pop %v7466
        %v7468 = vmul.f32 %v7459, %v7467
        %7470 = vrot.lane.b32.xlu0 %v7468, 64
        %v7471 = vpop.permute.xlu0 %7470
        %v7472 = vsel %vm2138, %v7471, 0
        %7474 = vmatprep.subr.mxu0 %v1096
        %7475 = vmatpush1.msra.mxu0 %v1095
        %7476 = vmatprep.subr.mxu0 %v1098
        %7477 = vmatpush1.msra.mxu0 %v1097
        %7478 = vmatprep.subr.mxu0 %v1100
        %7479 = vmatpush1.msra.mxu0 %v1099
        %7480 = vmatprep.subr.mxu0 %v1102
        %7481 = vmatpush1.msra.mxu0 %v1101
        %7482 = vmatprep.subr.mxu0 %v1104
        %7483 = vmatpush1.msra.mxu0 %v1103
        %7484 = vmatprep.subr.mxu0 %v1106
        %7485 = vmatpush1.msra.mxu0 %v1105
        %7486 = vmatprep.subr.mxu0 %v1108
        %7487 = vmatpush1.msra.mxu0 %v1107
        %7488 = vmatprep.subr.mxu0 %v1110
        %7489 = vmatpush1.msra.mxu0 %v1109
        %7490 = vmatprep.subr.mxu0 0.0
        %7491 = vmatpush1.msra.mxu0 0.0
        %7492 = vmatprep.subr.mxu0 0.0
        %7493 = vmatpush1.msra.mxu0 0.0
        %7494 = vmatprep.subr.mxu0 0.0
        %7495 = vmatpush1.msra.mxu0 0.0
        %7496 = vmatprep.subr.mxu0 0.0
        %7497 = vmatpush1.msra.mxu0 0.0
        %7498 = vmatprep.subr.mxu0 0.0
        %7499 = vmatpush1.msra.mxu0 0.0
        %7500 = vmatprep.subr.mxu0 0.0
        %7501 = vmatpush1.msra.mxu0 0.0
        %7502 = vmatprep.subr.mxu0 0.0
        %7503 = vmatpush1.msra.mxu0 0.0
        %7504 = vmatprep.subr.mxu0 0.0
        %7505 = vmatpush1.msra.mxu0 0.0
        %7506 = vmatprep.subr.mxu0 0.0
        %7507 = vmatpush1.msra.mxu0 0.0
        %7508 = vmatprep.subr.mxu0 0.0
        %7509 = vmatpush1.msra.mxu0 0.0
        %7510 = vmatprep.subr.mxu0 0.0
        %7511 = vmatpush1.msra.mxu0 0.0
        %7512 = vmatprep.subr.mxu0 0.0
        %7513 = vmatpush1.msra.mxu0 0.0
        %7514 = vmatprep.subr.mxu0 0.0
        %7515 = vmatpush1.msra.mxu0 0.0
        %7516 = vmatprep.subr.mxu0 0.0
        %7517 = vmatpush1.msra.mxu0 0.0
        %7518 = vmatprep.subr.mxu0 0.0
        %7519 = vmatpush1.msra.mxu0 0.0
        %7520 = vmatprep.subr.mxu0 0.0
        %7521 = vmatpush1.msra.mxu0 0.0
        %7522 = vmatprep.subr.mxu0 0.0
        %7523 = vmatpush1.msra.mxu0 0.0
        %7524 = vmatprep.subr.mxu0 0.0
        %7525 = vmatpush1.msra.mxu0 0.0
        %7526 = vmatprep.subr.mxu0 0.0
        %7527 = vmatpush1.msra.mxu0 0.0
        %7528 = vmatprep.subr.mxu0 0.0
        %7529 = vmatpush1.msra.mxu0 0.0
        %7530 = vmatprep.subr.mxu0 0.0
        %7531 = vmatpush1.msra.mxu0 0.0
        %7532 = vmatprep.subr.mxu0 0.0
        %7533 = vmatpush1.msra.mxu0 0.0
        %7534 = vmatprep.subr.mxu0 0.0
        %7535 = vmatpush1.msra.mxu0 0.0
        %7536 = vmatprep.subr.mxu0 0.0
        %7537 = vmatpush1.msra.mxu0 0.0
        %7538 = vmatprep.mubr.f32.mxu0 0.0
        %7539 = vmatmul.mubr.f32.gmra.mrb[0].mxu0 %v7472
        %v7540 = vpop.f32.mrb[0].mxu0
        %v7541 = vadd.f32 0.0, %v7540
        %v7542 = vpop.f32.mrb[0].mxu0
        %v7543 = vadd.f32 0.0, %v7542
        %7544 = vdwg.mxu0
        %v7547 = vrot.slane %v7541, 7
        %v7548 = vrot.slane %v7543, 7
        %v7551 = vadd.f32 %v7347, %v7547
        %v7552 = vadd.f32 %v7349, %v7548
        %v7553 = vtanh.pop %v7551
        %v7554 = vtanh.pop %v7552
        %v7555 = vxor.u32 %v7551, 2147483648
        %v7556 = vxor.u32 %v7552, 2147483648
        %v7557 = vmul.f32 %v7555, 1.442695
        %v7558 = vpow.pop %v7557
        %v7559 = vmul.f32 %v7556, 1.442695
        %v7560 = vpow.pop %v7559
        %v7561 = vadd.f32 %v7558, 1.0
        %v7562 = vadd.f32 %v7560, 1.0
        %v7563 = vrcp.pop %v7561
        %v7564 = vmul.f32 1.0, %v7563
        %v7565 = vrcp.pop %v7562
        %v7566 = vmul.f32 1.0, %v7565
        %v7567 = vsel %vm7366, %v7553, %v7564
        %v7568 = vsel %vm7367, %v7554, %v7566
        %v7570 = vrot.slane %v7466, 7
        %v7572 = vmul.f32 %v7567, %v7570
        %v7573 = vmul.f32 %v7567, %v7568
        %7575 = vrot.lane.b32.xlu0 %v7573, 64
        %v7576 = vpop.permute.xlu0 %7575
        %v7578 = vadd.f32 %v7572, %v7576
        %v7579 = vtanh.pop %v7578
        %v7580 = vmul.f32 %v7568, %v7579
        %v7582 = vrot.slane %v7580, 1
        %7583 = vrot.lane.b32.xlu0 %v7582, 64
        %v7584 = vpop.permute.xlu0 %7583
        %v7585 = vsel %vm2138, %v7584, 0
        %7587 = vmatprep.subr.mxu0 %v1096
        %7588 = vmatpush1.msra.mxu0 %v1095
        %7589 = vmatprep.subr.mxu0 %v1098
        %7590 = vmatpush1.msra.mxu0 %v1097
        %7591 = vmatprep.subr.mxu0 %v1100
        %7592 = vmatpush1.msra.mxu0 %v1099
        %7593 = vmatprep.subr.mxu0 %v1102
        %7594 = vmatpush1.msra.mxu0 %v1101
        %7595 = vmatprep.subr.mxu0 %v1104
        %7596 = vmatpush1.msra.mxu0 %v1103
        %7597 = vmatprep.subr.mxu0 %v1106
        %7598 = vmatpush1.msra.mxu0 %v1105
        %7599 = vmatprep.subr.mxu0 %v1108
        %7600 = vmatpush1.msra.mxu0 %v1107
        %7601 = vmatprep.subr.mxu0 %v1110
        %7602 = vmatpush1.msra.mxu0 %v1109
        %7603 = vmatprep.subr.mxu0 0.0
        %7604 = vmatpush1.msra.mxu0 0.0
        %7605 = vmatprep.subr.mxu0 0.0
        %7606 = vmatpush1.msra.mxu0 0.0
        %7607 = vmatprep.subr.mxu0 0.0
        %7608 = vmatpush1.msra.mxu0 0.0
        %7609 = vmatprep.subr.mxu0 0.0
        %7610 = vmatpush1.msra.mxu0 0.0
        %7611 = vmatprep.subr.mxu0 0.0
        %7612 = vmatpush1.msra.mxu0 0.0
        %7613 = vmatprep.subr.mxu0 0.0
        %7614 = vmatpush1.msra.mxu0 0.0
        %7615 = vmatprep.subr.mxu0 0.0
        %7616 = vmatpush1.msra.mxu0 0.0
        %7617 = vmatprep.subr.mxu0 0.0
        %7618 = vmatpush1.msra.mxu0 0.0
        %7619 = vmatprep.subr.mxu0 0.0
        %7620 = vmatpush1.msra.mxu0 0.0
        %7621 = vmatprep.subr.mxu0 0.0
        %7622 = vmatpush1.msra.mxu0 0.0
        %7623 = vmatprep.subr.mxu0 0.0
        %7624 = vmatpush1.msra.mxu0 0.0
        %7625 = vmatprep.subr.mxu0 0.0
        %7626 = vmatpush1.msra.mxu0 0.0
        %7627 = vmatprep.subr.mxu0 0.0
        %7628 = vmatpush1.msra.mxu0 0.0
        %7629 = vmatprep.subr.mxu0 0.0
        %7630 = vmatpush1.msra.mxu0 0.0
        %7631 = vmatprep.subr.mxu0 0.0
        %7632 = vmatpush1.msra.mxu0 0.0
        %7633 = vmatprep.subr.mxu0 0.0
        %7634 = vmatpush1.msra.mxu0 0.0
        %7635 = vmatprep.subr.mxu0 0.0
        %7636 = vmatpush1.msra.mxu0 0.0
        %7637 = vmatprep.subr.mxu0 0.0
        %7638 = vmatpush1.msra.mxu0 0.0
        %7639 = vmatprep.subr.mxu0 0.0
        %7640 = vmatpush1.msra.mxu0 0.0
        %7641 = vmatprep.subr.mxu0 0.0
        %7642 = vmatpush1.msra.mxu0 0.0
        %7643 = vmatprep.subr.mxu0 0.0
        %7644 = vmatpush1.msra.mxu0 0.0
        %7645 = vmatprep.subr.mxu0 0.0
        %7646 = vmatpush1.msra.mxu0 0.0
        %7647 = vmatprep.subr.mxu0 0.0
        %7648 = vmatpush1.msra.mxu0 0.0
        %7649 = vmatprep.subr.mxu0 0.0
        %7650 = vmatpush1.msra.mxu0 0.0
        %7651 = vmatprep.mubr.f32.mxu0 0.0
        %7652 = vmatmul.mubr.f32.gmra.mrb[0].mxu0 %v7585
        %v7653 = vpop.f32.mrb[0].mxu0
        %v7654 = vadd.f32 0.0, %v7653
        %v7655 = vpop.f32.mrb[0].mxu0
        %v7656 = vadd.f32 0.0, %v7655
        %7657 = vdwg.mxu0
        %v7660 = vrot.slane %v7654, 6
        %v7661 = vrot.slane %v7656, 6
        %v7664 = vadd.f32 %v7347, %v7660
        %v7665 = vadd.f32 %v7349, %v7661
        %v7666 = vtanh.pop %v7664
        %v7667 = vtanh.pop %v7665
        %v7668 = vxor.u32 %v7664, 2147483648
        %v7669 = vxor.u32 %v7665, 2147483648
        %v7670 = vmul.f32 %v7668, 1.442695
        %v7671 = vpow.pop %v7670
        %v7672 = vmul.f32 %v7669, 1.442695
        %v7673 = vpow.pop %v7672
        %v7674 = vadd.f32 %v7671, 1.0
        %v7675 = vadd.f32 %v7673, 1.0
        %v7676 = vrcp.pop %v7674
        %v7677 = vmul.f32 1.0, %v7676
        %v7678 = vrcp.pop %v7675
        %v7679 = vmul.f32 1.0, %v7678
        %v7680 = vsel %vm7366, %v7666, %v7677
        %v7681 = vsel %vm7367, %v7667, %v7679
        %v7683 = vrot.slane %v7578, 7
        %v7685 = vmul.f32 %v7680, %v7683
        %v7686 = vmul.f32 %v7680, %v7681
        %7688 = vrot.lane.b32.xlu0 %v7686, 64
        %v7689 = vpop.permute.xlu0 %7688
        %v7691 = vadd.f32 %v7685, %v7689
        %v7692 = vtanh.pop %v7691
        %v7693 = vmul.f32 %v7681, %v7692
        %v7695 = vrot.slane %v7693, 2
        %7696 = vrot.lane.b32.xlu0 %v7695, 64
        %v7697 = vpop.permute.xlu0 %7696
        %v7698 = vsel %vm2138, %v7697, 0
        %7700 = vmatprep.subr.mxu0 %v1096
        %7701 = vmatpush1.msra.mxu0 %v1095
        %7702 = vmatprep.subr.mxu0 %v1098
        %7703 = vmatpush1.msra.mxu0 %v1097
        %7704 = vmatprep.subr.mxu0 %v1100
        %7705 = vmatpush1.msra.mxu0 %v1099
        %7706 = vmatprep.subr.mxu0 %v1102
        %7707 = vmatpush1.msra.mxu0 %v1101
        %7708 = vmatprep.subr.mxu0 %v1104
        %7709 = vmatpush1.msra.mxu0 %v1103
        %7710 = vmatprep.subr.mxu0 %v1106
        %7711 = vmatpush1.msra.mxu0 %v1105
        %7712 = vmatprep.subr.mxu0 %v1108
        %7713 = vmatpush1.msra.mxu0 %v1107
        %7714 = vmatprep.subr.mxu0 %v1110
        %7715 = vmatpush1.msra.mxu0 %v1109
        %7716 = vmatprep.subr.mxu0 0.0
        %7717 = vmatpush1.msra.mxu0 0.0
        %7718 = vmatprep.subr.mxu0 0.0
        %7719 = vmatpush1.msra.mxu0 0.0
        %7720 = vmatprep.subr.mxu0 0.0
        %7721 = vmatpush1.msra.mxu0 0.0
        %7722 = vmatprep.subr.mxu0 0.0
        %7723 = vmatpush1.msra.mxu0 0.0
        %7724 = vmatprep.subr.mxu0 0.0
        %7725 = vmatpush1.msra.mxu0 0.0
        %7726 = vmatprep.subr.mxu0 0.0
        %7727 = vmatpush1.msra.mxu0 0.0
        %7728 = vmatprep.subr.mxu0 0.0
        %7729 = vmatpush1.msra.mxu0 0.0
        %7730 = vmatprep.subr.mxu0 0.0
        %7731 = vmatpush1.msra.mxu0 0.0
        %7732 = vmatprep.subr.mxu0 0.0
        %7733 = vmatpush1.msra.mxu0 0.0
        %7734 = vmatprep.subr.mxu0 0.0
        %7735 = vmatpush1.msra.mxu0 0.0
        %7736 = vmatprep.subr.mxu0 0.0
        %7737 = vmatpush1.msra.mxu0 0.0
        %7738 = vmatprep.subr.mxu0 0.0
        %7739 = vmatpush1.msra.mxu0 0.0
        %7740 = vmatprep.subr.mxu0 0.0
        %7741 = vmatpush1.msra.mxu0 0.0
        %7742 = vmatprep.subr.mxu0 0.0
        %7743 = vmatpush1.msra.mxu0 0.0
        %7744 = vmatprep.subr.mxu0 0.0
        %7745 = vmatpush1.msra.mxu0 0.0
        %7746 = vmatprep.subr.mxu0 0.0
        %7747 = vmatpush1.msra.mxu0 0.0
        %7748 = vmatprep.subr.mxu0 0.0
        %7749 = vmatpush1.msra.mxu0 0.0
        %7750 = vmatprep.subr.mxu0 0.0
        %7751 = vmatpush1.msra.mxu0 0.0
        %7752 = vmatprep.subr.mxu0 0.0
        %7753 = vmatpush1.msra.mxu0 0.0
        %7754 = vmatprep.subr.mxu0 0.0
        %7755 = vmatpush1.msra.mxu0 0.0
        %7756 = vmatprep.subr.mxu0 0.0
        %7757 = vmatpush1.msra.mxu0 0.0
        %7758 = vmatprep.subr.mxu0 0.0
        %7759 = vmatpush1.msra.mxu0 0.0
        %7760 = vmatprep.subr.mxu0 0.0
        %7761 = vmatpush1.msra.mxu0 0.0
        %7762 = vmatprep.subr.mxu0 0.0
        %7763 = vmatpush1.msra.mxu0 0.0
        %7764 = vmatprep.mubr.f32.mxu0 0.0
        %7765 = vmatmul.mubr.f32.gmra.mrb[0].mxu0 %v7698
        %v7766 = vpop.f32.mrb[0].mxu0
        %v7767 = vadd.f32 0.0, %v7766
        %v7768 = vpop.f32.mrb[0].mxu0
        %v7769 = vadd.f32 0.0, %v7768
        %7770 = vdwg.mxu0
        %v7773 = vrot.slane %v7767, 5
        %v7774 = vrot.slane %v7769, 5
        %v7777 = vadd.f32 %v7347, %v7773
        %v7778 = vadd.f32 %v7349, %v7774
        %v7779 = vtanh.pop %v7777
        %v7780 = vtanh.pop %v7778
        %v7781 = vxor.u32 %v7777, 2147483648
        %v7782 = vxor.u32 %v7778, 2147483648
        %v7783 = vmul.f32 %v7781, 1.442695
        %v7784 = vpow.pop %v7783
        %v7785 = vmul.f32 %v7782, 1.442695
        %v7786 = vpow.pop %v7785
        %v7787 = vadd.f32 %v7784, 1.0
        %v7788 = vadd.f32 %v7786, 1.0
        %v7789 = vrcp.pop %v7787
        %v7790 = vmul.f32 1.0, %v7789
        %v7791 = vrcp.pop %v7788
        %v7792 = vmul.f32 1.0, %v7791
        %v7793 = vsel %vm7366, %v7779, %v7790
        %v7794 = vsel %vm7367, %v7780, %v7792
        %v7796 = vrot.slane %v7691, 7
        %v7798 = vmul.f32 %v7793, %v7796
        %v7799 = vmul.f32 %v7793, %v7794
        %7801 = vrot.lane.b32.xlu0 %v7799, 64
        %v7802 = vpop.permute.xlu0 %7801
        %v7804 = vadd.f32 %v7798, %v7802
        %v7805 = vtanh.pop %v7804
        %v7806 = vmul.f32 %v7794, %v7805
        %v7808 = vrot.slane %v7806, 3
        %7809 = vrot.lane.b32.xlu0 %v7808, 64
        %v7810 = vpop.permute.xlu0 %7809
        %v7811 = vsel %vm2138, %v7810, 0
        %7813 = vmatprep.subr.mxu0 %v1096
        %7814 = vmatpush1.msra.mxu0 %v1095
        %7815 = vmatprep.subr.mxu0 %v1098
        %7816 = vmatpush1.msra.mxu0 %v1097
        %7817 = vmatprep.subr.mxu0 %v1100
        %7818 = vmatpush1.msra.mxu0 %v1099
        %7819 = vmatprep.subr.mxu0 %v1102
        %7820 = vmatpush1.msra.mxu0 %v1101
        %7821 = vmatprep.subr.mxu0 %v1104
        %7822 = vmatpush1.msra.mxu0 %v1103
        %7823 = vmatprep.subr.mxu0 %v1106
        %7824 = vmatpush1.msra.mxu0 %v1105
        %7825 = vmatprep.subr.mxu0 %v1108
        %7826 = vmatpush1.msra.mxu0 %v1107
        %7827 = vmatprep.subr.mxu0 %v1110
        %7828 = vmatpush1.msra.mxu0 %v1109
        %7829 = vmatprep.subr.mxu0 0.0
        %7830 = vmatpush1.msra.mxu0 0.0
        %7831 = vmatprep.subr.mxu0 0.0
        %7832 = vmatpush1.msra.mxu0 0.0
        %7833 = vmatprep.subr.mxu0 0.0
        %7834 = vmatpush1.msra.mxu0 0.0
        %7835 = vmatprep.subr.mxu0 0.0
        %7836 = vmatpush1.msra.mxu0 0.0
        %7837 = vmatprep.subr.mxu0 0.0
        %7838 = vmatpush1.msra.mxu0 0.0
        %7839 = vmatprep.subr.mxu0 0.0
        %7840 = vmatpush1.msra.mxu0 0.0
        %7841 = vmatprep.subr.mxu0 0.0
        %7842 = vmatpush1.msra.mxu0 0.0
        %7843 = vmatprep.subr.mxu0 0.0
        %7844 = vmatpush1.msra.mxu0 0.0
        %7845 = vmatprep.subr.mxu0 0.0
        %7846 = vmatpush1.msra.mxu0 0.0
        %7847 = vmatprep.subr.mxu0 0.0
        %7848 = vmatpush1.msra.mxu0 0.0
        %7849 = vmatprep.subr.mxu0 0.0
        %7850 = vmatpush1.msra.mxu0 0.0
        %7851 = vmatprep.subr.mxu0 0.0
        %7852 = vmatpush1.msra.mxu0 0.0
        %7853 = vmatprep.subr.mxu0 0.0
        %7854 = vmatpush1.msra.mxu0 0.0
        %7855 = vmatprep.subr.mxu0 0.0
        %7856 = vmatpush1.msra.mxu0 0.0
        %7857 = vmatprep.subr.mxu0 0.0
        %7858 = vmatpush1.msra.mxu0 0.0
        %7859 = vmatprep.subr.mxu0 0.0
        %7860 = vmatpush1.msra.mxu0 0.0
        %7861 = vmatprep.subr.mxu0 0.0
        %7862 = vmatpush1.msra.mxu0 0.0
        %7863 = vmatprep.subr.mxu0 0.0
        %7864 = vmatpush1.msra.mxu0 0.0
        %7865 = vmatprep.subr.mxu0 0.0
        %7866 = vmatpush1.msra.mxu0 0.0
        %7867 = vmatprep.subr.mxu0 0.0
        %7868 = vmatpush1.msra.mxu0 0.0
        %7869 = vmatprep.subr.mxu0 0.0
        %7870 = vmatpush1.msra.mxu0 0.0
        %7871 = vmatprep.subr.mxu0 0.0
        %7872 = vmatpush1.msra.mxu0 0.0
        %7873 = vmatprep.subr.mxu0 0.0
        %7874 = vmatpush1.msra.mxu0 0.0
        %7875 = vmatprep.subr.mxu0 0.0
        %7876 = vmatpush1.msra.mxu0 0.0
        %7877 = vmatprep.mubr.f32.mxu0 0.0
        %7878 = vmatmul.mubr.f32.gmra.mrb[0].mxu0 %v7811
        %v7879 = vpop.f32.mrb[0].mxu0
        %v7880 = vadd.f32 0.0, %v7879
        %v7881 = vpop.f32.mrb[0].mxu0
        %v7882 = vadd.f32 0.0, %v7881
        %7883 = vdwg.mxu0
        %v7886 = vrot.slane %v7880, 4
        %v7887 = vrot.slane %v7882, 4
        %v7890 = vadd.f32 %v7347, %v7886
        %v7891 = vadd.f32 %v7349, %v7887
        %v7892 = vtanh.pop %v7890
        %v7893 = vtanh.pop %v7891
        %v7894 = vxor.u32 %v7890, 2147483648
        %v7895 = vxor.u32 %v7891, 2147483648
        %v7896 = vmul.f32 %v7894, 1.442695
        %v7897 = vpow.pop %v7896
        %v7898 = vmul.f32 %v7895, 1.442695
        %v7899 = vpow.pop %v7898
        %v7900 = vadd.f32 %v7897, 1.0
        %v7901 = vadd.f32 %v7899, 1.0
        %v7902 = vrcp.pop %v7900
        %v7903 = vmul.f32 1.0, %v7902
        %v7904 = vrcp.pop %v7901
        %v7905 = vmul.f32 1.0, %v7904
        %v7906 = vsel %vm7366, %v7892, %v7903
        %v7907 = vsel %vm7367, %v7893, %v7905
        %v7909 = vrot.slane %v7804, 7
        %v7911 = vmul.f32 %v7906, %v7909
        %v7912 = vmul.f32 %v7906, %v7907
        %7914 = vrot.lane.b32.xlu0 %v7912, 64
        %v7915 = vpop.permute.xlu0 %7914
        %v7917 = vadd.f32 %v7911, %v7915
        %v7918 = vtanh.pop %v7917
        %v7919 = vmul.f32 %v7907, %v7918
        %v7921 = vrot.slane %v7919, 4
        %7922 = vrot.lane.b32.xlu0 %v7921, 64
        %v7923 = vpop.permute.xlu0 %7922
        %v7924 = vsel %vm2138, %v7923, 0
        %7926 = vmatprep.subr.mxu0 %v1096
        %7927 = vmatpush1.msra.mxu0 %v1095
        %7928 = vmatprep.subr.mxu0 %v1098
        %7929 = vmatpush1.msra.mxu0 %v1097
        %7930 = vmatprep.subr.mxu0 %v1100
        %7931 = vmatpush1.msra.mxu0 %v1099
        %7932 = vmatprep.subr.mxu0 %v1102
        %7933 = vmatpush1.msra.mxu0 %v1101
        %7934 = vmatprep.subr.mxu0 %v1104
        %7935 = vmatpush1.msra.mxu0 %v1103
        %7936 = vmatprep.subr.mxu0 %v1106
        %7937 = vmatpush1.msra.mxu0 %v1105
        %7938 = vmatprep.subr.mxu0 %v1108
        %7939 = vmatpush1.msra.mxu0 %v1107
        %7940 = vmatprep.subr.mxu0 %v1110
        %7941 = vmatpush1.msra.mxu0 %v1109
        %7942 = vmatprep.subr.mxu0 0.0
        %7943 = vmatpush1.msra.mxu0 0.0
        %7944 = vmatprep.subr.mxu0 0.0
        %7945 = vmatpush1.msra.mxu0 0.0
        %7946 = vmatprep.subr.mxu0 0.0
        %7947 = vmatpush1.msra.mxu0 0.0
        %7948 = vmatprep.subr.mxu0 0.0
        %7949 = vmatpush1.msra.mxu0 0.0
        %7950 = vmatprep.subr.mxu0 0.0
        %7951 = vmatpush1.msra.mxu0 0.0
        %7952 = vmatprep.subr.mxu0 0.0
        %7953 = vmatpush1.msra.mxu0 0.0
        %7954 = vmatprep.subr.mxu0 0.0
        %7955 = vmatpush1.msra.mxu0 0.0
        %7956 = vmatprep.subr.mxu0 0.0
        %7957 = vmatpush1.msra.mxu0 0.0
        %7958 = vmatprep.subr.mxu0 0.0
        %7959 = vmatpush1.msra.mxu0 0.0
        %7960 = vmatprep.subr.mxu0 0.0
        %7961 = vmatpush1.msra.mxu0 0.0
        %7962 = vmatprep.subr.mxu0 0.0
        %7963 = vmatpush1.msra.mxu0 0.0
        %7964 = vmatprep.subr.mxu0 0.0
        %7965 = vmatpush1.msra.mxu0 0.0
        %7966 = vmatprep.subr.mxu0 0.0
        %7967 = vmatpush1.msra.mxu0 0.0
        %7968 = vmatprep.subr.mxu0 0.0
        %7969 = vmatpush1.msra.mxu0 0.0
        %7970 = vmatprep.subr.mxu0 0.0
        %7971 = vmatpush1.msra.mxu0 0.0
        %7972 = vmatprep.subr.mxu0 0.0
        %7973 = vmatpush1.msra.mxu0 0.0
        %7974 = vmatprep.subr.mxu0 0.0
        %7975 = vmatpush1.msra.mxu0 0.0
        %7976 = vmatprep.subr.mxu0 0.0
        %7977 = vmatpush1.msra.mxu0 0.0
        %7978 = vmatprep.subr.mxu0 0.0
        %7979 = vmatpush1.msra.mxu0 0.0
        %7980 = vmatprep.subr.mxu0 0.0
        %7981 = vmatpush1.msra.mxu0 0.0
        %7982 = vmatprep.subr.mxu0 0.0
        %7983 = vmatpush1.msra.mxu0 0.0
        %7984 = vmatprep.subr.mxu0 0.0
        %7985 = vmatpush1.msra.mxu0 0.0
        %7986 = vmatprep.subr.mxu0 0.0
        %7987 = vmatpush1.msra.mxu0 0.0
        %7988 = vmatprep.subr.mxu0 0.0
        %7989 = vmatpush1.msra.mxu0 0.0
        %7990 = vmatprep.mubr.f32.mxu0 0.0
        %7991 = vmatmul.mubr.f32.gmra.mrb[0].mxu0 %v7924
        %v7992 = vpop.f32.mrb[0].mxu0
        %v7993 = vadd.f32 0.0, %v7992
        %v7994 = vpop.f32.mrb[0].mxu0
        %v7995 = vadd.f32 0.0, %v7994
        %7996 = vdwg.mxu0
        %v7999 = vrot.slane %v7993, 3
        %v8000 = vrot.slane %v7995, 3
        %v8003 = vadd.f32 %v7347, %v7999
        %v8004 = vadd.f32 %v7349, %v8000
        %v8005 = vtanh.pop %v8003
        %v8006 = vtanh.pop %v8004
        %v8007 = vxor.u32 %v8003, 2147483648
        %v8008 = vxor.u32 %v8004, 2147483648
        %v8009 = vmul.f32 %v8007, 1.442695
        %v8010 = vpow.pop %v8009
        %v8011 = vmul.f32 %v8008, 1.442695
        %v8012 = vpow.pop %v8011
        %v8013 = vadd.f32 %v8010, 1.0
        %v8014 = vadd.f32 %v8012, 1.0
        %v8015 = vrcp.pop %v8013
        %v8016 = vmul.f32 1.0, %v8015
        %v8017 = vrcp.pop %v8014
        %v8018 = vmul.f32 1.0, %v8017
        %v8019 = vsel %vm7366, %v8005, %v8016
        %v8020 = vsel %vm7367, %v8006, %v8018
        %v8022 = vrot.slane %v7917, 7
        %v8024 = vmul.f32 %v8019, %v8022
        %v8025 = vmul.f32 %v8019, %v8020
        %8027 = vrot.lane.b32.xlu0 %v8025, 64
        %v8028 = vpop.permute.xlu0 %8027
        %v8030 = vadd.f32 %v8024, %v8028
        %v8031 = vtanh.pop %v8030
        %v8032 = vmul.f32 %v8020, %v8031
        %v8034 = vrot.slane %v8032, 5
        %8035 = vrot.lane.b32.xlu0 %v8034, 64
        %v8036 = vpop.permute.xlu0 %8035
        %v8037 = vsel %vm2138, %v8036, 0
        %8039 = vmatprep.subr.mxu0 %v1096
        %8040 = vmatpush1.msra.mxu0 %v1095
        %8041 = vmatprep.subr.mxu0 %v1098
        %8042 = vmatpush1.msra.mxu0 %v1097
        %8043 = vmatprep.subr.mxu0 %v1100
        %8044 = vmatpush1.msra.mxu0 %v1099
        %8045 = vmatprep.subr.mxu0 %v1102
        %8046 = vmatpush1.msra.mxu0 %v1101
        %8047 = vmatprep.subr.mxu0 %v1104
        %8048 = vmatpush1.msra.mxu0 %v1103
        %8049 = vmatprep.subr.mxu0 %v1106
        %8050 = vmatpush1.msra.mxu0 %v1105
        %8051 = vmatprep.subr.mxu0 %v1108
        %8052 = vmatpush1.msra.mxu0 %v1107
        %8053 = vmatprep.subr.mxu0 %v1110
        %8054 = vmatpush1.msra.mxu0 %v1109
        %8055 = vmatprep.subr.mxu0 0.0
        %8056 = vmatpush1.msra.mxu0 0.0
        %8057 = vmatprep.subr.mxu0 0.0
        %8058 = vmatpush1.msra.mxu0 0.0
        %8059 = vmatprep.subr.mxu0 0.0
        %8060 = vmatpush1.msra.mxu0 0.0
        %8061 = vmatprep.subr.mxu0 0.0
        %8062 = vmatpush1.msra.mxu0 0.0
        %8063 = vmatprep.subr.mxu0 0.0
        %8064 = vmatpush1.msra.mxu0 0.0
        %8065 = vmatprep.subr.mxu0 0.0
        %8066 = vmatpush1.msra.mxu0 0.0
        %8067 = vmatprep.subr.mxu0 0.0
        %8068 = vmatpush1.msra.mxu0 0.0
        %8069 = vmatprep.subr.mxu0 0.0
        %8070 = vmatpush1.msra.mxu0 0.0
        %8071 = vmatprep.subr.mxu0 0.0
        %8072 = vmatpush1.msra.mxu0 0.0
        %8073 = vmatprep.subr.mxu0 0.0
        %8074 = vmatpush1.msra.mxu0 0.0
        %8075 = vmatprep.subr.mxu0 0.0
        %8076 = vmatpush1.msra.mxu0 0.0
        %8077 = vmatprep.subr.mxu0 0.0
        %8078 = vmatpush1.msra.mxu0 0.0
        %8079 = vmatprep.subr.mxu0 0.0
        %8080 = vmatpush1.msra.mxu0 0.0
        %8081 = vmatprep.subr.mxu0 0.0
        %8082 = vmatpush1.msra.mxu0 0.0
        %8083 = vmatprep.subr.mxu0 0.0
        %8084 = vmatpush1.msra.mxu0 0.0
        %8085 = vmatprep.subr.mxu0 0.0
        %8086 = vmatpush1.msra.mxu0 0.0
        %8087 = vmatprep.subr.mxu0 0.0
        %8088 = vmatpush1.msra.mxu0 0.0
        %8089 = vmatprep.subr.mxu0 0.0
        %8090 = vmatpush1.msra.mxu0 0.0
        %8091 = vmatprep.subr.mxu0 0.0
        %8092 = vmatpush1.msra.mxu0 0.0
        %8093 = vmatprep.subr.mxu0 0.0
        %8094 = vmatpush1.msra.mxu0 0.0
        %8095 = vmatprep.subr.mxu0 0.0
        %8096 = vmatpush1.msra.mxu0 0.0
        %8097 = vmatprep.subr.mxu0 0.0
        %8098 = vmatpush1.msra.mxu0 0.0
        %8099 = vmatprep.subr.mxu0 0.0
        %8100 = vmatpush1.msra.mxu0 0.0
        %8101 = vmatprep.subr.mxu0 0.0
        %8102 = vmatpush1.msra.mxu0 0.0
        %8103 = vmatprep.mubr.f32.mxu0 0.0
        %8104 = vmatmul.mubr.f32.gmra.mrb[0].mxu0 %v8037
        %v8105 = vpop.f32.mrb[0].mxu0
        %v8106 = vadd.f32 0.0, %v8105
        %v8107 = vpop.f32.mrb[0].mxu0
        %v8108 = vadd.f32 0.0, %v8107
        %8109 = vdwg.mxu0
        %v8112 = vrot.slane %v8106, 2
        %v8113 = vrot.slane %v8108, 2
        %v8116 = vadd.f32 %v7347, %v8112
        %v8117 = vadd.f32 %v7349, %v8113
        %v8118 = vtanh.pop %v8116
        %v8119 = vtanh.pop %v8117
        %v8120 = vxor.u32 %v8116, 2147483648
        %v8121 = vxor.u32 %v8117, 2147483648
        %v8122 = vmul.f32 %v8120, 1.442695
        %v8123 = vpow.pop %v8122
        %v8124 = vmul.f32 %v8121, 1.442695
        %v8125 = vpow.pop %v8124
        %v8126 = vadd.f32 %v8123, 1.0
        %v8127 = vadd.f32 %v8125, 1.0
        %v8128 = vrcp.pop %v8126
        %v8129 = vmul.f32 1.0, %v8128
        %v8130 = vrcp.pop %v8127
        %v8131 = vmul.f32 1.0, %v8130
        %v8132 = vsel %vm7366, %v8118, %v8129
        %v8133 = vsel %vm7367, %v8119, %v8131
        %v8135 = vrot.slane %v8030, 7
        %v8137 = vmul.f32 %v8132, %v8135
        %v8138 = vmul.f32 %v8132, %v8133
        %8140 = vrot.lane.b32.xlu0 %v8138, 64
        %v8141 = vpop.permute.xlu0 %8140
        %v8143 = vadd.f32 %v8137, %v8141
        %v8144 = vtanh.pop %v8143
        %v8145 = vmul.f32 %v8133, %v8144
        %v8147 = vrot.slane %v8145, 6
        %8148 = vrot.lane.b32.xlu0 %v8147, 64
        %v8149 = vpop.permute.xlu0 %8148
        %v8150 = vsel %vm2138, %v8149, 0
        %8152 = vmatprep.subr.mxu0 %v1096
        %8153 = vmatpush1.msra.mxu0 %v1095
        %8154 = vmatprep.subr.mxu0 %v1098
        %8155 = vmatpush1.msra.mxu0 %v1097
        %8156 = vmatprep.subr.mxu0 %v1100
        %8157 = vmatpush1.msra.mxu0 %v1099
        %8158 = vmatprep.subr.mxu0 %v1102
        %8159 = vmatpush1.msra.mxu0 %v1101
        %8160 = vmatprep.subr.mxu0 %v1104
        %8161 = vmatpush1.msra.mxu0 %v1103
        %8162 = vmatprep.subr.mxu0 %v1106
        %8163 = vmatpush1.msra.mxu0 %v1105
        %8164 = vmatprep.subr.mxu0 %v1108
        %8165 = vmatpush1.msra.mxu0 %v1107
        %8166 = vmatprep.subr.mxu0 %v1110
        %8167 = vmatpush1.msra.mxu0 %v1109
        %8168 = vmatprep.subr.mxu0 0.0
        %8169 = vmatpush1.msra.mxu0 0.0
        %8170 = vmatprep.subr.mxu0 0.0
        %8171 = vmatpush1.msra.mxu0 0.0
        %8172 = vmatprep.subr.mxu0 0.0
        %8173 = vmatpush1.msra.mxu0 0.0
        %8174 = vmatprep.subr.mxu0 0.0
        %8175 = vmatpush1.msra.mxu0 0.0
        %8176 = vmatprep.subr.mxu0 0.0
        %8177 = vmatpush1.msra.mxu0 0.0
        %8178 = vmatprep.subr.mxu0 0.0
        %8179 = vmatpush1.msra.mxu0 0.0
        %8180 = vmatprep.subr.mxu0 0.0
        %8181 = vmatpush1.msra.mxu0 0.0
        %8182 = vmatprep.subr.mxu0 0.0
        %8183 = vmatpush1.msra.mxu0 0.0
        %8184 = vmatprep.subr.mxu0 0.0
        %8185 = vmatpush1.msra.mxu0 0.0
        %8186 = vmatprep.subr.mxu0 0.0
        %8187 = vmatpush1.msra.mxu0 0.0
        %8188 = vmatprep.subr.mxu0 0.0
        %8189 = vmatpush1.msra.mxu0 0.0
        %8190 = vmatprep.subr.mxu0 0.0
        %8191 = vmatpush1.msra.mxu0 0.0
        %8192 = vmatprep.subr.mxu0 0.0
        %8193 = vmatpush1.msra.mxu0 0.0
        %8194 = vmatprep.subr.mxu0 0.0
        %8195 = vmatpush1.msra.mxu0 0.0
        %8196 = vmatprep.subr.mxu0 0.0
        %8197 = vmatpush1.msra.mxu0 0.0
        %8198 = vmatprep.subr.mxu0 0.0
        %8199 = vmatpush1.msra.mxu0 0.0
        %8200 = vmatprep.subr.mxu0 0.0
        %8201 = vmatpush1.msra.mxu0 0.0
        %8202 = vmatprep.subr.mxu0 0.0
        %8203 = vmatpush1.msra.mxu0 0.0
        %8204 = vmatprep.subr.mxu0 0.0
        %8205 = vmatpush1.msra.mxu0 0.0
        %8206 = vmatprep.subr.mxu0 0.0
        %8207 = vmatpush1.msra.mxu0 0.0
        %8208 = vmatprep.subr.mxu0 0.0
        %8209 = vmatpush1.msra.mxu0 0.0
        %8210 = vmatprep.subr.mxu0 0.0
        %8211 = vmatpush1.msra.mxu0 0.0
        %8212 = vmatprep.subr.mxu0 0.0
        %8213 = vmatpush1.msra.mxu0 0.0
        %8214 = vmatprep.subr.mxu0 0.0
        %8215 = vmatpush1.msra.mxu0 0.0
        %8216 = vmatprep.mubr.f32.mxu0 0.0
        %8217 = vmatmul.mubr.f32.gmra.mrb[0].mxu0 %v8150
        %v8218 = vpop.f32.mrb[0].mxu0
        %v8219 = vadd.f32 0.0, %v8218
        %v8220 = vpop.f32.mrb[0].mxu0
        %v8221 = vadd.f32 0.0, %v8220
        %8222 = vdwg.mxu0
        %v8225 = vrot.slane %v8219, 1
        %v8226 = vrot.slane %v8221, 1
        %v8229 = vadd.f32 %v7347, %v8225
        %v8230 = vadd.f32 %v7349, %v8226
        %v8231 = vtanh.pop %v8229
        %v8232 = vtanh.pop %v8230
        %v8233 = vxor.u32 %v8229, 2147483648
        %v8234 = vxor.u32 %v8230, 2147483648
        %v8235 = vmul.f32 %v8233, 1.442695
        %v8236 = vpow.pop %v8235
        %v8237 = vmul.f32 %v8234, 1.442695
        %v8238 = vpow.pop %v8237
        %v8239 = vadd.f32 %v8236, 1.0
        %v8240 = vadd.f32 %v8238, 1.0
        %v8241 = vrcp.pop %v8239
        %v8242 = vmul.f32 1.0, %v8241
        %v8243 = vrcp.pop %v8240
        %v8244 = vmul.f32 1.0, %v8243
        %v8245 = vsel %vm7366, %v8231, %v8242
        %v8246 = vsel %vm7367, %v8232, %v8244
        %v8248 = vrot.slane %v8143, 7
        %v8250 = vmul.f32 %v8245, %v8248
        %v8251 = vmul.f32 %v8245, %v8246
        %8253 = vrot.lane.b32.xlu0 %v8251, 64
        %v8254 = vpop.permute.xlu0 %8253
        %v8256 = vadd.f32 %v8250, %v8254
        %v8257 = vtanh.pop %v8256
        %v8258 = vmul.f32 %v8246, %v8257
        %v8260 = vrot.slane %v8258, 7
        %8261 = vrot.lane.b32.xlu0 %v8260, 64
        %v8262 = vpop.permute.xlu0 %8261
        %v8263 = vsel %vm2138, %v8262, 0
        %8265 = vmatprep.subr.mxu0 0.0
        %8266 = vmatpush1.msra.mxu0 %v1111
        %8267 = vmatprep.subr.mxu0 0.0
        %8268 = vmatpush1.msra.mxu0 %v1112
        %8269 = vmatprep.subr.mxu0 0.0
        %8270 = vmatpush1.msra.mxu0 %v1113
        %8271 = vmatprep.subr.mxu0 0.0
        %8272 = vmatpush1.msra.mxu0 %v1114
        %8273 = vmatprep.subr.mxu0 0.0
        %8274 = vmatpush1.msra.mxu0 %v1115
        %8275 = vmatprep.subr.mxu0 0.0
        %8276 = vmatpush1.msra.mxu0 %v1116
        %8277 = vmatprep.subr.mxu0 0.0
        %8278 = vmatpush1.msra.mxu0 %v1117
        %8279 = vmatprep.subr.mxu0 0.0
        %8280 = vmatpush1.msra.mxu0 %v1118
        %8281 = vmatprep.subr.mxu0 0.0
        %8282 = vmatpush1.msra.mxu0 0.0
        %8283 = vmatprep.subr.mxu0 0.0
        %8284 = vmatpush1.msra.mxu0 0.0
        %8285 = vmatprep.subr.mxu0 0.0
        %8286 = vmatpush1.msra.mxu0 0.0
        %8287 = vmatprep.subr.mxu0 0.0
        %8288 = vmatpush1.msra.mxu0 0.0
        %8289 = vmatprep.subr.mxu0 0.0
        %8290 = vmatpush1.msra.mxu0 0.0
        %8291 = vmatprep.subr.mxu0 0.0
        %8292 = vmatpush1.msra.mxu0 0.0
        %8293 = vmatprep.subr.mxu0 0.0
        %8294 = vmatpush1.msra.mxu0 0.0
        %8295 = vmatprep.subr.mxu0 0.0
        %8296 = vmatpush1.msra.mxu0 0.0
        %8297 = vmatprep.subr.mxu0 0.0
        %8298 = vmatpush1.msra.mxu0 0.0
        %8299 = vmatprep.subr.mxu0 0.0
        %8300 = vmatpush1.msra.mxu0 0.0
        %8301 = vmatprep.subr.mxu0 0.0
        %8302 = vmatpush1.msra.mxu0 0.0
        %8303 = vmatprep.subr.mxu0 0.0
        %8304 = vmatpush1.msra.mxu0 0.0
        %8305 = vmatprep.subr.mxu0 0.0
        %8306 = vmatpush1.msra.mxu0 0.0
        %8307 = vmatprep.subr.mxu0 0.0
        %8308 = vmatpush1.msra.mxu0 0.0
        %8309 = vmatprep.subr.mxu0 0.0
        %8310 = vmatpush1.msra.mxu0 0.0
        %8311 = vmatprep.subr.mxu0 0.0
        %8312 = vmatpush1.msra.mxu0 0.0
        %8313 = vmatprep.subr.mxu0 0.0
        %8314 = vmatpush1.msra.mxu0 0.0
        %8315 = vmatprep.subr.mxu0 0.0
        %8316 = vmatpush1.msra.mxu0 0.0
        %8317 = vmatprep.subr.mxu0 0.0
        %8318 = vmatpush1.msra.mxu0 0.0
        %8319 = vmatprep.subr.mxu0 0.0
        %8320 = vmatpush1.msra.mxu0 0.0
        %8321 = vmatprep.subr.mxu0 0.0
        %8322 = vmatpush1.msra.mxu0 0.0
        %8323 = vmatprep.subr.mxu0 0.0
        %8324 = vmatpush1.msra.mxu0 0.0
        %8325 = vmatprep.subr.mxu0 0.0
        %8326 = vmatpush1.msra.mxu0 0.0
        %8327 = vmatprep.subr.mxu0 0.0
        %8328 = vmatpush1.msra.mxu0 0.0
        %8329 = vmatprep.mubr.f32.mxu0 0.0
        %8330 = vmatmul.mubr.f32.gmra.mrb[0].mxu0 %v8263
        %v8331 = vpop.f32.mrb[0].mxu0
        %v8332 = vadd.f32 %v1119, %v8331
        %v8333 = vpop.f32.mrb[0].mxu0
        %8334 = vdwg.mxu0
        %vm8335 = vcmask 16384
        %8336 = vst.msk [vmem:[%s702] sm:$0x1] %vm8335, %v8332
        %s8337 = sand.u32 %s533, 1
        %s8338 = scalar_lea.sflag [#allocation3], %s8337
        %s8339 = sand.u32 %s533, 1
        %s8340 = scalar_lea.vmem [#allocation2], %s8339
        // Predicated region
        $region113: #{deeplob_forward_pallas.1} parent=111 // pred_check
          %p8341 = pneg %p543
        $region114: #{deeplob_forward_pallas.1} parent=111 // pred_check_branch
          %8343 = sbr.rel (%p8341) target = $region116
        $region115: #{deeplob_forward_pallas.1} parent=111 // pred_region
          %s8345 = ssub.s32 16, 16
          %8346 = vsyncadd %s8338, %s8345
          %s8347 = smul.addr %s37, 16
          %s8348 = scalar_lea.hbm %s23, %s8347
          %s8350 = sshll.u32 %s8340, 4
          %s8351 = int_to_ptr.vmem [resolvable:$true] %s8350
          %8353 = dma.vmem_to_hbm [thread:$0]  %s8351, 16, %s8348, %s8338
        $region116: #{deeplob_forward_pallas.1} parent=111 // pred_fallthru
          _
      $region112: #{deeplob_forward_pallas.1} parent=5 // pred_fallthru
        _
      %p8354 = scmp.le.s32.totalorder 2, %s32
      // Predicated region
      $region117: #{deeplob_forward_pallas.1} parent=5 // pred_check
        %p8355 = pneg %p8354
      $region118: #{deeplob_forward_pallas.1} parent=5 // pred_check_branch
        %8357 = sbr.rel (%p8355) target = $region120
      $region119: #{deeplob_forward_pallas.1} parent=5 // pred_region
        %s8358 = ssub.s32 %s32, 2
        // Predicated region
        $region121: #{deeplob_forward_pallas.1} parent=119 // pred_check
          %p8359 = pneg %p549
        $region122: #{deeplob_forward_pallas.1} parent=119 // pred_check_branch
          %8361 = sbr.rel (%p8359) target = $region124
        $region123: #{deeplob_forward_pallas.1} parent=119 // pred_region
          %s8362 = sand.u32 %s534, 1
          %s8363 = scalar_lea.sflag [#allocation3], %s8362
          %s8364 = sand.u32 %s534, 1
          %s8365 = scalar_lea.vmem [#allocation2], %s8364
          %8366 = dma.done %s8363, 16
        $region124: #{deeplob_forward_pallas.1} parent=119 // pred_fallthru
          _
      $region120: #{deeplob_forward_pallas.1} parent=5 // pred_fallthru
        _
    $region6: #{deeplob_forward_pallas.1} parent=1 // loop_footer
      %s36 = sadd.s32 1, %s32
    $region7: #{deeplob_forward_pallas.1} parent=1 // loop_footer_branch
      %31 = sbr.rel target = $region3
    $region8: #{deeplob_forward_pallas.1} parent=1 // loop_exit
      _
    %8367 = vsyncpa [#allocation3], 1
    %s8368 = scalar_lea.sflag [#allocation3], 1
    %8369 = vsyncpa %s8368, 1

</llo_original>
